<compile_context>
chip_gen: v7x
topology: tpu7x:2x2x1
jax: 0.10.0
libtpu: 0.0.40
codegen_flags: <defaults>
</compile_context>

<pallas_src>
import numpy as np

import jax
import jax.numpy as jnp
from jax.experimental import pallas as pl
from jax.experimental.pallas import tpu as pltpu

C = 128                                # padded lane width (== dim_middle)
DIM_MIDDLE = 128
DIM_POLICY = 16
DIM_VALUE = 32
DIM_MAPPING = DIM_POLICY + DIM_VALUE   # 48
DIM_VHEAD = 3                          # value_no_draw = False
DIN = 2                                # 'basic-nostm' -> 2 input planes
BN_EPS = 1e-5
TAPS = ((0, 0), (1, 0), (1, 1))        # LadderConvLayer taps; (0,1) is zero
VALUE_OUT_LANE = 64                    # value head final output lanes 64:67

# torch mish == x * (e^2 + 2e)/(e^2 + 2e + 2), e = exp(x).  approx reciprocal
# uses the cheap EUP vrcp path; set False for closer torch parity.
# TODO(synk): validate 1/128-bucket parity of the approx-reciprocal mish vs torch.
MISH_APPROX_RECIPROCAL = True

_SYM_INDEX = [(0, 4, 0, 4, 0, False), (0, 4, 0, 4, 0, True),
              (0, 4, 3, 7, 1, False), (0, 4, 3, 7, -1, True),
              (3, 7, 3, 7, 2, False), (3, 7, 3, 7, 2, True),
              (3, 7, 0, 4, -1, False), (3, 7, 0, 4, 1, True)]


def _build_gather_index():
    """(8, 32) int32: (symmetry, lane) -> flat index into a (2,7,7) plane.

    lane = (y*4 + x)*2 + c for the symmetry-transformed 4x4 chunk."""
    base = np.arange(DIN * 7 * 7, dtype=np.int32).reshape(DIN, 7, 7)
    rows = []
    for y0, y1, x0, x1, k, t in _SYM_INDEX:
        c = base[:, y0:y1, x0:x1]
        if t:
            c = np.transpose(c, (0, 2, 1))
        c = np.rot90(c, k, axes=(1, 2))
        rows.append(np.transpose(c, (1, 2, 0)).reshape(-1))   # (32,)
    return np.stack(rows).astype(np.int32)                    # (8, 32)


_GATHER_IDX = _build_gather_index()


# ------------------------------------------------------------------ kernel ---
def _flatladder_kernel(x_ref, l0w_ref, lb_ref, lw_ref, cw_ref, cb_ref,
                       pw_ref, pb_ref, vw_ref, vb_ref,
                       out_ref, s9_ref, s4_ref):
    f32 = jnp.float32
    bf16 = jnp.bfloat16
    TB = out_ref.shape[0]
    R = 8 * TB                          # rows per spatial position (sym-major)

    def mm(a, w):                       # MXU matmul, f32 accumulate
        return jnp.dot(a, w, preferred_element_type=f32)

    def mish(v):
        # x * tanh(softplus(x)) == x * (e^2 + 2e) / (e^2 + 2e + 2), e = exp(x)
        # (clamp arg at 30: beyond that tanh(softplus(x)) == 1 in f32)
        e = jnp.exp(jnp.minimum(v, 30.0))
        p = e * (e + 2.0)
        return v * (p * pl.reciprocal(p + 2.0, approx=MISH_APPROX_RECIPROCAL))

    def conv1x1_mish(a_f32, ci):
        # Conv2dBlock(ks=1, norm='bn', activation='mish'); BN pre-folded.
        return mish(mm(a_f32.astype(bf16), cw_ref[ci]) + cb_ref[ci])

    # ---- ladder layer 0 (2 ch, 4x4 -> 3x3) + mish + conv1x1#0 + mish -> s9 ---
    # One (R,32)@(32,1152) dot; lane block q holds output position q = y*3+x.
    y0 = mm(x_ref[...], l0w_ref[...])                          # (R, 1152) f32
    b0 = lb_ref[0]                                             # (1, 128)
    for q in range(9):
        t = mish(y0[:, 128 * q:128 * (q + 1)] + b0)            # (R, 128) f32
        s9_ref[q * R:(q + 1) * R, :] = conv1x1_mish(t, 0).astype(bf16)

    # ---- ladder layer 1 (3x3 -> 2x2) + mish + conv1x1#1 + mish -> s4 ---------
    # Tap inputs for a whole output row are a contiguous (2R,128) slab slice:
    # no gather copies, three accumulating dots per output-row block.
    b1 = lb_ref[1]
    for yo in range(2):
        acc = None
        for t, (dy, dx) in enumerate(TAPS):
            start = ((yo + dy) * 3 + dx) * R
            contrib = mm(s9_ref[start:start + 2 * R, :], lw_ref[t])
            acc = contrib if acc is None else acc + contrib
        h = mish(acc + b1)                                     # (2R, 128) f32
        s4_ref[yo * 2 * R:(yo + 1) * 2 * R, :] = conv1x1_mish(h, 1).astype(bf16)

    # ---- ladder layer 2 (2x2 -> 1x1) + mish + conv1x1#2 + mish ---------------
    b2 = lb_ref[2]
    acc = None
    for t, (dy, dx) in enumerate(TAPS):
        start = (dy * 2 + dx) * R
        contrib = mm(s4_ref[start:start + R, :], lw_ref[3 + t])
        acc = contrib if acc is None else acc + contrib
    u = conv1x1_mish(mish(acc + b2), 2)                        # (R, 128) f32

    # ---- final 1x1 conv (128 -> 48, act none) + clamp + fake_quant(128) ------
    mapped = mm(u.astype(bf16), cw_ref[3]) + cb_ref[3]         # (R, 128) f32
    mapped = jnp.clip(mapped, -1.0, 127.0 / 128.0)
    mapped = jnp.round(mapped * 128.0) * (1.0 / 128.0)

    # ---- feature sum over the 8 symmetries (rows are sym-major) --------------
    feat = mapped[0:TB]
    for s in range(1, 8):
        feat = feat + mapped[s * TB:(s + 1) * TB]              # (TB, 128) f32

    # ---- policy head (f32): 2 LinearBlocks + policy_query.T -> lanes 0:49 ----
    pk = jnp.maximum(mm(feat, pw_ref[0]) + pb_ref[0], 0.0)     # relu
    pk = mm(pk, pw_ref[1]) + pb_ref[1]                         # none
    pol = mm(pk, pw_ref[2])                                    # @ policy_query.T

    # ---- value head (f32): 4 clamp+linear; final layer writes lanes 64:67 ----
    v = feat
    for i in range(4):
        v = jnp.clip(v, 0.0, 127.0 / 128.0)
        v = mm(v, vw_ref[i]) + vb_ref[i]

    # merged output: policy lanes 0:49, value lanes 64:67, rest zero
    out_ref[...] = pol + v


# ----------------------------------------------------------------- wrapper ---
def _choose_tb(batch):
    """Batch tile: multiple of 8, <=128; >=2 grid blocks when batch > 8."""
    def ru8(v):
        return ((v + 7) // 8) * 8
    if batch <= 8:
        return 8
    return min(ru8((batch + 1) // 2), 128)


def _vmem_limit_bytes():
    # ~48 MiB on v7x (64 MiB physical), ~96 MiB on v5e/v6e (128 MiB physical).
    try:
        cap = pltpu.get_tpu_info().vmem_capacity_bytes
    except Exception:
        cap = 64 << 20
    return int(min(cap * 3 // 4, 96 << 20))


def flat_ladder_forward(x, params):
    """x: (B, 2, 7, 7) float32 input planes (NCHW, like the PyTorch module)."""
    B = x.shape[0]
    TB = _choose_tb(B)
    B_pad = -(-B // TB) * TB
    nblk = B_pad // TB
    R = 8 * TB

    # 8-way symmetry extraction as one constant gather; lanes = (y*4+x)*2 + c.
    xf = x.reshape(B, DIN * 49).astype(jnp.float32)
    xg = jnp.take(xf, jnp.asarray(_GATHER_IDX.reshape(-1)), axis=1)
    xg = xg.reshape(B, 8, 32)
    if B_pad != B:
        xg = jnp.pad(xg, ((0, B_pad - B), (0, 0), (0, 0)))
    # rows: (block, sym, batch_local)  ->  row = blk*R + s*TB + b
    xk = (xg.reshape(nblk, TB, 8, 32)
            .transpose(0, 2, 1, 3)
            .reshape(nblk * R, 32)
            .astype(jnp.bfloat16))

    def wspec(arr):
        nd = arr.ndim
        return pl.BlockSpec(arr.shape, lambda i, _nd=nd: (0,) * _nd)

    out = pl.pallas_call(
        _flatladder_kernel,
        out_shape=jax.ShapeDtypeStruct((B_pad, C), jnp.float32),
        grid=(nblk,),
        in_specs=[pl.BlockSpec((R, 32), lambda i: (i, 0)),
                  wspec(params['L0W']), wspec(params['LB']), wspec(params['LW']),
                  wspec(params['CW']), wspec(params['CB']),
                  wspec(params['PW']), wspec(params['PB']),
                  wspec(params['VW']), wspec(params['VB'])],
        out_specs=pl.BlockSpec((TB, C), lambda i: (i, 0)),
        scratch_shapes=[pltpu.VMEM((9 * R, C), jnp.bfloat16),   # 3x3 stage slab
                        pltpu.VMEM((4 * R, C), jnp.bfloat16)],  # 2x2 stage slab
        compiler_params=pltpu.CompilerParams(
            dimension_semantics=("parallel",),
            vmem_limit_bytes=_vmem_limit_bytes()),
    )(xk, params['L0W'], params['LB'], params['LW'], params['CW'], params['CB'],
      params['PW'], params['PB'], params['VW'], params['VB'])

    value = out[:B, VALUE_OUT_LANE:VALUE_OUT_LANE + DIM_VHEAD]  # (B, 3)
    policy = out[:B, :49].reshape(B, 7, 7)                      # (B, 7, 7)
    return value, policy


# --------------------------------------------------------------- parameters --
def make_params(key):
    keys = iter(jax.random.split(key, 64))
    bf16 = jnp.bfloat16

    def nrm(shape, std):
        return jax.random.normal(next(keys), shape, jnp.float32) * std

    def pad_w(w):                       # (in, out) -> (128, 128)
        z = jnp.zeros((C, C), jnp.float32)
        return z.at[:w.shape[0], :w.shape[1]].set(w)

    def pad_b(b, off=0):                # (out,) -> (1, 128) at lane offset
        z = jnp.zeros((1, C), jnp.float32)
        return z.at[0, off:off + b.shape[0]].set(b)

    # Ladder layer 0: torch weight (3, 128, 2), bias zeros.  Folded into nine
    # per-output-position (32, 128) matrices over the lane-packed 4x4x2 input,
    # lane-stacked into a single (32, 1152) matrix (one dot in the kernel).
    w0 = nrm((3, DIM_MIDDLE, DIN), (2.0 / DIN) ** 0.5 * 0.5)
    l0 = []
    for y in range(3):
        for xx in range(3):
            wq = jnp.zeros((32, DIM_MIDDLE), jnp.float32)
            for t, (dy, dx) in enumerate(TAPS):
                p = (y + dy) * 4 + (xx + dx)
                for c in range(DIN):
                    wq = wq.at[2 * p + c].set(w0[t, :, c])
            l0.append(wq)
    L0W = jnp.concatenate(l0, axis=1).astype(bf16)            # (32, 1152)

    # Ladder layers 1, 2 (128 -> 128): (in, out) weights, bf16.
    LW = []
    for _ in range(2):
        w = nrm((3, DIM_MIDDLE, DIM_MIDDLE), (2.0 / DIM_MIDDLE) ** 0.5 * 0.5)
        for t in range(3):
            LW.append(w[t].T)
    LW = jnp.stack(LW).astype(bf16)                           # (6, 128, 128)
    LB = jnp.zeros((3, 1, C), jnp.float32)                    # zero-init biases

    # 1x1 Conv2dBlocks; BatchNorm folded in eval mode into (W, b).
    # TODO(synk): train-mode BatchNorm (per-chunk batch statistics) not reproduced;
    #             eval-mode running-stat folding used instead.
    conv_dims = [(DIM_MIDDLE, DIM_MIDDLE)] * 3 + [(DIM_MIDDLE, DIM_MAPPING)]
    CW, CB = [], []
    for din, dout in conv_dims:
        w = nrm((dout, din), (2.0 / din) ** 0.5 * 0.5)
        b = nrm((dout,), 0.05)
        gamma = 1.0 + nrm((dout,), 0.05)
        beta = nrm((dout,), 0.05)
        mean = nrm((dout,), 0.05)
        var = 1.0 + jnp.abs(nrm((dout,), 0.05))
        scale = gamma / jnp.sqrt(var + BN_EPS)
        CW.append(pad_w((w * scale[:, None]).T))
        CB.append(pad_b((b - mean) * scale + beta))
    CW = jnp.stack(CW).astype(bf16)                           # (4, 128, 128)
    CB = jnp.stack(CB)                                        # (4, 1, 128) f32

    # Policy head: two 16x16 LinearBlocks + (49, 16) query, padded to 128 lanes.
    # Kept f32: tiny FLOP share and the unclamped feature sum is not bf16-exact.
    pw1 = nrm((DIM_POLICY, DIM_POLICY), (1.0 / DIM_POLICY) ** 0.5)
    pb1 = nrm((DIM_POLICY,), 0.05)
    pw2 = nrm((DIM_POLICY, DIM_POLICY), (1.0 / DIM_POLICY) ** 0.5)
    pb2 = nrm((DIM_POLICY,), 0.05)
    pq = nrm((49, DIM_POLICY), 1.0)
    PW = jnp.stack([pad_w(pw1.T), pad_w(pw2.T), pad_w(pq.T)])  # (3,128,128) f32
    PB = jnp.stack([pad_b(pb1), pad_b(pb2)])                   # (2,1,128) f32

    # Value head: 32->32->32->32->3.  First layer reads feature lanes 16:48;
    # the final layer writes output lanes 64:67 so value and policy can share
    # one merged (TB, 128) output block.
    # TODO(synk): LinearBlock(quant=True) weight fake-quantization omitted (float weights).
    v_dims = [(DIM_VALUE, 32), (32, 32), (32, 32), (32, DIM_VHEAD)]
    VW, VB = [], []
    for i, (din, dout) in enumerate(v_dims):
        w = nrm((dout, din), (1.0 / din) ** 0.5)
        b = nrm((dout,), 0.05)
        in_off = DIM_POLICY if i == 0 else 0
        out_off = VALUE_OUT_LANE if i == len(v_dims) - 1 else 0
        wp = (jnp.zeros((C, C), jnp.float32)
                 .at[in_off:in_off + din, out_off:out_off + dout].set(w.T))
        VW.append(wp)
        VB.append(pad_b(b, out_off))
    VW = jnp.stack(VW)                                        # (4,128,128) f32
    VB = jnp.stack(VB)                                        # (4,1,128) f32

    return dict(L0W=L0W, LB=LB, LW=LW, CW=CW, CB=CB, PW=PW, PB=PB, VW=VW, VB=VB)


# -------------------------------------------------------------------- main ---
if __name__ == "__main__":
    key = jax.random.PRNGKey(0)
    kp, kx = jax.random.split(key)
    params = make_params(kp)

    B = 2
    # board-like input planes: (B, 2, 7, 7) in {0, 1}
    x = jax.random.bernoulli(kx, 0.3, (B, DIN, 7, 7)).astype(jnp.float32)

    value, policy = flat_ladder_forward(x, params)
    jax.block_until_ready((value, policy))
    assert value.shape == (B, DIM_VHEAD)
    assert policy.shape == (B, 7, 7)
    print("KERNEL_OK")
</pallas_src>

<mosaic_0001>
module attributes {stable_mosaic.version = 11 : i64} {
  func.func @_flatladder_kernel(%arg0: i32, %arg1: memref<64x32xbf16, #tpu.memory_space<vmem>>, %arg2: memref<32x1152xbf16, #tpu.memory_space<vmem>>, %arg3: memref<3x1x128xf32, #tpu.memory_space<vmem>>, %arg4: memref<6x128x128xbf16, #tpu.memory_space<vmem>>, %arg5: memref<4x128x128xbf16, #tpu.memory_space<vmem>>, %arg6: memref<4x1x128xf32, #tpu.memory_space<vmem>>, %arg7: memref<3x128x128xf32, #tpu.memory_space<vmem>>, %arg8: memref<2x1x128xf32, #tpu.memory_space<vmem>>, %arg9: memref<4x128x128xf32, #tpu.memory_space<vmem>>, %arg10: memref<4x1x128xf32, #tpu.memory_space<vmem>>, %arg11: memref<8x128xf32, #tpu.memory_space<vmem>>, %arg12: memref<576x128xbf16, #tpu.memory_space<vmem>>, %arg13: memref<256x128xbf16, #tpu.memory_space<vmem>>) attributes {dimension_semantics = [#tpu.dimension_semantics<parallel>], iteration_bounds = array<i64: 1>, scalar_prefetch = 0 : i64, scratch_operands = 2 : i64, tpu.core_type = #tpu.core_type<tc>, window_params = [{transform_indices = @transform_0, window_bounds = array<i64: 64, 32>}, {pipeline_mode = #tpu.pipeline_mode<synchronous>, transform_indices = @transform_1, window_bounds = array<i64: 32, 1152>}, {pipeline_mode = #tpu.pipeline_mode<synchronous>, transform_indices = @transform_2, window_bounds = array<i64: 3, 1, 128>}, {pipeline_mode = #tpu.pipeline_mode<synchronous>, transform_indices = @transform_3, window_bounds = array<i64: 6, 128, 128>}, {pipeline_mode = #tpu.pipeline_mode<synchronous>, transform_indices = @transform_4, window_bounds = array<i64: 4, 128, 128>}, {pipeline_mode = #tpu.pipeline_mode<synchronous>, transform_indices = @transform_5, window_bounds = array<i64: 4, 1, 128>}, {pipeline_mode = #tpu.pipeline_mode<synchronous>, transform_indices = @transform_6, window_bounds = array<i64: 3, 128, 128>}, {pipeline_mode = #tpu.pipeline_mode<synchronous>, transform_indices = @transform_7, window_bounds = array<i64: 2, 1, 128>}, {pipeline_mode = #tpu.pipeline_mode<synchronous>, transform_indices = @transform_8, window_bounds = array<i64: 4, 128, 128>}, {pipeline_mode = #tpu.pipeline_mode<synchronous>, transform_indices = @transform_9, window_bounds = array<i64: 4, 1, 128>}, {transform_indices = @transform_10, window_bounds = array<i64: 8, 128>}]} {
    %c0 = arith.constant 0 : index
    %c0_0 = arith.constant 0 : index
    %0 = vector.load %arg1[%c0, %c0_0] : memref<64x32xbf16, #tpu.memory_space<vmem>>, vector<64x32xbf16>
    %c0_1 = arith.constant 0 : index
    %c0_2 = arith.constant 0 : index
    %1 = vector.load %arg2[%c0_1, %c0_2] : memref<32x1152xbf16, #tpu.memory_space<vmem>>, vector<32x1152xbf16>
    %cst = arith.constant dense<0.000000e+00> : vector<64x1152xf32>
    %2 = tpu.matmul %0, %1, %cst {dimension_numbers = #tpu.dot_dimension_numbers<[1], [0], [0], [1], [0, 0, 1, 1], [], []>} : vector<64x32xbf16>, vector<32x1152xbf16>, vector<64x1152xf32> -> vector<64x1152xf32>
    %c0_3 = arith.constant 0 : index
    %c0_4 = arith.constant 0 : index
    %c0_5 = arith.constant 0 : index
    %3 = vector.load %arg3[%c0_3, %c0_4, %c0_5] : memref<3x1x128xf32, #tpu.memory_space<vmem>>, vector<1x1x128xf32>
    %4 = vector.shape_cast %3 : vector<1x1x128xf32> to vector<1x128xf32>
    %5 = vector.extract_strided_slice %2 {offsets = [0, 0], sizes = [64, 128], strides = [1, 1]} : vector<64x1152xf32> to vector<64x128xf32>
    %6 = vector.broadcast %4 : vector<1x128xf32> to vector<64x128xf32>
    %7 = arith.addf %5, %6 : vector<64x128xf32>
    %cst_6 = arith.constant 3.000000e+01 : f32
    %8 = vector.broadcast %cst_6 : f32 to vector<64x128xf32>
    %9 = arith.minimumf %7, %8 : vector<64x128xf32>
    %10 = math.exp %9 : vector<64x128xf32>
    %cst_7 = arith.constant 2.000000e+00 : f32
    %11 = vector.broadcast %cst_7 : f32 to vector<64x128xf32>
    %12 = arith.addf %10, %11 : vector<64x128xf32>
    %13 = arith.mulf %10, %12 : vector<64x128xf32>
    %cst_8 = arith.constant 2.000000e+00 : f32
    %14 = vector.broadcast %cst_8 : f32 to vector<64x128xf32>
    %15 = arith.addf %13, %14 : vector<64x128xf32>
    %16 = tpu.reciprocal %15 {approx = true} : vector<64x128xf32> -> vector<64x128xf32>
    %17 = arith.mulf %13, %16 : vector<64x128xf32>
    %18 = arith.mulf %7, %17 : vector<64x128xf32>
    %19 = arith.truncf %18 : vector<64x128xf32> to vector<64x128xbf16>
    %c0_9 = arith.constant 0 : index
    %c0_10 = arith.constant 0 : index
    %c0_11 = arith.constant 0 : index
    %20 = vector.load %arg5[%c0_9, %c0_10, %c0_11] : memref<4x128x128xbf16, #tpu.memory_space<vmem>>, vector<1x128x128xbf16>
    %21 = vector.shape_cast %20 : vector<1x128x128xbf16> to vector<128x128xbf16>
    %cst_12 = arith.constant dense<0.000000e+00> : vector<64x128xf32>
    %22 = tpu.matmul %19, %21, %cst_12 {dimension_numbers = #tpu.dot_dimension_numbers<[1], [0], [0], [1], [0, 0, 1, 1], [], []>} : vector<64x128xbf16>, vector<128x128xbf16>, vector<64x128xf32> -> vector<64x128xf32>
    %c0_13 = arith.constant 0 : index
    %c0_14 = arith.constant 0 : index
    %c0_15 = arith.constant 0 : index
    %23 = vector.load %arg6[%c0_13, %c0_14, %c0_15] : memref<4x1x128xf32, #tpu.memory_space<vmem>>, vector<1x1x128xf32>
    %24 = vector.shape_cast %23 : vector<1x1x128xf32> to vector<1x128xf32>
    %25 = vector.broadcast %24 : vector<1x128xf32> to vector<64x128xf32>
    %26 = arith.addf %22, %25 : vector<64x128xf32>
    %cst_16 = arith.constant 3.000000e+01 : f32
    %27 = vector.broadcast %cst_16 : f32 to vector<64x128xf32>
    %28 = arith.minimumf %26, %27 : vector<64x128xf32>
    %29 = math.exp %28 : vector<64x128xf32>
    %cst_17 = arith.constant 2.000000e+00 : f32
    %30 = vector.broadcast %cst_17 : f32 to vector<64x128xf32>
    %31 = arith.addf %29, %30 : vector<64x128xf32>
    %32 = arith.mulf %29, %31 : vector<64x128xf32>
    %cst_18 = arith.constant 2.000000e+00 : f32
    %33 = vector.broadcast %cst_18 : f32 to vector<64x128xf32>
    %34 = arith.addf %32, %33 : vector<64x128xf32>
    %35 = tpu.reciprocal %34 {approx = true} : vector<64x128xf32> -> vector<64x128xf32>
    %36 = arith.mulf %32, %35 : vector<64x128xf32>
    %37 = arith.mulf %26, %36 : vector<64x128xf32>
    %38 = arith.truncf %37 : vector<64x128xf32> to vector<64x128xbf16>
    %c0_19 = arith.constant 0 : index
    %c0_20 = arith.constant 0 : index
    %39 = vector.load %arg12[%c0_19, %c0_20] : memref<576x128xbf16, #tpu.memory_space<vmem>>, vector<64x128xbf16>
    tpu.vector_store %arg12[%c0_19, %c0_20], %38 {strides = array<i32>} : memref<576x128xbf16, #tpu.memory_space<vmem>>, vector<64x128xbf16>,
    %40 = vector.extract_strided_slice %2 {offsets = [0, 128], sizes = [64, 128], strides = [1, 1]} : vector<64x1152xf32> to vector<64x128xf32>
    %41 = vector.broadcast %4 : vector<1x128xf32> to vector<64x128xf32>
    %42 = arith.addf %40, %41 : vector<64x128xf32>
    %cst_21 = arith.constant 3.000000e+01 : f32
    %43 = vector.broadcast %cst_21 : f32 to vector<64x128xf32>
    %44 = arith.minimumf %42, %43 : vector<64x128xf32>
    %45 = math.exp %44 : vector<64x128xf32>
    %cst_22 = arith.constant 2.000000e+00 : f32
    %46 = vector.broadcast %cst_22 : f32 to vector<64x128xf32>
    %47 = arith.addf %45, %46 : vector<64x128xf32>
    %48 = arith.mulf %45, %47 : vector<64x128xf32>
    %cst_23 = arith.constant 2.000000e+00 : f32
    %49 = vector.broadcast %cst_23 : f32 to vector<64x128xf32>
    %50 = arith.addf %48, %49 : vector<64x128xf32>
    %51 = tpu.reciprocal %50 {approx = true} : vector<64x128xf32> -> vector<64x128xf32>
    %52 = arith.mulf %48, %51 : vector<64x128xf32>
    %53 = arith.mulf %42, %52 : vector<64x128xf32>
    %54 = arith.truncf %53 : vector<64x128xf32> to vector<64x128xbf16>
    %c0_24 = arith.constant 0 : index
    %c0_25 = arith.constant 0 : index
    %c0_26 = arith.constant 0 : index
    %55 = vector.load %arg5[%c0_24, %c0_25, %c0_26] : memref<4x128x128xbf16, #tpu.memory_space<vmem>>, vector<1x128x128xbf16>
    %56 = vector.shape_cast %55 : vector<1x128x128xbf16> to vector<128x128xbf16>
    %cst_27 = arith.constant dense<0.000000e+00> : vector<64x128xf32>
    %57 = tpu.matmul %54, %56, %cst_27 {dimension_numbers = #tpu.dot_dimension_numbers<[1], [0], [0], [1], [0, 0, 1, 1], [], []>} : vector<64x128xbf16>, vector<128x128xbf16>, vector<64x128xf32> -> vector<64x128xf32>
    %c0_28 = arith.constant 0 : index
    %c0_29 = arith.constant 0 : index
    %c0_30 = arith.constant 0 : index
    %58 = vector.load %arg6[%c0_28, %c0_29, %c0_30] : memref<4x1x128xf32, #tpu.memory_space<vmem>>, vector<1x1x128xf32>
    %59 = vector.shape_cast %58 : vector<1x1x128xf32> to vector<1x128xf32>
    %60 = vector.broadcast %59 : vector<1x128xf32> to vector<64x128xf32>
    %61 = arith.addf %57, %60 : vector<64x128xf32>
    %cst_31 = arith.constant 3.000000e+01 : f32
    %62 = vector.broadcast %cst_31 : f32 to vector<64x128xf32>
    %63 = arith.minimumf %61, %62 : vector<64x128xf32>
    %64 = math.exp %63 : vector<64x128xf32>
    %cst_32 = arith.constant 2.000000e+00 : f32
    %65 = vector.broadcast %cst_32 : f32 to vector<64x128xf32>
    %66 = arith.addf %64, %65 : vector<64x128xf32>
    %67 = arith.mulf %64, %66 : vector<64x128xf32>
    %cst_33 = arith.constant 2.000000e+00 : f32
    %68 = vector.broadcast %cst_33 : f32 to vector<64x128xf32>
    %69 = arith.addf %67, %68 : vector<64x128xf32>
    %70 = tpu.reciprocal %69 {approx = true} : vector<64x128xf32> -> vector<64x128xf32>
    %71 = arith.mulf %67, %70 : vector<64x128xf32>
    %72 = arith.mulf %61, %71 : vector<64x128xf32>
    %73 = arith.truncf %72 : vector<64x128xf32> to vector<64x128xbf16>
    %c64 = arith.constant 64 : index
    %c0_34 = arith.constant 0 : index
    %74 = vector.load %arg12[%c64, %c0_34] : memref<576x128xbf16, #tpu.memory_space<vmem>>, vector<64x128xbf16>
    tpu.vector_store %arg12[%c64, %c0_34], %73 {strides = array<i32>} : memref<576x128xbf16, #tpu.memory_space<vmem>>, vector<64x128xbf16>,
    %75 = vector.extract_strided_slice %2 {offsets = [0, 256], sizes = [64, 128], strides = [1, 1]} : vector<64x1152xf32> to vector<64x128xf32>
    %76 = vector.broadcast %4 : vector<1x128xf32> to vector<64x128xf32>
    %77 = arith.addf %75, %76 : vector<64x128xf32>
    %cst_35 = arith.constant 3.000000e+01 : f32
    %78 = vector.broadcast %cst_35 : f32 to vector<64x128xf32>
    %79 = arith.minimumf %77, %78 : vector<64x128xf32>
    %80 = math.exp %79 : vector<64x128xf32>
    %cst_36 = arith.constant 2.000000e+00 : f32
    %81 = vector.broadcast %cst_36 : f32 to vector<64x128xf32>
    %82 = arith.addf %80, %81 : vector<64x128xf32>
    %83 = arith.mulf %80, %82 : vector<64x128xf32>
    %cst_37 = arith.constant 2.000000e+00 : f32
    %84 = vector.broadcast %cst_37 : f32 to vector<64x128xf32>
    %85 = arith.addf %83, %84 : vector<64x128xf32>
    %86 = tpu.reciprocal %85 {approx = true} : vector<64x128xf32> -> vector<64x128xf32>
    %87 = arith.mulf %83, %86 : vector<64x128xf32>
    %88 = arith.mulf %77, %87 : vector<64x128xf32>
    %89 = arith.truncf %88 : vector<64x128xf32> to vector<64x128xbf16>
    %c0_38 = arith.constant 0 : index
    %c0_39 = arith.constant 0 : index
    %c0_40 = arith.constant 0 : index
    %90 = vector.load %arg5[%c0_38, %c0_39, %c0_40] : memref<4x128x128xbf16, #tpu.memory_space<vmem>>, vector<1x128x128xbf16>
    %91 = vector.shape_cast %90 : vector<1x128x128xbf16> to vector<128x128xbf16>
    %cst_41 = arith.constant dense<0.000000e+00> : vector<64x128xf32>
    %92 = tpu.matmul %89, %91, %cst_41 {dimension_numbers = #tpu.dot_dimension_numbers<[1], [0], [0], [1], [0, 0, 1, 1], [], []>} : vector<64x128xbf16>, vector<128x128xbf16>, vector<64x128xf32> -> vector<64x128xf32>
    %c0_42 = arith.constant 0 : index
    %c0_43 = arith.constant 0 : index
    %c0_44 = arith.constant 0 : index
    %93 = vector.load %arg6[%c0_42, %c0_43, %c0_44] : memref<4x1x128xf32, #tpu.memory_space<vmem>>, vector<1x1x128xf32>
    %94 = vector.shape_cast %93 : vector<1x1x128xf32> to vector<1x128xf32>
    %95 = vector.broadcast %94 : vector<1x128xf32> to vector<64x128xf32>
    %96 = arith.addf %92, %95 : vector<64x128xf32>
    %cst_45 = arith.constant 3.000000e+01 : f32
    %97 = vector.broadcast %cst_45 : f32 to vector<64x128xf32>
    %98 = arith.minimumf %96, %97 : vector<64x128xf32>
    %99 = math.exp %98 : vector<64x128xf32>
    %cst_46 = arith.constant 2.000000e+00 : f32
    %100 = vector.broadcast %cst_46 : f32 to vector<64x128xf32>
    %101 = arith.addf %99, %100 : vector<64x128xf32>
    %102 = arith.mulf %99, %101 : vector<64x128xf32>
    %cst_47 = arith.constant 2.000000e+00 : f32
    %103 = vector.broadcast %cst_47 : f32 to vector<64x128xf32>
    %104 = arith.addf %102, %103 : vector<64x128xf32>
    %105 = tpu.reciprocal %104 {approx = true} : vector<64x128xf32> -> vector<64x128xf32>
    %106 = arith.mulf %102, %105 : vector<64x128xf32>
    %107 = arith.mulf %96, %106 : vector<64x128xf32>
    %108 = arith.truncf %107 : vector<64x128xf32> to vector<64x128xbf16>
    %c128 = arith.constant 128 : index
    %c0_48 = arith.constant 0 : index
    %109 = vector.load %arg12[%c128, %c0_48] : memref<576x128xbf16, #tpu.memory_space<vmem>>, vector<64x128xbf16>
    tpu.vector_store %arg12[%c128, %c0_48], %108 {strides = array<i32>} : memref<576x128xbf16, #tpu.memory_space<vmem>>, vector<64x128xbf16>,
    %110 = vector.extract_strided_slice %2 {offsets = [0, 384], sizes = [64, 128], strides = [1, 1]} : vector<64x1152xf32> to vector<64x128xf32>
    %111 = vector.broadcast %4 : vector<1x128xf32> to vector<64x128xf32>
    %112 = arith.addf %110, %111 : vector<64x128xf32>
    %cst_49 = arith.constant 3.000000e+01 : f32
    %113 = vector.broadcast %cst_49 : f32 to vector<64x128xf32>
    %114 = arith.minimumf %112, %113 : vector<64x128xf32>
    %115 = math.exp %114 : vector<64x128xf32>
    %cst_50 = arith.constant 2.000000e+00 : f32
    %116 = vector.broadcast %cst_50 : f32 to vector<64x128xf32>
    %117 = arith.addf %115, %116 : vector<64x128xf32>
    %118 = arith.mulf %115, %117 : vector<64x128xf32>
    %cst_51 = arith.constant 2.000000e+00 : f32
    %119 = vector.broadcast %cst_51 : f32 to vector<64x128xf32>
    %120 = arith.addf %118, %119 : vector<64x128xf32>
    %121 = tpu.reciprocal %120 {approx = true} : vector<64x128xf32> -> vector<64x128xf32>
    %122 = arith.mulf %118, %121 : vector<64x128xf32>
    %123 = arith.mulf %112, %122 : vector<64x128xf32>
    %124 = arith.truncf %123 : vector<64x128xf32> to vector<64x128xbf16>
    %c0_52 = arith.constant 0 : index
    %c0_53 = arith.constant 0 : index
    %c0_54 = arith.constant 0 : index
    %125 = vector.load %arg5[%c0_52, %c0_53, %c0_54] : memref<4x128x128xbf16, #tpu.memory_space<vmem>>, vector<1x128x128xbf16>
    %126 = vector.shape_cast %125 : vector<1x128x128xbf16> to vector<128x128xbf16>
    %cst_55 = arith.constant dense<0.000000e+00> : vector<64x128xf32>
    %127 = tpu.matmul %124, %126, %cst_55 {dimension_numbers = #tpu.dot_dimension_numbers<[1], [0], [0], [1], [0, 0, 1, 1], [], []>} : vector<64x128xbf16>, vector<128x128xbf16>, vector<64x128xf32> -> vector<64x128xf32>
    %c0_56 = arith.constant 0 : index
    %c0_57 = arith.constant 0 : index
    %c0_58 = arith.constant 0 : index
    %128 = vector.load %arg6[%c0_56, %c0_57, %c0_58] : memref<4x1x128xf32, #tpu.memory_space<vmem>>, vector<1x1x128xf32>
    %129 = vector.shape_cast %128 : vector<1x1x128xf32> to vector<1x128xf32>
    %130 = vector.broadcast %129 : vector<1x128xf32> to vector<64x128xf32>
    %131 = arith.addf %127, %130 : vector<64x128xf32>
    %cst_59 = arith.constant 3.000000e+01 : f32
    %132 = vector.broadcast %cst_59 : f32 to vector<64x128xf32>
    %133 = arith.minimumf %131, %132 : vector<64x128xf32>
    %134 = math.exp %133 : vector<64x128xf32>
    %cst_60 = arith.constant 2.000000e+00 : f32
    %135 = vector.broadcast %cst_60 : f32 to vector<64x128xf32>
    %136 = arith.addf %134, %135 : vector<64x128xf32>
    %137 = arith.mulf %134, %136 : vector<64x128xf32>
    %cst_61 = arith.constant 2.000000e+00 : f32
    %138 = vector.broadcast %cst_61 : f32 to vector<64x128xf32>
    %139 = arith.addf %137, %138 : vector<64x128xf32>
    %140 = tpu.reciprocal %139 {approx = true} : vector<64x128xf32> -> vector<64x128xf32>
    %141 = arith.mulf %137, %140 : vector<64x128xf32>
    %142 = arith.mulf %131, %141 : vector<64x128xf32>
    %143 = arith.truncf %142 : vector<64x128xf32> to vector<64x128xbf16>
    %c192 = arith.constant 192 : index
    %c0_62 = arith.constant 0 : index
    %144 = vector.load %arg12[%c192, %c0_62] : memref<576x128xbf16, #tpu.memory_space<vmem>>, vector<64x128xbf16>
    tpu.vector_store %arg12[%c192, %c0_62], %143 {strides = array<i32>} : memref<576x128xbf16, #tpu.memory_space<vmem>>, vector<64x128xbf16>,
    %145 = vector.extract_strided_slice %2 {offsets = [0, 512], sizes = [64, 128], strides = [1, 1]} : vector<64x1152xf32> to vector<64x128xf32>
    %146 = vector.broadcast %4 : vector<1x128xf32> to vector<64x128xf32>
    %147 = arith.addf %145, %146 : vector<64x128xf32>
    %cst_63 = arith.constant 3.000000e+01 : f32
    %148 = vector.broadcast %cst_63 : f32 to vector<64x128xf32>
    %149 = arith.minimumf %147, %148 : vector<64x128xf32>
    %150 = math.exp %149 : vector<64x128xf32>
    %cst_64 = arith.constant 2.000000e+00 : f32
    %151 = vector.broadcast %cst_64 : f32 to vector<64x128xf32>
    %152 = arith.addf %150, %151 : vector<64x128xf32>
    %153 = arith.mulf %150, %152 : vector<64x128xf32>
    %cst_65 = arith.constant 2.000000e+00 : f32
    %154 = vector.broadcast %cst_65 : f32 to vector<64x128xf32>
    %155 = arith.addf %153, %154 : vector<64x128xf32>
    %156 = tpu.reciprocal %155 {approx = true} : vector<64x128xf32> -> vector<64x128xf32>
    %157 = arith.mulf %153, %156 : vector<64x128xf32>
    %158 = arith.mulf %147, %157 : vector<64x128xf32>
    %159 = arith.truncf %158 : vector<64x128xf32> to vector<64x128xbf16>
    %c0_66 = arith.constant 0 : index
    %c0_67 = arith.constant 0 : index
    %c0_68 = arith.constant 0 : index
    %160 = vector.load %arg5[%c0_66, %c0_67, %c0_68] : memref<4x128x128xbf16, #tpu.memory_space<vmem>>, vector<1x128x128xbf16>
    %161 = vector.shape_cast %160 : vector<1x128x128xbf16> to vector<128x128xbf16>
    %cst_69 = arith.constant dense<0.000000e+00> : vector<64x128xf32>
    %162 = tpu.matmul %159, %161, %cst_69 {dimension_numbers = #tpu.dot_dimension_numbers<[1], [0], [0], [1], [0, 0, 1, 1], [], []>} : vector<64x128xbf16>, vector<128x128xbf16>, vector<64x128xf32> -> vector<64x128xf32>
    %c0_70 = arith.constant 0 : index
    %c0_71 = arith.constant 0 : index
    %c0_72 = arith.constant 0 : index
    %163 = vector.load %arg6[%c0_70, %c0_71, %c0_72] : memref<4x1x128xf32, #tpu.memory_space<vmem>>, vector<1x1x128xf32>
    %164 = vector.shape_cast %163 : vector<1x1x128xf32> to vector<1x128xf32>
    %165 = vector.broadcast %164 : vector<1x128xf32> to vector<64x128xf32>
    %166 = arith.addf %162, %165 : vector<64x128xf32>
    %cst_73 = arith.constant 3.000000e+01 : f32
    %167 = vector.broadcast %cst_73 : f32 to vector<64x128xf32>
    %168 = arith.minimumf %166, %167 : vector<64x128xf32>
    %169 = math.exp %168 : vector<64x128xf32>
    %cst_74 = arith.constant 2.000000e+00 : f32
    %170 = vector.broadcast %cst_74 : f32 to vector<64x128xf32>
    %171 = arith.addf %169, %170 : vector<64x128xf32>
    %172 = arith.mulf %169, %171 : vector<64x128xf32>
    %cst_75 = arith.constant 2.000000e+00 : f32
    %173 = vector.broadcast %cst_75 : f32 to vector<64x128xf32>
    %174 = arith.addf %172, %173 : vector<64x128xf32>
    %175 = tpu.reciprocal %174 {approx = true} : vector<64x128xf32> -> vector<64x128xf32>
    %176 = arith.mulf %172, %175 : vector<64x128xf32>
    %177 = arith.mulf %166, %176 : vector<64x128xf32>
    %178 = arith.truncf %177 : vector<64x128xf32> to vector<64x128xbf16>
    %c256 = arith.constant 256 : index
    %c0_76 = arith.constant 0 : index
    %179 = vector.load %arg12[%c256, %c0_76] : memref<576x128xbf16, #tpu.memory_space<vmem>>, vector<64x128xbf16>
    tpu.vector_store %arg12[%c256, %c0_76], %178 {strides = array<i32>} : memref<576x128xbf16, #tpu.memory_space<vmem>>, vector<64x128xbf16>,
    %180 = vector.extract_strided_slice %2 {offsets = [0, 640], sizes = [64, 128], strides = [1, 1]} : vector<64x1152xf32> to vector<64x128xf32>
    %181 = vector.broadcast %4 : vector<1x128xf32> to vector<64x128xf32>
    %182 = arith.addf %180, %181 : vector<64x128xf32>
    %cst_77 = arith.constant 3.000000e+01 : f32
    %183 = vector.broadcast %cst_77 : f32 to vector<64x128xf32>
    %184 = arith.minimumf %182, %183 : vector<64x128xf32>
    %185 = math.exp %184 : vector<64x128xf32>
    %cst_78 = arith.constant 2.000000e+00 : f32
    %186 = vector.broadcast %cst_78 : f32 to vector<64x128xf32>
    %187 = arith.addf %185, %186 : vector<64x128xf32>
    %188 = arith.mulf %185, %187 : vector<64x128xf32>
    %cst_79 = arith.constant 2.000000e+00 : f32
    %189 = vector.broadcast %cst_79 : f32 to vector<64x128xf32>
    %190 = arith.addf %188, %189 : vector<64x128xf32>
    %191 = tpu.reciprocal %190 {approx = true} : vector<64x128xf32> -> vector<64x128xf32>
    %192 = arith.mulf %188, %191 : vector<64x128xf32>
    %193 = arith.mulf %182, %192 : vector<64x128xf32>
    %194 = arith.truncf %193 : vector<64x128xf32> to vector<64x128xbf16>
    %c0_80 = arith.constant 0 : index
    %c0_81 = arith.constant 0 : index
    %c0_82 = arith.constant 0 : index
    %195 = vector.load %arg5[%c0_80, %c0_81, %c0_82] : memref<4x128x128xbf16, #tpu.memory_space<vmem>>, vector<1x128x128xbf16>
    %196 = vector.shape_cast %195 : vector<1x128x128xbf16> to vector<128x128xbf16>
    %cst_83 = arith.constant dense<0.000000e+00> : vector<64x128xf32>
    %197 = tpu.matmul %194, %196, %cst_83 {dimension_numbers = #tpu.dot_dimension_numbers<[1], [0], [0], [1], [0, 0, 1, 1], [], []>} : vector<64x128xbf16>, vector<128x128xbf16>, vector<64x128xf32> -> vector<64x128xf32>
    %c0_84 = arith.constant 0 : index
    %c0_85 = arith.constant 0 : index
    %c0_86 = arith.constant 0 : index
    %198 = vector.load %arg6[%c0_84, %c0_85, %c0_86] : memref<4x1x128xf32, #tpu.memory_space<vmem>>, vector<1x1x128xf32>
    %199 = vector.shape_cast %198 : vector<1x1x128xf32> to vector<1x128xf32>
    %200 = vector.broadcast %199 : vector<1x128xf32> to vector<64x128xf32>
    %201 = arith.addf %197, %200 : vector<64x128xf32>
    %cst_87 = arith.constant 3.000000e+01 : f32
    %202 = vector.broadcast %cst_87 : f32 to vector<64x128xf32>
    %203 = arith.minimumf %201, %202 : vector<64x128xf32>
    %204 = math.exp %203 : vector<64x128xf32>
    %cst_88 = arith.constant 2.000000e+00 : f32
    %205 = vector.broadcast %cst_88 : f32 to vector<64x128xf32>
    %206 = arith.addf %204, %205 : vector<64x128xf32>
    %207 = arith.mulf %204, %206 : vector<64x128xf32>
    %cst_89 = arith.constant 2.000000e+00 : f32
    %208 = vector.broadcast %cst_89 : f32 to vector<64x128xf32>
    %209 = arith.addf %207, %208 : vector<64x128xf32>
    %210 = tpu.reciprocal %209 {approx = true} : vector<64x128xf32> -> vector<64x128xf32>
    %211 = arith.mulf %207, %210 : vector<64x128xf32>
    %212 = arith.mulf %201, %211 : vector<64x128xf32>
    %213 = arith.truncf %212 : vector<64x128xf32> to vector<64x128xbf16>
    %c320 = arith.constant 320 : index
    %c0_90 = arith.constant 0 : index
    %214 = vector.load %arg12[%c320, %c0_90] : memref<576x128xbf16, #tpu.memory_space<vmem>>, vector<64x128xbf16>
    tpu.vector_store %arg12[%c320, %c0_90], %213 {strides = array<i32>} : memref<576x128xbf16, #tpu.memory_space<vmem>>, vector<64x128xbf16>,
    %215 = vector.extract_strided_slice %2 {offsets = [0, 768], sizes = [64, 128], strides = [1, 1]} : vector<64x1152xf32> to vector<64x128xf32>
    %216 = vector.broadcast %4 : vector<1x128xf32> to vector<64x128xf32>
    %217 = arith.addf %215, %216 : vector<64x128xf32>
    %cst_91 = arith.constant 3.000000e+01 : f32
    %218 = vector.broadcast %cst_91 : f32 to vector<64x128xf32>
    %219 = arith.minimumf %217, %218 : vector<64x128xf32>
    %220 = math.exp %219 : vector<64x128xf32>
    %cst_92 = arith.constant 2.000000e+00 : f32
    %221 = vector.broadcast %cst_92 : f32 to vector<64x128xf32>
    %222 = arith.addf %220, %221 : vector<64x128xf32>
    %223 = arith.mulf %220, %222 : vector<64x128xf32>
    %cst_93 = arith.constant 2.000000e+00 : f32
    %224 = vector.broadcast %cst_93 : f32 to vector<64x128xf32>
    %225 = arith.addf %223, %224 : vector<64x128xf32>
    %226 = tpu.reciprocal %225 {approx = true} : vector<64x128xf32> -> vector<64x128xf32>
    %227 = arith.mulf %223, %226 : vector<64x128xf32>
    %228 = arith.mulf %217, %227 : vector<64x128xf32>
    %229 = arith.truncf %228 : vector<64x128xf32> to vector<64x128xbf16>
    %c0_94 = arith.constant 0 : index
    %c0_95 = arith.constant 0 : index
    %c0_96 = arith.constant 0 : index
    %230 = vector.load %arg5[%c0_94, %c0_95, %c0_96] : memref<4x128x128xbf16, #tpu.memory_space<vmem>>, vector<1x128x128xbf16>
    %231 = vector.shape_cast %230 : vector<1x128x128xbf16> to vector<128x128xbf16>
    %cst_97 = arith.constant dense<0.000000e+00> : vector<64x128xf32>
    %232 = tpu.matmul %229, %231, %cst_97 {dimension_numbers = #tpu.dot_dimension_numbers<[1], [0], [0], [1], [0, 0, 1, 1], [], []>} : vector<64x128xbf16>, vector<128x128xbf16>, vector<64x128xf32> -> vector<64x128xf32>
    %c0_98 = arith.constant 0 : index
    %c0_99 = arith.constant 0 : index
    %c0_100 = arith.constant 0 : index
    %233 = vector.load %arg6[%c0_98, %c0_99, %c0_100] : memref<4x1x128xf32, #tpu.memory_space<vmem>>, vector<1x1x128xf32>
    %234 = vector.shape_cast %233 : vector<1x1x128xf32> to vector<1x128xf32>
    %235 = vector.broadcast %234 : vector<1x128xf32> to vector<64x128xf32>
    %236 = arith.addf %232, %235 : vector<64x128xf32>
    %cst_101 = arith.constant 3.000000e+01 : f32
    %237 = vector.broadcast %cst_101 : f32 to vector<64x128xf32>
    %238 = arith.minimumf %236, %237 : vector<64x128xf32>
    %239 = math.exp %238 : vector<64x128xf32>
    %cst_102 = arith.constant 2.000000e+00 : f32
    %240 = vector.broadcast %cst_102 : f32 to vector<64x128xf32>
    %241 = arith.addf %239, %240 : vector<64x128xf32>
    %242 = arith.mulf %239, %241 : vector<64x128xf32>
    %cst_103 = arith.constant 2.000000e+00 : f32
    %243 = vector.broadcast %cst_103 : f32 to vector<64x128xf32>
    %244 = arith.addf %242, %243 : vector<64x128xf32>
    %245 = tpu.reciprocal %244 {approx = true} : vector<64x128xf32> -> vector<64x128xf32>
    %246 = arith.mulf %242, %245 : vector<64x128xf32>
    %247 = arith.mulf %236, %246 : vector<64x128xf32>
    %248 = arith.truncf %247 : vector<64x128xf32> to vector<64x128xbf16>
    %c384 = arith.constant 384 : index
    %c0_104 = arith.constant 0 : index
    %249 = vector.load %arg12[%c384, %c0_104] : memref<576x128xbf16, #tpu.memory_space<vmem>>, vector<64x128xbf16>
    tpu.vector_store %arg12[%c384, %c0_104], %248 {strides = array<i32>} : memref<576x128xbf16, #tpu.memory_space<vmem>>, vector<64x128xbf16>,
    %250 = vector.extract_strided_slice %2 {offsets = [0, 896], sizes = [64, 128], strides = [1, 1]} : vector<64x1152xf32> to vector<64x128xf32>
    %251 = vector.broadcast %4 : vector<1x128xf32> to vector<64x128xf32>
    %252 = arith.addf %250, %251 : vector<64x128xf32>
    %cst_105 = arith.constant 3.000000e+01 : f32
    %253 = vector.broadcast %cst_105 : f32 to vector<64x128xf32>
    %254 = arith.minimumf %252, %253 : vector<64x128xf32>
    %255 = math.exp %254 : vector<64x128xf32>
    %cst_106 = arith.constant 2.000000e+00 : f32
    %256 = vector.broadcast %cst_106 : f32 to vector<64x128xf32>
    %257 = arith.addf %255, %256 : vector<64x128xf32>
    %258 = arith.mulf %255, %257 : vector<64x128xf32>
    %cst_107 = arith.constant 2.000000e+00 : f32
    %259 = vector.broadcast %cst_107 : f32 to vector<64x128xf32>
    %260 = arith.addf %258, %259 : vector<64x128xf32>
    %261 = tpu.reciprocal %260 {approx = true} : vector<64x128xf32> -> vector<64x128xf32>
    %262 = arith.mulf %258, %261 : vector<64x128xf32>
    %263 = arith.mulf %252, %262 : vector<64x128xf32>
    %264 = arith.truncf %263 : vector<64x128xf32> to vector<64x128xbf16>
    %c0_108 = arith.constant 0 : index
    %c0_109 = arith.constant 0 : index
    %c0_110 = arith.constant 0 : index
    %265 = vector.load %arg5[%c0_108, %c0_109, %c0_110] : memref<4x128x128xbf16, #tpu.memory_space<vmem>>, vector<1x128x128xbf16>
    %266 = vector.shape_cast %265 : vector<1x128x128xbf16> to vector<128x128xbf16>
    %cst_111 = arith.constant dense<0.000000e+00> : vector<64x128xf32>
    %267 = tpu.matmul %264, %266, %cst_111 {dimension_numbers = #tpu.dot_dimension_numbers<[1], [0], [0], [1], [0, 0, 1, 1], [], []>} : vector<64x128xbf16>, vector<128x128xbf16>, vector<64x128xf32> -> vector<64x128xf32>
    %c0_112 = arith.constant 0 : index
    %c0_113 = arith.constant 0 : index
    %c0_114 = arith.constant 0 : index
    %268 = vector.load %arg6[%c0_112, %c0_113, %c0_114] : memref<4x1x128xf32, #tpu.memory_space<vmem>>, vector<1x1x128xf32>
    %269 = vector.shape_cast %268 : vector<1x1x128xf32> to vector<1x128xf32>
    %270 = vector.broadcast %269 : vector<1x128xf32> to vector<64x128xf32>
    %271 = arith.addf %267, %270 : vector<64x128xf32>
    %cst_115 = arith.constant 3.000000e+01 : f32
    %272 = vector.broadcast %cst_115 : f32 to vector<64x128xf32>
    %273 = arith.minimumf %271, %272 : vector<64x128xf32>
    %274 = math.exp %273 : vector<64x128xf32>
    %cst_116 = arith.constant 2.000000e+00 : f32
    %275 = vector.broadcast %cst_116 : f32 to vector<64x128xf32>
    %276 = arith.addf %274, %275 : vector<64x128xf32>
    %277 = arith.mulf %274, %276 : vector<64x128xf32>
    %cst_117 = arith.constant 2.000000e+00 : f32
    %278 = vector.broadcast %cst_117 : f32 to vector<64x128xf32>
    %279 = arith.addf %277, %278 : vector<64x128xf32>
    %280 = tpu.reciprocal %279 {approx = true} : vector<64x128xf32> -> vector<64x128xf32>
    %281 = arith.mulf %277, %280 : vector<64x128xf32>
    %282 = arith.mulf %271, %281 : vector<64x128xf32>
    %283 = arith.truncf %282 : vector<64x128xf32> to vector<64x128xbf16>
    %c448 = arith.constant 448 : index
    %c0_118 = arith.constant 0 : index
    %284 = vector.load %arg12[%c448, %c0_118] : memref<576x128xbf16, #tpu.memory_space<vmem>>, vector<64x128xbf16>
    tpu.vector_store %arg12[%c448, %c0_118], %283 {strides = array<i32>} : memref<576x128xbf16, #tpu.memory_space<vmem>>, vector<64x128xbf16>,
    %285 = vector.extract_strided_slice %2 {offsets = [0, 1024], sizes = [64, 128], strides = [1, 1]} : vector<64x1152xf32> to vector<64x128xf32>
    %286 = vector.broadcast %4 : vector<1x128xf32> to vector<64x128xf32>
    %287 = arith.addf %285, %286 : vector<64x128xf32>
    %cst_119 = arith.constant 3.000000e+01 : f32
    %288 = vector.broadcast %cst_119 : f32 to vector<64x128xf32>
    %289 = arith.minimumf %287, %288 : vector<64x128xf32>
    %290 = math.exp %289 : vector<64x128xf32>
    %cst_120 = arith.constant 2.000000e+00 : f32
    %291 = vector.broadcast %cst_120 : f32 to vector<64x128xf32>
    %292 = arith.addf %290, %291 : vector<64x128xf32>
    %293 = arith.mulf %290, %292 : vector<64x128xf32>
    %cst_121 = arith.constant 2.000000e+00 : f32
    %294 = vector.broadcast %cst_121 : f32 to vector<64x128xf32>
    %295 = arith.addf %293, %294 : vector<64x128xf32>
    %296 = tpu.reciprocal %295 {approx = true} : vector<64x128xf32> -> vector<64x128xf32>
    %297 = arith.mulf %293, %296 : vector<64x128xf32>
    %298 = arith.mulf %287, %297 : vector<64x128xf32>
    %299 = arith.truncf %298 : vector<64x128xf32> to vector<64x128xbf16>
    %c0_122 = arith.constant 0 : index
    %c0_123 = arith.constant 0 : index
    %c0_124 = arith.constant 0 : index
    %300 = vector.load %arg5[%c0_122, %c0_123, %c0_124] : memref<4x128x128xbf16, #tpu.memory_space<vmem>>, vector<1x128x128xbf16>
    %301 = vector.shape_cast %300 : vector<1x128x128xbf16> to vector<128x128xbf16>
    %cst_125 = arith.constant dense<0.000000e+00> : vector<64x128xf32>
    %302 = tpu.matmul %299, %301, %cst_125 {dimension_numbers = #tpu.dot_dimension_numbers<[1], [0], [0], [1], [0, 0, 1, 1], [], []>} : vector<64x128xbf16>, vector<128x128xbf16>, vector<64x128xf32> -> vector<64x128xf32>
    %c0_126 = arith.constant 0 : index
    %c0_127 = arith.constant 0 : index
    %c0_128 = arith.constant 0 : index
    %303 = vector.load %arg6[%c0_126, %c0_127, %c0_128] : memref<4x1x128xf32, #tpu.memory_space<vmem>>, vector<1x1x128xf32>
    %304 = vector.shape_cast %303 : vector<1x1x128xf32> to vector<1x128xf32>
    %305 = vector.broadcast %304 : vector<1x128xf32> to vector<64x128xf32>
    %306 = arith.addf %302, %305 : vector<64x128xf32>
    %cst_129 = arith.constant 3.000000e+01 : f32
    %307 = vector.broadcast %cst_129 : f32 to vector<64x128xf32>
    %308 = arith.minimumf %306, %307 : vector<64x128xf32>
    %309 = math.exp %308 : vector<64x128xf32>
    %cst_130 = arith.constant 2.000000e+00 : f32
    %310 = vector.broadcast %cst_130 : f32 to vector<64x128xf32>
    %311 = arith.addf %309, %310 : vector<64x128xf32>
    %312 = arith.mulf %309, %311 : vector<64x128xf32>
    %cst_131 = arith.constant 2.000000e+00 : f32
    %313 = vector.broadcast %cst_131 : f32 to vector<64x128xf32>
    %314 = arith.addf %312, %313 : vector<64x128xf32>
    %315 = tpu.reciprocal %314 {approx = true} : vector<64x128xf32> -> vector<64x128xf32>
    %316 = arith.mulf %312, %315 : vector<64x128xf32>
    %317 = arith.mulf %306, %316 : vector<64x128xf32>
    %318 = arith.truncf %317 : vector<64x128xf32> to vector<64x128xbf16>
    %c512 = arith.constant 512 : index
    %c0_132 = arith.constant 0 : index
    %319 = vector.load %arg12[%c512, %c0_132] : memref<576x128xbf16, #tpu.memory_space<vmem>>, vector<64x128xbf16>
    tpu.vector_store %arg12[%c512, %c0_132], %318 {strides = array<i32>} : memref<576x128xbf16, #tpu.memory_space<vmem>>, vector<64x128xbf16>,
    %c1 = arith.constant 1 : index
    %c0_133 = arith.constant 0 : index
    %c0_134 = arith.constant 0 : index
    %320 = vector.load %arg3[%c1, %c0_133, %c0_134] : memref<3x1x128xf32, #tpu.memory_space<vmem>>, vector<1x1x128xf32>
    %321 = vector.shape_cast %320 : vector<1x1x128xf32> to vector<1x128xf32>
    %c0_135 = arith.constant 0 : index
    %c0_136 = arith.constant 0 : index
    %322 = vector.load %arg12[%c0_135, %c0_136] : memref<576x128xbf16, #tpu.memory_space<vmem>>, vector<128x128xbf16>
    %c0_137 = arith.constant 0 : index
    %c0_138 = arith.constant 0 : index
    %c0_139 = arith.constant 0 : index
    %323 = vector.load %arg4[%c0_137, %c0_138, %c0_139] : memref<6x128x128xbf16, #tpu.memory_space<vmem>>, vector<1x128x128xbf16>
    %324 = vector.shape_cast %323 : vector<1x128x128xbf16> to vector<128x128xbf16>
    %cst_140 = arith.constant dense<0.000000e+00> : vector<128x128xf32>
    %325 = tpu.matmul %322, %324, %cst_140 {dimension_numbers = #tpu.dot_dimension_numbers<[1], [0], [0], [1], [0, 0, 1, 1], [], []>} : vector<128x128xbf16>, vector<128x128xbf16>, vector<128x128xf32> -> vector<128x128xf32>
    %c192_141 = arith.constant 192 : index
    %c0_142 = arith.constant 0 : index
    %326 = vector.load %arg12[%c192_141, %c0_142] : memref<576x128xbf16, #tpu.memory_space<vmem>>, vector<128x128xbf16>
    %c1_143 = arith.constant 1 : index
    %c0_144 = arith.constant 0 : index
    %c0_145 = arith.constant 0 : index
    %327 = vector.load %arg4[%c1_143, %c0_144, %c0_145] : memref<6x128x128xbf16, #tpu.memory_space<vmem>>, vector<1x128x128xbf16>
    %328 = vector.shape_cast %327 : vector<1x128x128xbf16> to vector<128x128xbf16>
    %cst_146 = arith.constant dense<0.000000e+00> : vector<128x128xf32>
    %329 = tpu.matmul %326, %328, %cst_146 {dimension_numbers = #tpu.dot_dimension_numbers<[1], [0], [0], [1], [0, 0, 1, 1], [], []>} : vector<128x128xbf16>, vector<128x128xbf16>, vector<128x128xf32> -> vector<128x128xf32>
    %330 = arith.addf %325, %329 : vector<128x128xf32>
    %c256_147 = arith.constant 256 : index
    %c0_148 = arith.constant 0 : index
    %331 = vector.load %arg12[%c256_147, %c0_148] : memref<576x128xbf16, #tpu.memory_space<vmem>>, vector<128x128xbf16>
    %c2 = arith.constant 2 : index
    %c0_149 = arith.constant 0 : index
    %c0_150 = arith.constant 0 : index
    %332 = vector.load %arg4[%c2, %c0_149, %c0_150] : memref<6x128x128xbf16, #tpu.memory_space<vmem>>, vector<1x128x128xbf16>
    %333 = vector.shape_cast %332 : vector<1x128x128xbf16> to vector<128x128xbf16>
    %cst_151 = arith.constant dense<0.000000e+00> : vector<128x128xf32>
    %334 = tpu.matmul %331, %333, %cst_151 {dimension_numbers = #tpu.dot_dimension_numbers<[1], [0], [0], [1], [0, 0, 1, 1], [], []>} : vector<128x128xbf16>, vector<128x128xbf16>, vector<128x128xf32> -> vector<128x128xf32>
    %335 = arith.addf %330, %334 : vector<128x128xf32>
    %336 = vector.broadcast %321 : vector<1x128xf32> to vector<128x128xf32>
    %337 = arith.addf %335, %336 : vector<128x128xf32>
    %cst_152 = arith.constant 3.000000e+01 : f32
    %338 = vector.broadcast %cst_152 : f32 to vector<128x128xf32>
    %339 = arith.minimumf %337, %338 : vector<128x128xf32>
    %340 = math.exp %339 : vector<128x128xf32>
    %cst_153 = arith.constant 2.000000e+00 : f32
    %341 = vector.broadcast %cst_153 : f32 to vector<128x128xf32>
    %342 = arith.addf %340, %341 : vector<128x128xf32>
    %343 = arith.mulf %340, %342 : vector<128x128xf32>
    %cst_154 = arith.constant 2.000000e+00 : f32
    %344 = vector.broadcast %cst_154 : f32 to vector<128x128xf32>
    %345 = arith.addf %343, %344 : vector<128x128xf32>
    %346 = tpu.reciprocal %345 {approx = true} : vector<128x128xf32> -> vector<128x128xf32>
    %347 = arith.mulf %343, %346 : vector<128x128xf32>
    %348 = arith.mulf %337, %347 : vector<128x128xf32>
    %349 = arith.truncf %348 : vector<128x128xf32> to vector<128x128xbf16>
    %c1_155 = arith.constant 1 : index
    %c0_156 = arith.constant 0 : index
    %c0_157 = arith.constant 0 : index
    %350 = vector.load %arg5[%c1_155, %c0_156, %c0_157] : memref<4x128x128xbf16, #tpu.memory_space<vmem>>, vector<1x128x128xbf16>
    %351 = vector.shape_cast %350 : vector<1x128x128xbf16> to vector<128x128xbf16>
    %cst_158 = arith.constant dense<0.000000e+00> : vector<128x128xf32>
    %352 = tpu.matmul %349, %351, %cst_158 {dimension_numbers = #tpu.dot_dimension_numbers<[1], [0], [0], [1], [0, 0, 1, 1], [], []>} : vector<128x128xbf16>, vector<128x128xbf16>, vector<128x128xf32> -> vector<128x128xf32>
    %c1_159 = arith.constant 1 : index
    %c0_160 = arith.constant 0 : index
    %c0_161 = arith.constant 0 : index
    %353 = vector.load %arg6[%c1_159, %c0_160, %c0_161] : memref<4x1x128xf32, #tpu.memory_space<vmem>>, vector<1x1x128xf32>
    %354 = vector.shape_cast %353 : vector<1x1x128xf32> to vector<1x128xf32>
    %355 = vector.broadcast %354 : vector<1x128xf32> to vector<128x128xf32>
    %356 = arith.addf %352, %355 : vector<128x128xf32>
    %cst_162 = arith.constant 3.000000e+01 : f32
    %357 = vector.broadcast %cst_162 : f32 to vector<128x128xf32>
    %358 = arith.minimumf %356, %357 : vector<128x128xf32>
    %359 = math.exp %358 : vector<128x128xf32>
    %cst_163 = arith.constant 2.000000e+00 : f32
    %360 = vector.broadcast %cst_163 : f32 to vector<128x128xf32>
    %361 = arith.addf %359, %360 : vector<128x128xf32>
    %362 = arith.mulf %359, %361 : vector<128x128xf32>
    %cst_164 = arith.constant 2.000000e+00 : f32
    %363 = vector.broadcast %cst_164 : f32 to vector<128x128xf32>
    %364 = arith.addf %362, %363 : vector<128x128xf32>
    %365 = tpu.reciprocal %364 {approx = true} : vector<128x128xf32> -> vector<128x128xf32>
    %366 = arith.mulf %362, %365 : vector<128x128xf32>
    %367 = arith.mulf %356, %366 : vector<128x128xf32>
    %368 = arith.truncf %367 : vector<128x128xf32> to vector<128x128xbf16>
    %c0_165 = arith.constant 0 : index
    %c0_166 = arith.constant 0 : index
    %369 = vector.load %arg13[%c0_165, %c0_166] : memref<256x128xbf16, #tpu.memory_space<vmem>>, vector<128x128xbf16>
    tpu.vector_store %arg13[%c0_165, %c0_166], %368 {strides = array<i32>} : memref<256x128xbf16, #tpu.memory_space<vmem>>, vector<128x128xbf16>,
    %c192_167 = arith.constant 192 : index
    %c0_168 = arith.constant 0 : index
    %370 = vector.load %arg12[%c192_167, %c0_168] : memref<576x128xbf16, #tpu.memory_space<vmem>>, vector<128x128xbf16>
    %c0_169 = arith.constant 0 : index
    %c0_170 = arith.constant 0 : index
    %c0_171 = arith.constant 0 : index
    %371 = vector.load %arg4[%c0_169, %c0_170, %c0_171] : memref<6x128x128xbf16, #tpu.memory_space<vmem>>, vector<1x128x128xbf16>
    %372 = vector.shape_cast %371 : vector<1x128x128xbf16> to vector<128x128xbf16>
    %cst_172 = arith.constant dense<0.000000e+00> : vector<128x128xf32>
    %373 = tpu.matmul %370, %372, %cst_172 {dimension_numbers = #tpu.dot_dimension_numbers<[1], [0], [0], [1], [0, 0, 1, 1], [], []>} : vector<128x128xbf16>, vector<128x128xbf16>, vector<128x128xf32> -> vector<128x128xf32>
    %c384_173 = arith.constant 384 : index
    %c0_174 = arith.constant 0 : index
    %374 = vector.load %arg12[%c384_173, %c0_174] : memref<576x128xbf16, #tpu.memory_space<vmem>>, vector<128x128xbf16>
    %c1_175 = arith.constant 1 : index
    %c0_176 = arith.constant 0 : index
    %c0_177 = arith.constant 0 : index
    %375 = vector.load %arg4[%c1_175, %c0_176, %c0_177] : memref<6x128x128xbf16, #tpu.memory_space<vmem>>, vector<1x128x128xbf16>
    %376 = vector.shape_cast %375 : vector<1x128x128xbf16> to vector<128x128xbf16>
    %cst_178 = arith.constant dense<0.000000e+00> : vector<128x128xf32>
    %377 = tpu.matmul %374, %376, %cst_178 {dimension_numbers = #tpu.dot_dimension_numbers<[1], [0], [0], [1], [0, 0, 1, 1], [], []>} : vector<128x128xbf16>, vector<128x128xbf16>, vector<128x128xf32> -> vector<128x128xf32>
    %378 = arith.addf %373, %377 : vector<128x128xf32>
    %c448_179 = arith.constant 448 : index
    %c0_180 = arith.constant 0 : index
    %379 = vector.load %arg12[%c448_179, %c0_180] : memref<576x128xbf16, #tpu.memory_space<vmem>>, vector<128x128xbf16>
    %c2_181 = arith.constant 2 : index
    %c0_182 = arith.constant 0 : index
    %c0_183 = arith.constant 0 : index
    %380 = vector.load %arg4[%c2_181, %c0_182, %c0_183] : memref<6x128x128xbf16, #tpu.memory_space<vmem>>, vector<1x128x128xbf16>
    %381 = vector.shape_cast %380 : vector<1x128x128xbf16> to vector<128x128xbf16>
    %cst_184 = arith.constant dense<0.000000e+00> : vector<128x128xf32>
    %382 = tpu.matmul %379, %381, %cst_184 {dimension_numbers = #tpu.dot_dimension_numbers<[1], [0], [0], [1], [0, 0, 1, 1], [], []>} : vector<128x128xbf16>, vector<128x128xbf16>, vector<128x128xf32> -> vector<128x128xf32>
    %383 = arith.addf %378, %382 : vector<128x128xf32>
    %384 = vector.broadcast %321 : vector<1x128xf32> to vector<128x128xf32>
    %385 = arith.addf %383, %384 : vector<128x128xf32>
    %cst_185 = arith.constant 3.000000e+01 : f32
    %386 = vector.broadcast %cst_185 : f32 to vector<128x128xf32>
    %387 = arith.minimumf %385, %386 : vector<128x128xf32>
    %388 = math.exp %387 : vector<128x128xf32>
    %cst_186 = arith.constant 2.000000e+00 : f32
    %389 = vector.broadcast %cst_186 : f32 to vector<128x128xf32>
    %390 = arith.addf %388, %389 : vector<128x128xf32>
    %391 = arith.mulf %388, %390 : vector<128x128xf32>
    %cst_187 = arith.constant 2.000000e+00 : f32
    %392 = vector.broadcast %cst_187 : f32 to vector<128x128xf32>
    %393 = arith.addf %391, %392 : vector<128x128xf32>
    %394 = tpu.reciprocal %393 {approx = true} : vector<128x128xf32> -> vector<128x128xf32>
    %395 = arith.mulf %391, %394 : vector<128x128xf32>
    %396 = arith.mulf %385, %395 : vector<128x128xf32>
    %397 = arith.truncf %396 : vector<128x128xf32> to vector<128x128xbf16>
    %c1_188 = arith.constant 1 : index
    %c0_189 = arith.constant 0 : index
    %c0_190 = arith.constant 0 : index
    %398 = vector.load %arg5[%c1_188, %c0_189, %c0_190] : memref<4x128x128xbf16, #tpu.memory_space<vmem>>, vector<1x128x128xbf16>
    %399 = vector.shape_cast %398 : vector<1x128x128xbf16> to vector<128x128xbf16>
    %cst_191 = arith.constant dense<0.000000e+00> : vector<128x128xf32>
    %400 = tpu.matmul %397, %399, %cst_191 {dimension_numbers = #tpu.dot_dimension_numbers<[1], [0], [0], [1], [0, 0, 1, 1], [], []>} : vector<128x128xbf16>, vector<128x128xbf16>, vector<128x128xf32> -> vector<128x128xf32>
    %c1_192 = arith.constant 1 : index
    %c0_193 = arith.constant 0 : index
    %c0_194 = arith.constant 0 : index
    %401 = vector.load %arg6[%c1_192, %c0_193, %c0_194] : memref<4x1x128xf32, #tpu.memory_space<vmem>>, vector<1x1x128xf32>
    %402 = vector.shape_cast %401 : vector<1x1x128xf32> to vector<1x128xf32>
    %403 = vector.broadcast %402 : vector<1x128xf32> to vector<128x128xf32>
    %404 = arith.addf %400, %403 : vector<128x128xf32>
    %cst_195 = arith.constant 3.000000e+01 : f32
    %405 = vector.broadcast %cst_195 : f32 to vector<128x128xf32>
    %406 = arith.minimumf %404, %405 : vector<128x128xf32>
    %407 = math.exp %406 : vector<128x128xf32>
    %cst_196 = arith.constant 2.000000e+00 : f32
    %408 = vector.broadcast %cst_196 : f32 to vector<128x128xf32>
    %409 = arith.addf %407, %408 : vector<128x128xf32>
    %410 = arith.mulf %407, %409 : vector<128x128xf32>
    %cst_197 = arith.constant 2.000000e+00 : f32
    %411 = vector.broadcast %cst_197 : f32 to vector<128x128xf32>
    %412 = arith.addf %410, %411 : vector<128x128xf32>
    %413 = tpu.reciprocal %412 {approx = true} : vector<128x128xf32> -> vector<128x128xf32>
    %414 = arith.mulf %410, %413 : vector<128x128xf32>
    %415 = arith.mulf %404, %414 : vector<128x128xf32>
    %416 = arith.truncf %415 : vector<128x128xf32> to vector<128x128xbf16>
    %c128_198 = arith.constant 128 : index
    %c0_199 = arith.constant 0 : index
    %417 = vector.load %arg13[%c128_198, %c0_199] : memref<256x128xbf16, #tpu.memory_space<vmem>>, vector<128x128xbf16>
    tpu.vector_store %arg13[%c128_198, %c0_199], %416 {strides = array<i32>} : memref<256x128xbf16, #tpu.memory_space<vmem>>, vector<128x128xbf16>,
    %c2_200 = arith.constant 2 : index
    %c0_201 = arith.constant 0 : index
    %c0_202 = arith.constant 0 : index
    %418 = vector.load %arg3[%c2_200, %c0_201, %c0_202] : memref<3x1x128xf32, #tpu.memory_space<vmem>>, vector<1x1x128xf32>
    %419 = vector.shape_cast %418 : vector<1x1x128xf32> to vector<1x128xf32>
    %c0_203 = arith.constant 0 : index
    %c0_204 = arith.constant 0 : index
    %420 = vector.load %arg13[%c0_203, %c0_204] : memref<256x128xbf16, #tpu.memory_space<vmem>>, vector<64x128xbf16>
    %c3 = arith.constant 3 : index
    %c0_205 = arith.constant 0 : index
    %c0_206 = arith.constant 0 : index
    %421 = vector.load %arg4[%c3, %c0_205, %c0_206] : memref<6x128x128xbf16, #tpu.memory_space<vmem>>, vector<1x128x128xbf16>
    %422 = vector.shape_cast %421 : vector<1x128x128xbf16> to vector<128x128xbf16>
    %cst_207 = arith.constant dense<0.000000e+00> : vector<64x128xf32>
    %423 = tpu.matmul %420, %422, %cst_207 {dimension_numbers = #tpu.dot_dimension_numbers<[1], [0], [0], [1], [0, 0, 1, 1], [], []>} : vector<64x128xbf16>, vector<128x128xbf16>, vector<64x128xf32> -> vector<64x128xf32>
    %c128_208 = arith.constant 128 : index
    %c0_209 = arith.constant 0 : index
    %424 = vector.load %arg13[%c128_208, %c0_209] : memref<256x128xbf16, #tpu.memory_space<vmem>>, vector<64x128xbf16>
    %c4 = arith.constant 4 : index
    %c0_210 = arith.constant 0 : index
    %c0_211 = arith.constant 0 : index
    %425 = vector.load %arg4[%c4, %c0_210, %c0_211] : memref<6x128x128xbf16, #tpu.memory_space<vmem>>, vector<1x128x128xbf16>
    %426 = vector.shape_cast %425 : vector<1x128x128xbf16> to vector<128x128xbf16>
    %cst_212 = arith.constant dense<0.000000e+00> : vector<64x128xf32>
    %427 = tpu.matmul %424, %426, %cst_212 {dimension_numbers = #tpu.dot_dimension_numbers<[1], [0], [0], [1], [0, 0, 1, 1], [], []>} : vector<64x128xbf16>, vector<128x128xbf16>, vector<64x128xf32> -> vector<64x128xf32>
    %428 = arith.addf %423, %427 : vector<64x128xf32>
    %c192_213 = arith.constant 192 : index
    %c0_214 = arith.constant 0 : index
    %429 = vector.load %arg13[%c192_213, %c0_214] : memref<256x128xbf16, #tpu.memory_space<vmem>>, vector<64x128xbf16>
    %c5 = arith.constant 5 : index
    %c0_215 = arith.constant 0 : index
    %c0_216 = arith.constant 0 : index
    %430 = vector.load %arg4[%c5, %c0_215, %c0_216] : memref<6x128x128xbf16, #tpu.memory_space<vmem>>, vector<1x128x128xbf16>
    %431 = vector.shape_cast %430 : vector<1x128x128xbf16> to vector<128x128xbf16>
    %cst_217 = arith.constant dense<0.000000e+00> : vector<64x128xf32>
    %432 = tpu.matmul %429, %431, %cst_217 {dimension_numbers = #tpu.dot_dimension_numbers<[1], [0], [0], [1], [0, 0, 1, 1], [], []>} : vector<64x128xbf16>, vector<128x128xbf16>, vector<64x128xf32> -> vector<64x128xf32>
    %433 = arith.addf %428, %432 : vector<64x128xf32>
    %434 = vector.broadcast %419 : vector<1x128xf32> to vector<64x128xf32>
    %435 = arith.addf %433, %434 : vector<64x128xf32>
    %cst_218 = arith.constant 3.000000e+01 : f32
    %436 = vector.broadcast %cst_218 : f32 to vector<64x128xf32>
    %437 = arith.minimumf %435, %436 : vector<64x128xf32>
    %438 = math.exp %437 : vector<64x128xf32>
    %cst_219 = arith.constant 2.000000e+00 : f32
    %439 = vector.broadcast %cst_219 : f32 to vector<64x128xf32>
    %440 = arith.addf %438, %439 : vector<64x128xf32>
    %441 = arith.mulf %438, %440 : vector<64x128xf32>
    %cst_220 = arith.constant 2.000000e+00 : f32
    %442 = vector.broadcast %cst_220 : f32 to vector<64x128xf32>
    %443 = arith.addf %441, %442 : vector<64x128xf32>
    %444 = tpu.reciprocal %443 {approx = true} : vector<64x128xf32> -> vector<64x128xf32>
    %445 = arith.mulf %441, %444 : vector<64x128xf32>
    %446 = arith.mulf %435, %445 : vector<64x128xf32>
    %447 = arith.truncf %446 : vector<64x128xf32> to vector<64x128xbf16>
    %c2_221 = arith.constant 2 : index
    %c0_222 = arith.constant 0 : index
    %c0_223 = arith.constant 0 : index
    %448 = vector.load %arg5[%c2_221, %c0_222, %c0_223] : memref<4x128x128xbf16, #tpu.memory_space<vmem>>, vector<1x128x128xbf16>
    %449 = vector.shape_cast %448 : vector<1x128x128xbf16> to vector<128x128xbf16>
    %cst_224 = arith.constant dense<0.000000e+00> : vector<64x128xf32>
    %450 = tpu.matmul %447, %449, %cst_224 {dimension_numbers = #tpu.dot_dimension_numbers<[1], [0], [0], [1], [0, 0, 1, 1], [], []>} : vector<64x128xbf16>, vector<128x128xbf16>, vector<64x128xf32> -> vector<64x128xf32>
    %c2_225 = arith.constant 2 : index
    %c0_226 = arith.constant 0 : index
    %c0_227 = arith.constant 0 : index
    %451 = vector.load %arg6[%c2_225, %c0_226, %c0_227] : memref<4x1x128xf32, #tpu.memory_space<vmem>>, vector<1x1x128xf32>
    %452 = vector.shape_cast %451 : vector<1x1x128xf32> to vector<1x128xf32>
    %453 = vector.broadcast %452 : vector<1x128xf32> to vector<64x128xf32>
    %454 = arith.addf %450, %453 : vector<64x128xf32>
    %cst_228 = arith.constant 3.000000e+01 : f32
    %455 = vector.broadcast %cst_228 : f32 to vector<64x128xf32>
    %456 = arith.minimumf %454, %455 : vector<64x128xf32>
    %457 = math.exp %456 : vector<64x128xf32>
    %cst_229 = arith.constant 2.000000e+00 : f32
    %458 = vector.broadcast %cst_229 : f32 to vector<64x128xf32>
    %459 = arith.addf %457, %458 : vector<64x128xf32>
    %460 = arith.mulf %457, %459 : vector<64x128xf32>
    %cst_230 = arith.constant 2.000000e+00 : f32
    %461 = vector.broadcast %cst_230 : f32 to vector<64x128xf32>
    %462 = arith.addf %460, %461 : vector<64x128xf32>
    %463 = tpu.reciprocal %462 {approx = true} : vector<64x128xf32> -> vector<64x128xf32>
    %464 = arith.mulf %460, %463 : vector<64x128xf32>
    %465 = arith.mulf %454, %464 : vector<64x128xf32>
    %466 = arith.truncf %465 : vector<64x128xf32> to vector<64x128xbf16>
    %c3_231 = arith.constant 3 : index
    %c0_232 = arith.constant 0 : index
    %c0_233 = arith.constant 0 : index
    %467 = vector.load %arg5[%c3_231, %c0_232, %c0_233] : memref<4x128x128xbf16, #tpu.memory_space<vmem>>, vector<1x128x128xbf16>
    %468 = vector.shape_cast %467 : vector<1x128x128xbf16> to vector<128x128xbf16>
    %cst_234 = arith.constant dense<0.000000e+00> : vector<64x128xf32>
    %469 = tpu.matmul %466, %468, %cst_234 {dimension_numbers = #tpu.dot_dimension_numbers<[1], [0], [0], [1], [0, 0, 1, 1], [], []>} : vector<64x128xbf16>, vector<128x128xbf16>, vector<64x128xf32> -> vector<64x128xf32>
    %c3_235 = arith.constant 3 : index
    %c0_236 = arith.constant 0 : index
    %c0_237 = arith.constant 0 : index
    %470 = vector.load %arg6[%c3_235, %c0_236, %c0_237] : memref<4x1x128xf32, #tpu.memory_space<vmem>>, vector<1x1x128xf32>
    %471 = vector.shape_cast %470 : vector<1x1x128xf32> to vector<1x128xf32>
    %472 = vector.broadcast %471 : vector<1x128xf32> to vector<64x128xf32>
    %473 = arith.addf %469, %472 : vector<64x128xf32>
    %cst_238 = arith.constant -1.000000e+00 : f32
    %cst_239 = arith.constant 0.9921875 : f32
    %474 = vector.broadcast %cst_238 : f32 to vector<64x128xf32>
    %475 = arith.maximumf %474, %473 : vector<64x128xf32>
    %476 = vector.broadcast %cst_239 : f32 to vector<64x128xf32>
    %477 = arith.minimumf %476, %475 : vector<64x128xf32>
    %cst_240 = arith.constant 1.280000e+02 : f32
    %478 = vector.broadcast %cst_240 : f32 to vector<64x128xf32>
    %479 = arith.mulf %477, %478 : vector<64x128xf32>
    %480 = math.roundeven %479 : vector<64x128xf32>
    %cst_241 = arith.constant 7.812500e-03 : f32
    %481 = vector.broadcast %cst_241 : f32 to vector<64x128xf32>
    %482 = arith.mulf %480, %481 : vector<64x128xf32>
    %483 = vector.extract_strided_slice %482 {offsets = [0, 0], sizes = [8, 128], strides = [1, 1]} : vector<64x128xf32> to vector<8x128xf32>
    %484 = vector.extract_strided_slice %482 {offsets = [8, 0], sizes = [8, 128], strides = [1, 1]} : vector<64x128xf32> to vector<8x128xf32>
    %485 = arith.addf %483, %484 : vector<8x128xf32>
    %486 = vector.extract_strided_slice %482 {offsets = [16, 0], sizes = [8, 128], strides = [1, 1]} : vector<64x128xf32> to vector<8x128xf32>
    %487 = arith.addf %485, %486 : vector<8x128xf32>
    %488 = vector.extract_strided_slice %482 {offsets = [24, 0], sizes = [8, 128], strides = [1, 1]} : vector<64x128xf32> to vector<8x128xf32>
    %489 = arith.addf %487, %488 : vector<8x128xf32>
    %490 = vector.extract_strided_slice %482 {offsets = [32, 0], sizes = [8, 128], strides = [1, 1]} : vector<64x128xf32> to vector<8x128xf32>
    %491 = arith.addf %489, %490 : vector<8x128xf32>
    %492 = vector.extract_strided_slice %482 {offsets = [40, 0], sizes = [8, 128], strides = [1, 1]} : vector<64x128xf32> to vector<8x128xf32>
    %493 = arith.addf %491, %492 : vector<8x128xf32>
    %494 = vector.extract_strided_slice %482 {offsets = [48, 0], sizes = [8, 128], strides = [1, 1]} : vector<64x128xf32> to vector<8x128xf32>
    %495 = arith.addf %493, %494 : vector<8x128xf32>
    %496 = vector.extract_strided_slice %482 {offsets = [56, 0], sizes = [8, 128], strides = [1, 1]} : vector<64x128xf32> to vector<8x128xf32>
    %497 = arith.addf %495, %496 : vector<8x128xf32>
    %c0_242 = arith.constant 0 : index
    %c0_243 = arith.constant 0 : index
    %c0_244 = arith.constant 0 : index
    %498 = vector.load %arg7[%c0_242, %c0_243, %c0_244] : memref<3x128x128xf32, #tpu.memory_space<vmem>>, vector<1x128x128xf32>
    %499 = vector.shape_cast %498 : vector<1x128x128xf32> to vector<128x128xf32>
    %cst_245 = arith.constant dense<0.000000e+00> : vector<8x128xf32>
    %500 = tpu.matmul %497, %499, %cst_245 {dimension_numbers = #tpu.dot_dimension_numbers<[1], [0], [0], [1], [0, 0, 1, 1], [], []>} : vector<8x128xf32>, vector<128x128xf32>, vector<8x128xf32> -> vector<8x128xf32>
    %c0_246 = arith.constant 0 : index
    %c0_247 = arith.constant 0 : index
    %c0_248 = arith.constant 0 : index
    %501 = vector.load %arg8[%c0_246, %c0_247, %c0_248] : memref<2x1x128xf32, #tpu.memory_space<vmem>>, vector<1x1x128xf32>
    %502 = vector.shape_cast %501 : vector<1x1x128xf32> to vector<1x128xf32>
    %503 = vector.broadcast %502 : vector<1x128xf32> to vector<8x128xf32>
    %504 = arith.addf %500, %503 : vector<8x128xf32>
    %cst_249 = arith.constant 0.000000e+00 : f32
    %505 = vector.broadcast %cst_249 : f32 to vector<8x128xf32>
    %506 = arith.maximumf %504, %505 : vector<8x128xf32>
    %c1_250 = arith.constant 1 : index
    %c0_251 = arith.constant 0 : index
    %c0_252 = arith.constant 0 : index
    %507 = vector.load %arg7[%c1_250, %c0_251, %c0_252] : memref<3x128x128xf32, #tpu.memory_space<vmem>>, vector<1x128x128xf32>
    %508 = vector.shape_cast %507 : vector<1x128x128xf32> to vector<128x128xf32>
    %cst_253 = arith.constant dense<0.000000e+00> : vector<8x128xf32>
    %509 = tpu.matmul %506, %508, %cst_253 {dimension_numbers = #tpu.dot_dimension_numbers<[1], [0], [0], [1], [0, 0, 1, 1], [], []>} : vector<8x128xf32>, vector<128x128xf32>, vector<8x128xf32> -> vector<8x128xf32>
    %c1_254 = arith.constant 1 : index
    %c0_255 = arith.constant 0 : index
    %c0_256 = arith.constant 0 : index
    %510 = vector.load %arg8[%c1_254, %c0_255, %c0_256] : memref<2x1x128xf32, #tpu.memory_space<vmem>>, vector<1x1x128xf32>
    %511 = vector.shape_cast %510 : vector<1x1x128xf32> to vector<1x128xf32>
    %512 = vector.broadcast %511 : vector<1x128xf32> to vector<8x128xf32>
    %513 = arith.addf %509, %512 : vector<8x128xf32>
    %c2_257 = arith.constant 2 : index
    %c0_258 = arith.constant 0 : index
    %c0_259 = arith.constant 0 : index
    %514 = vector.load %arg7[%c2_257, %c0_258, %c0_259] : memref<3x128x128xf32, #tpu.memory_space<vmem>>, vector<1x128x128xf32>
    %515 = vector.shape_cast %514 : vector<1x128x128xf32> to vector<128x128xf32>
    %cst_260 = arith.constant dense<0.000000e+00> : vector<8x128xf32>
    %516 = tpu.matmul %513, %515, %cst_260 {dimension_numbers = #tpu.dot_dimension_numbers<[1], [0], [0], [1], [0, 0, 1, 1], [], []>} : vector<8x128xf32>, vector<128x128xf32>, vector<8x128xf32> -> vector<8x128xf32>
    %cst_261 = arith.constant 0.000000e+00 : f32
    %cst_262 = arith.constant 0.9921875 : f32
    %517 = vector.broadcast %cst_261 : f32 to vector<8x128xf32>
    %518 = arith.maximumf %517, %497 : vector<8x128xf32>
    %519 = vector.broadcast %cst_262 : f32 to vector<8x128xf32>
    %520 = arith.minimumf %519, %518 : vector<8x128xf32>
    %c0_263 = arith.constant 0 : index
    %c0_264 = arith.constant 0 : index
    %c0_265 = arith.constant 0 : index
    %521 = vector.load %arg9[%c0_263, %c0_264, %c0_265] : memref<4x128x128xf32, #tpu.memory_space<vmem>>, vector<1x128x128xf32>
    %522 = vector.shape_cast %521 : vector<1x128x128xf32> to vector<128x128xf32>
    %cst_266 = arith.constant dense<0.000000e+00> : vector<8x128xf32>
    %523 = tpu.matmul %520, %522, %cst_266 {dimension_numbers = #tpu.dot_dimension_numbers<[1], [0], [0], [1], [0, 0, 1, 1], [], []>} : vector<8x128xf32>, vector<128x128xf32>, vector<8x128xf32> -> vector<8x128xf32>
    %c0_267 = arith.constant 0 : index
    %c0_268 = arith.constant 0 : index
    %c0_269 = arith.constant 0 : index
    %524 = vector.load %arg10[%c0_267, %c0_268, %c0_269] : memref<4x1x128xf32, #tpu.memory_space<vmem>>, vector<1x1x128xf32>
    %525 = vector.shape_cast %524 : vector<1x1x128xf32> to vector<1x128xf32>
    %526 = vector.broadcast %525 : vector<1x128xf32> to vector<8x128xf32>
    %527 = arith.addf %523, %526 : vector<8x128xf32>
    %cst_270 = arith.constant 0.000000e+00 : f32
    %cst_271 = arith.constant 0.9921875 : f32
    %528 = vector.broadcast %cst_270 : f32 to vector<8x128xf32>
    %529 = arith.maximumf %528, %527 : vector<8x128xf32>
    %530 = vector.broadcast %cst_271 : f32 to vector<8x128xf32>
    %531 = arith.minimumf %530, %529 : vector<8x128xf32>
    %c1_272 = arith.constant 1 : index
    %c0_273 = arith.constant 0 : index
    %c0_274 = arith.constant 0 : index
    %532 = vector.load %arg9[%c1_272, %c0_273, %c0_274] : memref<4x128x128xf32, #tpu.memory_space<vmem>>, vector<1x128x128xf32>
    %533 = vector.shape_cast %532 : vector<1x128x128xf32> to vector<128x128xf32>
    %cst_275 = arith.constant dense<0.000000e+00> : vector<8x128xf32>
    %534 = tpu.matmul %531, %533, %cst_275 {dimension_numbers = #tpu.dot_dimension_numbers<[1], [0], [0], [1], [0, 0, 1, 1], [], []>} : vector<8x128xf32>, vector<128x128xf32>, vector<8x128xf32> -> vector<8x128xf32>
    %c1_276 = arith.constant 1 : index
    %c0_277 = arith.constant 0 : index
    %c0_278 = arith.constant 0 : index
    %535 = vector.load %arg10[%c1_276, %c0_277, %c0_278] : memref<4x1x128xf32, #tpu.memory_space<vmem>>, vector<1x1x128xf32>
    %536 = vector.shape_cast %535 : vector<1x1x128xf32> to vector<1x128xf32>
    %537 = vector.broadcast %536 : vector<1x128xf32> to vector<8x128xf32>
    %538 = arith.addf %534, %537 : vector<8x128xf32>
    %cst_279 = arith.constant 0.000000e+00 : f32
    %cst_280 = arith.constant 0.9921875 : f32
    %539 = vector.broadcast %cst_279 : f32 to vector<8x128xf32>
    %540 = arith.maximumf %539, %538 : vector<8x128xf32>
    %541 = vector.broadcast %cst_280 : f32 to vector<8x128xf32>
    %542 = arith.minimumf %541, %540 : vector<8x128xf32>
    %c2_281 = arith.constant 2 : index
    %c0_282 = arith.constant 0 : index
    %c0_283 = arith.constant 0 : index
    %543 = vector.load %arg9[%c2_281, %c0_282, %c0_283] : memref<4x128x128xf32, #tpu.memory_space<vmem>>, vector<1x128x128xf32>
    %544 = vector.shape_cast %543 : vector<1x128x128xf32> to vector<128x128xf32>
    %cst_284 = arith.constant dense<0.000000e+00> : vector<8x128xf32>
    %545 = tpu.matmul %542, %544, %cst_284 {dimension_numbers = #tpu.dot_dimension_numbers<[1], [0], [0], [1], [0, 0, 1, 1], [], []>} : vector<8x128xf32>, vector<128x128xf32>, vector<8x128xf32> -> vector<8x128xf32>
    %c2_285 = arith.constant 2 : index
    %c0_286 = arith.constant 0 : index
    %c0_287 = arith.constant 0 : index
    %546 = vector.load %arg10[%c2_285, %c0_286, %c0_287] : memref<4x1x128xf32, #tpu.memory_space<vmem>>, vector<1x1x128xf32>
    %547 = vector.shape_cast %546 : vector<1x1x128xf32> to vector<1x128xf32>
    %548 = vector.broadcast %547 : vector<1x128xf32> to vector<8x128xf32>
    %549 = arith.addf %545, %548 : vector<8x128xf32>
    %cst_288 = arith.constant 0.000000e+00 : f32
    %cst_289 = arith.constant 0.9921875 : f32
    %550 = vector.broadcast %cst_288 : f32 to vector<8x128xf32>
    %551 = arith.maximumf %550, %549 : vector<8x128xf32>
    %552 = vector.broadcast %cst_289 : f32 to vector<8x128xf32>
    %553 = arith.minimumf %552, %551 : vector<8x128xf32>
    %c3_290 = arith.constant 3 : index
    %c0_291 = arith.constant 0 : index
    %c0_292 = arith.constant 0 : index
    %554 = vector.load %arg9[%c3_290, %c0_291, %c0_292] : memref<4x128x128xf32, #tpu.memory_space<vmem>>, vector<1x128x128xf32>
    %555 = vector.shape_cast %554 : vector<1x128x128xf32> to vector<128x128xf32>
    %cst_293 = arith.constant dense<0.000000e+00> : vector<8x128xf32>
    %556 = tpu.matmul %553, %555, %cst_293 {dimension_numbers = #tpu.dot_dimension_numbers<[1], [0], [0], [1], [0, 0, 1, 1], [], []>} : vector<8x128xf32>, vector<128x128xf32>, vector<8x128xf32> -> vector<8x128xf32>
    %c3_294 = arith.constant 3 : index
    %c0_295 = arith.constant 0 : index
    %c0_296 = arith.constant 0 : index
    %557 = vector.load %arg10[%c3_294, %c0_295, %c0_296] : memref<4x1x128xf32, #tpu.memory_space<vmem>>, vector<1x1x128xf32>
    %558 = vector.shape_cast %557 : vector<1x1x128xf32> to vector<1x128xf32>
    %559 = vector.broadcast %558 : vector<1x128xf32> to vector<8x128xf32>
    %560 = arith.addf %556, %559 : vector<8x128xf32>
    %561 = arith.addf %516, %560 : vector<8x128xf32>
    %c0_297 = arith.constant 0 : index
    %c0_298 = arith.constant 0 : index
    %562 = vector.load %arg11[%c0_297, %c0_298] : memref<8x128xf32, #tpu.memory_space<vmem>>, vector<8x128xf32>
    tpu.vector_store %arg11[%c0_297, %c0_298], %561 {strides = array<i32>} : memref<8x128xf32, #tpu.memory_space<vmem>>, vector<8x128xf32>,
    return
  }
  func.func @transform_0(%arg0: i32) -> (i32, i32) {
    %c0_i32 = arith.constant 0 : i32
    %c0_i32_0 = arith.constant 0 : i32
    return %arg0, %c0_i32 : i32, i32
  }
  func.func @transform_1(%arg0: i32) -> (i32, i32) {
    %c0_i32 = arith.constant 0 : i32
    %c0_i32_0 = arith.constant 0 : i32
    %c0_i32_1 = arith.constant 0 : i32
    return %c0_i32, %c0_i32_0 : i32, i32
  }
  func.func @transform_2(%arg0: i32) -> (i32, i32, i32) {
    %c0_i32 = arith.constant 0 : i32
    %c0_i32_0 = arith.constant 0 : i32
    %c0_i32_1 = arith.constant 0 : i32
    %c0_i32_2 = arith.constant 0 : i32
    return %c0_i32, %c0_i32_0, %c0_i32_1 : i32, i32, i32
  }
  func.func @transform_3(%arg0: i32) -> (i32, i32, i32) {
    %c0_i32 = arith.constant 0 : i32
    %c0_i32_0 = arith.constant 0 : i32
    %c0_i32_1 = arith.constant 0 : i32
    %c0_i32_2 = arith.constant 0 : i32
    return %c0_i32, %c0_i32_0, %c0_i32_1 : i32, i32, i32
  }
  func.func @transform_4(%arg0: i32) -> (i32, i32, i32) {
    %c0_i32 = arith.constant 0 : i32
    %c0_i32_0 = arith.constant 0 : i32
    %c0_i32_1 = arith.constant 0 : i32
    %c0_i32_2 = arith.constant 0 : i32
    return %c0_i32, %c0_i32_0, %c0_i32_1 : i32, i32, i32
  }
  func.func @transform_5(%arg0: i32) -> (i32, i32, i32) {
    %c0_i32 = arith.constant 0 : i32
    %c0_i32_0 = arith.constant 0 : i32
    %c0_i32_1 = arith.constant 0 : i32
    %c0_i32_2 = arith.constant 0 : i32
    return %c0_i32, %c0_i32_0, %c0_i32_1 : i32, i32, i32
  }
  func.func @transform_6(%arg0: i32) -> (i32, i32, i32) {
    %c0_i32 = arith.constant 0 : i32
    %c0_i32_0 = arith.constant 0 : i32
    %c0_i32_1 = arith.constant 0 : i32
    %c0_i32_2 = arith.constant 0 : i32
    return %c0_i32, %c0_i32_0, %c0_i32_1 : i32, i32, i32
  }
  func.func @transform_7(%arg0: i32) -> (i32, i32, i32) {
    %c0_i32 = arith.constant 0 : i32
    %c0_i32_0 = arith.constant 0 : i32
    %c0_i32_1 = arith.constant 0 : i32
    %c0_i32_2 = arith.constant 0 : i32
    return %c0_i32, %c0_i32_0, %c0_i32_1 : i32, i32, i32
  }
  func.func @transform_8(%arg0: i32) -> (i32, i32, i32) {
    %c0_i32 = arith.constant 0 : i32
    %c0_i32_0 = arith.constant 0 : i32
    %c0_i32_1 = arith.constant 0 : i32
    %c0_i32_2 = arith.constant 0 : i32
    return %c0_i32, %c0_i32_0, %c0_i32_1 : i32, i32, i32
  }
  func.func @transform_9(%arg0: i32) -> (i32, i32, i32) {
    %c0_i32 = arith.constant 0 : i32
    %c0_i32_0 = arith.constant 0 : i32
    %c0_i32_1 = arith.constant 0 : i32
    %c0_i32_2 = arith.constant 0 : i32
    return %c0_i32, %c0_i32_0, %c0_i32_1 : i32, i32, i32
  }
  func.func @transform_10(%arg0: i32) -> (i32, i32) {
    %c0_i32 = arith.constant 0 : i32
    %c0_i32_0 = arith.constant 0 : i32
    return %arg0, %c0_i32 : i32, i32
  }
}

</mosaic_0001>

<llo_original>
// kernel: tpu_custom_call.1
$region0: #{tpu_custom_call.1}
  #allocation0 [shape = 'u32[]', space=smem, size = 0x4, offset = 0x4, fixed_abs, tag = 'smem constant byte address 0x4 - core index']
  #allocation1 [shape = 'u32[144,128]{1,0:T(1,128)}', space=vmem, size = 0x12000, scoped, tag = 'internal scratch']
  #allocation2 [shape = 'bf16[576,128]{1,0:T(16,128)(2,1)}', space=vmem, size = 0x24000, scoped, tag = 'scratch operand']
  #allocation3 [shape = 'bf16[256,128]{1,0:T(16,128)(2,1)}', space=vmem, size = 0x10000, scoped, tag = 'scratch operand']
  %s0 = inlined_call_operand.vmem [shape: bf16[64,32], index: 0, kind: input, shape index: {}]
  %s1 = inlined_call_operand.hbm [shape: bf16[32,1152], index: 1, kind: input, shape index: {}]
  %s2 = inlined_call_operand.vmem [shape: f32[3,1,128], index: 2, kind: input, shape index: {}]
  %s3 = inlined_call_operand.hbm [shape: bf16[6,128,128], index: 3, kind: input, shape index: {}]
  %s4 = inlined_call_operand.hbm [shape: bf16[4,128,128], index: 4, kind: input, shape index: {}]
  %s5 = inlined_call_operand.vmem [shape: f32[4,1,128], index: 5, kind: input, shape index: {}]
  %s6 = inlined_call_operand.hbm [shape: f32[3,128,128], index: 6, kind: input, shape index: {}]
  %s7 = inlined_call_operand.vmem [shape: f32[2,1,128], index: 7, kind: input, shape index: {}]
  %s8 = inlined_call_operand.hbm [shape: f32[4,128,128], index: 8, kind: input, shape index: {}]
  %s9 = inlined_call_operand.vmem [shape: f32[4,1,128], index: 9, kind: input, shape index: {}]
  %s10 = inlined_call_operand.hbm [shape: f32[8,128], index: 10, kind: output, shape index: {}]
  %s11 = sld [smem:[#allocation0]]
  $region70: #{tpu_custom_call.1} parent=0
    _
  %s13 = ssub.s32 1, %s11
  %s14 = scalar_select 0, %s13, %s11
  $region1: #{tpu_custom_call.1} parent=0
    #allocation4 [shape = 'u8[73728]{0}', space=vmem, size = 0x12000, scoped, tag = 'input window, operand 1, single buffered']
    #allocation5 [shape = 's32[1]{0}', space=sflag, size = 0x4, scoped, tag = 'scoped memory for tpu_custom_call.1']
    #allocation6 [shape = 's32[1]{0}', space=sflag, size = 0x4, scoped, tag = 'scoped memory for tpu_custom_call.1']
    #allocation7 [shape = 'u8[196608]{0}', space=vmem, size = 0x30000, scoped, tag = 'input window, operand 3, single buffered']
    #allocation8 [shape = 's32[1]{0}', space=sflag, size = 0x4, scoped, tag = 'scoped memory for tpu_custom_call.1']
    #allocation9 [shape = 'u8[131072]{0}', space=vmem, size = 0x20000, scoped, tag = 'input window, operand 4, single buffered']
    #allocation10 [shape = 'u8[196608]{0}', space=vmem, size = 0x30000, scoped, tag = 'input window, operand 6, single buffered']
    #allocation11 [shape = 's32[1]{0}', space=sflag, size = 0x4, scoped, tag = 'scoped memory for tpu_custom_call.1']
    #allocation12 [shape = 'u8[262144]{0}', space=vmem, size = 0x40000, scoped, tag = 'input window, operand 8, single buffered']
    #allocation13 [shape = 'u8[4096]{0}', space=vmem, size = 0x1000, scoped, tag = 'output window, operand 0, single buffered']
    %15 = vsyncpa [#allocation5], 0
    %16 = vsyncpa [#allocation8], 0
    %17 = vsyncpa [#allocation11], 0
    %18 = vsyncpa [#allocation6], 0
    // Predicated region
    $region2: #{tpu_custom_call.1} parent=1 // pred_check
      _
    $region3: #{tpu_custom_call.1} parent=1 // pred_check_branch
      %20 = sbr.rel (0) target = $region5
    $region4: #{tpu_custom_call.1} parent=1 // pred_region
      _
    $region5: #{tpu_custom_call.1} parent=1 // pred_fallthru
      _
    // Predicated region
    $region6: #{tpu_custom_call.1} parent=1 // pred_check
      _
    $region7: #{tpu_custom_call.1} parent=1 // pred_check_branch
      %22 = sbr.rel (0) target = $region9
    $region8: #{tpu_custom_call.1} parent=1 // pred_region
      %s24 = ssub.s32 2304, 2304
      %25 = vsyncadd [#allocation5], %s24
      %s26 = sshll.u32 [#allocation4], 4
      %s27 = int_to_ptr.vmem [resolvable:$true] %s26
      %32 = dma.hbm_to_vmem [thread:$0]  %s1, 2304, %s27, [#allocation5], 576, 576, 36
    $region9: #{tpu_custom_call.1} parent=1 // pred_fallthru
      _
    // Predicated region
    $region10: #{tpu_custom_call.1} parent=1 // pred_check
      _
    $region11: #{tpu_custom_call.1} parent=1 // pred_check_branch
      %34 = sbr.rel (0) target = $region13
    $region12: #{tpu_custom_call.1} parent=1 // pred_region
      _
    $region13: #{tpu_custom_call.1} parent=1 // pred_fallthru
      _
    // Predicated region
    $region14: #{tpu_custom_call.1} parent=1 // pred_check
      _
    $region15: #{tpu_custom_call.1} parent=1 // pred_check_branch
      %36 = sbr.rel (0) target = $region17
    $region16: #{tpu_custom_call.1} parent=1 // pred_region
      %s38 = ssub.s32 6144, 6144
      %39 = vsyncadd [#allocation8], %s38
      %s40 = sshll.u32 [#allocation7], 4
      %s41 = int_to_ptr.vmem [resolvable:$true] %s40
      %46 = dma.hbm_to_vmem [thread:$0]  %s3, 6144, %s41, [#allocation8], 64, 64, 4
    $region17: #{tpu_custom_call.1} parent=1 // pred_fallthru
      _
    // Predicated region
    $region18: #{tpu_custom_call.1} parent=1 // pred_check
      _
    $region19: #{tpu_custom_call.1} parent=1 // pred_check_branch
      %48 = sbr.rel (0) target = $region21
    $region20: #{tpu_custom_call.1} parent=1 // pred_region
      %s50 = ssub.s32 4096, 4096
      %51 = vsyncadd [#allocation8], %s50
      %s52 = sshll.u32 [#allocation9], 4
      %s53 = int_to_ptr.vmem [resolvable:$true] %s52
      %58 = dma.hbm_to_vmem [thread:$0]  %s4, 4096, %s53, [#allocation8], 64, 64, 4
    $region21: #{tpu_custom_call.1} parent=1 // pred_fallthru
      _
    // Predicated region
    $region22: #{tpu_custom_call.1} parent=1 // pred_check
      _
    $region23: #{tpu_custom_call.1} parent=1 // pred_check_branch
      %60 = sbr.rel (0) target = $region25
    $region24: #{tpu_custom_call.1} parent=1 // pred_region
      _
    $region25: #{tpu_custom_call.1} parent=1 // pred_fallthru
      _
    // Predicated region
    $region26: #{tpu_custom_call.1} parent=1 // pred_check
      _
    $region27: #{tpu_custom_call.1} parent=1 // pred_check_branch
      %62 = sbr.rel (0) target = $region29
    $region28: #{tpu_custom_call.1} parent=1 // pred_region
      %s64 = ssub.s32 6144, 6144
      %65 = vsyncadd [#allocation11], %s64
      %s66 = sshll.u32 [#allocation10], 4
      %s67 = int_to_ptr.vmem [resolvable:$true] %s66
      %72 = dma.hbm_to_vmem [thread:$0]  %s6, 6144, %s67, [#allocation11], 128, 128, 8
    $region29: #{tpu_custom_call.1} parent=1 // pred_fallthru
      _
    // Predicated region
    $region30: #{tpu_custom_call.1} parent=1 // pred_check
      _
    $region31: #{tpu_custom_call.1} parent=1 // pred_check_branch
      %74 = sbr.rel (0) target = $region33
    $region32: #{tpu_custom_call.1} parent=1 // pred_region
      _
    $region33: #{tpu_custom_call.1} parent=1 // pred_fallthru
      _
    // Predicated region
    $region34: #{tpu_custom_call.1} parent=1 // pred_check
      _
    $region35: #{tpu_custom_call.1} parent=1 // pred_check_branch
      %76 = sbr.rel (0) target = $region37
    $region36: #{tpu_custom_call.1} parent=1 // pred_region
      %s78 = ssub.s32 8192, 8192
      %79 = vsyncadd [#allocation11], %s78
      %s80 = sshll.u32 [#allocation12], 4
      %s81 = int_to_ptr.vmem [resolvable:$true] %s80
      %86 = dma.hbm_to_vmem [thread:$0]  %s8, 8192, %s81, [#allocation11], 128, 128, 8
    $region37: #{tpu_custom_call.1} parent=1 // pred_fallthru
      _
    // Predicated region
    $region38: #{tpu_custom_call.1} parent=1 // pred_check
      _
    $region39: #{tpu_custom_call.1} parent=1 // pred_check_branch
      %88 = sbr.rel (0) target = $region41
    $region40: #{tpu_custom_call.1} parent=1 // pred_region
      _
    $region41: #{tpu_custom_call.1} parent=1 // pred_fallthru
      _
    // Predicated region
    $region42: #{tpu_custom_call.1} parent=1 // pred_check
      _
    $region43: #{tpu_custom_call.1} parent=1 // pred_check_branch
      %90 = sbr.rel (0) target = $region45
    $region44: #{tpu_custom_call.1} parent=1 // pred_region
      %91 = dma.done [#allocation5], 2304
    $region45: #{tpu_custom_call.1} parent=1 // pred_fallthru
      _
    // Predicated region
    $region46: #{tpu_custom_call.1} parent=1 // pred_check
      _
    $region47: #{tpu_custom_call.1} parent=1 // pred_check_branch
      %93 = sbr.rel (0) target = $region49
    $region48: #{tpu_custom_call.1} parent=1 // pred_region
      %94 = dma.done [#allocation8], 6144
    $region49: #{tpu_custom_call.1} parent=1 // pred_fallthru
      _
    // Predicated region
    $region50: #{tpu_custom_call.1} parent=1 // pred_check
      _
    $region51: #{tpu_custom_call.1} parent=1 // pred_check_branch
      %96 = sbr.rel (0) target = $region53
    $region52: #{tpu_custom_call.1} parent=1 // pred_region
      %97 = dma.done [#allocation8], 4096
    $region53: #{tpu_custom_call.1} parent=1 // pred_fallthru
      _
    // Predicated region
    $region54: #{tpu_custom_call.1} parent=1 // pred_check
      _
    $region55: #{tpu_custom_call.1} parent=1 // pred_check_branch
      %99 = sbr.rel (0) target = $region57
    $region56: #{tpu_custom_call.1} parent=1 // pred_region
      %100 = dma.done [#allocation11], 6144
    $region57: #{tpu_custom_call.1} parent=1 // pred_fallthru
      _
    // Predicated region
    $region58: #{tpu_custom_call.1} parent=1 // pred_check
      _
    $region59: #{tpu_custom_call.1} parent=1 // pred_check_branch
      %102 = sbr.rel (0) target = $region61
    $region60: #{tpu_custom_call.1} parent=1 // pred_region
      %103 = dma.done [#allocation11], 8192
    $region61: #{tpu_custom_call.1} parent=1 // pred_fallthru
      _
    %v105 = vld [vmem:[%s0] sm:$0xf]
    %v106 = vld [vmem:[%s0 + $0x4] sm:$0xf]
    %v107 = vld [vmem:[%s0 + $0x8] sm:$0xf]
    %v108 = vld [vmem:[%s0 + $0xc] sm:$0xf]
    %v109 = vld [vmem:[%s0 + $0x10] sm:$0xf]
    %v110 = vld [vmem:[%s0 + $0x14] sm:$0xf]
    %v111 = vld [vmem:[%s0 + $0x18] sm:$0xf]
    %v112 = vld [vmem:[%s0 + $0x1c] sm:$0xf]
    %v113 = vld [vmem:[#allocation4] sm:$0xff]
    %v114 = vld [vmem:[#allocation4 + $0x8] sm:$0xff]
    %v115 = vld [vmem:[#allocation4 + $0x10] sm:$0xff]
    %v116 = vld [vmem:[#allocation4 + $0x18] sm:$0xff]
    %v117 = vld [vmem:[#allocation4 + $0x20] sm:$0xf]
    %v118 = vld [vmem:[#allocation4 + $0x24] sm:$0xff]
    %v119 = vld [vmem:[#allocation4 + $0x2c] sm:$0xff]
    %v120 = vld [vmem:[#allocation4 + $0x34] sm:$0xff]
    %v121 = vld [vmem:[#allocation4 + $0x3c] sm:$0xff]
    %v122 = vld [vmem:[#allocation4 + $0x44] sm:$0xf]
    %v123 = vld [vmem:[#allocation4 + $0x48] sm:$0xff]
    %v124 = vld [vmem:[#allocation4 + $0x50] sm:$0xff]
    %v125 = vld [vmem:[#allocation4 + $0x58] sm:$0xff]
    %v126 = vld [vmem:[#allocation4 + $0x60] sm:$0xff]
    %v127 = vld [vmem:[#allocation4 + $0x68] sm:$0xf]
    %v128 = vld [vmem:[#allocation4 + $0x6c] sm:$0xff]
    %v129 = vld [vmem:[#allocation4 + $0x74] sm:$0xff]
    %v130 = vld [vmem:[#allocation4 + $0x7c] sm:$0xff]
    %v131 = vld [vmem:[#allocation4 + $0x84] sm:$0xff]
    %v132 = vld [vmem:[#allocation4 + $0x8c] sm:$0xf]
    %v141 = vunpack.c.l.b16 %v105
    %v142 = vunpack.c.l.b16 %v106
    %v143 = vunpack.c.l.b16 %v107
    %v144 = vunpack.c.l.b16 %v108
    %v145 = vunpack.c.l.b16 %v109
    %v146 = vunpack.c.l.b16 %v110
    %v147 = vunpack.c.l.b16 %v111
    %v148 = vunpack.c.l.b16 %v112
    %v149 = vpack.c.b16 %v142, %v141
    %v150 = vpack.c.b16 %v144, %v143
    %v151 = vpack.c.b16 %v146, %v145
    %v152 = vpack.c.b16 %v148, %v147
    %v173 = vunpack.c.l.b16 %v113
    %v174 = vunpack.c.h.b16 %v113
    %v175 = vunpack.c.l.b16 %v114
    %v176 = vunpack.c.h.b16 %v114
    %v177 = vunpack.c.l.b16 %v115
    %v178 = vunpack.c.h.b16 %v115
    %v179 = vunpack.c.l.b16 %v116
    %v180 = vunpack.c.h.b16 %v116
    %v181 = vunpack.c.l.b16 %v117
    %v182 = vunpack.c.l.b16 %v118
    %v183 = vunpack.c.h.b16 %v118
    %v184 = vunpack.c.l.b16 %v119
    %v185 = vunpack.c.h.b16 %v119
    %v186 = vunpack.c.l.b16 %v120
    %v187 = vunpack.c.h.b16 %v120
    %v188 = vunpack.c.l.b16 %v121
    %v189 = vunpack.c.h.b16 %v121
    %v190 = vunpack.c.l.b16 %v122
    %v191 = vunpack.c.l.b16 %v123
    %v192 = vunpack.c.h.b16 %v123
    %v193 = vunpack.c.l.b16 %v124
    %v194 = vunpack.c.h.b16 %v124
    %v195 = vunpack.c.l.b16 %v125
    %v196 = vunpack.c.h.b16 %v125
    %v197 = vunpack.c.l.b16 %v126
    %v198 = vunpack.c.h.b16 %v126
    %v199 = vunpack.c.l.b16 %v127
    %v200 = vunpack.c.l.b16 %v128
    %v201 = vunpack.c.h.b16 %v128
    %v202 = vunpack.c.l.b16 %v129
    %v203 = vunpack.c.h.b16 %v129
    %v204 = vunpack.c.l.b16 %v130
    %v205 = vunpack.c.h.b16 %v130
    %v206 = vunpack.c.l.b16 %v131
    %v207 = vunpack.c.h.b16 %v131
    %v208 = vunpack.c.l.b16 %v132
    %v209 = vpack.c.b16 %v182, %v173
    %v210 = vpack.c.b16 %v183, %v174
    %v211 = vpack.c.b16 %v184, %v175
    %v212 = vpack.c.b16 %v185, %v176
    %v213 = vpack.c.b16 %v186, %v177
    %v214 = vpack.c.b16 %v187, %v178
    %v215 = vpack.c.b16 %v188, %v179
    %v216 = vpack.c.b16 %v189, %v180
    %v217 = vpack.c.b16 %v190, %v181
    %v218 = vpack.c.b16 %v200, %v191
    %v219 = vpack.c.b16 %v201, %v192
    %v220 = vpack.c.b16 %v202, %v193
    %v221 = vpack.c.b16 %v203, %v194
    %v222 = vpack.c.b16 %v204, %v195
    %v223 = vpack.c.b16 %v205, %v196
    %v224 = vpack.c.b16 %v206, %v197
    %v225 = vpack.c.b16 %v207, %v198
    %v226 = vpack.c.b16 %v208, %v199
    %vm245 = vcmask 261120
    %v247 = vsel %vm245, %v149, 0
    %v250 = vsel %vm245, %v150, 0
    %v253 = vsel %vm245, %v151, 0
    %v256 = vsel %vm245, %v152, 0
    %258 = vmatprep.subr.bf16.mxu0 %v210
    %259 = vmatpush1.bf16.msra.mxu0 %v209
    %260 = vmatprep.subr.bf16.mxu0 %v219
    %261 = vmatpush1.bf16.msra.mxu0 %v218
    %262 = vmatprep.subr.bf16.mxu0 0
    %263 = vmatpush1.bf16.msra.mxu0 0
    %264 = vmatprep.subr.bf16.mxu0 0
    %265 = vmatpush1.bf16.msra.mxu0 0
    %266 = vmatprep.subr.bf16.mxu0 0
    %267 = vmatpush1.bf16.msra.mxu0 0
    %268 = vmatprep.subr.bf16.mxu0 0
    %269 = vmatpush1.bf16.msra.mxu0 0
    %270 = vmatprep.subr.bf16.mxu0 0
    %271 = vmatpush1.bf16.msra.mxu0 0
    %272 = vmatprep.subr.bf16.mxu0 0
    %273 = vmatpush1.bf16.msra.mxu0 0
    %274 = vmatprep.subr.bf16.mxu0 0
    %275 = vmatpush1.bf16.msra.mxu0 0
    %276 = vmatprep.subr.bf16.mxu0 0
    %277 = vmatpush1.bf16.msra.mxu0 0
    %278 = vmatprep.subr.bf16.mxu0 0
    %279 = vmatpush1.bf16.msra.mxu0 0
    %280 = vmatprep.subr.bf16.mxu0 0
    %281 = vmatpush1.bf16.msra.mxu0 0
    %282 = vmatprep.subr.bf16.mxu0 0
    %283 = vmatpush1.bf16.msra.mxu0 0
    %284 = vmatprep.subr.bf16.mxu0 0
    %285 = vmatpush1.bf16.msra.mxu0 0
    %286 = vmatprep.subr.bf16.mxu0 0
    %287 = vmatpush1.bf16.msra.mxu0 0
    %288 = vmatprep.subr.bf16.mxu0 0
    %289 = vmatpush1.bf16.msra.mxu0 0
    %290 = vmatprep.mubr.bf16.mxu0 0
    %291 = vmatmul.mubr.bf16.gmra.mrb[0].mxu0 %v247
    %v292 = vpop.f32.mrb[0].mxu0
    %v293 = vadd.f32 0.0, %v292
    %v294 = vpop.f32.mrb[0].mxu0
    %v295 = vadd.f32 0.0, %v294
    %v296 = vpop.f32.mrb[0].mxu0
    %v297 = vadd.f32 0.0, %v296
    %v298 = vpop.f32.mrb[0].mxu0
    %v299 = vadd.f32 0.0, %v298
    %300 = vmatprep.mubr.bf16.mxu0 0
    %301 = vmatmul.mubr.bf16.gmra.mrb[0].mxu0 %v250
    %v302 = vpop.f32.mrb[0].mxu0
    %v303 = vadd.f32 0.0, %v302
    %v304 = vpop.f32.mrb[0].mxu0
    %v305 = vadd.f32 0.0, %v304
    %v306 = vpop.f32.mrb[0].mxu0
    %v307 = vadd.f32 0.0, %v306
    %v308 = vpop.f32.mrb[0].mxu0
    %v309 = vadd.f32 0.0, %v308
    %310 = vmatprep.mubr.bf16.mxu0 0
    %311 = vmatmul.mubr.bf16.gmra.mrb[0].mxu0 %v253
    %v312 = vpop.f32.mrb[0].mxu0
    %v313 = vadd.f32 0.0, %v312
    %v314 = vpop.f32.mrb[0].mxu0
    %v315 = vadd.f32 0.0, %v314
    %v316 = vpop.f32.mrb[0].mxu0
    %v317 = vadd.f32 0.0, %v316
    %v318 = vpop.f32.mrb[0].mxu0
    %v319 = vadd.f32 0.0, %v318
    %320 = vmatprep.mubr.bf16.mxu0 0
    %321 = vmatmul.mubr.bf16.gmra.mrb[0].mxu0 %v256
    %v322 = vpop.f32.mrb[0].mxu0
    %v323 = vadd.f32 0.0, %v322
    %v324 = vpop.f32.mrb[0].mxu0
    %v325 = vadd.f32 0.0, %v324
    %v326 = vpop.f32.mrb[0].mxu0
    %v327 = vadd.f32 0.0, %v326
    %v328 = vpop.f32.mrb[0].mxu0
    %v329 = vadd.f32 0.0, %v328
    %330 = vdwg.mxu0
    %331 = vmatprep.subr.bf16.mxu0 %v212
    %332 = vmatpush1.bf16.msra.mxu0 %v211
    %333 = vmatprep.subr.bf16.mxu0 %v221
    %334 = vmatpush1.bf16.msra.mxu0 %v220
    %335 = vmatprep.subr.bf16.mxu0 0
    %336 = vmatpush1.bf16.msra.mxu0 0
    %337 = vmatprep.subr.bf16.mxu0 0
    %338 = vmatpush1.bf16.msra.mxu0 0
    %339 = vmatprep.subr.bf16.mxu0 0
    %340 = vmatpush1.bf16.msra.mxu0 0
    %341 = vmatprep.subr.bf16.mxu0 0
    %342 = vmatpush1.bf16.msra.mxu0 0
    %343 = vmatprep.subr.bf16.mxu0 0
    %344 = vmatpush1.bf16.msra.mxu0 0
    %345 = vmatprep.subr.bf16.mxu0 0
    %346 = vmatpush1.bf16.msra.mxu0 0
    %347 = vmatprep.subr.bf16.mxu0 0
    %348 = vmatpush1.bf16.msra.mxu0 0
    %349 = vmatprep.subr.bf16.mxu0 0
    %350 = vmatpush1.bf16.msra.mxu0 0
    %351 = vmatprep.subr.bf16.mxu0 0
    %352 = vmatpush1.bf16.msra.mxu0 0
    %353 = vmatprep.subr.bf16.mxu0 0
    %354 = vmatpush1.bf16.msra.mxu0 0
    %355 = vmatprep.subr.bf16.mxu0 0
    %356 = vmatpush1.bf16.msra.mxu0 0
    %357 = vmatprep.subr.bf16.mxu0 0
    %358 = vmatpush1.bf16.msra.mxu0 0
    %359 = vmatprep.subr.bf16.mxu0 0
    %360 = vmatpush1.bf16.msra.mxu0 0
    %361 = vmatprep.subr.bf16.mxu0 0
    %362 = vmatpush1.bf16.msra.mxu0 0
    %363 = vmatprep.mubr.bf16.mxu0 0
    %364 = vmatmul.mubr.bf16.gmra.mrb[0].mxu0 %v247
    %v365 = vpop.f32.mrb[0].mxu0
    %v366 = vadd.f32 0.0, %v365
    %v367 = vpop.f32.mrb[0].mxu0
    %v368 = vadd.f32 0.0, %v367
    %v369 = vpop.f32.mrb[0].mxu0
    %v370 = vadd.f32 0.0, %v369
    %v371 = vpop.f32.mrb[0].mxu0
    %v372 = vadd.f32 0.0, %v371
    %373 = vmatprep.mubr.bf16.mxu0 0
    %374 = vmatmul.mubr.bf16.gmra.mrb[0].mxu0 %v250
    %v375 = vpop.f32.mrb[0].mxu0
    %v376 = vadd.f32 0.0, %v375
    %v377 = vpop.f32.mrb[0].mxu0
    %v378 = vadd.f32 0.0, %v377
    %v379 = vpop.f32.mrb[0].mxu0
    %v380 = vadd.f32 0.0, %v379
    %v381 = vpop.f32.mrb[0].mxu0
    %v382 = vadd.f32 0.0, %v381
    %383 = vmatprep.mubr.bf16.mxu0 0
    %384 = vmatmul.mubr.bf16.gmra.mrb[0].mxu0 %v253
    %v385 = vpop.f32.mrb[0].mxu0
    %v386 = vadd.f32 0.0, %v385
    %v387 = vpop.f32.mrb[0].mxu0
    %v388 = vadd.f32 0.0, %v387
    %v389 = vpop.f32.mrb[0].mxu0
    %v390 = vadd.f32 0.0, %v389
    %v391 = vpop.f32.mrb[0].mxu0
    %v392 = vadd.f32 0.0, %v391
    %393 = vmatprep.mubr.bf16.mxu0 0
    %394 = vmatmul.mubr.bf16.gmra.mrb[0].mxu0 %v256
    %v395 = vpop.f32.mrb[0].mxu0
    %v396 = vadd.f32 0.0, %v395
    %v397 = vpop.f32.mrb[0].mxu0
    %v398 = vadd.f32 0.0, %v397
    %v399 = vpop.f32.mrb[0].mxu0
    %v400 = vadd.f32 0.0, %v399
    %v401 = vpop.f32.mrb[0].mxu0
    %v402 = vadd.f32 0.0, %v401
    %403 = vdwg.mxu0
    %404 = vmatprep.subr.bf16.mxu0 %v214
    %405 = vmatpush1.bf16.msra.mxu0 %v213
    %406 = vmatprep.subr.bf16.mxu0 %v223
    %407 = vmatpush1.bf16.msra.mxu0 %v222
    %408 = vmatprep.subr.bf16.mxu0 0
    %409 = vmatpush1.bf16.msra.mxu0 0
    %410 = vmatprep.subr.bf16.mxu0 0
    %411 = vmatpush1.bf16.msra.mxu0 0
    %412 = vmatprep.subr.bf16.mxu0 0
    %413 = vmatpush1.bf16.msra.mxu0 0
    %414 = vmatprep.subr.bf16.mxu0 0
    %415 = vmatpush1.bf16.msra.mxu0 0
    %416 = vmatprep.subr.bf16.mxu0 0
    %417 = vmatpush1.bf16.msra.mxu0 0
    %418 = vmatprep.subr.bf16.mxu0 0
    %419 = vmatpush1.bf16.msra.mxu0 0
    %420 = vmatprep.subr.bf16.mxu0 0
    %421 = vmatpush1.bf16.msra.mxu0 0
    %422 = vmatprep.subr.bf16.mxu0 0
    %423 = vmatpush1.bf16.msra.mxu0 0
    %424 = vmatprep.subr.bf16.mxu0 0
    %425 = vmatpush1.bf16.msra.mxu0 0
    %426 = vmatprep.subr.bf16.mxu0 0
    %427 = vmatpush1.bf16.msra.mxu0 0
    %428 = vmatprep.subr.bf16.mxu0 0
    %429 = vmatpush1.bf16.msra.mxu0 0
    %430 = vmatprep.subr.bf16.mxu0 0
    %431 = vmatpush1.bf16.msra.mxu0 0
    %432 = vmatprep.subr.bf16.mxu0 0
    %433 = vmatpush1.bf16.msra.mxu0 0
    %434 = vmatprep.subr.bf16.mxu0 0
    %435 = vmatpush1.bf16.msra.mxu0 0
    %436 = vmatprep.mubr.bf16.mxu0 0
    %437 = vmatmul.mubr.bf16.gmra.mrb[0].mxu0 %v247
    %v438 = vpop.f32.mrb[0].mxu0
    %v439 = vadd.f32 0.0, %v438
    %v440 = vpop.f32.mrb[0].mxu0
    %v441 = vadd.f32 0.0, %v440
    %v442 = vpop.f32.mrb[0].mxu0
    %v443 = vadd.f32 0.0, %v442
    %v444 = vpop.f32.mrb[0].mxu0
    %v445 = vadd.f32 0.0, %v444
    %446 = vmatprep.mubr.bf16.mxu0 0
    %447 = vmatmul.mubr.bf16.gmra.mrb[0].mxu0 %v250
    %v448 = vpop.f32.mrb[0].mxu0
    %v449 = vadd.f32 0.0, %v448
    %v450 = vpop.f32.mrb[0].mxu0
    %v451 = vadd.f32 0.0, %v450
    %v452 = vpop.f32.mrb[0].mxu0
    %v453 = vadd.f32 0.0, %v452
    %v454 = vpop.f32.mrb[0].mxu0
    %v455 = vadd.f32 0.0, %v454
    %456 = vmatprep.mubr.bf16.mxu0 0
    %457 = vmatmul.mubr.bf16.gmra.mrb[0].mxu0 %v253
    %v458 = vpop.f32.mrb[0].mxu0
    %v459 = vadd.f32 0.0, %v458
    %v460 = vpop.f32.mrb[0].mxu0
    %v461 = vadd.f32 0.0, %v460
    %v462 = vpop.f32.mrb[0].mxu0
    %v463 = vadd.f32 0.0, %v462
    %v464 = vpop.f32.mrb[0].mxu0
    %v465 = vadd.f32 0.0, %v464
    %466 = vmatprep.mubr.bf16.mxu0 0
    %467 = vmatmul.mubr.bf16.gmra.mrb[0].mxu0 %v256
    %v468 = vpop.f32.mrb[0].mxu0
    %v469 = vadd.f32 0.0, %v468
    %v470 = vpop.f32.mrb[0].mxu0
    %v471 = vadd.f32 0.0, %v470
    %v472 = vpop.f32.mrb[0].mxu0
    %v473 = vadd.f32 0.0, %v472
    %v474 = vpop.f32.mrb[0].mxu0
    %v475 = vadd.f32 0.0, %v474
    %476 = vdwg.mxu0
    %477 = vmatprep.subr.bf16.mxu0 %v216
    %478 = vmatpush1.bf16.msra.mxu0 %v215
    %479 = vmatprep.subr.bf16.mxu0 %v225
    %480 = vmatpush1.bf16.msra.mxu0 %v224
    %481 = vmatprep.subr.bf16.mxu0 0
    %482 = vmatpush1.bf16.msra.mxu0 0
    %483 = vmatprep.subr.bf16.mxu0 0
    %484 = vmatpush1.bf16.msra.mxu0 0
    %485 = vmatprep.subr.bf16.mxu0 0
    %486 = vmatpush1.bf16.msra.mxu0 0
    %487 = vmatprep.subr.bf16.mxu0 0
    %488 = vmatpush1.bf16.msra.mxu0 0
    %489 = vmatprep.subr.bf16.mxu0 0
    %490 = vmatpush1.bf16.msra.mxu0 0
    %491 = vmatprep.subr.bf16.mxu0 0
    %492 = vmatpush1.bf16.msra.mxu0 0
    %493 = vmatprep.subr.bf16.mxu0 0
    %494 = vmatpush1.bf16.msra.mxu0 0
    %495 = vmatprep.subr.bf16.mxu0 0
    %496 = vmatpush1.bf16.msra.mxu0 0
    %497 = vmatprep.subr.bf16.mxu0 0
    %498 = vmatpush1.bf16.msra.mxu0 0
    %499 = vmatprep.subr.bf16.mxu0 0
    %500 = vmatpush1.bf16.msra.mxu0 0
    %501 = vmatprep.subr.bf16.mxu0 0
    %502 = vmatpush1.bf16.msra.mxu0 0
    %503 = vmatprep.subr.bf16.mxu0 0
    %504 = vmatpush1.bf16.msra.mxu0 0
    %505 = vmatprep.subr.bf16.mxu0 0
    %506 = vmatpush1.bf16.msra.mxu0 0
    %507 = vmatprep.subr.bf16.mxu0 0
    %508 = vmatpush1.bf16.msra.mxu0 0
    %509 = vmatprep.mubr.bf16.mxu0 0
    %510 = vmatmul.mubr.bf16.gmra.mrb[0].mxu0 %v247
    %v511 = vpop.f32.mrb[0].mxu0
    %v512 = vadd.f32 0.0, %v511
    %v513 = vpop.f32.mrb[0].mxu0
    %v514 = vadd.f32 0.0, %v513
    %v515 = vpop.f32.mrb[0].mxu0
    %v516 = vadd.f32 0.0, %v515
    %v517 = vpop.f32.mrb[0].mxu0
    %v518 = vadd.f32 0.0, %v517
    %519 = vmatprep.mubr.bf16.mxu0 0
    %520 = vmatmul.mubr.bf16.gmra.mrb[0].mxu0 %v250
    %v521 = vpop.f32.mrb[0].mxu0
    %v522 = vadd.f32 0.0, %v521
    %v523 = vpop.f32.mrb[0].mxu0
    %v524 = vadd.f32 0.0, %v523
    %v525 = vpop.f32.mrb[0].mxu0
    %v526 = vadd.f32 0.0, %v525
    %v527 = vpop.f32.mrb[0].mxu0
    %v528 = vadd.f32 0.0, %v527
    %529 = vmatprep.mubr.bf16.mxu0 0
    %530 = vmatmul.mubr.bf16.gmra.mrb[0].mxu0 %v253
    %v531 = vpop.f32.mrb[0].mxu0
    %v532 = vadd.f32 0.0, %v531
    %v533 = vpop.f32.mrb[0].mxu0
    %v534 = vadd.f32 0.0, %v533
    %v535 = vpop.f32.mrb[0].mxu0
    %v536 = vadd.f32 0.0, %v535
    %v537 = vpop.f32.mrb[0].mxu0
    %v538 = vadd.f32 0.0, %v537
    %539 = vmatprep.mubr.bf16.mxu0 0
    %540 = vmatmul.mubr.bf16.gmra.mrb[0].mxu0 %v256
    %v541 = vpop.f32.mrb[0].mxu0
    %v542 = vadd.f32 0.0, %v541
    %v543 = vpop.f32.mrb[0].mxu0
    %v544 = vadd.f32 0.0, %v543
    %v545 = vpop.f32.mrb[0].mxu0
    %v546 = vadd.f32 0.0, %v545
    %v547 = vpop.f32.mrb[0].mxu0
    %v548 = vadd.f32 0.0, %v547
    %549 = vdwg.mxu0
    %550 = vmatprep.subr.bf16.mxu0 0
    %551 = vmatpush1.bf16.msra.mxu0 %v217
    %552 = vmatprep.subr.bf16.mxu0 0
    %553 = vmatpush1.bf16.msra.mxu0 %v226
    %554 = vmatprep.subr.bf16.mxu0 0
    %555 = vmatpush1.bf16.msra.mxu0 0
    %556 = vmatprep.subr.bf16.mxu0 0
    %557 = vmatpush1.bf16.msra.mxu0 0
    %558 = vmatprep.subr.bf16.mxu0 0
    %559 = vmatpush1.bf16.msra.mxu0 0
    %560 = vmatprep.subr.bf16.mxu0 0
    %561 = vmatpush1.bf16.msra.mxu0 0
    %562 = vmatprep.subr.bf16.mxu0 0
    %563 = vmatpush1.bf16.msra.mxu0 0
    %564 = vmatprep.subr.bf16.mxu0 0
    %565 = vmatpush1.bf16.msra.mxu0 0
    %566 = vmatprep.subr.bf16.mxu0 0
    %567 = vmatpush1.bf16.msra.mxu0 0
    %568 = vmatprep.subr.bf16.mxu0 0
    %569 = vmatpush1.bf16.msra.mxu0 0
    %570 = vmatprep.subr.bf16.mxu0 0
    %571 = vmatpush1.bf16.msra.mxu0 0
    %572 = vmatprep.subr.bf16.mxu0 0
    %573 = vmatpush1.bf16.msra.mxu0 0
    %574 = vmatprep.subr.bf16.mxu0 0
    %575 = vmatpush1.bf16.msra.mxu0 0
    %576 = vmatprep.subr.bf16.mxu0 0
    %577 = vmatpush1.bf16.msra.mxu0 0
    %578 = vmatprep.subr.bf16.mxu0 0
    %579 = vmatpush1.bf16.msra.mxu0 0
    %580 = vmatprep.subr.bf16.mxu0 0
    %581 = vmatpush1.bf16.msra.mxu0 0
    %582 = vmatprep.mubr.bf16.mxu0 0
    %583 = vmatmul.mubr.bf16.gmra.mrb[0].mxu0 %v247
    %v584 = vpop.f32.mrb[0].mxu0
    %v585 = vadd.f32 0.0, %v584
    %v586 = vpop.f32.mrb[0].mxu0
    %v587 = vpop.f32.mrb[0].mxu0
    %v588 = vadd.f32 0.0, %v587
    %v589 = vpop.f32.mrb[0].mxu0
    %590 = vmatprep.mubr.bf16.mxu0 0
    %591 = vmatmul.mubr.bf16.gmra.mrb[0].mxu0 %v250
    %v592 = vpop.f32.mrb[0].mxu0
    %v593 = vadd.f32 0.0, %v592
    %v594 = vpop.f32.mrb[0].mxu0
    %v595 = vpop.f32.mrb[0].mxu0
    %v596 = vadd.f32 0.0, %v595
    %v597 = vpop.f32.mrb[0].mxu0
    %598 = vmatprep.mubr.bf16.mxu0 0
    %599 = vmatmul.mubr.bf16.gmra.mrb[0].mxu0 %v253
    %v600 = vpop.f32.mrb[0].mxu0
    %v601 = vadd.f32 0.0, %v600
    %v602 = vpop.f32.mrb[0].mxu0
    %v603 = vpop.f32.mrb[0].mxu0
    %v604 = vadd.f32 0.0, %v603
    %v605 = vpop.f32.mrb[0].mxu0
    %606 = vmatprep.mubr.bf16.mxu0 0
    %607 = vmatmul.mubr.bf16.gmra.mrb[0].mxu0 %v256
    %v608 = vpop.f32.mrb[0].mxu0
    %v609 = vadd.f32 0.0, %v608
    %v610 = vpop.f32.mrb[0].mxu0
    %v611 = vpop.f32.mrb[0].mxu0
    %v612 = vadd.f32 0.0, %v611
    %v613 = vpop.f32.mrb[0].mxu0
    %614 = vdwg.mxu0
    %v615 = vld [vmem:[%s2] sm:$0x1]
    %v617 = vlaneseq
    %v618 = vshrl.u32 %v617, 7
    %v619 = vsub.s32 0, %v618
    %v620 = vrot.slane %v615, %v619
    %v622 = vadd.f32 %v293, %v620
    %v623 = vadd.f32 %v297, %v620
    %v624 = vadd.f32 %v303, %v620
    %v625 = vadd.f32 %v307, %v620
    %v626 = vadd.f32 %v313, %v620
    %v627 = vadd.f32 %v317, %v620
    %v628 = vadd.f32 %v323, %v620
    %v629 = vadd.f32 %v327, %v620
    %v630 = vmin.f32 %v622, 30.0
    %v631 = vmin.f32 %v623, 30.0
    %v632 = vmin.f32 %v624, 30.0
    %v633 = vmin.f32 %v625, 30.0
    %v634 = vmin.f32 %v626, 30.0
    %v635 = vmin.f32 %v627, 30.0
    %v636 = vmin.f32 %v628, 30.0
    %v637 = vmin.f32 %v629, 30.0
    %v638 = vmul.f32 %v630, 1.442695
    %v639 = vpow.pop %v638
    %v640 = vmul.f32 %v631, 1.442695
    %v641 = vpow.pop %v640
    %v642 = vmul.f32 %v632, 1.442695
    %v643 = vpow.pop %v642
    %v644 = vmul.f32 %v633, 1.442695
    %v645 = vpow.pop %v644
    %v646 = vmul.f32 %v634, 1.442695
    %v647 = vpow.pop %v646
    %v648 = vmul.f32 %v635, 1.442695
    %v649 = vpow.pop %v648
    %v650 = vmul.f32 %v636, 1.442695
    %v651 = vpow.pop %v650
    %v652 = vmul.f32 %v637, 1.442695
    %v653 = vpow.pop %v652
    %v654 = vadd.f32 %v639, 2.0
    %v655 = vadd.f32 %v641, 2.0
    %v656 = vadd.f32 %v643, 2.0
    %v657 = vadd.f32 %v645, 2.0
    %v658 = vadd.f32 %v647, 2.0
    %v659 = vadd.f32 %v649, 2.0
    %v660 = vadd.f32 %v651, 2.0
    %v661 = vadd.f32 %v653, 2.0
    %v662 = vmul.f32 %v639, %v654
    %v663 = vmul.f32 %v641, %v655
    %v664 = vmul.f32 %v643, %v656
    %v665 = vmul.f32 %v645, %v657
    %v666 = vmul.f32 %v647, %v658
    %v667 = vmul.f32 %v649, %v659
    %v668 = vmul.f32 %v651, %v660
    %v669 = vmul.f32 %v653, %v661
    %v670 = vadd.f32 %v662, 2.0
    %v671 = vadd.f32 %v663, 2.0
    %v672 = vadd.f32 %v664, 2.0
    %v673 = vadd.f32 %v665, 2.0
    %v674 = vadd.f32 %v666, 2.0
    %v675 = vadd.f32 %v667, 2.0
    %v676 = vadd.f32 %v668, 2.0
    %v677 = vadd.f32 %v669, 2.0
    %v678 = vrcp.pop %v670
    %v679 = vrcp.pop %v671
    %v680 = vrcp.pop %v672
    %v681 = vrcp.pop %v673
    %v682 = vrcp.pop %v674
    %v683 = vrcp.pop %v675
    %v684 = vrcp.pop %v676
    %v685 = vrcp.pop %v677
    %v686 = vmul.f32 %v662, %v678
    %v687 = vmul.f32 %v663, %v679
    %v688 = vmul.f32 %v664, %v680
    %v689 = vmul.f32 %v665, %v681
    %v690 = vmul.f32 %v666, %v682
    %v691 = vmul.f32 %v667, %v683
    %v692 = vmul.f32 %v668, %v684
    %v693 = vmul.f32 %v669, %v685
    %v694 = vmul.f32 %v622, %v686
    %v695 = vmul.f32 %v623, %v687
    %v696 = vmul.f32 %v624, %v688
    %v697 = vmul.f32 %v625, %v689
    %v698 = vmul.f32 %v626, %v690
    %v699 = vmul.f32 %v627, %v691
    %v700 = vmul.f32 %v628, %v692
    %v701 = vmul.f32 %v629, %v693
    %v702 = vpack.c.bf16 %v695, %v694
    %v703 = vpack.c.bf16 %v697, %v696
    %v704 = vpack.c.bf16 %v699, %v698
    %v705 = vpack.c.bf16 %v701, %v700
    %v706 = vld [vmem:[#allocation9] sm:$0xf]
    %v707 = vld [vmem:[#allocation9 + $0x4] sm:$0xf]
    %v708 = vld [vmem:[#allocation9 + $0x8] sm:$0xf]
    %v709 = vld [vmem:[#allocation9 + $0xc] sm:$0xf]
    %v710 = vld [vmem:[#allocation9 + $0x10] sm:$0xf]
    %v711 = vld [vmem:[#allocation9 + $0x14] sm:$0xf]
    %v712 = vld [vmem:[#allocation9 + $0x18] sm:$0xf]
    %v713 = vld [vmem:[#allocation9 + $0x1c] sm:$0xf]
    %v714 = vld [vmem:[#allocation9 + $0x20] sm:$0xf]
    %v715 = vld [vmem:[#allocation9 + $0x24] sm:$0xf]
    %v716 = vld [vmem:[#allocation9 + $0x28] sm:$0xf]
    %v717 = vld [vmem:[#allocation9 + $0x2c] sm:$0xf]
    %v718 = vld [vmem:[#allocation9 + $0x30] sm:$0xf]
    %v719 = vld [vmem:[#allocation9 + $0x34] sm:$0xf]
    %v720 = vld [vmem:[#allocation9 + $0x38] sm:$0xf]
    %v721 = vld [vmem:[#allocation9 + $0x3c] sm:$0xf]
    %v722 = vld [vmem:[%s5] sm:$0x1]
    %v724 = vlaneseq
    %v725 = vshrl.u32 %v724, 7
    %v726 = vsub.s32 0, %v725
    %v727 = vrot.slane %v722, %v726
    %v745 = vunpack.c.l.b16 %v706
    %v746 = vunpack.c.l.b16 %v707
    %v747 = vunpack.c.l.b16 %v708
    %v748 = vunpack.c.l.b16 %v709
    %v749 = vunpack.c.l.b16 %v710
    %v750 = vunpack.c.l.b16 %v711
    %v751 = vunpack.c.l.b16 %v712
    %v752 = vunpack.c.l.b16 %v713
    %v753 = vunpack.c.l.b16 %v714
    %v754 = vunpack.c.l.b16 %v715
    %v755 = vunpack.c.l.b16 %v716
    %v756 = vunpack.c.l.b16 %v717
    %v757 = vunpack.c.l.b16 %v718
    %v758 = vunpack.c.l.b16 %v719
    %v759 = vunpack.c.l.b16 %v720
    %v760 = vunpack.c.l.b16 %v721
    %v761 = vpack.c.b16 %v746, %v745
    %v762 = vpack.c.b16 %v748, %v747
    %v763 = vpack.c.b16 %v750, %v749
    %v764 = vpack.c.b16 %v752, %v751
    %v765 = vpack.c.b16 %v754, %v753
    %v766 = vpack.c.b16 %v756, %v755
    %v767 = vpack.c.b16 %v758, %v757
    %v768 = vpack.c.b16 %v760, %v759
    %777 = vmatprep.subr.bf16.mxu0 0
    %778 = vmatpush1.bf16.msra.mxu0 %v761
    %779 = vmatprep.subr.bf16.mxu0 0
    %780 = vmatpush1.bf16.msra.mxu0 %v762
    %781 = vmatprep.subr.bf16.mxu0 0
    %782 = vmatpush1.bf16.msra.mxu0 %v763
    %783 = vmatprep.subr.bf16.mxu0 0
    %784 = vmatpush1.bf16.msra.mxu0 %v764
    %785 = vmatprep.subr.bf16.mxu0 0
    %786 = vmatpush1.bf16.msra.mxu0 %v765
    %787 = vmatprep.subr.bf16.mxu0 0
    %788 = vmatpush1.bf16.msra.mxu0 %v766
    %789 = vmatprep.subr.bf16.mxu0 0
    %790 = vmatpush1.bf16.msra.mxu0 %v767
    %791 = vmatprep.subr.bf16.mxu0 0
    %792 = vmatpush1.bf16.msra.mxu0 %v768
    %793 = vmatprep.subr.bf16.mxu0 0
    %794 = vmatpush1.bf16.msra.mxu0 0
    %795 = vmatprep.subr.bf16.mxu0 0
    %796 = vmatpush1.bf16.msra.mxu0 0
    %797 = vmatprep.subr.bf16.mxu0 0
    %798 = vmatpush1.bf16.msra.mxu0 0
    %799 = vmatprep.subr.bf16.mxu0 0
    %800 = vmatpush1.bf16.msra.mxu0 0
    %801 = vmatprep.subr.bf16.mxu0 0
    %802 = vmatpush1.bf16.msra.mxu0 0
    %803 = vmatprep.subr.bf16.mxu0 0
    %804 = vmatpush1.bf16.msra.mxu0 0
    %805 = vmatprep.subr.bf16.mxu0 0
    %806 = vmatpush1.bf16.msra.mxu0 0
    %807 = vmatprep.subr.bf16.mxu0 0
    %808 = vmatpush1.bf16.msra.mxu0 0
    %809 = vmatprep.mubr.bf16.mxu0 0
    %810 = vmatmul.mubr.bf16.gmra.mrb[0].mxu0 %v702
    %v811 = vpop.f32.mrb[0].mxu0
    %v812 = vadd.f32 %v727, %v811
    %v813 = vpop.f32.mrb[0].mxu0
    %v814 = vpop.f32.mrb[0].mxu0
    %v815 = vadd.f32 %v727, %v814
    %v816 = vpop.f32.mrb[0].mxu0
    %817 = vmatprep.mubr.bf16.mxu0 0
    %818 = vmatmul.mubr.bf16.gmra.mrb[0].mxu0 %v703
    %v819 = vpop.f32.mrb[0].mxu0
    %v820 = vadd.f32 %v727, %v819
    %v821 = vpop.f32.mrb[0].mxu0
    %v822 = vpop.f32.mrb[0].mxu0
    %v823 = vadd.f32 %v727, %v822
    %v824 = vpop.f32.mrb[0].mxu0
    %825 = vmatprep.mubr.bf16.mxu0 0
    %826 = vmatmul.mubr.bf16.gmra.mrb[0].mxu0 %v704
    %v827 = vpop.f32.mrb[0].mxu0
    %v828 = vadd.f32 %v727, %v827
    %v829 = vpop.f32.mrb[0].mxu0
    %v830 = vpop.f32.mrb[0].mxu0
    %v831 = vadd.f32 %v727, %v830
    %v832 = vpop.f32.mrb[0].mxu0
    %833 = vmatprep.mubr.bf16.mxu0 0
    %834 = vmatmul.mubr.bf16.gmra.mrb[0].mxu0 %v705
    %v835 = vpop.f32.mrb[0].mxu0
    %v836 = vadd.f32 %v727, %v835
    %v837 = vpop.f32.mrb[0].mxu0
    %v838 = vpop.f32.mrb[0].mxu0
    %v839 = vadd.f32 %v727, %v838
    %v840 = vpop.f32.mrb[0].mxu0
    %841 = vdwg.mxu0
    %v842 = vmin.f32 %v812, 30.0
    %v843 = vmin.f32 %v815, 30.0
    %v844 = vmin.f32 %v820, 30.0
    %v845 = vmin.f32 %v823, 30.0
    %v846 = vmin.f32 %v828, 30.0
    %v847 = vmin.f32 %v831, 30.0
    %v848 = vmin.f32 %v836, 30.0
    %v849 = vmin.f32 %v839, 30.0
    %v850 = vmul.f32 %v842, 1.442695
    %v851 = vpow.pop %v850
    %v852 = vmul.f32 %v843, 1.442695
    %v853 = vpow.pop %v852
    %v854 = vmul.f32 %v844, 1.442695
    %v855 = vpow.pop %v854
    %v856 = vmul.f32 %v845, 1.442695
    %v857 = vpow.pop %v856
    %v858 = vmul.f32 %v846, 1.442695
    %v859 = vpow.pop %v858
    %v860 = vmul.f32 %v847, 1.442695
    %v861 = vpow.pop %v860
    %v862 = vmul.f32 %v848, 1.442695
    %v863 = vpow.pop %v862
    %v864 = vmul.f32 %v849, 1.442695
    %v865 = vpow.pop %v864
    %v866 = vadd.f32 %v851, 2.0
    %v867 = vadd.f32 %v853, 2.0
    %v868 = vadd.f32 %v855, 2.0
    %v869 = vadd.f32 %v857, 2.0
    %v870 = vadd.f32 %v859, 2.0
    %v871 = vadd.f32 %v861, 2.0
    %v872 = vadd.f32 %v863, 2.0
    %v873 = vadd.f32 %v865, 2.0
    %v874 = vmul.f32 %v851, %v866
    %v875 = vmul.f32 %v853, %v867
    %v876 = vmul.f32 %v855, %v868
    %v877 = vmul.f32 %v857, %v869
    %v878 = vmul.f32 %v859, %v870
    %v879 = vmul.f32 %v861, %v871
    %v880 = vmul.f32 %v863, %v872
    %v881 = vmul.f32 %v865, %v873
    %v882 = vadd.f32 %v874, 2.0
    %v883 = vadd.f32 %v875, 2.0
    %v884 = vadd.f32 %v876, 2.0
    %v885 = vadd.f32 %v877, 2.0
    %v886 = vadd.f32 %v878, 2.0
    %v887 = vadd.f32 %v879, 2.0
    %v888 = vadd.f32 %v880, 2.0
    %v889 = vadd.f32 %v881, 2.0
    %v890 = vrcp.pop %v882
    %v891 = vrcp.pop %v883
    %v892 = vrcp.pop %v884
    %v893 = vrcp.pop %v885
    %v894 = vrcp.pop %v886
    %v895 = vrcp.pop %v887
    %v896 = vrcp.pop %v888
    %v897 = vrcp.pop %v889
    %v898 = vmul.f32 %v874, %v890
    %v899 = vmul.f32 %v875, %v891
    %v900 = vmul.f32 %v876, %v892
    %v901 = vmul.f32 %v877, %v893
    %v902 = vmul.f32 %v878, %v894
    %v903 = vmul.f32 %v879, %v895
    %v904 = vmul.f32 %v880, %v896
    %v905 = vmul.f32 %v881, %v897
    %v906 = vmul.f32 %v812, %v898
    %v907 = vmul.f32 %v815, %v899
    %v908 = vmul.f32 %v820, %v900
    %v909 = vmul.f32 %v823, %v901
    %v910 = vmul.f32 %v828, %v902
    %v911 = vmul.f32 %v831, %v903
    %v912 = vmul.f32 %v836, %v904
    %v913 = vmul.f32 %v839, %v905
    %v914 = vpack.c.bf16 %v907, %v906
    %v915 = vpack.c.bf16 %v909, %v908
    %v916 = vpack.c.bf16 %v911, %v910
    %v917 = vpack.c.bf16 %v913, %v912
    %918 = vst [vmem:[#allocation2] sm:$0xff] %v914
    %919 = vst [vmem:[#allocation2 + $0x8] sm:$0xff] %v915
    %920 = vst [vmem:[#allocation2 + $0x10] sm:$0xff] %v916
    %921 = vst [vmem:[#allocation2 + $0x18] sm:$0xff] %v917
    %v922 = vadd.f32 %v295, %v620
    %v923 = vadd.f32 %v299, %v620
    %v924 = vadd.f32 %v305, %v620
    %v925 = vadd.f32 %v309, %v620
    %v926 = vadd.f32 %v315, %v620
    %v927 = vadd.f32 %v319, %v620
    %v928 = vadd.f32 %v325, %v620
    %v929 = vadd.f32 %v329, %v620
    %v930 = vmin.f32 %v922, 30.0
    %v931 = vmin.f32 %v923, 30.0
    %v932 = vmin.f32 %v924, 30.0
    %v933 = vmin.f32 %v925, 30.0
    %v934 = vmin.f32 %v926, 30.0
    %v935 = vmin.f32 %v927, 30.0
    %v936 = vmin.f32 %v928, 30.0
    %v937 = vmin.f32 %v929, 30.0
    %v938 = vmul.f32 %v930, 1.442695
    %v939 = vpow.pop %v938
    %v940 = vmul.f32 %v931, 1.442695
    %v941 = vpow.pop %v940
    %v942 = vmul.f32 %v932, 1.442695
    %v943 = vpow.pop %v942
    %v944 = vmul.f32 %v933, 1.442695
    %v945 = vpow.pop %v944
    %v946 = vmul.f32 %v934, 1.442695
    %v947 = vpow.pop %v946
    %v948 = vmul.f32 %v935, 1.442695
    %v949 = vpow.pop %v948
    %v950 = vmul.f32 %v936, 1.442695
    %v951 = vpow.pop %v950
    %v952 = vmul.f32 %v937, 1.442695
    %v953 = vpow.pop %v952
    %v954 = vadd.f32 %v939, 2.0
    %v955 = vadd.f32 %v941, 2.0
    %v956 = vadd.f32 %v943, 2.0
    %v957 = vadd.f32 %v945, 2.0
    %v958 = vadd.f32 %v947, 2.0
    %v959 = vadd.f32 %v949, 2.0
    %v960 = vadd.f32 %v951, 2.0
    %v961 = vadd.f32 %v953, 2.0
    %v962 = vmul.f32 %v939, %v954
    %v963 = vmul.f32 %v941, %v955
    %v964 = vmul.f32 %v943, %v956
    %v965 = vmul.f32 %v945, %v957
    %v966 = vmul.f32 %v947, %v958
    %v967 = vmul.f32 %v949, %v959
    %v968 = vmul.f32 %v951, %v960
    %v969 = vmul.f32 %v953, %v961
    %v970 = vadd.f32 %v962, 2.0
    %v971 = vadd.f32 %v963, 2.0
    %v972 = vadd.f32 %v964, 2.0
    %v973 = vadd.f32 %v965, 2.0
    %v974 = vadd.f32 %v966, 2.0
    %v975 = vadd.f32 %v967, 2.0
    %v976 = vadd.f32 %v968, 2.0
    %v977 = vadd.f32 %v969, 2.0
    %v978 = vrcp.pop %v970
    %v979 = vrcp.pop %v971
    %v980 = vrcp.pop %v972
    %v981 = vrcp.pop %v973
    %v982 = vrcp.pop %v974
    %v983 = vrcp.pop %v975
    %v984 = vrcp.pop %v976
    %v985 = vrcp.pop %v977
    %v986 = vmul.f32 %v962, %v978
    %v987 = vmul.f32 %v963, %v979
    %v988 = vmul.f32 %v964, %v980
    %v989 = vmul.f32 %v965, %v981
    %v990 = vmul.f32 %v966, %v982
    %v991 = vmul.f32 %v967, %v983
    %v992 = vmul.f32 %v968, %v984
    %v993 = vmul.f32 %v969, %v985
    %v994 = vmul.f32 %v922, %v986
    %v995 = vmul.f32 %v923, %v987
    %v996 = vmul.f32 %v924, %v988
    %v997 = vmul.f32 %v925, %v989
    %v998 = vmul.f32 %v926, %v990
    %v999 = vmul.f32 %v927, %v991
    %v1000 = vmul.f32 %v928, %v992
    %v1001 = vmul.f32 %v929, %v993
    %v1002 = vpack.c.bf16 %v995, %v994
    %v1003 = vpack.c.bf16 %v997, %v996
    %v1004 = vpack.c.bf16 %v999, %v998
    %v1005 = vpack.c.bf16 %v1001, %v1000
    %v1006 = vld [vmem:[#allocation9] sm:$0xf]
    %v1007 = vld [vmem:[#allocation9 + $0x4] sm:$0xf]
    %v1008 = vld [vmem:[#allocation9 + $0x8] sm:$0xf]
    %v1009 = vld [vmem:[#allocation9 + $0xc] sm:$0xf]
    %v1010 = vld [vmem:[#allocation9 + $0x10] sm:$0xf]
    %v1011 = vld [vmem:[#allocation9 + $0x14] sm:$0xf]
    %v1012 = vld [vmem:[#allocation9 + $0x18] sm:$0xf]
    %v1013 = vld [vmem:[#allocation9 + $0x1c] sm:$0xf]
    %v1014 = vld [vmem:[#allocation9 + $0x20] sm:$0xf]
    %v1015 = vld [vmem:[#allocation9 + $0x24] sm:$0xf]
    %v1016 = vld [vmem:[#allocation9 + $0x28] sm:$0xf]
    %v1017 = vld [vmem:[#allocation9 + $0x2c] sm:$0xf]
    %v1018 = vld [vmem:[#allocation9 + $0x30] sm:$0xf]
    %v1019 = vld [vmem:[#allocation9 + $0x34] sm:$0xf]
    %v1020 = vld [vmem:[#allocation9 + $0x38] sm:$0xf]
    %v1021 = vld [vmem:[#allocation9 + $0x3c] sm:$0xf]
    %v1022 = vld [vmem:[%s5] sm:$0x1]
    %v1024 = vlaneseq
    %v1025 = vshrl.u32 %v1024, 7
    %v1026 = vsub.s32 0, %v1025
    %v1027 = vrot.slane %v1022, %v1026
    %v1045 = vunpack.c.l.b16 %v1006
    %v1046 = vunpack.c.l.b16 %v1007
    %v1047 = vunpack.c.l.b16 %v1008
    %v1048 = vunpack.c.l.b16 %v1009
    %v1049 = vunpack.c.l.b16 %v1010
    %v1050 = vunpack.c.l.b16 %v1011
    %v1051 = vunpack.c.l.b16 %v1012
    %v1052 = vunpack.c.l.b16 %v1013
    %v1053 = vunpack.c.l.b16 %v1014
    %v1054 = vunpack.c.l.b16 %v1015
    %v1055 = vunpack.c.l.b16 %v1016
    %v1056 = vunpack.c.l.b16 %v1017
    %v1057 = vunpack.c.l.b16 %v1018
    %v1058 = vunpack.c.l.b16 %v1019
    %v1059 = vunpack.c.l.b16 %v1020
    %v1060 = vunpack.c.l.b16 %v1021
    %v1061 = vpack.c.b16 %v1046, %v1045
    %v1062 = vpack.c.b16 %v1048, %v1047
    %v1063 = vpack.c.b16 %v1050, %v1049
    %v1064 = vpack.c.b16 %v1052, %v1051
    %v1065 = vpack.c.b16 %v1054, %v1053
    %v1066 = vpack.c.b16 %v1056, %v1055
    %v1067 = vpack.c.b16 %v1058, %v1057
    %v1068 = vpack.c.b16 %v1060, %v1059
    %1077 = vmatprep.subr.bf16.mxu0 0
    %1078 = vmatpush1.bf16.msra.mxu0 %v1061
    %1079 = vmatprep.subr.bf16.mxu0 0
    %1080 = vmatpush1.bf16.msra.mxu0 %v1062
    %1081 = vmatprep.subr.bf16.mxu0 0
    %1082 = vmatpush1.bf16.msra.mxu0 %v1063
    %1083 = vmatprep.subr.bf16.mxu0 0
    %1084 = vmatpush1.bf16.msra.mxu0 %v1064
    %1085 = vmatprep.subr.bf16.mxu0 0
    %1086 = vmatpush1.bf16.msra.mxu0 %v1065
    %1087 = vmatprep.subr.bf16.mxu0 0
    %1088 = vmatpush1.bf16.msra.mxu0 %v1066
    %1089 = vmatprep.subr.bf16.mxu0 0
    %1090 = vmatpush1.bf16.msra.mxu0 %v1067
    %1091 = vmatprep.subr.bf16.mxu0 0
    %1092 = vmatpush1.bf16.msra.mxu0 %v1068
    %1093 = vmatprep.subr.bf16.mxu0 0
    %1094 = vmatpush1.bf16.msra.mxu0 0
    %1095 = vmatprep.subr.bf16.mxu0 0
    %1096 = vmatpush1.bf16.msra.mxu0 0
    %1097 = vmatprep.subr.bf16.mxu0 0
    %1098 = vmatpush1.bf16.msra.mxu0 0
    %1099 = vmatprep.subr.bf16.mxu0 0
    %1100 = vmatpush1.bf16.msra.mxu0 0
    %1101 = vmatprep.subr.bf16.mxu0 0
    %1102 = vmatpush1.bf16.msra.mxu0 0
    %1103 = vmatprep.subr.bf16.mxu0 0
    %1104 = vmatpush1.bf16.msra.mxu0 0
    %1105 = vmatprep.subr.bf16.mxu0 0
    %1106 = vmatpush1.bf16.msra.mxu0 0
    %1107 = vmatprep.subr.bf16.mxu0 0
    %1108 = vmatpush1.bf16.msra.mxu0 0
    %1109 = vmatprep.mubr.bf16.mxu0 0
    %1110 = vmatmul.mubr.bf16.gmra.mrb[0].mxu0 %v1002
    %v1111 = vpop.f32.mrb[0].mxu0
    %v1112 = vadd.f32 %v1027, %v1111
    %v1113 = vpop.f32.mrb[0].mxu0
    %v1114 = vpop.f32.mrb[0].mxu0
    %v1115 = vadd.f32 %v1027, %v1114
    %v1116 = vpop.f32.mrb[0].mxu0
    %1117 = vmatprep.mubr.bf16.mxu0 0
    %1118 = vmatmul.mubr.bf16.gmra.mrb[0].mxu0 %v1003
    %v1119 = vpop.f32.mrb[0].mxu0
    %v1120 = vadd.f32 %v1027, %v1119
    %v1121 = vpop.f32.mrb[0].mxu0
    %v1122 = vpop.f32.mrb[0].mxu0
    %v1123 = vadd.f32 %v1027, %v1122
    %v1124 = vpop.f32.mrb[0].mxu0
    %1125 = vmatprep.mubr.bf16.mxu0 0
    %1126 = vmatmul.mubr.bf16.gmra.mrb[0].mxu0 %v1004
    %v1127 = vpop.f32.mrb[0].mxu0
    %v1128 = vadd.f32 %v1027, %v1127
    %v1129 = vpop.f32.mrb[0].mxu0
    %v1130 = vpop.f32.mrb[0].mxu0
    %v1131 = vadd.f32 %v1027, %v1130
    %v1132 = vpop.f32.mrb[0].mxu0
    %1133 = vmatprep.mubr.bf16.mxu0 0
    %1134 = vmatmul.mubr.bf16.gmra.mrb[0].mxu0 %v1005
    %v1135 = vpop.f32.mrb[0].mxu0
    %v1136 = vadd.f32 %v1027, %v1135
    %v1137 = vpop.f32.mrb[0].mxu0
    %v1138 = vpop.f32.mrb[0].mxu0
    %v1139 = vadd.f32 %v1027, %v1138
    %v1140 = vpop.f32.mrb[0].mxu0
    %1141 = vdwg.mxu0
    %v1142 = vmin.f32 %v1112, 30.0
    %v1143 = vmin.f32 %v1115, 30.0
    %v1144 = vmin.f32 %v1120, 30.0
    %v1145 = vmin.f32 %v1123, 30.0
    %v1146 = vmin.f32 %v1128, 30.0
    %v1147 = vmin.f32 %v1131, 30.0
    %v1148 = vmin.f32 %v1136, 30.0
    %v1149 = vmin.f32 %v1139, 30.0
    %v1150 = vmul.f32 %v1142, 1.442695
    %v1151 = vpow.pop %v1150
    %v1152 = vmul.f32 %v1143, 1.442695
    %v1153 = vpow.pop %v1152
    %v1154 = vmul.f32 %v1144, 1.442695
    %v1155 = vpow.pop %v1154
    %v1156 = vmul.f32 %v1145, 1.442695
    %v1157 = vpow.pop %v1156
    %v1158 = vmul.f32 %v1146, 1.442695
    %v1159 = vpow.pop %v1158
    %v1160 = vmul.f32 %v1147, 1.442695
    %v1161 = vpow.pop %v1160
    %v1162 = vmul.f32 %v1148, 1.442695
    %v1163 = vpow.pop %v1162
    %v1164 = vmul.f32 %v1149, 1.442695
    %v1165 = vpow.pop %v1164
    %v1166 = vadd.f32 %v1151, 2.0
    %v1167 = vadd.f32 %v1153, 2.0
    %v1168 = vadd.f32 %v1155, 2.0
    %v1169 = vadd.f32 %v1157, 2.0
    %v1170 = vadd.f32 %v1159, 2.0
    %v1171 = vadd.f32 %v1161, 2.0
    %v1172 = vadd.f32 %v1163, 2.0
    %v1173 = vadd.f32 %v1165, 2.0
    %v1174 = vmul.f32 %v1151, %v1166
    %v1175 = vmul.f32 %v1153, %v1167
    %v1176 = vmul.f32 %v1155, %v1168
    %v1177 = vmul.f32 %v1157, %v1169
    %v1178 = vmul.f32 %v1159, %v1170
    %v1179 = vmul.f32 %v1161, %v1171
    %v1180 = vmul.f32 %v1163, %v1172
    %v1181 = vmul.f32 %v1165, %v1173
    %v1182 = vadd.f32 %v1174, 2.0
    %v1183 = vadd.f32 %v1175, 2.0
    %v1184 = vadd.f32 %v1176, 2.0
    %v1185 = vadd.f32 %v1177, 2.0
    %v1186 = vadd.f32 %v1178, 2.0
    %v1187 = vadd.f32 %v1179, 2.0
    %v1188 = vadd.f32 %v1180, 2.0
    %v1189 = vadd.f32 %v1181, 2.0
    %v1190 = vrcp.pop %v1182
    %v1191 = vrcp.pop %v1183
    %v1192 = vrcp.pop %v1184
    %v1193 = vrcp.pop %v1185
    %v1194 = vrcp.pop %v1186
    %v1195 = vrcp.pop %v1187
    %v1196 = vrcp.pop %v1188
    %v1197 = vrcp.pop %v1189
    %v1198 = vmul.f32 %v1174, %v1190
    %v1199 = vmul.f32 %v1175, %v1191
    %v1200 = vmul.f32 %v1176, %v1192
    %v1201 = vmul.f32 %v1177, %v1193
    %v1202 = vmul.f32 %v1178, %v1194
    %v1203 = vmul.f32 %v1179, %v1195
    %v1204 = vmul.f32 %v1180, %v1196
    %v1205 = vmul.f32 %v1181, %v1197
    %v1206 = vmul.f32 %v1112, %v1198
    %v1207 = vmul.f32 %v1115, %v1199
    %v1208 = vmul.f32 %v1120, %v1200
    %v1209 = vmul.f32 %v1123, %v1201
    %v1210 = vmul.f32 %v1128, %v1202
    %v1211 = vmul.f32 %v1131, %v1203
    %v1212 = vmul.f32 %v1136, %v1204
    %v1213 = vmul.f32 %v1139, %v1205
    %v1214 = vpack.c.bf16 %v1207, %v1206
    %v1215 = vpack.c.bf16 %v1209, %v1208
    %v1216 = vpack.c.bf16 %v1211, %v1210
    %v1217 = vpack.c.bf16 %v1213, %v1212
    %1218 = vst [vmem:[#allocation2 + $0x20] sm:$0xff] %v1214
    %1219 = vst [vmem:[#allocation2 + $0x28] sm:$0xff] %v1215
    %1220 = vst [vmem:[#allocation2 + $0x30] sm:$0xff] %v1216
    %1221 = vst [vmem:[#allocation2 + $0x38] sm:$0xff] %v1217
    %v1222 = vadd.f32 %v366, %v620
    %v1223 = vadd.f32 %v370, %v620
    %v1224 = vadd.f32 %v376, %v620
    %v1225 = vadd.f32 %v380, %v620
    %v1226 = vadd.f32 %v386, %v620
    %v1227 = vadd.f32 %v390, %v620
    %v1228 = vadd.f32 %v396, %v620
    %v1229 = vadd.f32 %v400, %v620
    %v1230 = vmin.f32 %v1222, 30.0
    %v1231 = vmin.f32 %v1223, 30.0
    %v1232 = vmin.f32 %v1224, 30.0
    %v1233 = vmin.f32 %v1225, 30.0
    %v1234 = vmin.f32 %v1226, 30.0
    %v1235 = vmin.f32 %v1227, 30.0
    %v1236 = vmin.f32 %v1228, 30.0
    %v1237 = vmin.f32 %v1229, 30.0
    %v1238 = vmul.f32 %v1230, 1.442695
    %v1239 = vpow.pop %v1238
    %v1240 = vmul.f32 %v1231, 1.442695
    %v1241 = vpow.pop %v1240
    %v1242 = vmul.f32 %v1232, 1.442695
    %v1243 = vpow.pop %v1242
    %v1244 = vmul.f32 %v1233, 1.442695
    %v1245 = vpow.pop %v1244
    %v1246 = vmul.f32 %v1234, 1.442695
    %v1247 = vpow.pop %v1246
    %v1248 = vmul.f32 %v1235, 1.442695
    %v1249 = vpow.pop %v1248
    %v1250 = vmul.f32 %v1236, 1.442695
    %v1251 = vpow.pop %v1250
    %v1252 = vmul.f32 %v1237, 1.442695
    %v1253 = vpow.pop %v1252
    %v1254 = vadd.f32 %v1239, 2.0
    %v1255 = vadd.f32 %v1241, 2.0
    %v1256 = vadd.f32 %v1243, 2.0
    %v1257 = vadd.f32 %v1245, 2.0
    %v1258 = vadd.f32 %v1247, 2.0
    %v1259 = vadd.f32 %v1249, 2.0
    %v1260 = vadd.f32 %v1251, 2.0
    %v1261 = vadd.f32 %v1253, 2.0
    %v1262 = vmul.f32 %v1239, %v1254
    %v1263 = vmul.f32 %v1241, %v1255
    %v1264 = vmul.f32 %v1243, %v1256
    %v1265 = vmul.f32 %v1245, %v1257
    %v1266 = vmul.f32 %v1247, %v1258
    %v1267 = vmul.f32 %v1249, %v1259
    %v1268 = vmul.f32 %v1251, %v1260
    %v1269 = vmul.f32 %v1253, %v1261
    %v1270 = vadd.f32 %v1262, 2.0
    %v1271 = vadd.f32 %v1263, 2.0
    %v1272 = vadd.f32 %v1264, 2.0
    %v1273 = vadd.f32 %v1265, 2.0
    %v1274 = vadd.f32 %v1266, 2.0
    %v1275 = vadd.f32 %v1267, 2.0
    %v1276 = vadd.f32 %v1268, 2.0
    %v1277 = vadd.f32 %v1269, 2.0
    %v1278 = vrcp.pop %v1270
    %v1279 = vrcp.pop %v1271
    %v1280 = vrcp.pop %v1272
    %v1281 = vrcp.pop %v1273
    %v1282 = vrcp.pop %v1274
    %v1283 = vrcp.pop %v1275
    %v1284 = vrcp.pop %v1276
    %v1285 = vrcp.pop %v1277
    %v1286 = vmul.f32 %v1262, %v1278
    %v1287 = vmul.f32 %v1263, %v1279
    %v1288 = vmul.f32 %v1264, %v1280
    %v1289 = vmul.f32 %v1265, %v1281
    %v1290 = vmul.f32 %v1266, %v1282
    %v1291 = vmul.f32 %v1267, %v1283
    %v1292 = vmul.f32 %v1268, %v1284
    %v1293 = vmul.f32 %v1269, %v1285
    %v1294 = vmul.f32 %v1222, %v1286
    %v1295 = vmul.f32 %v1223, %v1287
    %v1296 = vmul.f32 %v1224, %v1288
    %v1297 = vmul.f32 %v1225, %v1289
    %v1298 = vmul.f32 %v1226, %v1290
    %v1299 = vmul.f32 %v1227, %v1291
    %v1300 = vmul.f32 %v1228, %v1292
    %v1301 = vmul.f32 %v1229, %v1293
    %v1302 = vpack.c.bf16 %v1295, %v1294
    %v1303 = vpack.c.bf16 %v1297, %v1296
    %v1304 = vpack.c.bf16 %v1299, %v1298
    %v1305 = vpack.c.bf16 %v1301, %v1300
    %v1306 = vld [vmem:[#allocation9] sm:$0xf]
    %v1307 = vld [vmem:[#allocation9 + $0x4] sm:$0xf]
    %v1308 = vld [vmem:[#allocation9 + $0x8] sm:$0xf]
    %v1309 = vld [vmem:[#allocation9 + $0xc] sm:$0xf]
    %v1310 = vld [vmem:[#allocation9 + $0x10] sm:$0xf]
    %v1311 = vld [vmem:[#allocation9 + $0x14] sm:$0xf]
    %v1312 = vld [vmem:[#allocation9 + $0x18] sm:$0xf]
    %v1313 = vld [vmem:[#allocation9 + $0x1c] sm:$0xf]
    %v1314 = vld [vmem:[#allocation9 + $0x20] sm:$0xf]
    %v1315 = vld [vmem:[#allocation9 + $0x24] sm:$0xf]
    %v1316 = vld [vmem:[#allocation9 + $0x28] sm:$0xf]
    %v1317 = vld [vmem:[#allocation9 + $0x2c] sm:$0xf]
    %v1318 = vld [vmem:[#allocation9 + $0x30] sm:$0xf]
    %v1319 = vld [vmem:[#allocation9 + $0x34] sm:$0xf]
    %v1320 = vld [vmem:[#allocation9 + $0x38] sm:$0xf]
    %v1321 = vld [vmem:[#allocation9 + $0x3c] sm:$0xf]
    %v1322 = vld [vmem:[%s5] sm:$0x1]
    %v1324 = vlaneseq
    %v1325 = vshrl.u32 %v1324, 7
    %v1326 = vsub.s32 0, %v1325
    %v1327 = vrot.slane %v1322, %v1326
    %v1345 = vunpack.c.l.b16 %v1306
    %v1346 = vunpack.c.l.b16 %v1307
    %v1347 = vunpack.c.l.b16 %v1308
    %v1348 = vunpack.c.l.b16 %v1309
    %v1349 = vunpack.c.l.b16 %v1310
    %v1350 = vunpack.c.l.b16 %v1311
    %v1351 = vunpack.c.l.b16 %v1312
    %v1352 = vunpack.c.l.b16 %v1313
    %v1353 = vunpack.c.l.b16 %v1314
    %v1354 = vunpack.c.l.b16 %v1315
    %v1355 = vunpack.c.l.b16 %v1316
    %v1356 = vunpack.c.l.b16 %v1317
    %v1357 = vunpack.c.l.b16 %v1318
    %v1358 = vunpack.c.l.b16 %v1319
    %v1359 = vunpack.c.l.b16 %v1320
    %v1360 = vunpack.c.l.b16 %v1321
    %v1361 = vpack.c.b16 %v1346, %v1345
    %v1362 = vpack.c.b16 %v1348, %v1347
    %v1363 = vpack.c.b16 %v1350, %v1349
    %v1364 = vpack.c.b16 %v1352, %v1351
    %v1365 = vpack.c.b16 %v1354, %v1353
    %v1366 = vpack.c.b16 %v1356, %v1355
    %v1367 = vpack.c.b16 %v1358, %v1357
    %v1368 = vpack.c.b16 %v1360, %v1359
    %1377 = vmatprep.subr.bf16.mxu0 0
    %1378 = vmatpush1.bf16.msra.mxu0 %v1361
    %1379 = vmatprep.subr.bf16.mxu0 0
    %1380 = vmatpush1.bf16.msra.mxu0 %v1362
    %1381 = vmatprep.subr.bf16.mxu0 0
    %1382 = vmatpush1.bf16.msra.mxu0 %v1363
    %1383 = vmatprep.subr.bf16.mxu0 0
    %1384 = vmatpush1.bf16.msra.mxu0 %v1364
    %1385 = vmatprep.subr.bf16.mxu0 0
    %1386 = vmatpush1.bf16.msra.mxu0 %v1365
    %1387 = vmatprep.subr.bf16.mxu0 0
    %1388 = vmatpush1.bf16.msra.mxu0 %v1366
    %1389 = vmatprep.subr.bf16.mxu0 0
    %1390 = vmatpush1.bf16.msra.mxu0 %v1367
    %1391 = vmatprep.subr.bf16.mxu0 0
    %1392 = vmatpush1.bf16.msra.mxu0 %v1368
    %1393 = vmatprep.subr.bf16.mxu0 0
    %1394 = vmatpush1.bf16.msra.mxu0 0
    %1395 = vmatprep.subr.bf16.mxu0 0
    %1396 = vmatpush1.bf16.msra.mxu0 0
    %1397 = vmatprep.subr.bf16.mxu0 0
    %1398 = vmatpush1.bf16.msra.mxu0 0
    %1399 = vmatprep.subr.bf16.mxu0 0
    %1400 = vmatpush1.bf16.msra.mxu0 0
    %1401 = vmatprep.subr.bf16.mxu0 0
    %1402 = vmatpush1.bf16.msra.mxu0 0
    %1403 = vmatprep.subr.bf16.mxu0 0
    %1404 = vmatpush1.bf16.msra.mxu0 0
    %1405 = vmatprep.subr.bf16.mxu0 0
    %1406 = vmatpush1.bf16.msra.mxu0 0
    %1407 = vmatprep.subr.bf16.mxu0 0
    %1408 = vmatpush1.bf16.msra.mxu0 0
    %1409 = vmatprep.mubr.bf16.mxu0 0
    %1410 = vmatmul.mubr.bf16.gmra.mrb[0].mxu0 %v1302
    %v1411 = vpop.f32.mrb[0].mxu0
    %v1412 = vadd.f32 %v1327, %v1411
    %v1413 = vpop.f32.mrb[0].mxu0
    %v1414 = vpop.f32.mrb[0].mxu0
    %v1415 = vadd.f32 %v1327, %v1414
    %v1416 = vpop.f32.mrb[0].mxu0
    %1417 = vmatprep.mubr.bf16.mxu0 0
    %1418 = vmatmul.mubr.bf16.gmra.mrb[0].mxu0 %v1303
    %v1419 = vpop.f32.mrb[0].mxu0
    %v1420 = vadd.f32 %v1327, %v1419
    %v1421 = vpop.f32.mrb[0].mxu0
    %v1422 = vpop.f32.mrb[0].mxu0
    %v1423 = vadd.f32 %v1327, %v1422
    %v1424 = vpop.f32.mrb[0].mxu0
    %1425 = vmatprep.mubr.bf16.mxu0 0
    %1426 = vmatmul.mubr.bf16.gmra.mrb[0].mxu0 %v1304
    %v1427 = vpop.f32.mrb[0].mxu0
    %v1428 = vadd.f32 %v1327, %v1427
    %v1429 = vpop.f32.mrb[0].mxu0
    %v1430 = vpop.f32.mrb[0].mxu0
    %v1431 = vadd.f32 %v1327, %v1430
    %v1432 = vpop.f32.mrb[0].mxu0
    %1433 = vmatprep.mubr.bf16.mxu0 0
    %1434 = vmatmul.mubr.bf16.gmra.mrb[0].mxu0 %v1305
    %v1435 = vpop.f32.mrb[0].mxu0
    %v1436 = vadd.f32 %v1327, %v1435
    %v1437 = vpop.f32.mrb[0].mxu0
    %v1438 = vpop.f32.mrb[0].mxu0
    %v1439 = vadd.f32 %v1327, %v1438
    %v1440 = vpop.f32.mrb[0].mxu0
    %1441 = vdwg.mxu0
    %v1442 = vmin.f32 %v1412, 30.0
    %v1443 = vmin.f32 %v1415, 30.0
    %v1444 = vmin.f32 %v1420, 30.0
    %v1445 = vmin.f32 %v1423, 30.0
    %v1446 = vmin.f32 %v1428, 30.0
    %v1447 = vmin.f32 %v1431, 30.0
    %v1448 = vmin.f32 %v1436, 30.0
    %v1449 = vmin.f32 %v1439, 30.0
    %v1450 = vmul.f32 %v1442, 1.442695
    %v1451 = vpow.pop %v1450
    %v1452 = vmul.f32 %v1443, 1.442695
    %v1453 = vpow.pop %v1452
    %v1454 = vmul.f32 %v1444, 1.442695
    %v1455 = vpow.pop %v1454
    %v1456 = vmul.f32 %v1445, 1.442695
    %v1457 = vpow.pop %v1456
    %v1458 = vmul.f32 %v1446, 1.442695
    %v1459 = vpow.pop %v1458
    %v1460 = vmul.f32 %v1447, 1.442695
    %v1461 = vpow.pop %v1460
    %v1462 = vmul.f32 %v1448, 1.442695
    %v1463 = vpow.pop %v1462
    %v1464 = vmul.f32 %v1449, 1.442695
    %v1465 = vpow.pop %v1464
    %v1466 = vadd.f32 %v1451, 2.0
    %v1467 = vadd.f32 %v1453, 2.0
    %v1468 = vadd.f32 %v1455, 2.0
    %v1469 = vadd.f32 %v1457, 2.0
    %v1470 = vadd.f32 %v1459, 2.0
    %v1471 = vadd.f32 %v1461, 2.0
    %v1472 = vadd.f32 %v1463, 2.0
    %v1473 = vadd.f32 %v1465, 2.0
    %v1474 = vmul.f32 %v1451, %v1466
    %v1475 = vmul.f32 %v1453, %v1467
    %v1476 = vmul.f32 %v1455, %v1468
    %v1477 = vmul.f32 %v1457, %v1469
    %v1478 = vmul.f32 %v1459, %v1470
    %v1479 = vmul.f32 %v1461, %v1471
    %v1480 = vmul.f32 %v1463, %v1472
    %v1481 = vmul.f32 %v1465, %v1473
    %v1482 = vadd.f32 %v1474, 2.0
    %v1483 = vadd.f32 %v1475, 2.0
    %v1484 = vadd.f32 %v1476, 2.0
    %v1485 = vadd.f32 %v1477, 2.0
    %v1486 = vadd.f32 %v1478, 2.0
    %v1487 = vadd.f32 %v1479, 2.0
    %v1488 = vadd.f32 %v1480, 2.0
    %v1489 = vadd.f32 %v1481, 2.0
    %v1490 = vrcp.pop %v1482
    %v1491 = vrcp.pop %v1483
    %v1492 = vrcp.pop %v1484
    %v1493 = vrcp.pop %v1485
    %v1494 = vrcp.pop %v1486
    %v1495 = vrcp.pop %v1487
    %v1496 = vrcp.pop %v1488
    %v1497 = vrcp.pop %v1489
    %v1498 = vmul.f32 %v1474, %v1490
    %v1499 = vmul.f32 %v1475, %v1491
    %v1500 = vmul.f32 %v1476, %v1492
    %v1501 = vmul.f32 %v1477, %v1493
    %v1502 = vmul.f32 %v1478, %v1494
    %v1503 = vmul.f32 %v1479, %v1495
    %v1504 = vmul.f32 %v1480, %v1496
    %v1505 = vmul.f32 %v1481, %v1497
    %v1506 = vmul.f32 %v1412, %v1498
    %v1507 = vmul.f32 %v1415, %v1499
    %v1508 = vmul.f32 %v1420, %v1500
    %v1509 = vmul.f32 %v1423, %v1501
    %v1510 = vmul.f32 %v1428, %v1502
    %v1511 = vmul.f32 %v1431, %v1503
    %v1512 = vmul.f32 %v1436, %v1504
    %v1513 = vmul.f32 %v1439, %v1505
    %v1514 = vpack.c.bf16 %v1507, %v1506
    %v1515 = vpack.c.bf16 %v1509, %v1508
    %v1516 = vpack.c.bf16 %v1511, %v1510
    %v1517 = vpack.c.bf16 %v1513, %v1512
    %1518 = vst [vmem:[#allocation2 + $0x40] sm:$0xff] %v1514
    %1519 = vst [vmem:[#allocation2 + $0x48] sm:$0xff] %v1515
    %1520 = vst [vmem:[#allocation2 + $0x50] sm:$0xff] %v1516
    %1521 = vst [vmem:[#allocation2 + $0x58] sm:$0xff] %v1517
    %v1522 = vadd.f32 %v368, %v620
    %v1523 = vadd.f32 %v372, %v620
    %v1524 = vadd.f32 %v378, %v620
    %v1525 = vadd.f32 %v382, %v620
    %v1526 = vadd.f32 %v388, %v620
    %v1527 = vadd.f32 %v392, %v620
    %v1528 = vadd.f32 %v398, %v620
    %v1529 = vadd.f32 %v402, %v620
    %v1530 = vmin.f32 %v1522, 30.0
    %v1531 = vmin.f32 %v1523, 30.0
    %v1532 = vmin.f32 %v1524, 30.0
    %v1533 = vmin.f32 %v1525, 30.0
    %v1534 = vmin.f32 %v1526, 30.0
    %v1535 = vmin.f32 %v1527, 30.0
    %v1536 = vmin.f32 %v1528, 30.0
    %v1537 = vmin.f32 %v1529, 30.0
    %v1538 = vmul.f32 %v1530, 1.442695
    %v1539 = vpow.pop %v1538
    %v1540 = vmul.f32 %v1531, 1.442695
    %v1541 = vpow.pop %v1540
    %v1542 = vmul.f32 %v1532, 1.442695
    %v1543 = vpow.pop %v1542
    %v1544 = vmul.f32 %v1533, 1.442695
    %v1545 = vpow.pop %v1544
    %v1546 = vmul.f32 %v1534, 1.442695
    %v1547 = vpow.pop %v1546
    %v1548 = vmul.f32 %v1535, 1.442695
    %v1549 = vpow.pop %v1548
    %v1550 = vmul.f32 %v1536, 1.442695
    %v1551 = vpow.pop %v1550
    %v1552 = vmul.f32 %v1537, 1.442695
    %v1553 = vpow.pop %v1552
    %v1554 = vadd.f32 %v1539, 2.0
    %v1555 = vadd.f32 %v1541, 2.0
    %v1556 = vadd.f32 %v1543, 2.0
    %v1557 = vadd.f32 %v1545, 2.0
    %v1558 = vadd.f32 %v1547, 2.0
    %v1559 = vadd.f32 %v1549, 2.0
    %v1560 = vadd.f32 %v1551, 2.0
    %v1561 = vadd.f32 %v1553, 2.0
    %v1562 = vmul.f32 %v1539, %v1554
    %v1563 = vmul.f32 %v1541, %v1555
    %v1564 = vmul.f32 %v1543, %v1556
    %v1565 = vmul.f32 %v1545, %v1557
    %v1566 = vmul.f32 %v1547, %v1558
    %v1567 = vmul.f32 %v1549, %v1559
    %v1568 = vmul.f32 %v1551, %v1560
    %v1569 = vmul.f32 %v1553, %v1561
    %v1570 = vadd.f32 %v1562, 2.0
    %v1571 = vadd.f32 %v1563, 2.0
    %v1572 = vadd.f32 %v1564, 2.0
    %v1573 = vadd.f32 %v1565, 2.0
    %v1574 = vadd.f32 %v1566, 2.0
    %v1575 = vadd.f32 %v1567, 2.0
    %v1576 = vadd.f32 %v1568, 2.0
    %v1577 = vadd.f32 %v1569, 2.0
    %v1578 = vrcp.pop %v1570
    %v1579 = vrcp.pop %v1571
    %v1580 = vrcp.pop %v1572
    %v1581 = vrcp.pop %v1573
    %v1582 = vrcp.pop %v1574
    %v1583 = vrcp.pop %v1575
    %v1584 = vrcp.pop %v1576
    %v1585 = vrcp.pop %v1577
    %v1586 = vmul.f32 %v1562, %v1578
    %v1587 = vmul.f32 %v1563, %v1579
    %v1588 = vmul.f32 %v1564, %v1580
    %v1589 = vmul.f32 %v1565, %v1581
    %v1590 = vmul.f32 %v1566, %v1582
    %v1591 = vmul.f32 %v1567, %v1583
    %v1592 = vmul.f32 %v1568, %v1584
    %v1593 = vmul.f32 %v1569, %v1585
    %v1594 = vmul.f32 %v1522, %v1586
    %v1595 = vmul.f32 %v1523, %v1587
    %v1596 = vmul.f32 %v1524, %v1588
    %v1597 = vmul.f32 %v1525, %v1589
    %v1598 = vmul.f32 %v1526, %v1590
    %v1599 = vmul.f32 %v1527, %v1591
    %v1600 = vmul.f32 %v1528, %v1592
    %v1601 = vmul.f32 %v1529, %v1593
    %v1602 = vpack.c.bf16 %v1595, %v1594
    %v1603 = vpack.c.bf16 %v1597, %v1596
    %v1604 = vpack.c.bf16 %v1599, %v1598
    %v1605 = vpack.c.bf16 %v1601, %v1600
    %v1606 = vld [vmem:[#allocation9] sm:$0xf]
    %v1607 = vld [vmem:[#allocation9 + $0x4] sm:$0xf]
    %v1608 = vld [vmem:[#allocation9 + $0x8] sm:$0xf]
    %v1609 = vld [vmem:[#allocation9 + $0xc] sm:$0xf]
    %v1610 = vld [vmem:[#allocation9 + $0x10] sm:$0xf]
    %v1611 = vld [vmem:[#allocation9 + $0x14] sm:$0xf]
    %v1612 = vld [vmem:[#allocation9 + $0x18] sm:$0xf]
    %v1613 = vld [vmem:[#allocation9 + $0x1c] sm:$0xf]
    %v1614 = vld [vmem:[#allocation9 + $0x20] sm:$0xf]
    %v1615 = vld [vmem:[#allocation9 + $0x24] sm:$0xf]
    %v1616 = vld [vmem:[#allocation9 + $0x28] sm:$0xf]
    %v1617 = vld [vmem:[#allocation9 + $0x2c] sm:$0xf]
    %v1618 = vld [vmem:[#allocation9 + $0x30] sm:$0xf]
    %v1619 = vld [vmem:[#allocation9 + $0x34] sm:$0xf]
    %v1620 = vld [vmem:[#allocation9 + $0x38] sm:$0xf]
    %v1621 = vld [vmem:[#allocation9 + $0x3c] sm:$0xf]
    %v1622 = vld [vmem:[%s5] sm:$0x1]
    %v1624 = vlaneseq
    %v1625 = vshrl.u32 %v1624, 7
    %v1626 = vsub.s32 0, %v1625
    %v1627 = vrot.slane %v1622, %v1626
    %v1645 = vunpack.c.l.b16 %v1606
    %v1646 = vunpack.c.l.b16 %v1607
    %v1647 = vunpack.c.l.b16 %v1608
    %v1648 = vunpack.c.l.b16 %v1609
    %v1649 = vunpack.c.l.b16 %v1610
    %v1650 = vunpack.c.l.b16 %v1611
    %v1651 = vunpack.c.l.b16 %v1612
    %v1652 = vunpack.c.l.b16 %v1613
    %v1653 = vunpack.c.l.b16 %v1614
    %v1654 = vunpack.c.l.b16 %v1615
    %v1655 = vunpack.c.l.b16 %v1616
    %v1656 = vunpack.c.l.b16 %v1617
    %v1657 = vunpack.c.l.b16 %v1618
    %v1658 = vunpack.c.l.b16 %v1619
    %v1659 = vunpack.c.l.b16 %v1620
    %v1660 = vunpack.c.l.b16 %v1621
    %v1661 = vpack.c.b16 %v1646, %v1645
    %v1662 = vpack.c.b16 %v1648, %v1647
    %v1663 = vpack.c.b16 %v1650, %v1649
    %v1664 = vpack.c.b16 %v1652, %v1651
    %v1665 = vpack.c.b16 %v1654, %v1653
    %v1666 = vpack.c.b16 %v1656, %v1655
    %v1667 = vpack.c.b16 %v1658, %v1657
    %v1668 = vpack.c.b16 %v1660, %v1659
    %1677 = vmatprep.subr.bf16.mxu0 0
    %1678 = vmatpush1.bf16.msra.mxu0 %v1661
    %1679 = vmatprep.subr.bf16.mxu0 0
    %1680 = vmatpush1.bf16.msra.mxu0 %v1662
    %1681 = vmatprep.subr.bf16.mxu0 0
    %1682 = vmatpush1.bf16.msra.mxu0 %v1663
    %1683 = vmatprep.subr.bf16.mxu0 0
    %1684 = vmatpush1.bf16.msra.mxu0 %v1664
    %1685 = vmatprep.subr.bf16.mxu0 0
    %1686 = vmatpush1.bf16.msra.mxu0 %v1665
    %1687 = vmatprep.subr.bf16.mxu0 0
    %1688 = vmatpush1.bf16.msra.mxu0 %v1666
    %1689 = vmatprep.subr.bf16.mxu0 0
    %1690 = vmatpush1.bf16.msra.mxu0 %v1667
    %1691 = vmatprep.subr.bf16.mxu0 0
    %1692 = vmatpush1.bf16.msra.mxu0 %v1668
    %1693 = vmatprep.subr.bf16.mxu0 0
    %1694 = vmatpush1.bf16.msra.mxu0 0
    %1695 = vmatprep.subr.bf16.mxu0 0
    %1696 = vmatpush1.bf16.msra.mxu0 0
    %1697 = vmatprep.subr.bf16.mxu0 0
    %1698 = vmatpush1.bf16.msra.mxu0 0
    %1699 = vmatprep.subr.bf16.mxu0 0
    %1700 = vmatpush1.bf16.msra.mxu0 0
    %1701 = vmatprep.subr.bf16.mxu0 0
    %1702 = vmatpush1.bf16.msra.mxu0 0
    %1703 = vmatprep.subr.bf16.mxu0 0
    %1704 = vmatpush1.bf16.msra.mxu0 0
    %1705 = vmatprep.subr.bf16.mxu0 0
    %1706 = vmatpush1.bf16.msra.mxu0 0
    %1707 = vmatprep.subr.bf16.mxu0 0
    %1708 = vmatpush1.bf16.msra.mxu0 0
    %1709 = vmatprep.mubr.bf16.mxu0 0
    %1710 = vmatmul.mubr.bf16.gmra.mrb[0].mxu0 %v1602
    %v1711 = vpop.f32.mrb[0].mxu0
    %v1712 = vadd.f32 %v1627, %v1711
    %v1713 = vpop.f32.mrb[0].mxu0
    %v1714 = vpop.f32.mrb[0].mxu0
    %v1715 = vadd.f32 %v1627, %v1714
    %v1716 = vpop.f32.mrb[0].mxu0
    %1717 = vmatprep.mubr.bf16.mxu0 0
    %1718 = vmatmul.mubr.bf16.gmra.mrb[0].mxu0 %v1603
    %v1719 = vpop.f32.mrb[0].mxu0
    %v1720 = vadd.f32 %v1627, %v1719
    %v1721 = vpop.f32.mrb[0].mxu0
    %v1722 = vpop.f32.mrb[0].mxu0
    %v1723 = vadd.f32 %v1627, %v1722
    %v1724 = vpop.f32.mrb[0].mxu0
    %1725 = vmatprep.mubr.bf16.mxu0 0
    %1726 = vmatmul.mubr.bf16.gmra.mrb[0].mxu0 %v1604
    %v1727 = vpop.f32.mrb[0].mxu0
    %v1728 = vadd.f32 %v1627, %v1727
    %v1729 = vpop.f32.mrb[0].mxu0
    %v1730 = vpop.f32.mrb[0].mxu0
    %v1731 = vadd.f32 %v1627, %v1730
    %v1732 = vpop.f32.mrb[0].mxu0
    %1733 = vmatprep.mubr.bf16.mxu0 0
    %1734 = vmatmul.mubr.bf16.gmra.mrb[0].mxu0 %v1605
    %v1735 = vpop.f32.mrb[0].mxu0
    %v1736 = vadd.f32 %v1627, %v1735
    %v1737 = vpop.f32.mrb[0].mxu0
    %v1738 = vpop.f32.mrb[0].mxu0
    %v1739 = vadd.f32 %v1627, %v1738
    %v1740 = vpop.f32.mrb[0].mxu0
    %1741 = vdwg.mxu0
    %v1742 = vmin.f32 %v1712, 30.0
    %v1743 = vmin.f32 %v1715, 30.0
    %v1744 = vmin.f32 %v1720, 30.0
    %v1745 = vmin.f32 %v1723, 30.0
    %v1746 = vmin.f32 %v1728, 30.0
    %v1747 = vmin.f32 %v1731, 30.0
    %v1748 = vmin.f32 %v1736, 30.0
    %v1749 = vmin.f32 %v1739, 30.0
    %v1750 = vmul.f32 %v1742, 1.442695
    %v1751 = vpow.pop %v1750
    %v1752 = vmul.f32 %v1743, 1.442695
    %v1753 = vpow.pop %v1752
    %v1754 = vmul.f32 %v1744, 1.442695
    %v1755 = vpow.pop %v1754
    %v1756 = vmul.f32 %v1745, 1.442695
    %v1757 = vpow.pop %v1756
    %v1758 = vmul.f32 %v1746, 1.442695
    %v1759 = vpow.pop %v1758
    %v1760 = vmul.f32 %v1747, 1.442695
    %v1761 = vpow.pop %v1760
    %v1762 = vmul.f32 %v1748, 1.442695
    %v1763 = vpow.pop %v1762
    %v1764 = vmul.f32 %v1749, 1.442695
    %v1765 = vpow.pop %v1764
    %v1766 = vadd.f32 %v1751, 2.0
    %v1767 = vadd.f32 %v1753, 2.0
    %v1768 = vadd.f32 %v1755, 2.0
    %v1769 = vadd.f32 %v1757, 2.0
    %v1770 = vadd.f32 %v1759, 2.0
    %v1771 = vadd.f32 %v1761, 2.0
    %v1772 = vadd.f32 %v1763, 2.0
    %v1773 = vadd.f32 %v1765, 2.0
    %v1774 = vmul.f32 %v1751, %v1766
    %v1775 = vmul.f32 %v1753, %v1767
    %v1776 = vmul.f32 %v1755, %v1768
    %v1777 = vmul.f32 %v1757, %v1769
    %v1778 = vmul.f32 %v1759, %v1770
    %v1779 = vmul.f32 %v1761, %v1771
    %v1780 = vmul.f32 %v1763, %v1772
    %v1781 = vmul.f32 %v1765, %v1773
    %v1782 = vadd.f32 %v1774, 2.0
    %v1783 = vadd.f32 %v1775, 2.0
    %v1784 = vadd.f32 %v1776, 2.0
    %v1785 = vadd.f32 %v1777, 2.0
    %v1786 = vadd.f32 %v1778, 2.0
    %v1787 = vadd.f32 %v1779, 2.0
    %v1788 = vadd.f32 %v1780, 2.0
    %v1789 = vadd.f32 %v1781, 2.0
    %v1790 = vrcp.pop %v1782
    %v1791 = vrcp.pop %v1783
    %v1792 = vrcp.pop %v1784
    %v1793 = vrcp.pop %v1785
    %v1794 = vrcp.pop %v1786
    %v1795 = vrcp.pop %v1787
    %v1796 = vrcp.pop %v1788
    %v1797 = vrcp.pop %v1789
    %v1798 = vmul.f32 %v1774, %v1790
    %v1799 = vmul.f32 %v1775, %v1791
    %v1800 = vmul.f32 %v1776, %v1792
    %v1801 = vmul.f32 %v1777, %v1793
    %v1802 = vmul.f32 %v1778, %v1794
    %v1803 = vmul.f32 %v1779, %v1795
    %v1804 = vmul.f32 %v1780, %v1796
    %v1805 = vmul.f32 %v1781, %v1797
    %v1806 = vmul.f32 %v1712, %v1798
    %v1807 = vmul.f32 %v1715, %v1799
    %v1808 = vmul.f32 %v1720, %v1800
    %v1809 = vmul.f32 %v1723, %v1801
    %v1810 = vmul.f32 %v1728, %v1802
    %v1811 = vmul.f32 %v1731, %v1803
    %v1812 = vmul.f32 %v1736, %v1804
    %v1813 = vmul.f32 %v1739, %v1805
    %v1814 = vpack.c.bf16 %v1807, %v1806
    %v1815 = vpack.c.bf16 %v1809, %v1808
    %v1816 = vpack.c.bf16 %v1811, %v1810
    %v1817 = vpack.c.bf16 %v1813, %v1812
    %1818 = vst [vmem:[#allocation2 + $0x60] sm:$0xff] %v1814
    %1819 = vst [vmem:[#allocation2 + $0x68] sm:$0xff] %v1815
    %1820 = vst [vmem:[#allocation2 + $0x70] sm:$0xff] %v1816
    %1821 = vst [vmem:[#allocation2 + $0x78] sm:$0xff] %v1817
    %v1822 = vadd.f32 %v439, %v620
    %v1823 = vadd.f32 %v443, %v620
    %v1824 = vadd.f32 %v449, %v620
    %v1825 = vadd.f32 %v453, %v620
    %v1826 = vadd.f32 %v459, %v620
    %v1827 = vadd.f32 %v463, %v620
    %v1828 = vadd.f32 %v469, %v620
    %v1829 = vadd.f32 %v473, %v620
    %v1830 = vmin.f32 %v1822, 30.0
    %v1831 = vmin.f32 %v1823, 30.0
    %v1832 = vmin.f32 %v1824, 30.0
    %v1833 = vmin.f32 %v1825, 30.0
    %v1834 = vmin.f32 %v1826, 30.0
    %v1835 = vmin.f32 %v1827, 30.0
    %v1836 = vmin.f32 %v1828, 30.0
    %v1837 = vmin.f32 %v1829, 30.0
    %v1838 = vmul.f32 %v1830, 1.442695
    %v1839 = vpow.pop %v1838
    %v1840 = vmul.f32 %v1831, 1.442695
    %v1841 = vpow.pop %v1840
    %v1842 = vmul.f32 %v1832, 1.442695
    %v1843 = vpow.pop %v1842
    %v1844 = vmul.f32 %v1833, 1.442695
    %v1845 = vpow.pop %v1844
    %v1846 = vmul.f32 %v1834, 1.442695
    %v1847 = vpow.pop %v1846
    %v1848 = vmul.f32 %v1835, 1.442695
    %v1849 = vpow.pop %v1848
    %v1850 = vmul.f32 %v1836, 1.442695
    %v1851 = vpow.pop %v1850
    %v1852 = vmul.f32 %v1837, 1.442695
    %v1853 = vpow.pop %v1852
    %v1854 = vadd.f32 %v1839, 2.0
    %v1855 = vadd.f32 %v1841, 2.0
    %v1856 = vadd.f32 %v1843, 2.0
    %v1857 = vadd.f32 %v1845, 2.0
    %v1858 = vadd.f32 %v1847, 2.0
    %v1859 = vadd.f32 %v1849, 2.0
    %v1860 = vadd.f32 %v1851, 2.0
    %v1861 = vadd.f32 %v1853, 2.0
    %v1862 = vmul.f32 %v1839, %v1854
    %v1863 = vmul.f32 %v1841, %v1855
    %v1864 = vmul.f32 %v1843, %v1856
    %v1865 = vmul.f32 %v1845, %v1857
    %v1866 = vmul.f32 %v1847, %v1858
    %v1867 = vmul.f32 %v1849, %v1859
    %v1868 = vmul.f32 %v1851, %v1860
    %v1869 = vmul.f32 %v1853, %v1861
    %v1870 = vadd.f32 %v1862, 2.0
    %v1871 = vadd.f32 %v1863, 2.0
    %v1872 = vadd.f32 %v1864, 2.0
    %v1873 = vadd.f32 %v1865, 2.0
    %v1874 = vadd.f32 %v1866, 2.0
    %v1875 = vadd.f32 %v1867, 2.0
    %v1876 = vadd.f32 %v1868, 2.0
    %v1877 = vadd.f32 %v1869, 2.0
    %v1878 = vrcp.pop %v1870
    %v1879 = vrcp.pop %v1871
    %v1880 = vrcp.pop %v1872
    %v1881 = vrcp.pop %v1873
    %v1882 = vrcp.pop %v1874
    %v1883 = vrcp.pop %v1875
    %v1884 = vrcp.pop %v1876
    %v1885 = vrcp.pop %v1877
    %v1886 = vmul.f32 %v1862, %v1878
    %v1887 = vmul.f32 %v1863, %v1879
    %v1888 = vmul.f32 %v1864, %v1880
    %v1889 = vmul.f32 %v1865, %v1881
    %v1890 = vmul.f32 %v1866, %v1882
    %v1891 = vmul.f32 %v1867, %v1883
    %v1892 = vmul.f32 %v1868, %v1884
    %v1893 = vmul.f32 %v1869, %v1885
    %v1894 = vmul.f32 %v1822, %v1886
    %v1895 = vmul.f32 %v1823, %v1887
    %v1896 = vmul.f32 %v1824, %v1888
    %v1897 = vmul.f32 %v1825, %v1889
    %v1898 = vmul.f32 %v1826, %v1890
    %v1899 = vmul.f32 %v1827, %v1891
    %v1900 = vmul.f32 %v1828, %v1892
    %v1901 = vmul.f32 %v1829, %v1893
    %v1902 = vpack.c.bf16 %v1895, %v1894
    %v1903 = vpack.c.bf16 %v1897, %v1896
    %v1904 = vpack.c.bf16 %v1899, %v1898
    %v1905 = vpack.c.bf16 %v1901, %v1900
    %v1906 = vld [vmem:[#allocation9] sm:$0xf]
    %v1907 = vld [vmem:[#allocation9 + $0x4] sm:$0xf]
    %v1908 = vld [vmem:[#allocation9 + $0x8] sm:$0xf]
    %v1909 = vld [vmem:[#allocation9 + $0xc] sm:$0xf]
    %v1910 = vld [vmem:[#allocation9 + $0x10] sm:$0xf]
    %v1911 = vld [vmem:[#allocation9 + $0x14] sm:$0xf]
    %v1912 = vld [vmem:[#allocation9 + $0x18] sm:$0xf]
    %v1913 = vld [vmem:[#allocation9 + $0x1c] sm:$0xf]
    %v1914 = vld [vmem:[#allocation9 + $0x20] sm:$0xf]
    %v1915 = vld [vmem:[#allocation9 + $0x24] sm:$0xf]
    %v1916 = vld [vmem:[#allocation9 + $0x28] sm:$0xf]
    %v1917 = vld [vmem:[#allocation9 + $0x2c] sm:$0xf]
    %v1918 = vld [vmem:[#allocation9 + $0x30] sm:$0xf]
    %v1919 = vld [vmem:[#allocation9 + $0x34] sm:$0xf]
    %v1920 = vld [vmem:[#allocation9 + $0x38] sm:$0xf]
    %v1921 = vld [vmem:[#allocation9 + $0x3c] sm:$0xf]
    %v1922 = vld [vmem:[%s5] sm:$0x1]
    %v1924 = vlaneseq
    %v1925 = vshrl.u32 %v1924, 7
    %v1926 = vsub.s32 0, %v1925
    %v1927 = vrot.slane %v1922, %v1926
    %v1945 = vunpack.c.l.b16 %v1906
    %v1946 = vunpack.c.l.b16 %v1907
    %v1947 = vunpack.c.l.b16 %v1908
    %v1948 = vunpack.c.l.b16 %v1909
    %v1949 = vunpack.c.l.b16 %v1910
    %v1950 = vunpack.c.l.b16 %v1911
    %v1951 = vunpack.c.l.b16 %v1912
    %v1952 = vunpack.c.l.b16 %v1913
    %v1953 = vunpack.c.l.b16 %v1914
    %v1954 = vunpack.c.l.b16 %v1915
    %v1955 = vunpack.c.l.b16 %v1916
    %v1956 = vunpack.c.l.b16 %v1917
    %v1957 = vunpack.c.l.b16 %v1918
    %v1958 = vunpack.c.l.b16 %v1919
    %v1959 = vunpack.c.l.b16 %v1920
    %v1960 = vunpack.c.l.b16 %v1921
    %v1961 = vpack.c.b16 %v1946, %v1945
    %v1962 = vpack.c.b16 %v1948, %v1947
    %v1963 = vpack.c.b16 %v1950, %v1949
    %v1964 = vpack.c.b16 %v1952, %v1951
    %v1965 = vpack.c.b16 %v1954, %v1953
    %v1966 = vpack.c.b16 %v1956, %v1955
    %v1967 = vpack.c.b16 %v1958, %v1957
    %v1968 = vpack.c.b16 %v1960, %v1959
    %1977 = vmatprep.subr.bf16.mxu0 0
    %1978 = vmatpush1.bf16.msra.mxu0 %v1961
    %1979 = vmatprep.subr.bf16.mxu0 0
    %1980 = vmatpush1.bf16.msra.mxu0 %v1962
    %1981 = vmatprep.subr.bf16.mxu0 0
    %1982 = vmatpush1.bf16.msra.mxu0 %v1963
    %1983 = vmatprep.subr.bf16.mxu0 0
    %1984 = vmatpush1.bf16.msra.mxu0 %v1964
    %1985 = vmatprep.subr.bf16.mxu0 0
    %1986 = vmatpush1.bf16.msra.mxu0 %v1965
    %1987 = vmatprep.subr.bf16.mxu0 0
    %1988 = vmatpush1.bf16.msra.mxu0 %v1966
    %1989 = vmatprep.subr.bf16.mxu0 0
    %1990 = vmatpush1.bf16.msra.mxu0 %v1967
    %1991 = vmatprep.subr.bf16.mxu0 0
    %1992 = vmatpush1.bf16.msra.mxu0 %v1968
    %1993 = vmatprep.subr.bf16.mxu0 0
    %1994 = vmatpush1.bf16.msra.mxu0 0
    %1995 = vmatprep.subr.bf16.mxu0 0
    %1996 = vmatpush1.bf16.msra.mxu0 0
    %1997 = vmatprep.subr.bf16.mxu0 0
    %1998 = vmatpush1.bf16.msra.mxu0 0
    %1999 = vmatprep.subr.bf16.mxu0 0
    %2000 = vmatpush1.bf16.msra.mxu0 0
    %2001 = vmatprep.subr.bf16.mxu0 0
    %2002 = vmatpush1.bf16.msra.mxu0 0
    %2003 = vmatprep.subr.bf16.mxu0 0
    %2004 = vmatpush1.bf16.msra.mxu0 0
    %2005 = vmatprep.subr.bf16.mxu0 0
    %2006 = vmatpush1.bf16.msra.mxu0 0
    %2007 = vmatprep.subr.bf16.mxu0 0
    %2008 = vmatpush1.bf16.msra.mxu0 0
    %2009 = vmatprep.mubr.bf16.mxu0 0
    %2010 = vmatmul.mubr.bf16.gmra.mrb[0].mxu0 %v1902
    %v2011 = vpop.f32.mrb[0].mxu0
    %v2012 = vadd.f32 %v1927, %v2011
    %v2013 = vpop.f32.mrb[0].mxu0
    %v2014 = vpop.f32.mrb[0].mxu0
    %v2015 = vadd.f32 %v1927, %v2014
    %v2016 = vpop.f32.mrb[0].mxu0
    %2017 = vmatprep.mubr.bf16.mxu0 0
    %2018 = vmatmul.mubr.bf16.gmra.mrb[0].mxu0 %v1903
    %v2019 = vpop.f32.mrb[0].mxu0
    %v2020 = vadd.f32 %v1927, %v2019
    %v2021 = vpop.f32.mrb[0].mxu0
    %v2022 = vpop.f32.mrb[0].mxu0
    %v2023 = vadd.f32 %v1927, %v2022
    %v2024 = vpop.f32.mrb[0].mxu0
    %2025 = vmatprep.mubr.bf16.mxu0 0
    %2026 = vmatmul.mubr.bf16.gmra.mrb[0].mxu0 %v1904
    %v2027 = vpop.f32.mrb[0].mxu0
    %v2028 = vadd.f32 %v1927, %v2027
    %v2029 = vpop.f32.mrb[0].mxu0
    %v2030 = vpop.f32.mrb[0].mxu0
    %v2031 = vadd.f32 %v1927, %v2030
    %v2032 = vpop.f32.mrb[0].mxu0
    %2033 = vmatprep.mubr.bf16.mxu0 0
    %2034 = vmatmul.mubr.bf16.gmra.mrb[0].mxu0 %v1905
    %v2035 = vpop.f32.mrb[0].mxu0
    %v2036 = vadd.f32 %v1927, %v2035
    %v2037 = vpop.f32.mrb[0].mxu0
    %v2038 = vpop.f32.mrb[0].mxu0
    %v2039 = vadd.f32 %v1927, %v2038
    %v2040 = vpop.f32.mrb[0].mxu0
    %2041 = vdwg.mxu0
    %v2042 = vmin.f32 %v2012, 30.0
    %v2043 = vmin.f32 %v2015, 30.0
    %v2044 = vmin.f32 %v2020, 30.0
    %v2045 = vmin.f32 %v2023, 30.0
    %v2046 = vmin.f32 %v2028, 30.0
    %v2047 = vmin.f32 %v2031, 30.0
    %v2048 = vmin.f32 %v2036, 30.0
    %v2049 = vmin.f32 %v2039, 30.0
    %v2050 = vmul.f32 %v2042, 1.442695
    %v2051 = vpow.pop %v2050
    %v2052 = vmul.f32 %v2043, 1.442695
    %v2053 = vpow.pop %v2052
    %v2054 = vmul.f32 %v2044, 1.442695
    %v2055 = vpow.pop %v2054
    %v2056 = vmul.f32 %v2045, 1.442695
    %v2057 = vpow.pop %v2056
    %v2058 = vmul.f32 %v2046, 1.442695
    %v2059 = vpow.pop %v2058
    %v2060 = vmul.f32 %v2047, 1.442695
    %v2061 = vpow.pop %v2060
    %v2062 = vmul.f32 %v2048, 1.442695
    %v2063 = vpow.pop %v2062
    %v2064 = vmul.f32 %v2049, 1.442695
    %v2065 = vpow.pop %v2064
    %v2066 = vadd.f32 %v2051, 2.0
    %v2067 = vadd.f32 %v2053, 2.0
    %v2068 = vadd.f32 %v2055, 2.0
    %v2069 = vadd.f32 %v2057, 2.0
    %v2070 = vadd.f32 %v2059, 2.0
    %v2071 = vadd.f32 %v2061, 2.0
    %v2072 = vadd.f32 %v2063, 2.0
    %v2073 = vadd.f32 %v2065, 2.0
    %v2074 = vmul.f32 %v2051, %v2066
    %v2075 = vmul.f32 %v2053, %v2067
    %v2076 = vmul.f32 %v2055, %v2068
    %v2077 = vmul.f32 %v2057, %v2069
    %v2078 = vmul.f32 %v2059, %v2070
    %v2079 = vmul.f32 %v2061, %v2071
    %v2080 = vmul.f32 %v2063, %v2072
    %v2081 = vmul.f32 %v2065, %v2073
    %v2082 = vadd.f32 %v2074, 2.0
    %v2083 = vadd.f32 %v2075, 2.0
    %v2084 = vadd.f32 %v2076, 2.0
    %v2085 = vadd.f32 %v2077, 2.0
    %v2086 = vadd.f32 %v2078, 2.0
    %v2087 = vadd.f32 %v2079, 2.0
    %v2088 = vadd.f32 %v2080, 2.0
    %v2089 = vadd.f32 %v2081, 2.0
    %v2090 = vrcp.pop %v2082
    %v2091 = vrcp.pop %v2083
    %v2092 = vrcp.pop %v2084
    %v2093 = vrcp.pop %v2085
    %v2094 = vrcp.pop %v2086
    %v2095 = vrcp.pop %v2087
    %v2096 = vrcp.pop %v2088
    %v2097 = vrcp.pop %v2089
    %v2098 = vmul.f32 %v2074, %v2090
    %v2099 = vmul.f32 %v2075, %v2091
    %v2100 = vmul.f32 %v2076, %v2092
    %v2101 = vmul.f32 %v2077, %v2093
    %v2102 = vmul.f32 %v2078, %v2094
    %v2103 = vmul.f32 %v2079, %v2095
    %v2104 = vmul.f32 %v2080, %v2096
    %v2105 = vmul.f32 %v2081, %v2097
    %v2106 = vmul.f32 %v2012, %v2098
    %v2107 = vmul.f32 %v2015, %v2099
    %v2108 = vmul.f32 %v2020, %v2100
    %v2109 = vmul.f32 %v2023, %v2101
    %v2110 = vmul.f32 %v2028, %v2102
    %v2111 = vmul.f32 %v2031, %v2103
    %v2112 = vmul.f32 %v2036, %v2104
    %v2113 = vmul.f32 %v2039, %v2105
    %v2114 = vpack.c.bf16 %v2107, %v2106
    %v2115 = vpack.c.bf16 %v2109, %v2108
    %v2116 = vpack.c.bf16 %v2111, %v2110
    %v2117 = vpack.c.bf16 %v2113, %v2112
    %2118 = vst [vmem:[#allocation2 + $0x80] sm:$0xff] %v2114
    %2119 = vst [vmem:[#allocation2 + $0x88] sm:$0xff] %v2115
    %2120 = vst [vmem:[#allocation2 + $0x90] sm:$0xff] %v2116
    %2121 = vst [vmem:[#allocation2 + $0x98] sm:$0xff] %v2117
    %v2122 = vadd.f32 %v441, %v620
    %v2123 = vadd.f32 %v445, %v620
    %v2124 = vadd.f32 %v451, %v620
    %v2125 = vadd.f32 %v455, %v620
    %v2126 = vadd.f32 %v461, %v620
    %v2127 = vadd.f32 %v465, %v620
    %v2128 = vadd.f32 %v471, %v620
    %v2129 = vadd.f32 %v475, %v620
    %v2130 = vmin.f32 %v2122, 30.0
    %v2131 = vmin.f32 %v2123, 30.0
    %v2132 = vmin.f32 %v2124, 30.0
    %v2133 = vmin.f32 %v2125, 30.0
    %v2134 = vmin.f32 %v2126, 30.0
    %v2135 = vmin.f32 %v2127, 30.0
    %v2136 = vmin.f32 %v2128, 30.0
    %v2137 = vmin.f32 %v2129, 30.0
    %v2138 = vmul.f32 %v2130, 1.442695
    %v2139 = vpow.pop %v2138
    %v2140 = vmul.f32 %v2131, 1.442695
    %v2141 = vpow.pop %v2140
    %v2142 = vmul.f32 %v2132, 1.442695
    %v2143 = vpow.pop %v2142
    %v2144 = vmul.f32 %v2133, 1.442695
    %v2145 = vpow.pop %v2144
    %v2146 = vmul.f32 %v2134, 1.442695
    %v2147 = vpow.pop %v2146
    %v2148 = vmul.f32 %v2135, 1.442695
    %v2149 = vpow.pop %v2148
    %v2150 = vmul.f32 %v2136, 1.442695
    %v2151 = vpow.pop %v2150
    %v2152 = vmul.f32 %v2137, 1.442695
    %v2153 = vpow.pop %v2152
    %v2154 = vadd.f32 %v2139, 2.0
    %v2155 = vadd.f32 %v2141, 2.0
    %v2156 = vadd.f32 %v2143, 2.0
    %v2157 = vadd.f32 %v2145, 2.0
    %v2158 = vadd.f32 %v2147, 2.0
    %v2159 = vadd.f32 %v2149, 2.0
    %v2160 = vadd.f32 %v2151, 2.0
    %v2161 = vadd.f32 %v2153, 2.0
    %v2162 = vmul.f32 %v2139, %v2154
    %v2163 = vmul.f32 %v2141, %v2155
    %v2164 = vmul.f32 %v2143, %v2156
    %v2165 = vmul.f32 %v2145, %v2157
    %v2166 = vmul.f32 %v2147, %v2158
    %v2167 = vmul.f32 %v2149, %v2159
    %v2168 = vmul.f32 %v2151, %v2160
    %v2169 = vmul.f32 %v2153, %v2161
    %v2170 = vadd.f32 %v2162, 2.0
    %v2171 = vadd.f32 %v2163, 2.0
    %v2172 = vadd.f32 %v2164, 2.0
    %v2173 = vadd.f32 %v2165, 2.0
    %v2174 = vadd.f32 %v2166, 2.0
    %v2175 = vadd.f32 %v2167, 2.0
    %v2176 = vadd.f32 %v2168, 2.0
    %v2177 = vadd.f32 %v2169, 2.0
    %v2178 = vrcp.pop %v2170
    %v2179 = vrcp.pop %v2171
    %v2180 = vrcp.pop %v2172
    %v2181 = vrcp.pop %v2173
    %v2182 = vrcp.pop %v2174
    %v2183 = vrcp.pop %v2175
    %v2184 = vrcp.pop %v2176
    %v2185 = vrcp.pop %v2177
    %v2186 = vmul.f32 %v2162, %v2178
    %v2187 = vmul.f32 %v2163, %v2179
    %v2188 = vmul.f32 %v2164, %v2180
    %v2189 = vmul.f32 %v2165, %v2181
    %v2190 = vmul.f32 %v2166, %v2182
    %v2191 = vmul.f32 %v2167, %v2183
    %v2192 = vmul.f32 %v2168, %v2184
    %v2193 = vmul.f32 %v2169, %v2185
    %v2194 = vmul.f32 %v2122, %v2186
    %v2195 = vmul.f32 %v2123, %v2187
    %v2196 = vmul.f32 %v2124, %v2188
    %v2197 = vmul.f32 %v2125, %v2189
    %v2198 = vmul.f32 %v2126, %v2190
    %v2199 = vmul.f32 %v2127, %v2191
    %v2200 = vmul.f32 %v2128, %v2192
    %v2201 = vmul.f32 %v2129, %v2193
    %v2202 = vpack.c.bf16 %v2195, %v2194
    %v2203 = vpack.c.bf16 %v2197, %v2196
    %v2204 = vpack.c.bf16 %v2199, %v2198
    %v2205 = vpack.c.bf16 %v2201, %v2200
    %v2206 = vld [vmem:[#allocation9] sm:$0xf]
    %v2207 = vld [vmem:[#allocation9 + $0x4] sm:$0xf]
    %v2208 = vld [vmem:[#allocation9 + $0x8] sm:$0xf]
    %v2209 = vld [vmem:[#allocation9 + $0xc] sm:$0xf]
    %v2210 = vld [vmem:[#allocation9 + $0x10] sm:$0xf]
    %v2211 = vld [vmem:[#allocation9 + $0x14] sm:$0xf]
    %v2212 = vld [vmem:[#allocation9 + $0x18] sm:$0xf]
    %v2213 = vld [vmem:[#allocation9 + $0x1c] sm:$0xf]
    %v2214 = vld [vmem:[#allocation9 + $0x20] sm:$0xf]
    %v2215 = vld [vmem:[#allocation9 + $0x24] sm:$0xf]
    %v2216 = vld [vmem:[#allocation9 + $0x28] sm:$0xf]
    %v2217 = vld [vmem:[#allocation9 + $0x2c] sm:$0xf]
    %v2218 = vld [vmem:[#allocation9 + $0x30] sm:$0xf]
    %v2219 = vld [vmem:[#allocation9 + $0x34] sm:$0xf]
    %v2220 = vld [vmem:[#allocation9 + $0x38] sm:$0xf]
    %v2221 = vld [vmem:[#allocation9 + $0x3c] sm:$0xf]
    %v2222 = vld [vmem:[%s5] sm:$0x1]
    %v2224 = vlaneseq
    %v2225 = vshrl.u32 %v2224, 7
    %v2226 = vsub.s32 0, %v2225
    %v2227 = vrot.slane %v2222, %v2226
    %v2245 = vunpack.c.l.b16 %v2206
    %v2246 = vunpack.c.l.b16 %v2207
    %v2247 = vunpack.c.l.b16 %v2208
    %v2248 = vunpack.c.l.b16 %v2209
    %v2249 = vunpack.c.l.b16 %v2210
    %v2250 = vunpack.c.l.b16 %v2211
    %v2251 = vunpack.c.l.b16 %v2212
    %v2252 = vunpack.c.l.b16 %v2213
    %v2253 = vunpack.c.l.b16 %v2214
    %v2254 = vunpack.c.l.b16 %v2215
    %v2255 = vunpack.c.l.b16 %v2216
    %v2256 = vunpack.c.l.b16 %v2217
    %v2257 = vunpack.c.l.b16 %v2218
    %v2258 = vunpack.c.l.b16 %v2219
    %v2259 = vunpack.c.l.b16 %v2220
    %v2260 = vunpack.c.l.b16 %v2221
    %v2261 = vpack.c.b16 %v2246, %v2245
    %v2262 = vpack.c.b16 %v2248, %v2247
    %v2263 = vpack.c.b16 %v2250, %v2249
    %v2264 = vpack.c.b16 %v2252, %v2251
    %v2265 = vpack.c.b16 %v2254, %v2253
    %v2266 = vpack.c.b16 %v2256, %v2255
    %v2267 = vpack.c.b16 %v2258, %v2257
    %v2268 = vpack.c.b16 %v2260, %v2259
    %2277 = vmatprep.subr.bf16.mxu0 0
    %2278 = vmatpush1.bf16.msra.mxu0 %v2261
    %2279 = vmatprep.subr.bf16.mxu0 0
    %2280 = vmatpush1.bf16.msra.mxu0 %v2262
    %2281 = vmatprep.subr.bf16.mxu0 0
    %2282 = vmatpush1.bf16.msra.mxu0 %v2263
    %2283 = vmatprep.subr.bf16.mxu0 0
    %2284 = vmatpush1.bf16.msra.mxu0 %v2264
    %2285 = vmatprep.subr.bf16.mxu0 0
    %2286 = vmatpush1.bf16.msra.mxu0 %v2265
    %2287 = vmatprep.subr.bf16.mxu0 0
    %2288 = vmatpush1.bf16.msra.mxu0 %v2266
    %2289 = vmatprep.subr.bf16.mxu0 0
    %2290 = vmatpush1.bf16.msra.mxu0 %v2267
    %2291 = vmatprep.subr.bf16.mxu0 0
    %2292 = vmatpush1.bf16.msra.mxu0 %v2268
    %2293 = vmatprep.subr.bf16.mxu0 0
    %2294 = vmatpush1.bf16.msra.mxu0 0
    %2295 = vmatprep.subr.bf16.mxu0 0
    %2296 = vmatpush1.bf16.msra.mxu0 0
    %2297 = vmatprep.subr.bf16.mxu0 0
    %2298 = vmatpush1.bf16.msra.mxu0 0
    %2299 = vmatprep.subr.bf16.mxu0 0
    %2300 = vmatpush1.bf16.msra.mxu0 0
    %2301 = vmatprep.subr.bf16.mxu0 0
    %2302 = vmatpush1.bf16.msra.mxu0 0
    %2303 = vmatprep.subr.bf16.mxu0 0
    %2304 = vmatpush1.bf16.msra.mxu0 0
    %2305 = vmatprep.subr.bf16.mxu0 0
    %2306 = vmatpush1.bf16.msra.mxu0 0
    %2307 = vmatprep.subr.bf16.mxu0 0
    %2308 = vmatpush1.bf16.msra.mxu0 0
    %2309 = vmatprep.mubr.bf16.mxu0 0
    %2310 = vmatmul.mubr.bf16.gmra.mrb[0].mxu0 %v2202
    %v2311 = vpop.f32.mrb[0].mxu0
    %v2312 = vadd.f32 %v2227, %v2311
    %v2313 = vpop.f32.mrb[0].mxu0
    %v2314 = vpop.f32.mrb[0].mxu0
    %v2315 = vadd.f32 %v2227, %v2314
    %v2316 = vpop.f32.mrb[0].mxu0
    %2317 = vmatprep.mubr.bf16.mxu0 0
    %2318 = vmatmul.mubr.bf16.gmra.mrb[0].mxu0 %v2203
    %v2319 = vpop.f32.mrb[0].mxu0
    %v2320 = vadd.f32 %v2227, %v2319
    %v2321 = vpop.f32.mrb[0].mxu0
    %v2322 = vpop.f32.mrb[0].mxu0
    %v2323 = vadd.f32 %v2227, %v2322
    %v2324 = vpop.f32.mrb[0].mxu0
    %2325 = vmatprep.mubr.bf16.mxu0 0
    %2326 = vmatmul.mubr.bf16.gmra.mrb[0].mxu0 %v2204
    %v2327 = vpop.f32.mrb[0].mxu0
    %v2328 = vadd.f32 %v2227, %v2327
    %v2329 = vpop.f32.mrb[0].mxu0
    %v2330 = vpop.f32.mrb[0].mxu0
    %v2331 = vadd.f32 %v2227, %v2330
    %v2332 = vpop.f32.mrb[0].mxu0
    %2333 = vmatprep.mubr.bf16.mxu0 0
    %2334 = vmatmul.mubr.bf16.gmra.mrb[0].mxu0 %v2205
    %v2335 = vpop.f32.mrb[0].mxu0
    %v2336 = vadd.f32 %v2227, %v2335
    %v2337 = vpop.f32.mrb[0].mxu0
    %v2338 = vpop.f32.mrb[0].mxu0
    %v2339 = vadd.f32 %v2227, %v2338
    %v2340 = vpop.f32.mrb[0].mxu0
    %2341 = vdwg.mxu0
    %v2342 = vmin.f32 %v2312, 30.0
    %v2343 = vmin.f32 %v2315, 30.0
    %v2344 = vmin.f32 %v2320, 30.0
    %v2345 = vmin.f32 %v2323, 30.0
    %v2346 = vmin.f32 %v2328, 30.0
    %v2347 = vmin.f32 %v2331, 30.0
    %v2348 = vmin.f32 %v2336, 30.0
    %v2349 = vmin.f32 %v2339, 30.0
    %v2350 = vmul.f32 %v2342, 1.442695
    %v2351 = vpow.pop %v2350
    %v2352 = vmul.f32 %v2343, 1.442695
    %v2353 = vpow.pop %v2352
    %v2354 = vmul.f32 %v2344, 1.442695
    %v2355 = vpow.pop %v2354
    %v2356 = vmul.f32 %v2345, 1.442695
    %v2357 = vpow.pop %v2356
    %v2358 = vmul.f32 %v2346, 1.442695
    %v2359 = vpow.pop %v2358
    %v2360 = vmul.f32 %v2347, 1.442695
    %v2361 = vpow.pop %v2360
    %v2362 = vmul.f32 %v2348, 1.442695
    %v2363 = vpow.pop %v2362
    %v2364 = vmul.f32 %v2349, 1.442695
    %v2365 = vpow.pop %v2364
    %v2366 = vadd.f32 %v2351, 2.0
    %v2367 = vadd.f32 %v2353, 2.0
    %v2368 = vadd.f32 %v2355, 2.0
    %v2369 = vadd.f32 %v2357, 2.0
    %v2370 = vadd.f32 %v2359, 2.0
    %v2371 = vadd.f32 %v2361, 2.0
    %v2372 = vadd.f32 %v2363, 2.0
    %v2373 = vadd.f32 %v2365, 2.0
    %v2374 = vmul.f32 %v2351, %v2366
    %v2375 = vmul.f32 %v2353, %v2367
    %v2376 = vmul.f32 %v2355, %v2368
    %v2377 = vmul.f32 %v2357, %v2369
    %v2378 = vmul.f32 %v2359, %v2370
    %v2379 = vmul.f32 %v2361, %v2371
    %v2380 = vmul.f32 %v2363, %v2372
    %v2381 = vmul.f32 %v2365, %v2373
    %v2382 = vadd.f32 %v2374, 2.0
    %v2383 = vadd.f32 %v2375, 2.0
    %v2384 = vadd.f32 %v2376, 2.0
    %v2385 = vadd.f32 %v2377, 2.0
    %v2386 = vadd.f32 %v2378, 2.0
    %v2387 = vadd.f32 %v2379, 2.0
    %v2388 = vadd.f32 %v2380, 2.0
    %v2389 = vadd.f32 %v2381, 2.0
    %v2390 = vrcp.pop %v2382
    %v2391 = vrcp.pop %v2383
    %v2392 = vrcp.pop %v2384
    %v2393 = vrcp.pop %v2385
    %v2394 = vrcp.pop %v2386
    %v2395 = vrcp.pop %v2387
    %v2396 = vrcp.pop %v2388
    %v2397 = vrcp.pop %v2389
    %v2398 = vmul.f32 %v2374, %v2390
    %v2399 = vmul.f32 %v2375, %v2391
    %v2400 = vmul.f32 %v2376, %v2392
    %v2401 = vmul.f32 %v2377, %v2393
    %v2402 = vmul.f32 %v2378, %v2394
    %v2403 = vmul.f32 %v2379, %v2395
    %v2404 = vmul.f32 %v2380, %v2396
    %v2405 = vmul.f32 %v2381, %v2397
    %v2406 = vmul.f32 %v2312, %v2398
    %v2407 = vmul.f32 %v2315, %v2399
    %v2408 = vmul.f32 %v2320, %v2400
    %v2409 = vmul.f32 %v2323, %v2401
    %v2410 = vmul.f32 %v2328, %v2402
    %v2411 = vmul.f32 %v2331, %v2403
    %v2412 = vmul.f32 %v2336, %v2404
    %v2413 = vmul.f32 %v2339, %v2405
    %v2414 = vpack.c.bf16 %v2407, %v2406
    %v2415 = vpack.c.bf16 %v2409, %v2408
    %v2416 = vpack.c.bf16 %v2411, %v2410
    %v2417 = vpack.c.bf16 %v2413, %v2412
    %2418 = vst [vmem:[#allocation2 + $0xa0] sm:$0xff] %v2414
    %2419 = vst [vmem:[#allocation2 + $0xa8] sm:$0xff] %v2415
    %2420 = vst [vmem:[#allocation2 + $0xb0] sm:$0xff] %v2416
    %2421 = vst [vmem:[#allocation2 + $0xb8] sm:$0xff] %v2417
    %v2422 = vadd.f32 %v512, %v620
    %v2423 = vadd.f32 %v516, %v620
    %v2424 = vadd.f32 %v522, %v620
    %v2425 = vadd.f32 %v526, %v620
    %v2426 = vadd.f32 %v532, %v620
    %v2427 = vadd.f32 %v536, %v620
    %v2428 = vadd.f32 %v542, %v620
    %v2429 = vadd.f32 %v546, %v620
    %v2430 = vmin.f32 %v2422, 30.0
    %v2431 = vmin.f32 %v2423, 30.0
    %v2432 = vmin.f32 %v2424, 30.0
    %v2433 = vmin.f32 %v2425, 30.0
    %v2434 = vmin.f32 %v2426, 30.0
    %v2435 = vmin.f32 %v2427, 30.0
    %v2436 = vmin.f32 %v2428, 30.0
    %v2437 = vmin.f32 %v2429, 30.0
    %v2438 = vmul.f32 %v2430, 1.442695
    %v2439 = vpow.pop %v2438
    %v2440 = vmul.f32 %v2431, 1.442695
    %v2441 = vpow.pop %v2440
    %v2442 = vmul.f32 %v2432, 1.442695
    %v2443 = vpow.pop %v2442
    %v2444 = vmul.f32 %v2433, 1.442695
    %v2445 = vpow.pop %v2444
    %v2446 = vmul.f32 %v2434, 1.442695
    %v2447 = vpow.pop %v2446
    %v2448 = vmul.f32 %v2435, 1.442695
    %v2449 = vpow.pop %v2448
    %v2450 = vmul.f32 %v2436, 1.442695
    %v2451 = vpow.pop %v2450
    %v2452 = vmul.f32 %v2437, 1.442695
    %v2453 = vpow.pop %v2452
    %v2454 = vadd.f32 %v2439, 2.0
    %v2455 = vadd.f32 %v2441, 2.0
    %v2456 = vadd.f32 %v2443, 2.0
    %v2457 = vadd.f32 %v2445, 2.0
    %v2458 = vadd.f32 %v2447, 2.0
    %v2459 = vadd.f32 %v2449, 2.0
    %v2460 = vadd.f32 %v2451, 2.0
    %v2461 = vadd.f32 %v2453, 2.0
    %v2462 = vmul.f32 %v2439, %v2454
    %v2463 = vmul.f32 %v2441, %v2455
    %v2464 = vmul.f32 %v2443, %v2456
    %v2465 = vmul.f32 %v2445, %v2457
    %v2466 = vmul.f32 %v2447, %v2458
    %v2467 = vmul.f32 %v2449, %v2459
    %v2468 = vmul.f32 %v2451, %v2460
    %v2469 = vmul.f32 %v2453, %v2461
    %v2470 = vadd.f32 %v2462, 2.0
    %v2471 = vadd.f32 %v2463, 2.0
    %v2472 = vadd.f32 %v2464, 2.0
    %v2473 = vadd.f32 %v2465, 2.0
    %v2474 = vadd.f32 %v2466, 2.0
    %v2475 = vadd.f32 %v2467, 2.0
    %v2476 = vadd.f32 %v2468, 2.0
    %v2477 = vadd.f32 %v2469, 2.0
    %v2478 = vrcp.pop %v2470
    %v2479 = vrcp.pop %v2471
    %v2480 = vrcp.pop %v2472
    %v2481 = vrcp.pop %v2473
    %v2482 = vrcp.pop %v2474
    %v2483 = vrcp.pop %v2475
    %v2484 = vrcp.pop %v2476
    %v2485 = vrcp.pop %v2477
    %v2486 = vmul.f32 %v2462, %v2478
    %v2487 = vmul.f32 %v2463, %v2479
    %v2488 = vmul.f32 %v2464, %v2480
    %v2489 = vmul.f32 %v2465, %v2481
    %v2490 = vmul.f32 %v2466, %v2482
    %v2491 = vmul.f32 %v2467, %v2483
    %v2492 = vmul.f32 %v2468, %v2484
    %v2493 = vmul.f32 %v2469, %v2485
    %v2494 = vmul.f32 %v2422, %v2486
    %v2495 = vmul.f32 %v2423, %v2487
    %v2496 = vmul.f32 %v2424, %v2488
    %v2497 = vmul.f32 %v2425, %v2489
    %v2498 = vmul.f32 %v2426, %v2490
    %v2499 = vmul.f32 %v2427, %v2491
    %v2500 = vmul.f32 %v2428, %v2492
    %v2501 = vmul.f32 %v2429, %v2493
    %v2502 = vpack.c.bf16 %v2495, %v2494
    %v2503 = vpack.c.bf16 %v2497, %v2496
    %v2504 = vpack.c.bf16 %v2499, %v2498
    %v2505 = vpack.c.bf16 %v2501, %v2500
    %v2506 = vld [vmem:[#allocation9] sm:$0xf]
    %v2507 = vld [vmem:[#allocation9 + $0x4] sm:$0xf]
    %v2508 = vld [vmem:[#allocation9 + $0x8] sm:$0xf]
    %v2509 = vld [vmem:[#allocation9 + $0xc] sm:$0xf]
    %v2510 = vld [vmem:[#allocation9 + $0x10] sm:$0xf]
    %v2511 = vld [vmem:[#allocation9 + $0x14] sm:$0xf]
    %v2512 = vld [vmem:[#allocation9 + $0x18] sm:$0xf]
    %v2513 = vld [vmem:[#allocation9 + $0x1c] sm:$0xf]
    %v2514 = vld [vmem:[#allocation9 + $0x20] sm:$0xf]
    %v2515 = vld [vmem:[#allocation9 + $0x24] sm:$0xf]
    %v2516 = vld [vmem:[#allocation9 + $0x28] sm:$0xf]
    %v2517 = vld [vmem:[#allocation9 + $0x2c] sm:$0xf]
    %v2518 = vld [vmem:[#allocation9 + $0x30] sm:$0xf]
    %v2519 = vld [vmem:[#allocation9 + $0x34] sm:$0xf]
    %v2520 = vld [vmem:[#allocation9 + $0x38] sm:$0xf]
    %v2521 = vld [vmem:[#allocation9 + $0x3c] sm:$0xf]
    %v2522 = vld [vmem:[%s5] sm:$0x1]
    %v2524 = vlaneseq
    %v2525 = vshrl.u32 %v2524, 7
    %v2526 = vsub.s32 0, %v2525
    %v2527 = vrot.slane %v2522, %v2526
    %v2545 = vunpack.c.l.b16 %v2506
    %v2546 = vunpack.c.l.b16 %v2507
    %v2547 = vunpack.c.l.b16 %v2508
    %v2548 = vunpack.c.l.b16 %v2509
    %v2549 = vunpack.c.l.b16 %v2510
    %v2550 = vunpack.c.l.b16 %v2511
    %v2551 = vunpack.c.l.b16 %v2512
    %v2552 = vunpack.c.l.b16 %v2513
    %v2553 = vunpack.c.l.b16 %v2514
    %v2554 = vunpack.c.l.b16 %v2515
    %v2555 = vunpack.c.l.b16 %v2516
    %v2556 = vunpack.c.l.b16 %v2517
    %v2557 = vunpack.c.l.b16 %v2518
    %v2558 = vunpack.c.l.b16 %v2519
    %v2559 = vunpack.c.l.b16 %v2520
    %v2560 = vunpack.c.l.b16 %v2521
    %v2561 = vpack.c.b16 %v2546, %v2545
    %v2562 = vpack.c.b16 %v2548, %v2547
    %v2563 = vpack.c.b16 %v2550, %v2549
    %v2564 = vpack.c.b16 %v2552, %v2551
    %v2565 = vpack.c.b16 %v2554, %v2553
    %v2566 = vpack.c.b16 %v2556, %v2555
    %v2567 = vpack.c.b16 %v2558, %v2557
    %v2568 = vpack.c.b16 %v2560, %v2559
    %2577 = vmatprep.subr.bf16.mxu0 0
    %2578 = vmatpush1.bf16.msra.mxu0 %v2561
    %2579 = vmatprep.subr.bf16.mxu0 0
    %2580 = vmatpush1.bf16.msra.mxu0 %v2562
    %2581 = vmatprep.subr.bf16.mxu0 0
    %2582 = vmatpush1.bf16.msra.mxu0 %v2563
    %2583 = vmatprep.subr.bf16.mxu0 0
    %2584 = vmatpush1.bf16.msra.mxu0 %v2564
    %2585 = vmatprep.subr.bf16.mxu0 0
    %2586 = vmatpush1.bf16.msra.mxu0 %v2565
    %2587 = vmatprep.subr.bf16.mxu0 0
    %2588 = vmatpush1.bf16.msra.mxu0 %v2566
    %2589 = vmatprep.subr.bf16.mxu0 0
    %2590 = vmatpush1.bf16.msra.mxu0 %v2567
    %2591 = vmatprep.subr.bf16.mxu0 0
    %2592 = vmatpush1.bf16.msra.mxu0 %v2568
    %2593 = vmatprep.subr.bf16.mxu0 0
    %2594 = vmatpush1.bf16.msra.mxu0 0
    %2595 = vmatprep.subr.bf16.mxu0 0
    %2596 = vmatpush1.bf16.msra.mxu0 0
    %2597 = vmatprep.subr.bf16.mxu0 0
    %2598 = vmatpush1.bf16.msra.mxu0 0
    %2599 = vmatprep.subr.bf16.mxu0 0
    %2600 = vmatpush1.bf16.msra.mxu0 0
    %2601 = vmatprep.subr.bf16.mxu0 0
    %2602 = vmatpush1.bf16.msra.mxu0 0
    %2603 = vmatprep.subr.bf16.mxu0 0
    %2604 = vmatpush1.bf16.msra.mxu0 0
    %2605 = vmatprep.subr.bf16.mxu0 0
    %2606 = vmatpush1.bf16.msra.mxu0 0
    %2607 = vmatprep.subr.bf16.mxu0 0
    %2608 = vmatpush1.bf16.msra.mxu0 0
    %2609 = vmatprep.mubr.bf16.mxu0 0
    %2610 = vmatmul.mubr.bf16.gmra.mrb[0].mxu0 %v2502
    %v2611 = vpop.f32.mrb[0].mxu0
    %v2612 = vadd.f32 %v2527, %v2611
    %v2613 = vpop.f32.mrb[0].mxu0
    %v2614 = vpop.f32.mrb[0].mxu0
    %v2615 = vadd.f32 %v2527, %v2614
    %v2616 = vpop.f32.mrb[0].mxu0
    %2617 = vmatprep.mubr.bf16.mxu0 0
    %2618 = vmatmul.mubr.bf16.gmra.mrb[0].mxu0 %v2503
    %v2619 = vpop.f32.mrb[0].mxu0
    %v2620 = vadd.f32 %v2527, %v2619
    %v2621 = vpop.f32.mrb[0].mxu0
    %v2622 = vpop.f32.mrb[0].mxu0
    %v2623 = vadd.f32 %v2527, %v2622
    %v2624 = vpop.f32.mrb[0].mxu0
    %2625 = vmatprep.mubr.bf16.mxu0 0
    %2626 = vmatmul.mubr.bf16.gmra.mrb[0].mxu0 %v2504
    %v2627 = vpop.f32.mrb[0].mxu0
    %v2628 = vadd.f32 %v2527, %v2627
    %v2629 = vpop.f32.mrb[0].mxu0
    %v2630 = vpop.f32.mrb[0].mxu0
    %v2631 = vadd.f32 %v2527, %v2630
    %v2632 = vpop.f32.mrb[0].mxu0
    %2633 = vmatprep.mubr.bf16.mxu0 0
    %2634 = vmatmul.mubr.bf16.gmra.mrb[0].mxu0 %v2505
    %v2635 = vpop.f32.mrb[0].mxu0
    %v2636 = vadd.f32 %v2527, %v2635
    %v2637 = vpop.f32.mrb[0].mxu0
    %v2638 = vpop.f32.mrb[0].mxu0
    %v2639 = vadd.f32 %v2527, %v2638
    %v2640 = vpop.f32.mrb[0].mxu0
    %2641 = vdwg.mxu0
    %v2642 = vmin.f32 %v2612, 30.0
    %v2643 = vmin.f32 %v2615, 30.0
    %v2644 = vmin.f32 %v2620, 30.0
    %v2645 = vmin.f32 %v2623, 30.0
    %v2646 = vmin.f32 %v2628, 30.0
    %v2647 = vmin.f32 %v2631, 30.0
    %v2648 = vmin.f32 %v2636, 30.0
    %v2649 = vmin.f32 %v2639, 30.0
    %v2650 = vmul.f32 %v2642, 1.442695
    %v2651 = vpow.pop %v2650
    %v2652 = vmul.f32 %v2643, 1.442695
    %v2653 = vpow.pop %v2652
    %v2654 = vmul.f32 %v2644, 1.442695
    %v2655 = vpow.pop %v2654
    %v2656 = vmul.f32 %v2645, 1.442695
    %v2657 = vpow.pop %v2656
    %v2658 = vmul.f32 %v2646, 1.442695
    %v2659 = vpow.pop %v2658
    %v2660 = vmul.f32 %v2647, 1.442695
    %v2661 = vpow.pop %v2660
    %v2662 = vmul.f32 %v2648, 1.442695
    %v2663 = vpow.pop %v2662
    %v2664 = vmul.f32 %v2649, 1.442695
    %v2665 = vpow.pop %v2664
    %v2666 = vadd.f32 %v2651, 2.0
    %v2667 = vadd.f32 %v2653, 2.0
    %v2668 = vadd.f32 %v2655, 2.0
    %v2669 = vadd.f32 %v2657, 2.0
    %v2670 = vadd.f32 %v2659, 2.0
    %v2671 = vadd.f32 %v2661, 2.0
    %v2672 = vadd.f32 %v2663, 2.0
    %v2673 = vadd.f32 %v2665, 2.0
    %v2674 = vmul.f32 %v2651, %v2666
    %v2675 = vmul.f32 %v2653, %v2667
    %v2676 = vmul.f32 %v2655, %v2668
    %v2677 = vmul.f32 %v2657, %v2669
    %v2678 = vmul.f32 %v2659, %v2670
    %v2679 = vmul.f32 %v2661, %v2671
    %v2680 = vmul.f32 %v2663, %v2672
    %v2681 = vmul.f32 %v2665, %v2673
    %v2682 = vadd.f32 %v2674, 2.0
    %v2683 = vadd.f32 %v2675, 2.0
    %v2684 = vadd.f32 %v2676, 2.0
    %v2685 = vadd.f32 %v2677, 2.0
    %v2686 = vadd.f32 %v2678, 2.0
    %v2687 = vadd.f32 %v2679, 2.0
    %v2688 = vadd.f32 %v2680, 2.0
    %v2689 = vadd.f32 %v2681, 2.0
    %v2690 = vrcp.pop %v2682
    %v2691 = vrcp.pop %v2683
    %v2692 = vrcp.pop %v2684
    %v2693 = vrcp.pop %v2685
    %v2694 = vrcp.pop %v2686
    %v2695 = vrcp.pop %v2687
    %v2696 = vrcp.pop %v2688
    %v2697 = vrcp.pop %v2689
    %v2698 = vmul.f32 %v2674, %v2690
    %v2699 = vmul.f32 %v2675, %v2691
    %v2700 = vmul.f32 %v2676, %v2692
    %v2701 = vmul.f32 %v2677, %v2693
    %v2702 = vmul.f32 %v2678, %v2694
    %v2703 = vmul.f32 %v2679, %v2695
    %v2704 = vmul.f32 %v2680, %v2696
    %v2705 = vmul.f32 %v2681, %v2697
    %v2706 = vmul.f32 %v2612, %v2698
    %v2707 = vmul.f32 %v2615, %v2699
    %v2708 = vmul.f32 %v2620, %v2700
    %v2709 = vmul.f32 %v2623, %v2701
    %v2710 = vmul.f32 %v2628, %v2702
    %v2711 = vmul.f32 %v2631, %v2703
    %v2712 = vmul.f32 %v2636, %v2704
    %v2713 = vmul.f32 %v2639, %v2705
    %v2714 = vpack.c.bf16 %v2707, %v2706
    %v2715 = vpack.c.bf16 %v2709, %v2708
    %v2716 = vpack.c.bf16 %v2711, %v2710
    %v2717 = vpack.c.bf16 %v2713, %v2712
    %2718 = vst [vmem:[#allocation2 + $0xc0] sm:$0xff] %v2714
    %2719 = vst [vmem:[#allocation2 + $0xc8] sm:$0xff] %v2715
    %2720 = vst [vmem:[#allocation2 + $0xd0] sm:$0xff] %v2716
    %2721 = vst [vmem:[#allocation2 + $0xd8] sm:$0xff] %v2717
    %v2722 = vadd.f32 %v514, %v620
    %v2723 = vadd.f32 %v518, %v620
    %v2724 = vadd.f32 %v524, %v620
    %v2725 = vadd.f32 %v528, %v620
    %v2726 = vadd.f32 %v534, %v620
    %v2727 = vadd.f32 %v538, %v620
    %v2728 = vadd.f32 %v544, %v620
    %v2729 = vadd.f32 %v548, %v620
    %v2730 = vmin.f32 %v2722, 30.0
    %v2731 = vmin.f32 %v2723, 30.0
    %v2732 = vmin.f32 %v2724, 30.0
    %v2733 = vmin.f32 %v2725, 30.0
    %v2734 = vmin.f32 %v2726, 30.0
    %v2735 = vmin.f32 %v2727, 30.0
    %v2736 = vmin.f32 %v2728, 30.0
    %v2737 = vmin.f32 %v2729, 30.0
    %v2738 = vmul.f32 %v2730, 1.442695
    %v2739 = vpow.pop %v2738
    %v2740 = vmul.f32 %v2731, 1.442695
    %v2741 = vpow.pop %v2740
    %v2742 = vmul.f32 %v2732, 1.442695
    %v2743 = vpow.pop %v2742
    %v2744 = vmul.f32 %v2733, 1.442695
    %v2745 = vpow.pop %v2744
    %v2746 = vmul.f32 %v2734, 1.442695
    %v2747 = vpow.pop %v2746
    %v2748 = vmul.f32 %v2735, 1.442695
    %v2749 = vpow.pop %v2748
    %v2750 = vmul.f32 %v2736, 1.442695
    %v2751 = vpow.pop %v2750
    %v2752 = vmul.f32 %v2737, 1.442695
    %v2753 = vpow.pop %v2752
    %v2754 = vadd.f32 %v2739, 2.0
    %v2755 = vadd.f32 %v2741, 2.0
    %v2756 = vadd.f32 %v2743, 2.0
    %v2757 = vadd.f32 %v2745, 2.0
    %v2758 = vadd.f32 %v2747, 2.0
    %v2759 = vadd.f32 %v2749, 2.0
    %v2760 = vadd.f32 %v2751, 2.0
    %v2761 = vadd.f32 %v2753, 2.0
    %v2762 = vmul.f32 %v2739, %v2754
    %v2763 = vmul.f32 %v2741, %v2755
    %v2764 = vmul.f32 %v2743, %v2756
    %v2765 = vmul.f32 %v2745, %v2757
    %v2766 = vmul.f32 %v2747, %v2758
    %v2767 = vmul.f32 %v2749, %v2759
    %v2768 = vmul.f32 %v2751, %v2760
    %v2769 = vmul.f32 %v2753, %v2761
    %v2770 = vadd.f32 %v2762, 2.0
    %v2771 = vadd.f32 %v2763, 2.0
    %v2772 = vadd.f32 %v2764, 2.0
    %v2773 = vadd.f32 %v2765, 2.0
    %v2774 = vadd.f32 %v2766, 2.0
    %v2775 = vadd.f32 %v2767, 2.0
    %v2776 = vadd.f32 %v2768, 2.0
    %v2777 = vadd.f32 %v2769, 2.0
    %v2778 = vrcp.pop %v2770
    %v2779 = vrcp.pop %v2771
    %v2780 = vrcp.pop %v2772
    %v2781 = vrcp.pop %v2773
    %v2782 = vrcp.pop %v2774
    %v2783 = vrcp.pop %v2775
    %v2784 = vrcp.pop %v2776
    %v2785 = vrcp.pop %v2777
    %v2786 = vmul.f32 %v2762, %v2778
    %v2787 = vmul.f32 %v2763, %v2779
    %v2788 = vmul.f32 %v2764, %v2780
    %v2789 = vmul.f32 %v2765, %v2781
    %v2790 = vmul.f32 %v2766, %v2782
    %v2791 = vmul.f32 %v2767, %v2783
    %v2792 = vmul.f32 %v2768, %v2784
    %v2793 = vmul.f32 %v2769, %v2785
    %v2794 = vmul.f32 %v2722, %v2786
    %v2795 = vmul.f32 %v2723, %v2787
    %v2796 = vmul.f32 %v2724, %v2788
    %v2797 = vmul.f32 %v2725, %v2789
    %v2798 = vmul.f32 %v2726, %v2790
    %v2799 = vmul.f32 %v2727, %v2791
    %v2800 = vmul.f32 %v2728, %v2792
    %v2801 = vmul.f32 %v2729, %v2793
    %v2802 = vpack.c.bf16 %v2795, %v2794
    %v2803 = vpack.c.bf16 %v2797, %v2796
    %v2804 = vpack.c.bf16 %v2799, %v2798
    %v2805 = vpack.c.bf16 %v2801, %v2800
    %v2806 = vld [vmem:[#allocation9] sm:$0xf]
    %v2807 = vld [vmem:[#allocation9 + $0x4] sm:$0xf]
    %v2808 = vld [vmem:[#allocation9 + $0x8] sm:$0xf]
    %v2809 = vld [vmem:[#allocation9 + $0xc] sm:$0xf]
    %v2810 = vld [vmem:[#allocation9 + $0x10] sm:$0xf]
    %v2811 = vld [vmem:[#allocation9 + $0x14] sm:$0xf]
    %v2812 = vld [vmem:[#allocation9 + $0x18] sm:$0xf]
    %v2813 = vld [vmem:[#allocation9 + $0x1c] sm:$0xf]
    %v2814 = vld [vmem:[#allocation9 + $0x20] sm:$0xf]
    %v2815 = vld [vmem:[#allocation9 + $0x24] sm:$0xf]
    %v2816 = vld [vmem:[#allocation9 + $0x28] sm:$0xf]
    %v2817 = vld [vmem:[#allocation9 + $0x2c] sm:$0xf]
    %v2818 = vld [vmem:[#allocation9 + $0x30] sm:$0xf]
    %v2819 = vld [vmem:[#allocation9 + $0x34] sm:$0xf]
    %v2820 = vld [vmem:[#allocation9 + $0x38] sm:$0xf]
    %v2821 = vld [vmem:[#allocation9 + $0x3c] sm:$0xf]
    %v2822 = vld [vmem:[%s5] sm:$0x1]
    %v2824 = vlaneseq
    %v2825 = vshrl.u32 %v2824, 7
    %v2826 = vsub.s32 0, %v2825
    %v2827 = vrot.slane %v2822, %v2826
    %v2845 = vunpack.c.l.b16 %v2806
    %v2846 = vunpack.c.l.b16 %v2807
    %v2847 = vunpack.c.l.b16 %v2808
    %v2848 = vunpack.c.l.b16 %v2809
    %v2849 = vunpack.c.l.b16 %v2810
    %v2850 = vunpack.c.l.b16 %v2811
    %v2851 = vunpack.c.l.b16 %v2812
    %v2852 = vunpack.c.l.b16 %v2813
    %v2853 = vunpack.c.l.b16 %v2814
    %v2854 = vunpack.c.l.b16 %v2815
    %v2855 = vunpack.c.l.b16 %v2816
    %v2856 = vunpack.c.l.b16 %v2817
    %v2857 = vunpack.c.l.b16 %v2818
    %v2858 = vunpack.c.l.b16 %v2819
    %v2859 = vunpack.c.l.b16 %v2820
    %v2860 = vunpack.c.l.b16 %v2821
    %v2861 = vpack.c.b16 %v2846, %v2845
    %v2862 = vpack.c.b16 %v2848, %v2847
    %v2863 = vpack.c.b16 %v2850, %v2849
    %v2864 = vpack.c.b16 %v2852, %v2851
    %v2865 = vpack.c.b16 %v2854, %v2853
    %v2866 = vpack.c.b16 %v2856, %v2855
    %v2867 = vpack.c.b16 %v2858, %v2857
    %v2868 = vpack.c.b16 %v2860, %v2859
    %2877 = vmatprep.subr.bf16.mxu0 0
    %2878 = vmatpush1.bf16.msra.mxu0 %v2861
    %2879 = vmatprep.subr.bf16.mxu0 0
    %2880 = vmatpush1.bf16.msra.mxu0 %v2862
    %2881 = vmatprep.subr.bf16.mxu0 0
    %2882 = vmatpush1.bf16.msra.mxu0 %v2863
    %2883 = vmatprep.subr.bf16.mxu0 0
    %2884 = vmatpush1.bf16.msra.mxu0 %v2864
    %2885 = vmatprep.subr.bf16.mxu0 0
    %2886 = vmatpush1.bf16.msra.mxu0 %v2865
    %2887 = vmatprep.subr.bf16.mxu0 0
    %2888 = vmatpush1.bf16.msra.mxu0 %v2866
    %2889 = vmatprep.subr.bf16.mxu0 0
    %2890 = vmatpush1.bf16.msra.mxu0 %v2867
    %2891 = vmatprep.subr.bf16.mxu0 0
    %2892 = vmatpush1.bf16.msra.mxu0 %v2868
    %2893 = vmatprep.subr.bf16.mxu0 0
    %2894 = vmatpush1.bf16.msra.mxu0 0
    %2895 = vmatprep.subr.bf16.mxu0 0
    %2896 = vmatpush1.bf16.msra.mxu0 0
    %2897 = vmatprep.subr.bf16.mxu0 0
    %2898 = vmatpush1.bf16.msra.mxu0 0
    %2899 = vmatprep.subr.bf16.mxu0 0
    %2900 = vmatpush1.bf16.msra.mxu0 0
    %2901 = vmatprep.subr.bf16.mxu0 0
    %2902 = vmatpush1.bf16.msra.mxu0 0
    %2903 = vmatprep.subr.bf16.mxu0 0
    %2904 = vmatpush1.bf16.msra.mxu0 0
    %2905 = vmatprep.subr.bf16.mxu0 0
    %2906 = vmatpush1.bf16.msra.mxu0 0
    %2907 = vmatprep.subr.bf16.mxu0 0
    %2908 = vmatpush1.bf16.msra.mxu0 0
    %2909 = vmatprep.mubr.bf16.mxu0 0
    %2910 = vmatmul.mubr.bf16.gmra.mrb[0].mxu0 %v2802
    %v2911 = vpop.f32.mrb[0].mxu0
    %v2912 = vadd.f32 %v2827, %v2911
    %v2913 = vpop.f32.mrb[0].mxu0
    %v2914 = vpop.f32.mrb[0].mxu0
    %v2915 = vadd.f32 %v2827, %v2914
    %v2916 = vpop.f32.mrb[0].mxu0
    %2917 = vmatprep.mubr.bf16.mxu0 0
    %2918 = vmatmul.mubr.bf16.gmra.mrb[0].mxu0 %v2803
    %v2919 = vpop.f32.mrb[0].mxu0
    %v2920 = vadd.f32 %v2827, %v2919
    %v2921 = vpop.f32.mrb[0].mxu0
    %v2922 = vpop.f32.mrb[0].mxu0
    %v2923 = vadd.f32 %v2827, %v2922
    %v2924 = vpop.f32.mrb[0].mxu0
    %2925 = vmatprep.mubr.bf16.mxu0 0
    %2926 = vmatmul.mubr.bf16.gmra.mrb[0].mxu0 %v2804
    %v2927 = vpop.f32.mrb[0].mxu0
    %v2928 = vadd.f32 %v2827, %v2927
    %v2929 = vpop.f32.mrb[0].mxu0
    %v2930 = vpop.f32.mrb[0].mxu0
    %v2931 = vadd.f32 %v2827, %v2930
    %v2932 = vpop.f32.mrb[0].mxu0
    %2933 = vmatprep.mubr.bf16.mxu0 0
    %2934 = vmatmul.mubr.bf16.gmra.mrb[0].mxu0 %v2805
    %v2935 = vpop.f32.mrb[0].mxu0
    %v2936 = vadd.f32 %v2827, %v2935
    %v2937 = vpop.f32.mrb[0].mxu0
    %v2938 = vpop.f32.mrb[0].mxu0
    %v2939 = vadd.f32 %v2827, %v2938
    %v2940 = vpop.f32.mrb[0].mxu0
    %2941 = vdwg.mxu0
    %v2942 = vmin.f32 %v2912, 30.0
    %v2943 = vmin.f32 %v2915, 30.0
    %v2944 = vmin.f32 %v2920, 30.0
    %v2945 = vmin.f32 %v2923, 30.0
    %v2946 = vmin.f32 %v2928, 30.0
    %v2947 = vmin.f32 %v2931, 30.0
    %v2948 = vmin.f32 %v2936, 30.0
    %v2949 = vmin.f32 %v2939, 30.0
    %v2950 = vmul.f32 %v2942, 1.442695
    %v2951 = vpow.pop %v2950
    %v2952 = vmul.f32 %v2943, 1.442695
    %v2953 = vpow.pop %v2952
    %v2954 = vmul.f32 %v2944, 1.442695
    %v2955 = vpow.pop %v2954
    %v2956 = vmul.f32 %v2945, 1.442695
    %v2957 = vpow.pop %v2956
    %v2958 = vmul.f32 %v2946, 1.442695
    %v2959 = vpow.pop %v2958
    %v2960 = vmul.f32 %v2947, 1.442695
    %v2961 = vpow.pop %v2960
    %v2962 = vmul.f32 %v2948, 1.442695
    %v2963 = vpow.pop %v2962
    %v2964 = vmul.f32 %v2949, 1.442695
    %v2965 = vpow.pop %v2964
    %v2966 = vadd.f32 %v2951, 2.0
    %v2967 = vadd.f32 %v2953, 2.0
    %v2968 = vadd.f32 %v2955, 2.0
    %v2969 = vadd.f32 %v2957, 2.0
    %v2970 = vadd.f32 %v2959, 2.0
    %v2971 = vadd.f32 %v2961, 2.0
    %v2972 = vadd.f32 %v2963, 2.0
    %v2973 = vadd.f32 %v2965, 2.0
    %v2974 = vmul.f32 %v2951, %v2966
    %v2975 = vmul.f32 %v2953, %v2967
    %v2976 = vmul.f32 %v2955, %v2968
    %v2977 = vmul.f32 %v2957, %v2969
    %v2978 = vmul.f32 %v2959, %v2970
    %v2979 = vmul.f32 %v2961, %v2971
    %v2980 = vmul.f32 %v2963, %v2972
    %v2981 = vmul.f32 %v2965, %v2973
    %v2982 = vadd.f32 %v2974, 2.0
    %v2983 = vadd.f32 %v2975, 2.0
    %v2984 = vadd.f32 %v2976, 2.0
    %v2985 = vadd.f32 %v2977, 2.0
    %v2986 = vadd.f32 %v2978, 2.0
    %v2987 = vadd.f32 %v2979, 2.0
    %v2988 = vadd.f32 %v2980, 2.0
    %v2989 = vadd.f32 %v2981, 2.0
    %v2990 = vrcp.pop %v2982
    %v2991 = vrcp.pop %v2983
    %v2992 = vrcp.pop %v2984
    %v2993 = vrcp.pop %v2985
    %v2994 = vrcp.pop %v2986
    %v2995 = vrcp.pop %v2987
    %v2996 = vrcp.pop %v2988
    %v2997 = vrcp.pop %v2989
    %v2998 = vmul.f32 %v2974, %v2990
    %v2999 = vmul.f32 %v2975, %v2991
    %v3000 = vmul.f32 %v2976, %v2992
    %v3001 = vmul.f32 %v2977, %v2993
    %v3002 = vmul.f32 %v2978, %v2994
    %v3003 = vmul.f32 %v2979, %v2995
    %v3004 = vmul.f32 %v2980, %v2996
    %v3005 = vmul.f32 %v2981, %v2997
    %v3006 = vmul.f32 %v2912, %v2998
    %v3007 = vmul.f32 %v2915, %v2999
    %v3008 = vmul.f32 %v2920, %v3000
    %v3009 = vmul.f32 %v2923, %v3001
    %v3010 = vmul.f32 %v2928, %v3002
    %v3011 = vmul.f32 %v2931, %v3003
    %v3012 = vmul.f32 %v2936, %v3004
    %v3013 = vmul.f32 %v2939, %v3005
    %v3014 = vpack.c.bf16 %v3007, %v3006
    %v3015 = vpack.c.bf16 %v3009, %v3008
    %v3016 = vpack.c.bf16 %v3011, %v3010
    %v3017 = vpack.c.bf16 %v3013, %v3012
    %3018 = vst [vmem:[#allocation2 + $0xe0] sm:$0xff] %v3014
    %3019 = vst [vmem:[#allocation2 + $0xe8] sm:$0xff] %v3015
    %3020 = vst [vmem:[#allocation2 + $0xf0] sm:$0xff] %v3016
    %3021 = vst [vmem:[#allocation2 + $0xf8] sm:$0xff] %v3017
    %v3022 = vadd.f32 %v585, %v620
    %v3023 = vadd.f32 %v588, %v620
    %v3024 = vadd.f32 %v593, %v620
    %v3025 = vadd.f32 %v596, %v620
    %v3026 = vadd.f32 %v601, %v620
    %v3027 = vadd.f32 %v604, %v620
    %v3028 = vadd.f32 %v609, %v620
    %v3029 = vadd.f32 %v612, %v620
    %v3030 = vmin.f32 %v3022, 30.0
    %v3031 = vmin.f32 %v3023, 30.0
    %v3032 = vmin.f32 %v3024, 30.0
    %v3033 = vmin.f32 %v3025, 30.0
    %v3034 = vmin.f32 %v3026, 30.0
    %v3035 = vmin.f32 %v3027, 30.0
    %v3036 = vmin.f32 %v3028, 30.0
    %v3037 = vmin.f32 %v3029, 30.0
    %v3038 = vmul.f32 %v3030, 1.442695
    %v3039 = vpow.pop %v3038
    %v3040 = vmul.f32 %v3031, 1.442695
    %v3041 = vpow.pop %v3040
    %v3042 = vmul.f32 %v3032, 1.442695
    %v3043 = vpow.pop %v3042
    %v3044 = vmul.f32 %v3033, 1.442695
    %v3045 = vpow.pop %v3044
    %v3046 = vmul.f32 %v3034, 1.442695
    %v3047 = vpow.pop %v3046
    %v3048 = vmul.f32 %v3035, 1.442695
    %v3049 = vpow.pop %v3048
    %v3050 = vmul.f32 %v3036, 1.442695
    %v3051 = vpow.pop %v3050
    %v3052 = vmul.f32 %v3037, 1.442695
    %v3053 = vpow.pop %v3052
    %v3054 = vadd.f32 %v3039, 2.0
    %v3055 = vadd.f32 %v3041, 2.0
    %v3056 = vadd.f32 %v3043, 2.0
    %v3057 = vadd.f32 %v3045, 2.0
    %v3058 = vadd.f32 %v3047, 2.0
    %v3059 = vadd.f32 %v3049, 2.0
    %v3060 = vadd.f32 %v3051, 2.0
    %v3061 = vadd.f32 %v3053, 2.0
    %v3062 = vmul.f32 %v3039, %v3054
    %v3063 = vmul.f32 %v3041, %v3055
    %v3064 = vmul.f32 %v3043, %v3056
    %v3065 = vmul.f32 %v3045, %v3057
    %v3066 = vmul.f32 %v3047, %v3058
    %v3067 = vmul.f32 %v3049, %v3059
    %v3068 = vmul.f32 %v3051, %v3060
    %v3069 = vmul.f32 %v3053, %v3061
    %v3070 = vadd.f32 %v3062, 2.0
    %v3071 = vadd.f32 %v3063, 2.0
    %v3072 = vadd.f32 %v3064, 2.0
    %v3073 = vadd.f32 %v3065, 2.0
    %v3074 = vadd.f32 %v3066, 2.0
    %v3075 = vadd.f32 %v3067, 2.0
    %v3076 = vadd.f32 %v3068, 2.0
    %v3077 = vadd.f32 %v3069, 2.0
    %v3078 = vrcp.pop %v3070
    %v3079 = vrcp.pop %v3071
    %v3080 = vrcp.pop %v3072
    %v3081 = vrcp.pop %v3073
    %v3082 = vrcp.pop %v3074
    %v3083 = vrcp.pop %v3075
    %v3084 = vrcp.pop %v3076
    %v3085 = vrcp.pop %v3077
    %v3086 = vmul.f32 %v3062, %v3078
    %v3087 = vmul.f32 %v3063, %v3079
    %v3088 = vmul.f32 %v3064, %v3080
    %v3089 = vmul.f32 %v3065, %v3081
    %v3090 = vmul.f32 %v3066, %v3082
    %v3091 = vmul.f32 %v3067, %v3083
    %v3092 = vmul.f32 %v3068, %v3084
    %v3093 = vmul.f32 %v3069, %v3085
    %v3094 = vmul.f32 %v3022, %v3086
    %v3095 = vmul.f32 %v3023, %v3087
    %v3096 = vmul.f32 %v3024, %v3088
    %v3097 = vmul.f32 %v3025, %v3089
    %v3098 = vmul.f32 %v3026, %v3090
    %v3099 = vmul.f32 %v3027, %v3091
    %v3100 = vmul.f32 %v3028, %v3092
    %v3101 = vmul.f32 %v3029, %v3093
    %v3102 = vpack.c.bf16 %v3095, %v3094
    %v3103 = vpack.c.bf16 %v3097, %v3096
    %v3104 = vpack.c.bf16 %v3099, %v3098
    %v3105 = vpack.c.bf16 %v3101, %v3100
    %v3106 = vld [vmem:[#allocation9] sm:$0xf]
    %v3107 = vld [vmem:[#allocation9 + $0x4] sm:$0xf]
    %v3108 = vld [vmem:[#allocation9 + $0x8] sm:$0xf]
    %v3109 = vld [vmem:[#allocation9 + $0xc] sm:$0xf]
    %v3110 = vld [vmem:[#allocation9 + $0x10] sm:$0xf]
    %v3111 = vld [vmem:[#allocation9 + $0x14] sm:$0xf]
    %v3112 = vld [vmem:[#allocation9 + $0x18] sm:$0xf]
    %v3113 = vld [vmem:[#allocation9 + $0x1c] sm:$0xf]
    %v3114 = vld [vmem:[#allocation9 + $0x20] sm:$0xf]
    %v3115 = vld [vmem:[#allocation9 + $0x24] sm:$0xf]
    %v3116 = vld [vmem:[#allocation9 + $0x28] sm:$0xf]
    %v3117 = vld [vmem:[#allocation9 + $0x2c] sm:$0xf]
    %v3118 = vld [vmem:[#allocation9 + $0x30] sm:$0xf]
    %v3119 = vld [vmem:[#allocation9 + $0x34] sm:$0xf]
    %v3120 = vld [vmem:[#allocation9 + $0x38] sm:$0xf]
    %v3121 = vld [vmem:[#allocation9 + $0x3c] sm:$0xf]
    %v3122 = vld [vmem:[%s5] sm:$0x1]
    %v3124 = vlaneseq
    %v3125 = vshrl.u32 %v3124, 7
    %v3126 = vsub.s32 0, %v3125
    %v3127 = vrot.slane %v3122, %v3126
    %v3145 = vunpack.c.l.b16 %v3106
    %v3146 = vunpack.c.l.b16 %v3107
    %v3147 = vunpack.c.l.b16 %v3108
    %v3148 = vunpack.c.l.b16 %v3109
    %v3149 = vunpack.c.l.b16 %v3110
    %v3150 = vunpack.c.l.b16 %v3111
    %v3151 = vunpack.c.l.b16 %v3112
    %v3152 = vunpack.c.l.b16 %v3113
    %v3153 = vunpack.c.l.b16 %v3114
    %v3154 = vunpack.c.l.b16 %v3115
    %v3155 = vunpack.c.l.b16 %v3116
    %v3156 = vunpack.c.l.b16 %v3117
    %v3157 = vunpack.c.l.b16 %v3118
    %v3158 = vunpack.c.l.b16 %v3119
    %v3159 = vunpack.c.l.b16 %v3120
    %v3160 = vunpack.c.l.b16 %v3121
    %v3161 = vpack.c.b16 %v3146, %v3145
    %v3162 = vpack.c.b16 %v3148, %v3147
    %v3163 = vpack.c.b16 %v3150, %v3149
    %v3164 = vpack.c.b16 %v3152, %v3151
    %v3165 = vpack.c.b16 %v3154, %v3153
    %v3166 = vpack.c.b16 %v3156, %v3155
    %v3167 = vpack.c.b16 %v3158, %v3157
    %v3168 = vpack.c.b16 %v3160, %v3159
    %3177 = vmatprep.subr.bf16.mxu0 0
    %3178 = vmatpush1.bf16.msra.mxu0 %v3161
    %3179 = vmatprep.subr.bf16.mxu0 0
    %3180 = vmatpush1.bf16.msra.mxu0 %v3162
    %3181 = vmatprep.subr.bf16.mxu0 0
    %3182 = vmatpush1.bf16.msra.mxu0 %v3163
    %3183 = vmatprep.subr.bf16.mxu0 0
    %3184 = vmatpush1.bf16.msra.mxu0 %v3164
    %3185 = vmatprep.subr.bf16.mxu0 0
    %3186 = vmatpush1.bf16.msra.mxu0 %v3165
    %3187 = vmatprep.subr.bf16.mxu0 0
    %3188 = vmatpush1.bf16.msra.mxu0 %v3166
    %3189 = vmatprep.subr.bf16.mxu0 0
    %3190 = vmatpush1.bf16.msra.mxu0 %v3167
    %3191 = vmatprep.subr.bf16.mxu0 0
    %3192 = vmatpush1.bf16.msra.mxu0 %v3168
    %3193 = vmatprep.subr.bf16.mxu0 0
    %3194 = vmatpush1.bf16.msra.mxu0 0
    %3195 = vmatprep.subr.bf16.mxu0 0
    %3196 = vmatpush1.bf16.msra.mxu0 0
    %3197 = vmatprep.subr.bf16.mxu0 0
    %3198 = vmatpush1.bf16.msra.mxu0 0
    %3199 = vmatprep.subr.bf16.mxu0 0
    %3200 = vmatpush1.bf16.msra.mxu0 0
    %3201 = vmatprep.subr.bf16.mxu0 0
    %3202 = vmatpush1.bf16.msra.mxu0 0
    %3203 = vmatprep.subr.bf16.mxu0 0
    %3204 = vmatpush1.bf16.msra.mxu0 0
    %3205 = vmatprep.subr.bf16.mxu0 0
    %3206 = vmatpush1.bf16.msra.mxu0 0
    %3207 = vmatprep.subr.bf16.mxu0 0
    %3208 = vmatpush1.bf16.msra.mxu0 0
    %3209 = vmatprep.mubr.bf16.mxu0 0
    %3210 = vmatmul.mubr.bf16.gmra.mrb[0].mxu0 %v3102
    %v3211 = vpop.f32.mrb[0].mxu0
    %v3212 = vadd.f32 %v3127, %v3211
    %v3213 = vpop.f32.mrb[0].mxu0
    %v3214 = vpop.f32.mrb[0].mxu0
    %v3215 = vadd.f32 %v3127, %v3214
    %v3216 = vpop.f32.mrb[0].mxu0
    %3217 = vmatprep.mubr.bf16.mxu0 0
    %3218 = vmatmul.mubr.bf16.gmra.mrb[0].mxu0 %v3103
    %v3219 = vpop.f32.mrb[0].mxu0
    %v3220 = vadd.f32 %v3127, %v3219
    %v3221 = vpop.f32.mrb[0].mxu0
    %v3222 = vpop.f32.mrb[0].mxu0
    %v3223 = vadd.f32 %v3127, %v3222
    %v3224 = vpop.f32.mrb[0].mxu0
    %3225 = vmatprep.mubr.bf16.mxu0 0
    %3226 = vmatmul.mubr.bf16.gmra.mrb[0].mxu0 %v3104
    %v3227 = vpop.f32.mrb[0].mxu0
    %v3228 = vadd.f32 %v3127, %v3227
    %v3229 = vpop.f32.mrb[0].mxu0
    %v3230 = vpop.f32.mrb[0].mxu0
    %v3231 = vadd.f32 %v3127, %v3230
    %v3232 = vpop.f32.mrb[0].mxu0
    %3233 = vmatprep.mubr.bf16.mxu0 0
    %3234 = vmatmul.mubr.bf16.gmra.mrb[0].mxu0 %v3105
    %v3235 = vpop.f32.mrb[0].mxu0
    %v3236 = vadd.f32 %v3127, %v3235
    %v3237 = vpop.f32.mrb[0].mxu0
    %v3238 = vpop.f32.mrb[0].mxu0
    %v3239 = vadd.f32 %v3127, %v3238
    %v3240 = vpop.f32.mrb[0].mxu0
    %3241 = vdwg.mxu0
    %v3242 = vmin.f32 %v3212, 30.0
    %v3243 = vmin.f32 %v3215, 30.0
    %v3244 = vmin.f32 %v3220, 30.0
    %v3245 = vmin.f32 %v3223, 30.0
    %v3246 = vmin.f32 %v3228, 30.0
    %v3247 = vmin.f32 %v3231, 30.0
    %v3248 = vmin.f32 %v3236, 30.0
    %v3249 = vmin.f32 %v3239, 30.0
    %v3250 = vmul.f32 %v3242, 1.442695
    %v3251 = vpow.pop %v3250
    %v3252 = vmul.f32 %v3243, 1.442695
    %v3253 = vpow.pop %v3252
    %v3254 = vmul.f32 %v3244, 1.442695
    %v3255 = vpow.pop %v3254
    %v3256 = vmul.f32 %v3245, 1.442695
    %v3257 = vpow.pop %v3256
    %v3258 = vmul.f32 %v3246, 1.442695
    %v3259 = vpow.pop %v3258
    %v3260 = vmul.f32 %v3247, 1.442695
    %v3261 = vpow.pop %v3260
    %v3262 = vmul.f32 %v3248, 1.442695
    %v3263 = vpow.pop %v3262
    %v3264 = vmul.f32 %v3249, 1.442695
    %v3265 = vpow.pop %v3264
    %v3266 = vadd.f32 %v3251, 2.0
    %v3267 = vadd.f32 %v3253, 2.0
    %v3268 = vadd.f32 %v3255, 2.0
    %v3269 = vadd.f32 %v3257, 2.0
    %v3270 = vadd.f32 %v3259, 2.0
    %v3271 = vadd.f32 %v3261, 2.0
    %v3272 = vadd.f32 %v3263, 2.0
    %v3273 = vadd.f32 %v3265, 2.0
    %v3274 = vmul.f32 %v3251, %v3266
    %v3275 = vmul.f32 %v3253, %v3267
    %v3276 = vmul.f32 %v3255, %v3268
    %v3277 = vmul.f32 %v3257, %v3269
    %v3278 = vmul.f32 %v3259, %v3270
    %v3279 = vmul.f32 %v3261, %v3271
    %v3280 = vmul.f32 %v3263, %v3272
    %v3281 = vmul.f32 %v3265, %v3273
    %v3282 = vadd.f32 %v3274, 2.0
    %v3283 = vadd.f32 %v3275, 2.0
    %v3284 = vadd.f32 %v3276, 2.0
    %v3285 = vadd.f32 %v3277, 2.0
    %v3286 = vadd.f32 %v3278, 2.0
    %v3287 = vadd.f32 %v3279, 2.0
    %v3288 = vadd.f32 %v3280, 2.0
    %v3289 = vadd.f32 %v3281, 2.0
    %v3290 = vrcp.pop %v3282
    %v3291 = vrcp.pop %v3283
    %v3292 = vrcp.pop %v3284
    %v3293 = vrcp.pop %v3285
    %v3294 = vrcp.pop %v3286
    %v3295 = vrcp.pop %v3287
    %v3296 = vrcp.pop %v3288
    %v3297 = vrcp.pop %v3289
    %v3298 = vmul.f32 %v3274, %v3290
    %v3299 = vmul.f32 %v3275, %v3291
    %v3300 = vmul.f32 %v3276, %v3292
    %v3301 = vmul.f32 %v3277, %v3293
    %v3302 = vmul.f32 %v3278, %v3294
    %v3303 = vmul.f32 %v3279, %v3295
    %v3304 = vmul.f32 %v3280, %v3296
    %v3305 = vmul.f32 %v3281, %v3297
    %v3306 = vmul.f32 %v3212, %v3298
    %v3307 = vmul.f32 %v3215, %v3299
    %v3308 = vmul.f32 %v3220, %v3300
    %v3309 = vmul.f32 %v3223, %v3301
    %v3310 = vmul.f32 %v3228, %v3302
    %v3311 = vmul.f32 %v3231, %v3303
    %v3312 = vmul.f32 %v3236, %v3304
    %v3313 = vmul.f32 %v3239, %v3305
    %v3314 = vpack.c.bf16 %v3307, %v3306
    %v3315 = vpack.c.bf16 %v3309, %v3308
    %v3316 = vpack.c.bf16 %v3311, %v3310
    %v3317 = vpack.c.bf16 %v3313, %v3312
    %3318 = vst [vmem:[#allocation2 + $0x100] sm:$0xff] %v3314
    %3319 = vst [vmem:[#allocation2 + $0x108] sm:$0xff] %v3315
    %3320 = vst [vmem:[#allocation2 + $0x110] sm:$0xff] %v3316
    %3321 = vst [vmem:[#allocation2 + $0x118] sm:$0xff] %v3317
    %s3322 = scalar_lea.vmem %s2, 1
    %v3323 = vld [vmem:[%s3322] sm:$0x1]
    %v3324 = vld [vmem:[#allocation2] sm:$0xff]
    %v3325 = vld [vmem:[#allocation2 + $0x8] sm:$0xff]
    %v3326 = vld [vmem:[#allocation2 + $0x10] sm:$0xff]
    %v3327 = vld [vmem:[#allocation2 + $0x18] sm:$0xff]
    %v3328 = vld [vmem:[#allocation2 + $0x20] sm:$0xff]
    %v3329 = vld [vmem:[#allocation2 + $0x28] sm:$0xff]
    %v3330 = vld [vmem:[#allocation2 + $0x30] sm:$0xff]
    %v3331 = vld [vmem:[#allocation2 + $0x38] sm:$0xff]
    %v3332 = vld [vmem:[#allocation7] sm:$0xf]
    %v3333 = vld [vmem:[#allocation7 + $0x4] sm:$0xf]
    %v3334 = vld [vmem:[#allocation7 + $0x8] sm:$0xf]
    %v3335 = vld [vmem:[#allocation7 + $0xc] sm:$0xf]
    %v3336 = vld [vmem:[#allocation7 + $0x10] sm:$0xf]
    %v3337 = vld [vmem:[#allocation7 + $0x14] sm:$0xf]
    %v3338 = vld [vmem:[#allocation7 + $0x18] sm:$0xf]
    %v3339 = vld [vmem:[#allocation7 + $0x1c] sm:$0xf]
    %v3340 = vld [vmem:[#allocation7 + $0x20] sm:$0xf]
    %v3341 = vld [vmem:[#allocation7 + $0x24] sm:$0xf]
    %v3342 = vld [vmem:[#allocation7 + $0x28] sm:$0xf]
    %v3343 = vld [vmem:[#allocation7 + $0x2c] sm:$0xf]
    %v3344 = vld [vmem:[#allocation7 + $0x30] sm:$0xf]
    %v3345 = vld [vmem:[#allocation7 + $0x34] sm:$0xf]
    %v3346 = vld [vmem:[#allocation7 + $0x38] sm:$0xf]
    %v3347 = vld [vmem:[#allocation7 + $0x3c] sm:$0xf]
    %v3348 = vld [vmem:[#allocation2 + $0x60] sm:$0xff]
    %v3349 = vld [vmem:[#allocation2 + $0x68] sm:$0xff]
    %v3350 = vld [vmem:[#allocation2 + $0x70] sm:$0xff]
    %v3351 = vld [vmem:[#allocation2 + $0x78] sm:$0xff]
    %v3352 = vld [vmem:[#allocation2 + $0x80] sm:$0xff]
    %v3353 = vld [vmem:[#allocation2 + $0x88] sm:$0xff]
    %v3354 = vld [vmem:[#allocation2 + $0x90] sm:$0xff]
    %v3355 = vld [vmem:[#allocation2 + $0x98] sm:$0xff]
    %s3356 = scalar_lea.vmem [#allocation7], 64
    %v3357 = vld [vmem:[%s3356] sm:$0xf]
    %v3358 = vld [vmem:[%s3356 + $0x4] sm:$0xf]
    %v3359 = vld [vmem:[%s3356 + $0x8] sm:$0xf]
    %v3360 = vld [vmem:[%s3356 + $0xc] sm:$0xf]
    %v3361 = vld [vmem:[%s3356 + $0x10] sm:$0xf]
    %v3362 = vld [vmem:[%s3356 + $0x14] sm:$0xf]
    %v3363 = vld [vmem:[%s3356 + $0x18] sm:$0xf]
    %v3364 = vld [vmem:[%s3356 + $0x1c] sm:$0xf]
    %v3365 = vld [vmem:[%s3356 + $0x20] sm:$0xf]
    %v3366 = vld [vmem:[%s3356 + $0x24] sm:$0xf]
    %v3367 = vld [vmem:[%s3356 + $0x28] sm:$0xf]
    %v3368 = vld [vmem:[%s3356 + $0x2c] sm:$0xf]
    %v3369 = vld [vmem:[%s3356 + $0x30] sm:$0xf]
    %v3370 = vld [vmem:[%s3356 + $0x34] sm:$0xf]
    %v3371 = vld [vmem:[%s3356 + $0x38] sm:$0xf]
    %v3372 = vld [vmem:[%s3356 + $0x3c] sm:$0xf]
    %v3389 = vunpack.c.l.b16 %v3357
    %v3390 = vunpack.c.l.b16 %v3358
    %v3391 = vunpack.c.l.b16 %v3359
    %v3392 = vunpack.c.l.b16 %v3360
    %v3393 = vunpack.c.l.b16 %v3361
    %v3394 = vunpack.c.l.b16 %v3362
    %v3395 = vunpack.c.l.b16 %v3363
    %v3396 = vunpack.c.l.b16 %v3364
    %v3397 = vunpack.c.l.b16 %v3365
    %v3398 = vunpack.c.l.b16 %v3366
    %v3399 = vunpack.c.l.b16 %v3367
    %v3400 = vunpack.c.l.b16 %v3368
    %v3401 = vunpack.c.l.b16 %v3369
    %v3402 = vunpack.c.l.b16 %v3370
    %v3403 = vunpack.c.l.b16 %v3371
    %v3404 = vunpack.c.l.b16 %v3372
    %v3405 = vpack.c.b16 %v3390, %v3389
    %v3406 = vpack.c.b16 %v3392, %v3391
    %v3407 = vpack.c.b16 %v3394, %v3393
    %v3408 = vpack.c.b16 %v3396, %v3395
    %v3409 = vpack.c.b16 %v3398, %v3397
    %v3410 = vpack.c.b16 %v3400, %v3399
    %v3411 = vpack.c.b16 %v3402, %v3401
    %v3412 = vpack.c.b16 %v3404, %v3403
    %3421 = vmatprep.subr.bf16.mxu0 0
    %3422 = vmatpush1.bf16.msra.mxu0 %v3405
    %3423 = vmatprep.subr.bf16.mxu0 0
    %3424 = vmatpush1.bf16.msra.mxu0 %v3406
    %3425 = vmatprep.subr.bf16.mxu0 0
    %3426 = vmatpush1.bf16.msra.mxu0 %v3407
    %3427 = vmatprep.subr.bf16.mxu0 0
    %3428 = vmatpush1.bf16.msra.mxu0 %v3408
    %3429 = vmatprep.subr.bf16.mxu0 0
    %3430 = vmatpush1.bf16.msra.mxu0 %v3409
    %3431 = vmatprep.subr.bf16.mxu0 0
    %3432 = vmatpush1.bf16.msra.mxu0 %v3410
    %3433 = vmatprep.subr.bf16.mxu0 0
    %3434 = vmatpush1.bf16.msra.mxu0 %v3411
    %3435 = vmatprep.subr.bf16.mxu0 0
    %3436 = vmatpush1.bf16.msra.mxu0 %v3412
    %3437 = vmatprep.subr.bf16.mxu0 0
    %3438 = vmatpush1.bf16.msra.mxu0 0
    %3439 = vmatprep.subr.bf16.mxu0 0
    %3440 = vmatpush1.bf16.msra.mxu0 0
    %3441 = vmatprep.subr.bf16.mxu0 0
    %3442 = vmatpush1.bf16.msra.mxu0 0
    %3443 = vmatprep.subr.bf16.mxu0 0
    %3444 = vmatpush1.bf16.msra.mxu0 0
    %3445 = vmatprep.subr.bf16.mxu0 0
    %3446 = vmatpush1.bf16.msra.mxu0 0
    %3447 = vmatprep.subr.bf16.mxu0 0
    %3448 = vmatpush1.bf16.msra.mxu0 0
    %3449 = vmatprep.subr.bf16.mxu0 0
    %3450 = vmatpush1.bf16.msra.mxu0 0
    %3451 = vmatprep.subr.bf16.mxu0 0
    %3452 = vmatpush1.bf16.msra.mxu0 0
    %3453 = vmatprep.mubr.bf16.mxu0 0
    %3454 = vmatmul.mubr.bf16.gmra.mrb[0].mxu0 %v3348
    %v3455 = vpop.f32.mrb[0].mxu0
    %v3456 = vadd.f32 0.0, %v3455
    %v3457 = vpop.f32.mrb[0].mxu0
    %v3458 = vpop.f32.mrb[0].mxu0
    %v3459 = vadd.f32 0.0, %v3458
    %v3460 = vpop.f32.mrb[0].mxu0
    %3461 = vmatprep.mubr.bf16.mxu0 0
    %3462 = vmatmul.mubr.bf16.gmra.mrb[0].mxu0 %v3349
    %v3463 = vpop.f32.mrb[0].mxu0
    %v3464 = vadd.f32 0.0, %v3463
    %v3465 = vpop.f32.mrb[0].mxu0
    %v3466 = vpop.f32.mrb[0].mxu0
    %v3467 = vadd.f32 0.0, %v3466
    %v3468 = vpop.f32.mrb[0].mxu0
    %3469 = vmatprep.mubr.bf16.mxu0 0
    %3470 = vmatmul.mubr.bf16.gmra.mrb[0].mxu0 %v3350
    %v3471 = vpop.f32.mrb[0].mxu0
    %v3472 = vadd.f32 0.0, %v3471
    %v3473 = vpop.f32.mrb[0].mxu0
    %v3474 = vpop.f32.mrb[0].mxu0
    %v3475 = vadd.f32 0.0, %v3474
    %v3476 = vpop.f32.mrb[0].mxu0
    %3477 = vmatprep.mubr.bf16.mxu0 0
    %3478 = vmatmul.mubr.bf16.gmra.mrb[0].mxu0 %v3351
    %v3479 = vpop.f32.mrb[0].mxu0
    %v3480 = vadd.f32 0.0, %v3479
    %v3481 = vpop.f32.mrb[0].mxu0
    %v3482 = vpop.f32.mrb[0].mxu0
    %v3483 = vadd.f32 0.0, %v3482
    %v3484 = vpop.f32.mrb[0].mxu0
    %3485 = vmatprep.mubr.bf16.mxu0 0
    %3486 = vmatmul.mubr.bf16.gmra.mrb[0].mxu0 %v3352
    %v3487 = vpop.f32.mrb[0].mxu0
    %v3488 = vadd.f32 0.0, %v3487
    %v3489 = vpop.f32.mrb[0].mxu0
    %v3490 = vpop.f32.mrb[0].mxu0
    %v3491 = vadd.f32 0.0, %v3490
    %v3492 = vpop.f32.mrb[0].mxu0
    %3493 = vmatprep.mubr.bf16.mxu0 0
    %3494 = vmatmul.mubr.bf16.gmra.mrb[0].mxu0 %v3353
    %v3495 = vpop.f32.mrb[0].mxu0
    %v3496 = vadd.f32 0.0, %v3495
    %v3497 = vpop.f32.mrb[0].mxu0
    %v3498 = vpop.f32.mrb[0].mxu0
    %v3499 = vadd.f32 0.0, %v3498
    %v3500 = vpop.f32.mrb[0].mxu0
    %3501 = vmatprep.mubr.bf16.mxu0 0
    %3502 = vmatmul.mubr.bf16.gmra.mrb[0].mxu0 %v3354
    %v3503 = vpop.f32.mrb[0].mxu0
    %v3504 = vadd.f32 0.0, %v3503
    %v3505 = vpop.f32.mrb[0].mxu0
    %v3506 = vpop.f32.mrb[0].mxu0
    %v3507 = vadd.f32 0.0, %v3506
    %v3508 = vpop.f32.mrb[0].mxu0
    %3509 = vmatprep.mubr.bf16.mxu0 0
    %3510 = vmatmul.mubr.bf16.gmra.mrb[0].mxu0 %v3355
    %v3511 = vpop.f32.mrb[0].mxu0
    %v3512 = vadd.f32 0.0, %v3511
    %v3513 = vpop.f32.mrb[0].mxu0
    %v3514 = vpop.f32.mrb[0].mxu0
    %v3515 = vadd.f32 0.0, %v3514
    %v3516 = vpop.f32.mrb[0].mxu0
    %3517 = vdwg.mxu0
    %v3534 = vunpack.c.l.b16 %v3332
    %v3535 = vunpack.c.l.b16 %v3333
    %v3536 = vunpack.c.l.b16 %v3334
    %v3537 = vunpack.c.l.b16 %v3335
    %v3538 = vunpack.c.l.b16 %v3336
    %v3539 = vunpack.c.l.b16 %v3337
    %v3540 = vunpack.c.l.b16 %v3338
    %v3541 = vunpack.c.l.b16 %v3339
    %v3542 = vunpack.c.l.b16 %v3340
    %v3543 = vunpack.c.l.b16 %v3341
    %v3544 = vunpack.c.l.b16 %v3342
    %v3545 = vunpack.c.l.b16 %v3343
    %v3546 = vunpack.c.l.b16 %v3344
    %v3547 = vunpack.c.l.b16 %v3345
    %v3548 = vunpack.c.l.b16 %v3346
    %v3549 = vunpack.c.l.b16 %v3347
    %v3550 = vpack.c.b16 %v3535, %v3534
    %v3551 = vpack.c.b16 %v3537, %v3536
    %v3552 = vpack.c.b16 %v3539, %v3538
    %v3553 = vpack.c.b16 %v3541, %v3540
    %v3554 = vpack.c.b16 %v3543, %v3542
    %v3555 = vpack.c.b16 %v3545, %v3544
    %v3556 = vpack.c.b16 %v3547, %v3546
    %v3557 = vpack.c.b16 %v3549, %v3548
    %3566 = vmatprep.subr.bf16.mxu0 0
    %3567 = vmatpush1.bf16.msra.mxu0 %v3550
    %3568 = vmatprep.subr.bf16.mxu0 0
    %3569 = vmatpush1.bf16.msra.mxu0 %v3551
    %3570 = vmatprep.subr.bf16.mxu0 0
    %3571 = vmatpush1.bf16.msra.mxu0 %v3552
    %3572 = vmatprep.subr.bf16.mxu0 0
    %3573 = vmatpush1.bf16.msra.mxu0 %v3553
    %3574 = vmatprep.subr.bf16.mxu0 0
    %3575 = vmatpush1.bf16.msra.mxu0 %v3554
    %3576 = vmatprep.subr.bf16.mxu0 0
    %3577 = vmatpush1.bf16.msra.mxu0 %v3555
    %3578 = vmatprep.subr.bf16.mxu0 0
    %3579 = vmatpush1.bf16.msra.mxu0 %v3556
    %3580 = vmatprep.subr.bf16.mxu0 0
    %3581 = vmatpush1.bf16.msra.mxu0 %v3557
    %3582 = vmatprep.subr.bf16.mxu0 0
    %3583 = vmatpush1.bf16.msra.mxu0 0
    %3584 = vmatprep.subr.bf16.mxu0 0
    %3585 = vmatpush1.bf16.msra.mxu0 0
    %3586 = vmatprep.subr.bf16.mxu0 0
    %3587 = vmatpush1.bf16.msra.mxu0 0
    %3588 = vmatprep.subr.bf16.mxu0 0
    %3589 = vmatpush1.bf16.msra.mxu0 0
    %3590 = vmatprep.subr.bf16.mxu0 0
    %3591 = vmatpush1.bf16.msra.mxu0 0
    %3592 = vmatprep.subr.bf16.mxu0 0
    %3593 = vmatpush1.bf16.msra.mxu0 0
    %3594 = vmatprep.subr.bf16.mxu0 0
    %3595 = vmatpush1.bf16.msra.mxu0 0
    %3596 = vmatprep.subr.bf16.mxu0 0
    %3597 = vmatpush1.bf16.msra.mxu0 0
    %3598 = vmatprep.mubr.bf16.mxu0 0
    %3599 = vmatmul.mubr.bf16.gmra.mrb[0].mxu0 %v3324
    %v3600 = vpop.f32.mrb[0].mxu0
    %v3601 = vadd.f32 %v3456, %v3600
    %v3602 = vpop.f32.mrb[0].mxu0
    %v3603 = vpop.f32.mrb[0].mxu0
    %v3604 = vadd.f32 %v3459, %v3603
    %v3605 = vpop.f32.mrb[0].mxu0
    %3606 = vmatprep.mubr.bf16.mxu0 0
    %3607 = vmatmul.mubr.bf16.gmra.mrb[0].mxu0 %v3325
    %v3608 = vpop.f32.mrb[0].mxu0
    %v3609 = vadd.f32 %v3464, %v3608
    %v3610 = vpop.f32.mrb[0].mxu0
    %v3611 = vpop.f32.mrb[0].mxu0
    %v3612 = vadd.f32 %v3467, %v3611
    %v3613 = vpop.f32.mrb[0].mxu0
    %3614 = vmatprep.mubr.bf16.mxu0 0
    %3615 = vmatmul.mubr.bf16.gmra.mrb[0].mxu0 %v3326
    %v3616 = vpop.f32.mrb[0].mxu0
    %v3617 = vadd.f32 %v3472, %v3616
    %v3618 = vpop.f32.mrb[0].mxu0
    %v3619 = vpop.f32.mrb[0].mxu0
    %v3620 = vadd.f32 %v3475, %v3619
    %v3621 = vpop.f32.mrb[0].mxu0
    %3622 = vmatprep.mubr.bf16.mxu0 0
    %3623 = vmatmul.mubr.bf16.gmra.mrb[0].mxu0 %v3327
    %v3624 = vpop.f32.mrb[0].mxu0
    %v3625 = vadd.f32 %v3480, %v3624
    %v3626 = vpop.f32.mrb[0].mxu0
    %v3627 = vpop.f32.mrb[0].mxu0
    %v3628 = vadd.f32 %v3483, %v3627
    %v3629 = vpop.f32.mrb[0].mxu0
    %3630 = vmatprep.mubr.bf16.mxu0 0
    %3631 = vmatmul.mubr.bf16.gmra.mrb[0].mxu0 %v3328
    %v3632 = vpop.f32.mrb[0].mxu0
    %v3633 = vadd.f32 %v3488, %v3632
    %v3634 = vpop.f32.mrb[0].mxu0
    %v3635 = vpop.f32.mrb[0].mxu0
    %v3636 = vadd.f32 %v3491, %v3635
    %v3637 = vpop.f32.mrb[0].mxu0
    %3638 = vmatprep.mubr.bf16.mxu0 0
    %3639 = vmatmul.mubr.bf16.gmra.mrb[0].mxu0 %v3329
    %v3640 = vpop.f32.mrb[0].mxu0
    %v3641 = vadd.f32 %v3496, %v3640
    %v3642 = vpop.f32.mrb[0].mxu0
    %v3643 = vpop.f32.mrb[0].mxu0
    %v3644 = vadd.f32 %v3499, %v3643
    %v3645 = vpop.f32.mrb[0].mxu0
    %3646 = vmatprep.mubr.bf16.mxu0 0
    %3647 = vmatmul.mubr.bf16.gmra.mrb[0].mxu0 %v3330
    %v3648 = vpop.f32.mrb[0].mxu0
    %v3649 = vadd.f32 %v3504, %v3648
    %v3650 = vpop.f32.mrb[0].mxu0
    %v3651 = vpop.f32.mrb[0].mxu0
    %v3652 = vadd.f32 %v3507, %v3651
    %v3653 = vpop.f32.mrb[0].mxu0
    %3654 = vmatprep.mubr.bf16.mxu0 0
    %3655 = vmatmul.mubr.bf16.gmra.mrb[0].mxu0 %v3331
    %v3656 = vpop.f32.mrb[0].mxu0
    %v3657 = vadd.f32 %v3512, %v3656
    %v3658 = vpop.f32.mrb[0].mxu0
    %v3659 = vpop.f32.mrb[0].mxu0
    %v3660 = vadd.f32 %v3515, %v3659
    %v3661 = vpop.f32.mrb[0].mxu0
    %3662 = vdwg.mxu0
    %v3663 = vld [vmem:[#allocation2 + $0x80] sm:$0xff]
    %v3664 = vld [vmem:[#allocation2 + $0x88] sm:$0xff]
    %v3665 = vld [vmem:[#allocation2 + $0x90] sm:$0xff]
    %v3666 = vld [vmem:[#allocation2 + $0x98] sm:$0xff]
    %v3667 = vld [vmem:[#allocation2 + $0xa0] sm:$0xff]
    %v3668 = vld [vmem:[#allocation2 + $0xa8] sm:$0xff]
    %v3669 = vld [vmem:[#allocation2 + $0xb0] sm:$0xff]
    %v3670 = vld [vmem:[#allocation2 + $0xb8] sm:$0xff]
    %s3671 = scalar_lea.vmem [#allocation7], 128
    %v3672 = vld [vmem:[%s3671] sm:$0xf]
    %v3673 = vld [vmem:[%s3671 + $0x4] sm:$0xf]
    %v3674 = vld [vmem:[%s3671 + $0x8] sm:$0xf]
    %v3675 = vld [vmem:[%s3671 + $0xc] sm:$0xf]
    %v3676 = vld [vmem:[%s3671 + $0x10] sm:$0xf]
    %v3677 = vld [vmem:[%s3671 + $0x14] sm:$0xf]
    %v3678 = vld [vmem:[%s3671 + $0x18] sm:$0xf]
    %v3679 = vld [vmem:[%s3671 + $0x1c] sm:$0xf]
    %v3680 = vld [vmem:[%s3671 + $0x20] sm:$0xf]
    %v3681 = vld [vmem:[%s3671 + $0x24] sm:$0xf]
    %v3682 = vld [vmem:[%s3671 + $0x28] sm:$0xf]
    %v3683 = vld [vmem:[%s3671 + $0x2c] sm:$0xf]
    %v3684 = vld [vmem:[%s3671 + $0x30] sm:$0xf]
    %v3685 = vld [vmem:[%s3671 + $0x34] sm:$0xf]
    %v3686 = vld [vmem:[%s3671 + $0x38] sm:$0xf]
    %v3687 = vld [vmem:[%s3671 + $0x3c] sm:$0xf]
    %v3704 = vunpack.c.l.b16 %v3672
    %v3705 = vunpack.c.l.b16 %v3673
    %v3706 = vunpack.c.l.b16 %v3674
    %v3707 = vunpack.c.l.b16 %v3675
    %v3708 = vunpack.c.l.b16 %v3676
    %v3709 = vunpack.c.l.b16 %v3677
    %v3710 = vunpack.c.l.b16 %v3678
    %v3711 = vunpack.c.l.b16 %v3679
    %v3712 = vunpack.c.l.b16 %v3680
    %v3713 = vunpack.c.l.b16 %v3681
    %v3714 = vunpack.c.l.b16 %v3682
    %v3715 = vunpack.c.l.b16 %v3683
    %v3716 = vunpack.c.l.b16 %v3684
    %v3717 = vunpack.c.l.b16 %v3685
    %v3718 = vunpack.c.l.b16 %v3686
    %v3719 = vunpack.c.l.b16 %v3687
    %v3720 = vpack.c.b16 %v3705, %v3704
    %v3721 = vpack.c.b16 %v3707, %v3706
    %v3722 = vpack.c.b16 %v3709, %v3708
    %v3723 = vpack.c.b16 %v3711, %v3710
    %v3724 = vpack.c.b16 %v3713, %v3712
    %v3725 = vpack.c.b16 %v3715, %v3714
    %v3726 = vpack.c.b16 %v3717, %v3716
    %v3727 = vpack.c.b16 %v3719, %v3718
    %3736 = vmatprep.subr.bf16.mxu0 0
    %3737 = vmatpush1.bf16.msra.mxu0 %v3720
    %3738 = vmatprep.subr.bf16.mxu0 0
    %3739 = vmatpush1.bf16.msra.mxu0 %v3721
    %3740 = vmatprep.subr.bf16.mxu0 0
    %3741 = vmatpush1.bf16.msra.mxu0 %v3722
    %3742 = vmatprep.subr.bf16.mxu0 0
    %3743 = vmatpush1.bf16.msra.mxu0 %v3723
    %3744 = vmatprep.subr.bf16.mxu0 0
    %3745 = vmatpush1.bf16.msra.mxu0 %v3724
    %3746 = vmatprep.subr.bf16.mxu0 0
    %3747 = vmatpush1.bf16.msra.mxu0 %v3725
    %3748 = vmatprep.subr.bf16.mxu0 0
    %3749 = vmatpush1.bf16.msra.mxu0 %v3726
    %3750 = vmatprep.subr.bf16.mxu0 0
    %3751 = vmatpush1.bf16.msra.mxu0 %v3727
    %3752 = vmatprep.subr.bf16.mxu0 0
    %3753 = vmatpush1.bf16.msra.mxu0 0
    %3754 = vmatprep.subr.bf16.mxu0 0
    %3755 = vmatpush1.bf16.msra.mxu0 0
    %3756 = vmatprep.subr.bf16.mxu0 0
    %3757 = vmatpush1.bf16.msra.mxu0 0
    %3758 = vmatprep.subr.bf16.mxu0 0
    %3759 = vmatpush1.bf16.msra.mxu0 0
    %3760 = vmatprep.subr.bf16.mxu0 0
    %3761 = vmatpush1.bf16.msra.mxu0 0
    %3762 = vmatprep.subr.bf16.mxu0 0
    %3763 = vmatpush1.bf16.msra.mxu0 0
    %3764 = vmatprep.subr.bf16.mxu0 0
    %3765 = vmatpush1.bf16.msra.mxu0 0
    %3766 = vmatprep.subr.bf16.mxu0 0
    %3767 = vmatpush1.bf16.msra.mxu0 0
    %3768 = vmatprep.mubr.bf16.mxu0 0
    %3769 = vmatmul.mubr.bf16.gmra.mrb[0].mxu0 %v3663
    %v3770 = vpop.f32.mrb[0].mxu0
    %v3771 = vadd.f32 0.0, %v3770
    %v3772 = vpop.f32.mrb[0].mxu0
    %v3773 = vpop.f32.mrb[0].mxu0
    %v3774 = vadd.f32 0.0, %v3773
    %v3775 = vpop.f32.mrb[0].mxu0
    %3776 = vmatprep.mubr.bf16.mxu0 0
    %3777 = vmatmul.mubr.bf16.gmra.mrb[0].mxu0 %v3664
    %v3778 = vpop.f32.mrb[0].mxu0
    %v3779 = vadd.f32 0.0, %v3778
    %v3780 = vpop.f32.mrb[0].mxu0
    %v3781 = vpop.f32.mrb[0].mxu0
    %v3782 = vadd.f32 0.0, %v3781
    %v3783 = vpop.f32.mrb[0].mxu0
    %3784 = vmatprep.mubr.bf16.mxu0 0
    %3785 = vmatmul.mubr.bf16.gmra.mrb[0].mxu0 %v3665
    %v3786 = vpop.f32.mrb[0].mxu0
    %v3787 = vadd.f32 0.0, %v3786
    %v3788 = vpop.f32.mrb[0].mxu0
    %v3789 = vpop.f32.mrb[0].mxu0
    %v3790 = vadd.f32 0.0, %v3789
    %v3791 = vpop.f32.mrb[0].mxu0
    %3792 = vmatprep.mubr.bf16.mxu0 0
    %3793 = vmatmul.mubr.bf16.gmra.mrb[0].mxu0 %v3666
    %v3794 = vpop.f32.mrb[0].mxu0
    %v3795 = vadd.f32 0.0, %v3794
    %v3796 = vpop.f32.mrb[0].mxu0
    %v3797 = vpop.f32.mrb[0].mxu0
    %v3798 = vadd.f32 0.0, %v3797
    %v3799 = vpop.f32.mrb[0].mxu0
    %3800 = vmatprep.mubr.bf16.mxu0 0
    %3801 = vmatmul.mubr.bf16.gmra.mrb[0].mxu0 %v3667
    %v3802 = vpop.f32.mrb[0].mxu0
    %v3803 = vadd.f32 0.0, %v3802
    %v3804 = vpop.f32.mrb[0].mxu0
    %v3805 = vpop.f32.mrb[0].mxu0
    %v3806 = vadd.f32 0.0, %v3805
    %v3807 = vpop.f32.mrb[0].mxu0
    %3808 = vmatprep.mubr.bf16.mxu0 0
    %3809 = vmatmul.mubr.bf16.gmra.mrb[0].mxu0 %v3668
    %v3810 = vpop.f32.mrb[0].mxu0
    %v3811 = vadd.f32 0.0, %v3810
    %v3812 = vpop.f32.mrb[0].mxu0
    %v3813 = vpop.f32.mrb[0].mxu0
    %v3814 = vadd.f32 0.0, %v3813
    %v3815 = vpop.f32.mrb[0].mxu0
    %3816 = vmatprep.mubr.bf16.mxu0 0
    %3817 = vmatmul.mubr.bf16.gmra.mrb[0].mxu0 %v3669
    %v3818 = vpop.f32.mrb[0].mxu0
    %v3819 = vadd.f32 0.0, %v3818
    %v3820 = vpop.f32.mrb[0].mxu0
    %v3821 = vpop.f32.mrb[0].mxu0
    %v3822 = vadd.f32 0.0, %v3821
    %v3823 = vpop.f32.mrb[0].mxu0
    %3824 = vmatprep.mubr.bf16.mxu0 0
    %3825 = vmatmul.mubr.bf16.gmra.mrb[0].mxu0 %v3670
    %v3826 = vpop.f32.mrb[0].mxu0
    %v3827 = vadd.f32 0.0, %v3826
    %v3828 = vpop.f32.mrb[0].mxu0
    %v3829 = vpop.f32.mrb[0].mxu0
    %v3830 = vadd.f32 0.0, %v3829
    %v3831 = vpop.f32.mrb[0].mxu0
    %3832 = vdwg.mxu0
    %v3833 = vadd.f32 %v3601, %v3771
    %v3834 = vadd.f32 %v3604, %v3774
    %v3835 = vadd.f32 %v3609, %v3779
    %v3836 = vadd.f32 %v3612, %v3782
    %v3837 = vadd.f32 %v3617, %v3787
    %v3838 = vadd.f32 %v3620, %v3790
    %v3839 = vadd.f32 %v3625, %v3795
    %v3840 = vadd.f32 %v3628, %v3798
    %v3841 = vadd.f32 %v3633, %v3803
    %v3842 = vadd.f32 %v3636, %v3806
    %v3843 = vadd.f32 %v3641, %v3811
    %v3844 = vadd.f32 %v3644, %v3814
    %v3845 = vadd.f32 %v3649, %v3819
    %v3846 = vadd.f32 %v3652, %v3822
    %v3847 = vadd.f32 %v3657, %v3827
    %v3848 = vadd.f32 %v3660, %v3830
    %v3850 = vlaneseq
    %v3851 = vshrl.u32 %v3850, 7
    %v3852 = vsub.s32 0, %v3851
    %v3853 = vrot.slane %v3323, %v3852
    %v3855 = vadd.f32 %v3833, %v3853
    %v3856 = vadd.f32 %v3834, %v3853
    %v3857 = vadd.f32 %v3835, %v3853
    %v3858 = vadd.f32 %v3836, %v3853
    %v3859 = vadd.f32 %v3837, %v3853
    %v3860 = vadd.f32 %v3838, %v3853
    %v3861 = vadd.f32 %v3839, %v3853
    %v3862 = vadd.f32 %v3840, %v3853
    %v3863 = vadd.f32 %v3841, %v3853
    %v3864 = vadd.f32 %v3842, %v3853
    %v3865 = vadd.f32 %v3843, %v3853
    %v3866 = vadd.f32 %v3844, %v3853
    %v3867 = vadd.f32 %v3845, %v3853
    %v3868 = vadd.f32 %v3846, %v3853
    %v3869 = vadd.f32 %v3847, %v3853
    %v3870 = vadd.f32 %v3848, %v3853
    %v3871 = vmin.f32 %v3855, 30.0
    %v3872 = vmin.f32 %v3856, 30.0
    %v3873 = vmin.f32 %v3857, 30.0
    %v3874 = vmin.f32 %v3858, 30.0
    %v3875 = vmin.f32 %v3859, 30.0
    %v3876 = vmin.f32 %v3860, 30.0
    %v3877 = vmin.f32 %v3861, 30.0
    %v3878 = vmin.f32 %v3862, 30.0
    %v3879 = vmin.f32 %v3863, 30.0
    %v3880 = vmin.f32 %v3864, 30.0
    %v3881 = vmin.f32 %v3865, 30.0
    %v3882 = vmin.f32 %v3866, 30.0
    %v3883 = vmin.f32 %v3867, 30.0
    %v3884 = vmin.f32 %v3868, 30.0
    %v3885 = vmin.f32 %v3869, 30.0
    %v3886 = vmin.f32 %v3870, 30.0
    %v3887 = vmul.f32 %v3871, 1.442695
    %v3888 = vpow.pop %v3887
    %v3889 = vmul.f32 %v3872, 1.442695
    %v3890 = vpow.pop %v3889
    %v3891 = vmul.f32 %v3873, 1.442695
    %v3892 = vpow.pop %v3891
    %v3893 = vmul.f32 %v3874, 1.442695
    %v3894 = vpow.pop %v3893
    %v3895 = vmul.f32 %v3875, 1.442695
    %v3896 = vpow.pop %v3895
    %v3897 = vmul.f32 %v3876, 1.442695
    %v3898 = vpow.pop %v3897
    %v3899 = vmul.f32 %v3877, 1.442695
    %v3900 = vpow.pop %v3899
    %v3901 = vmul.f32 %v3878, 1.442695
    %v3902 = vpow.pop %v3901
    %v3903 = vmul.f32 %v3879, 1.442695
    %v3904 = vpow.pop %v3903
    %v3905 = vmul.f32 %v3880, 1.442695
    %v3906 = vpow.pop %v3905
    %v3907 = vmul.f32 %v3881, 1.442695
    %v3908 = vpow.pop %v3907
    %v3909 = vmul.f32 %v3882, 1.442695
    %v3910 = vpow.pop %v3909
    %v3911 = vmul.f32 %v3883, 1.442695
    %v3912 = vpow.pop %v3911
    %v3913 = vmul.f32 %v3884, 1.442695
    %v3914 = vpow.pop %v3913
    %v3915 = vmul.f32 %v3885, 1.442695
    %v3916 = vpow.pop %v3915
    %v3917 = vmul.f32 %v3886, 1.442695
    %v3918 = vpow.pop %v3917
    %v3919 = vadd.f32 %v3888, 2.0
    %v3920 = vadd.f32 %v3890, 2.0
    %v3921 = vadd.f32 %v3892, 2.0
    %v3922 = vadd.f32 %v3894, 2.0
    %v3923 = vadd.f32 %v3896, 2.0
    %v3924 = vadd.f32 %v3898, 2.0
    %v3925 = vadd.f32 %v3900, 2.0
    %v3926 = vadd.f32 %v3902, 2.0
    %v3927 = vadd.f32 %v3904, 2.0
    %v3928 = vadd.f32 %v3906, 2.0
    %v3929 = vadd.f32 %v3908, 2.0
    %v3930 = vadd.f32 %v3910, 2.0
    %v3931 = vadd.f32 %v3912, 2.0
    %v3932 = vadd.f32 %v3914, 2.0
    %v3933 = vadd.f32 %v3916, 2.0
    %v3934 = vadd.f32 %v3918, 2.0
    %v3935 = vmul.f32 %v3888, %v3919
    %v3936 = vmul.f32 %v3890, %v3920
    %v3937 = vmul.f32 %v3892, %v3921
    %v3938 = vmul.f32 %v3894, %v3922
    %v3939 = vmul.f32 %v3896, %v3923
    %v3940 = vmul.f32 %v3898, %v3924
    %v3941 = vmul.f32 %v3900, %v3925
    %v3942 = vmul.f32 %v3902, %v3926
    %v3943 = vmul.f32 %v3904, %v3927
    %v3944 = vmul.f32 %v3906, %v3928
    %v3945 = vmul.f32 %v3908, %v3929
    %v3946 = vmul.f32 %v3910, %v3930
    %v3947 = vmul.f32 %v3912, %v3931
    %v3948 = vmul.f32 %v3914, %v3932
    %v3949 = vmul.f32 %v3916, %v3933
    %v3950 = vmul.f32 %v3918, %v3934
    %v3951 = vadd.f32 %v3935, 2.0
    %v3952 = vadd.f32 %v3936, 2.0
    %v3953 = vadd.f32 %v3937, 2.0
    %v3954 = vadd.f32 %v3938, 2.0
    %v3955 = vadd.f32 %v3939, 2.0
    %v3956 = vadd.f32 %v3940, 2.0
    %v3957 = vadd.f32 %v3941, 2.0
    %v3958 = vadd.f32 %v3942, 2.0
    %v3959 = vadd.f32 %v3943, 2.0
    %v3960 = vadd.f32 %v3944, 2.0
    %v3961 = vadd.f32 %v3945, 2.0
    %v3962 = vadd.f32 %v3946, 2.0
    %v3963 = vadd.f32 %v3947, 2.0
    %v3964 = vadd.f32 %v3948, 2.0
    %v3965 = vadd.f32 %v3949, 2.0
    %v3966 = vadd.f32 %v3950, 2.0
    %v3967 = vrcp.pop %v3951
    %v3968 = vrcp.pop %v3952
    %v3969 = vrcp.pop %v3953
    %v3970 = vrcp.pop %v3954
    %v3971 = vrcp.pop %v3955
    %v3972 = vrcp.pop %v3956
    %v3973 = vrcp.pop %v3957
    %v3974 = vrcp.pop %v3958
    %v3975 = vrcp.pop %v3959
    %v3976 = vrcp.pop %v3960
    %v3977 = vrcp.pop %v3961
    %v3978 = vrcp.pop %v3962
    %v3979 = vrcp.pop %v3963
    %v3980 = vrcp.pop %v3964
    %v3981 = vrcp.pop %v3965
    %v3982 = vrcp.pop %v3966
    %v3983 = vmul.f32 %v3935, %v3967
    %v3984 = vmul.f32 %v3936, %v3968
    %v3985 = vmul.f32 %v3937, %v3969
    %v3986 = vmul.f32 %v3938, %v3970
    %v3987 = vmul.f32 %v3939, %v3971
    %v3988 = vmul.f32 %v3940, %v3972
    %v3989 = vmul.f32 %v3941, %v3973
    %v3990 = vmul.f32 %v3942, %v3974
    %v3991 = vmul.f32 %v3943, %v3975
    %v3992 = vmul.f32 %v3944, %v3976
    %v3993 = vmul.f32 %v3945, %v3977
    %v3994 = vmul.f32 %v3946, %v3978
    %v3995 = vmul.f32 %v3947, %v3979
    %v3996 = vmul.f32 %v3948, %v3980
    %v3997 = vmul.f32 %v3949, %v3981
    %v3998 = vmul.f32 %v3950, %v3982
    %v3999 = vmul.f32 %v3855, %v3983
    %v4000 = vmul.f32 %v3856, %v3984
    %v4001 = vmul.f32 %v3857, %v3985
    %v4002 = vmul.f32 %v3858, %v3986
    %v4003 = vmul.f32 %v3859, %v3987
    %v4004 = vmul.f32 %v3860, %v3988
    %v4005 = vmul.f32 %v3861, %v3989
    %v4006 = vmul.f32 %v3862, %v3990
    %v4007 = vmul.f32 %v3863, %v3991
    %v4008 = vmul.f32 %v3864, %v3992
    %v4009 = vmul.f32 %v3865, %v3993
    %v4010 = vmul.f32 %v3866, %v3994
    %v4011 = vmul.f32 %v3867, %v3995
    %v4012 = vmul.f32 %v3868, %v3996
    %v4013 = vmul.f32 %v3869, %v3997
    %v4014 = vmul.f32 %v3870, %v3998
    %v4015 = vpack.c.bf16 %v4000, %v3999
    %v4016 = vpack.c.bf16 %v4002, %v4001
    %v4017 = vpack.c.bf16 %v4004, %v4003
    %v4018 = vpack.c.bf16 %v4006, %v4005
    %v4019 = vpack.c.bf16 %v4008, %v4007
    %v4020 = vpack.c.bf16 %v4010, %v4009
    %v4021 = vpack.c.bf16 %v4012, %v4011
    %v4022 = vpack.c.bf16 %v4014, %v4013
    %s4023 = scalar_lea.vmem [#allocation9], 64
    %v4024 = vld [vmem:[%s4023] sm:$0xf]
    %v4025 = vld [vmem:[%s4023 + $0x4] sm:$0xf]
    %v4026 = vld [vmem:[%s4023 + $0x8] sm:$0xf]
    %v4027 = vld [vmem:[%s4023 + $0xc] sm:$0xf]
    %v4028 = vld [vmem:[%s4023 + $0x10] sm:$0xf]
    %v4029 = vld [vmem:[%s4023 + $0x14] sm:$0xf]
    %v4030 = vld [vmem:[%s4023 + $0x18] sm:$0xf]
    %v4031 = vld [vmem:[%s4023 + $0x1c] sm:$0xf]
    %v4032 = vld [vmem:[%s4023 + $0x20] sm:$0xf]
    %v4033 = vld [vmem:[%s4023 + $0x24] sm:$0xf]
    %v4034 = vld [vmem:[%s4023 + $0x28] sm:$0xf]
    %v4035 = vld [vmem:[%s4023 + $0x2c] sm:$0xf]
    %v4036 = vld [vmem:[%s4023 + $0x30] sm:$0xf]
    %v4037 = vld [vmem:[%s4023 + $0x34] sm:$0xf]
    %v4038 = vld [vmem:[%s4023 + $0x38] sm:$0xf]
    %v4039 = vld [vmem:[%s4023 + $0x3c] sm:$0xf]
    %s4040 = scalar_lea.vmem %s5, 1
    %v4041 = vld [vmem:[%s4040] sm:$0x1]
    %v4043 = vlaneseq
    %v4044 = vshrl.u32 %v4043, 7
    %v4045 = vsub.s32 0, %v4044
    %v4046 = vrot.slane %v4041, %v4045
    %v4064 = vunpack.c.l.b16 %v4024
    %v4065 = vunpack.c.l.b16 %v4025
    %v4066 = vunpack.c.l.b16 %v4026
    %v4067 = vunpack.c.l.b16 %v4027
    %v4068 = vunpack.c.l.b16 %v4028
    %v4069 = vunpack.c.l.b16 %v4029
    %v4070 = vunpack.c.l.b16 %v4030
    %v4071 = vunpack.c.l.b16 %v4031
    %v4072 = vunpack.c.l.b16 %v4032
    %v4073 = vunpack.c.l.b16 %v4033
    %v4074 = vunpack.c.l.b16 %v4034
    %v4075 = vunpack.c.l.b16 %v4035
    %v4076 = vunpack.c.l.b16 %v4036
    %v4077 = vunpack.c.l.b16 %v4037
    %v4078 = vunpack.c.l.b16 %v4038
    %v4079 = vunpack.c.l.b16 %v4039
    %v4080 = vpack.c.b16 %v4065, %v4064
    %v4081 = vpack.c.b16 %v4067, %v4066
    %v4082 = vpack.c.b16 %v4069, %v4068
    %v4083 = vpack.c.b16 %v4071, %v4070
    %v4084 = vpack.c.b16 %v4073, %v4072
    %v4085 = vpack.c.b16 %v4075, %v4074
    %v4086 = vpack.c.b16 %v4077, %v4076
    %v4087 = vpack.c.b16 %v4079, %v4078
    %4096 = vmatprep.subr.bf16.mxu0 0
    %4097 = vmatpush1.bf16.msra.mxu0 %v4080
    %4098 = vmatprep.subr.bf16.mxu0 0
    %4099 = vmatpush1.bf16.msra.mxu0 %v4081
    %4100 = vmatprep.subr.bf16.mxu0 0
    %4101 = vmatpush1.bf16.msra.mxu0 %v4082
    %4102 = vmatprep.subr.bf16.mxu0 0
    %4103 = vmatpush1.bf16.msra.mxu0 %v4083
    %4104 = vmatprep.subr.bf16.mxu0 0
    %4105 = vmatpush1.bf16.msra.mxu0 %v4084
    %4106 = vmatprep.subr.bf16.mxu0 0
    %4107 = vmatpush1.bf16.msra.mxu0 %v4085
    %4108 = vmatprep.subr.bf16.mxu0 0
    %4109 = vmatpush1.bf16.msra.mxu0 %v4086
    %4110 = vmatprep.subr.bf16.mxu0 0
    %4111 = vmatpush1.bf16.msra.mxu0 %v4087
    %4112 = vmatprep.subr.bf16.mxu0 0
    %4113 = vmatpush1.bf16.msra.mxu0 0
    %4114 = vmatprep.subr.bf16.mxu0 0
    %4115 = vmatpush1.bf16.msra.mxu0 0
    %4116 = vmatprep.subr.bf16.mxu0 0
    %4117 = vmatpush1.bf16.msra.mxu0 0
    %4118 = vmatprep.subr.bf16.mxu0 0
    %4119 = vmatpush1.bf16.msra.mxu0 0
    %4120 = vmatprep.subr.bf16.mxu0 0
    %4121 = vmatpush1.bf16.msra.mxu0 0
    %4122 = vmatprep.subr.bf16.mxu0 0
    %4123 = vmatpush1.bf16.msra.mxu0 0
    %4124 = vmatprep.subr.bf16.mxu0 0
    %4125 = vmatpush1.bf16.msra.mxu0 0
    %4126 = vmatprep.subr.bf16.mxu0 0
    %4127 = vmatpush1.bf16.msra.mxu0 0
    %4128 = vmatprep.mubr.bf16.mxu0 0
    %4129 = vmatmul.mubr.bf16.gmra.mrb[0].mxu0 %v4015
    %v4130 = vpop.f32.mrb[0].mxu0
    %v4131 = vadd.f32 %v4046, %v4130
    %v4132 = vpop.f32.mrb[0].mxu0
    %v4133 = vpop.f32.mrb[0].mxu0
    %v4134 = vadd.f32 %v4046, %v4133
    %v4135 = vpop.f32.mrb[0].mxu0
    %4136 = vmatprep.mubr.bf16.mxu0 0
    %4137 = vmatmul.mubr.bf16.gmra.mrb[0].mxu0 %v4016
    %v4138 = vpop.f32.mrb[0].mxu0
    %v4139 = vadd.f32 %v4046, %v4138
    %v4140 = vpop.f32.mrb[0].mxu0
    %v4141 = vpop.f32.mrb[0].mxu0
    %v4142 = vadd.f32 %v4046, %v4141
    %v4143 = vpop.f32.mrb[0].mxu0
    %4144 = vmatprep.mubr.bf16.mxu0 0
    %4145 = vmatmul.mubr.bf16.gmra.mrb[0].mxu0 %v4017
    %v4146 = vpop.f32.mrb[0].mxu0
    %v4147 = vadd.f32 %v4046, %v4146
    %v4148 = vpop.f32.mrb[0].mxu0
    %v4149 = vpop.f32.mrb[0].mxu0
    %v4150 = vadd.f32 %v4046, %v4149
    %v4151 = vpop.f32.mrb[0].mxu0
    %4152 = vmatprep.mubr.bf16.mxu0 0
    %4153 = vmatmul.mubr.bf16.gmra.mrb[0].mxu0 %v4018
    %v4154 = vpop.f32.mrb[0].mxu0
    %v4155 = vadd.f32 %v4046, %v4154
    %v4156 = vpop.f32.mrb[0].mxu0
    %v4157 = vpop.f32.mrb[0].mxu0
    %v4158 = vadd.f32 %v4046, %v4157
    %v4159 = vpop.f32.mrb[0].mxu0
    %4160 = vmatprep.mubr.bf16.mxu0 0
    %4161 = vmatmul.mubr.bf16.gmra.mrb[0].mxu0 %v4019
    %v4162 = vpop.f32.mrb[0].mxu0
    %v4163 = vadd.f32 %v4046, %v4162
    %v4164 = vpop.f32.mrb[0].mxu0
    %v4165 = vpop.f32.mrb[0].mxu0
    %v4166 = vadd.f32 %v4046, %v4165
    %v4167 = vpop.f32.mrb[0].mxu0
    %4168 = vmatprep.mubr.bf16.mxu0 0
    %4169 = vmatmul.mubr.bf16.gmra.mrb[0].mxu0 %v4020
    %v4170 = vpop.f32.mrb[0].mxu0
    %v4171 = vadd.f32 %v4046, %v4170
    %v4172 = vpop.f32.mrb[0].mxu0
    %v4173 = vpop.f32.mrb[0].mxu0
    %v4174 = vadd.f32 %v4046, %v4173
    %v4175 = vpop.f32.mrb[0].mxu0
    %4176 = vmatprep.mubr.bf16.mxu0 0
    %4177 = vmatmul.mubr.bf16.gmra.mrb[0].mxu0 %v4021
    %v4178 = vpop.f32.mrb[0].mxu0
    %v4179 = vadd.f32 %v4046, %v4178
    %v4180 = vpop.f32.mrb[0].mxu0
    %v4181 = vpop.f32.mrb[0].mxu0
    %v4182 = vadd.f32 %v4046, %v4181
    %v4183 = vpop.f32.mrb[0].mxu0
    %4184 = vmatprep.mubr.bf16.mxu0 0
    %4185 = vmatmul.mubr.bf16.gmra.mrb[0].mxu0 %v4022
    %v4186 = vpop.f32.mrb[0].mxu0
    %v4187 = vadd.f32 %v4046, %v4186
    %v4188 = vpop.f32.mrb[0].mxu0
    %v4189 = vpop.f32.mrb[0].mxu0
    %v4190 = vadd.f32 %v4046, %v4189
    %v4191 = vpop.f32.mrb[0].mxu0
    %4192 = vdwg.mxu0
    %v4193 = vmin.f32 %v4131, 30.0
    %v4194 = vmin.f32 %v4134, 30.0
    %v4195 = vmin.f32 %v4139, 30.0
    %v4196 = vmin.f32 %v4142, 30.0
    %v4197 = vmin.f32 %v4147, 30.0
    %v4198 = vmin.f32 %v4150, 30.0
    %v4199 = vmin.f32 %v4155, 30.0
    %v4200 = vmin.f32 %v4158, 30.0
    %v4201 = vmin.f32 %v4163, 30.0
    %v4202 = vmin.f32 %v4166, 30.0
    %v4203 = vmin.f32 %v4171, 30.0
    %v4204 = vmin.f32 %v4174, 30.0
    %v4205 = vmin.f32 %v4179, 30.0
    %v4206 = vmin.f32 %v4182, 30.0
    %v4207 = vmin.f32 %v4187, 30.0
    %v4208 = vmin.f32 %v4190, 30.0
    %v4209 = vmul.f32 %v4193, 1.442695
    %v4210 = vpow.pop %v4209
    %v4211 = vmul.f32 %v4194, 1.442695
    %v4212 = vpow.pop %v4211
    %v4213 = vmul.f32 %v4195, 1.442695
    %v4214 = vpow.pop %v4213
    %v4215 = vmul.f32 %v4196, 1.442695
    %v4216 = vpow.pop %v4215
    %v4217 = vmul.f32 %v4197, 1.442695
    %v4218 = vpow.pop %v4217
    %v4219 = vmul.f32 %v4198, 1.442695
    %v4220 = vpow.pop %v4219
    %v4221 = vmul.f32 %v4199, 1.442695
    %v4222 = vpow.pop %v4221
    %v4223 = vmul.f32 %v4200, 1.442695
    %v4224 = vpow.pop %v4223
    %v4225 = vmul.f32 %v4201, 1.442695
    %v4226 = vpow.pop %v4225
    %v4227 = vmul.f32 %v4202, 1.442695
    %v4228 = vpow.pop %v4227
    %v4229 = vmul.f32 %v4203, 1.442695
    %v4230 = vpow.pop %v4229
    %v4231 = vmul.f32 %v4204, 1.442695
    %v4232 = vpow.pop %v4231
    %v4233 = vmul.f32 %v4205, 1.442695
    %v4234 = vpow.pop %v4233
    %v4235 = vmul.f32 %v4206, 1.442695
    %v4236 = vpow.pop %v4235
    %v4237 = vmul.f32 %v4207, 1.442695
    %v4238 = vpow.pop %v4237
    %v4239 = vmul.f32 %v4208, 1.442695
    %v4240 = vpow.pop %v4239
    %v4241 = vadd.f32 %v4210, 2.0
    %v4242 = vadd.f32 %v4212, 2.0
    %v4243 = vadd.f32 %v4214, 2.0
    %v4244 = vadd.f32 %v4216, 2.0
    %v4245 = vadd.f32 %v4218, 2.0
    %v4246 = vadd.f32 %v4220, 2.0
    %v4247 = vadd.f32 %v4222, 2.0
    %v4248 = vadd.f32 %v4224, 2.0
    %v4249 = vadd.f32 %v4226, 2.0
    %v4250 = vadd.f32 %v4228, 2.0
    %v4251 = vadd.f32 %v4230, 2.0
    %v4252 = vadd.f32 %v4232, 2.0
    %v4253 = vadd.f32 %v4234, 2.0
    %v4254 = vadd.f32 %v4236, 2.0
    %v4255 = vadd.f32 %v4238, 2.0
    %v4256 = vadd.f32 %v4240, 2.0
    %v4257 = vmul.f32 %v4210, %v4241
    %v4258 = vmul.f32 %v4212, %v4242
    %v4259 = vmul.f32 %v4214, %v4243
    %v4260 = vmul.f32 %v4216, %v4244
    %v4261 = vmul.f32 %v4218, %v4245
    %v4262 = vmul.f32 %v4220, %v4246
    %v4263 = vmul.f32 %v4222, %v4247
    %v4264 = vmul.f32 %v4224, %v4248
    %v4265 = vmul.f32 %v4226, %v4249
    %v4266 = vmul.f32 %v4228, %v4250
    %v4267 = vmul.f32 %v4230, %v4251
    %v4268 = vmul.f32 %v4232, %v4252
    %v4269 = vmul.f32 %v4234, %v4253
    %v4270 = vmul.f32 %v4236, %v4254
    %v4271 = vmul.f32 %v4238, %v4255
    %v4272 = vmul.f32 %v4240, %v4256
    %v4273 = vadd.f32 %v4257, 2.0
    %v4274 = vadd.f32 %v4258, 2.0
    %v4275 = vadd.f32 %v4259, 2.0
    %v4276 = vadd.f32 %v4260, 2.0
    %v4277 = vadd.f32 %v4261, 2.0
    %v4278 = vadd.f32 %v4262, 2.0
    %v4279 = vadd.f32 %v4263, 2.0
    %v4280 = vadd.f32 %v4264, 2.0
    %v4281 = vadd.f32 %v4265, 2.0
    %v4282 = vadd.f32 %v4266, 2.0
    %v4283 = vadd.f32 %v4267, 2.0
    %v4284 = vadd.f32 %v4268, 2.0
    %v4285 = vadd.f32 %v4269, 2.0
    %v4286 = vadd.f32 %v4270, 2.0
    %v4287 = vadd.f32 %v4271, 2.0
    %v4288 = vadd.f32 %v4272, 2.0
    %v4289 = vrcp.pop %v4273
    %v4290 = vrcp.pop %v4274
    %v4291 = vrcp.pop %v4275
    %v4292 = vrcp.pop %v4276
    %v4293 = vrcp.pop %v4277
    %v4294 = vrcp.pop %v4278
    %v4295 = vrcp.pop %v4279
    %v4296 = vrcp.pop %v4280
    %v4297 = vrcp.pop %v4281
    %v4298 = vrcp.pop %v4282
    %v4299 = vrcp.pop %v4283
    %v4300 = vrcp.pop %v4284
    %v4301 = vrcp.pop %v4285
    %v4302 = vrcp.pop %v4286
    %v4303 = vrcp.pop %v4287
    %v4304 = vrcp.pop %v4288
    %v4305 = vmul.f32 %v4257, %v4289
    %v4306 = vmul.f32 %v4258, %v4290
    %v4307 = vmul.f32 %v4259, %v4291
    %v4308 = vmul.f32 %v4260, %v4292
    %v4309 = vmul.f32 %v4261, %v4293
    %v4310 = vmul.f32 %v4262, %v4294
    %v4311 = vmul.f32 %v4263, %v4295
    %v4312 = vmul.f32 %v4264, %v4296
    %v4313 = vmul.f32 %v4265, %v4297
    %v4314 = vmul.f32 %v4266, %v4298
    %v4315 = vmul.f32 %v4267, %v4299
    %v4316 = vmul.f32 %v4268, %v4300
    %v4317 = vmul.f32 %v4269, %v4301
    %v4318 = vmul.f32 %v4270, %v4302
    %v4319 = vmul.f32 %v4271, %v4303
    %v4320 = vmul.f32 %v4272, %v4304
    %v4321 = vmul.f32 %v4131, %v4305
    %v4322 = vmul.f32 %v4134, %v4306
    %v4323 = vmul.f32 %v4139, %v4307
    %v4324 = vmul.f32 %v4142, %v4308
    %v4325 = vmul.f32 %v4147, %v4309
    %v4326 = vmul.f32 %v4150, %v4310
    %v4327 = vmul.f32 %v4155, %v4311
    %v4328 = vmul.f32 %v4158, %v4312
    %v4329 = vmul.f32 %v4163, %v4313
    %v4330 = vmul.f32 %v4166, %v4314
    %v4331 = vmul.f32 %v4171, %v4315
    %v4332 = vmul.f32 %v4174, %v4316
    %v4333 = vmul.f32 %v4179, %v4317
    %v4334 = vmul.f32 %v4182, %v4318
    %v4335 = vmul.f32 %v4187, %v4319
    %v4336 = vmul.f32 %v4190, %v4320
    %v4337 = vpack.c.bf16 %v4322, %v4321
    %v4338 = vpack.c.bf16 %v4324, %v4323
    %v4339 = vpack.c.bf16 %v4326, %v4325
    %v4340 = vpack.c.bf16 %v4328, %v4327
    %v4341 = vpack.c.bf16 %v4330, %v4329
    %v4342 = vpack.c.bf16 %v4332, %v4331
    %v4343 = vpack.c.bf16 %v4334, %v4333
    %v4344 = vpack.c.bf16 %v4336, %v4335
    %4345 = vst [vmem:[#allocation3] sm:$0xff] %v4337
    %4346 = vst [vmem:[#allocation3 + $0x8] sm:$0xff] %v4338
    %4347 = vst [vmem:[#allocation3 + $0x10] sm:$0xff] %v4339
    %4348 = vst [vmem:[#allocation3 + $0x18] sm:$0xff] %v4340
    %4349 = vst [vmem:[#allocation3 + $0x20] sm:$0xff] %v4341
    %4350 = vst [vmem:[#allocation3 + $0x28] sm:$0xff] %v4342
    %4351 = vst [vmem:[#allocation3 + $0x30] sm:$0xff] %v4343
    %4352 = vst [vmem:[#allocation3 + $0x38] sm:$0xff] %v4344
    %v4353 = vld [vmem:[#allocation2 + $0x60] sm:$0xff]
    %v4354 = vld [vmem:[#allocation2 + $0x68] sm:$0xff]
    %v4355 = vld [vmem:[#allocation2 + $0x70] sm:$0xff]
    %v4356 = vld [vmem:[#allocation2 + $0x78] sm:$0xff]
    %v4357 = vld [vmem:[#allocation2 + $0x80] sm:$0xff]
    %v4358 = vld [vmem:[#allocation2 + $0x88] sm:$0xff]
    %v4359 = vld [vmem:[#allocation2 + $0x90] sm:$0xff]
    %v4360 = vld [vmem:[#allocation2 + $0x98] sm:$0xff]
    %v4361 = vld [vmem:[#allocation7] sm:$0xf]
    %v4362 = vld [vmem:[#allocation7 + $0x4] sm:$0xf]
    %v4363 = vld [vmem:[#allocation7 + $0x8] sm:$0xf]
    %v4364 = vld [vmem:[#allocation7 + $0xc] sm:$0xf]
    %v4365 = vld [vmem:[#allocation7 + $0x10] sm:$0xf]
    %v4366 = vld [vmem:[#allocation7 + $0x14] sm:$0xf]
    %v4367 = vld [vmem:[#allocation7 + $0x18] sm:$0xf]
    %v4368 = vld [vmem:[#allocation7 + $0x1c] sm:$0xf]
    %v4369 = vld [vmem:[#allocation7 + $0x20] sm:$0xf]
    %v4370 = vld [vmem:[#allocation7 + $0x24] sm:$0xf]
    %v4371 = vld [vmem:[#allocation7 + $0x28] sm:$0xf]
    %v4372 = vld [vmem:[#allocation7 + $0x2c] sm:$0xf]
    %v4373 = vld [vmem:[#allocation7 + $0x30] sm:$0xf]
    %v4374 = vld [vmem:[#allocation7 + $0x34] sm:$0xf]
    %v4375 = vld [vmem:[#allocation7 + $0x38] sm:$0xf]
    %v4376 = vld [vmem:[#allocation7 + $0x3c] sm:$0xf]
    %v4377 = vld [vmem:[#allocation2 + $0xc0] sm:$0xff]
    %v4378 = vld [vmem:[#allocation2 + $0xc8] sm:$0xff]
    %v4379 = vld [vmem:[#allocation2 + $0xd0] sm:$0xff]
    %v4380 = vld [vmem:[#allocation2 + $0xd8] sm:$0xff]
    %v4381 = vld [vmem:[#allocation2 + $0xe0] sm:$0xff]
    %v4382 = vld [vmem:[#allocation2 + $0xe8] sm:$0xff]
    %v4383 = vld [vmem:[#allocation2 + $0xf0] sm:$0xff]
    %v4384 = vld [vmem:[#allocation2 + $0xf8] sm:$0xff]
    %v4385 = vld [vmem:[%s3356] sm:$0xf]
    %v4386 = vld [vmem:[%s3356 + $0x4] sm:$0xf]
    %v4387 = vld [vmem:[%s3356 + $0x8] sm:$0xf]
    %v4388 = vld [vmem:[%s3356 + $0xc] sm:$0xf]
    %v4389 = vld [vmem:[%s3356 + $0x10] sm:$0xf]
    %v4390 = vld [vmem:[%s3356 + $0x14] sm:$0xf]
    %v4391 = vld [vmem:[%s3356 + $0x18] sm:$0xf]
    %v4392 = vld [vmem:[%s3356 + $0x1c] sm:$0xf]
    %v4393 = vld [vmem:[%s3356 + $0x20] sm:$0xf]
    %v4394 = vld [vmem:[%s3356 + $0x24] sm:$0xf]
    %v4395 = vld [vmem:[%s3356 + $0x28] sm:$0xf]
    %v4396 = vld [vmem:[%s3356 + $0x2c] sm:$0xf]
    %v4397 = vld [vmem:[%s3356 + $0x30] sm:$0xf]
    %v4398 = vld [vmem:[%s3356 + $0x34] sm:$0xf]
    %v4399 = vld [vmem:[%s3356 + $0x38] sm:$0xf]
    %v4400 = vld [vmem:[%s3356 + $0x3c] sm:$0xf]
    %v4417 = vunpack.c.l.b16 %v4385
    %v4418 = vunpack.c.l.b16 %v4386
    %v4419 = vunpack.c.l.b16 %v4387
    %v4420 = vunpack.c.l.b16 %v4388
    %v4421 = vunpack.c.l.b16 %v4389
    %v4422 = vunpack.c.l.b16 %v4390
    %v4423 = vunpack.c.l.b16 %v4391
    %v4424 = vunpack.c.l.b16 %v4392
    %v4425 = vunpack.c.l.b16 %v4393
    %v4426 = vunpack.c.l.b16 %v4394
    %v4427 = vunpack.c.l.b16 %v4395
    %v4428 = vunpack.c.l.b16 %v4396
    %v4429 = vunpack.c.l.b16 %v4397
    %v4430 = vunpack.c.l.b16 %v4398
    %v4431 = vunpack.c.l.b16 %v4399
    %v4432 = vunpack.c.l.b16 %v4400
    %v4433 = vpack.c.b16 %v4418, %v4417
    %v4434 = vpack.c.b16 %v4420, %v4419
    %v4435 = vpack.c.b16 %v4422, %v4421
    %v4436 = vpack.c.b16 %v4424, %v4423
    %v4437 = vpack.c.b16 %v4426, %v4425
    %v4438 = vpack.c.b16 %v4428, %v4427
    %v4439 = vpack.c.b16 %v4430, %v4429
    %v4440 = vpack.c.b16 %v4432, %v4431
    %4449 = vmatprep.subr.bf16.mxu0 0
    %4450 = vmatpush1.bf16.msra.mxu0 %v4433
    %4451 = vmatprep.subr.bf16.mxu0 0
    %4452 = vmatpush1.bf16.msra.mxu0 %v4434
    %4453 = vmatprep.subr.bf16.mxu0 0
    %4454 = vmatpush1.bf16.msra.mxu0 %v4435
    %4455 = vmatprep.subr.bf16.mxu0 0
    %4456 = vmatpush1.bf16.msra.mxu0 %v4436
    %4457 = vmatprep.subr.bf16.mxu0 0
    %4458 = vmatpush1.bf16.msra.mxu0 %v4437
    %4459 = vmatprep.subr.bf16.mxu0 0
    %4460 = vmatpush1.bf16.msra.mxu0 %v4438
    %4461 = vmatprep.subr.bf16.mxu0 0
    %4462 = vmatpush1.bf16.msra.mxu0 %v4439
    %4463 = vmatprep.subr.bf16.mxu0 0
    %4464 = vmatpush1.bf16.msra.mxu0 %v4440
    %4465 = vmatprep.subr.bf16.mxu0 0
    %4466 = vmatpush1.bf16.msra.mxu0 0
    %4467 = vmatprep.subr.bf16.mxu0 0
    %4468 = vmatpush1.bf16.msra.mxu0 0
    %4469 = vmatprep.subr.bf16.mxu0 0
    %4470 = vmatpush1.bf16.msra.mxu0 0
    %4471 = vmatprep.subr.bf16.mxu0 0
    %4472 = vmatpush1.bf16.msra.mxu0 0
    %4473 = vmatprep.subr.bf16.mxu0 0
    %4474 = vmatpush1.bf16.msra.mxu0 0
    %4475 = vmatprep.subr.bf16.mxu0 0
    %4476 = vmatpush1.bf16.msra.mxu0 0
    %4477 = vmatprep.subr.bf16.mxu0 0
    %4478 = vmatpush1.bf16.msra.mxu0 0
    %4479 = vmatprep.subr.bf16.mxu0 0
    %4480 = vmatpush1.bf16.msra.mxu0 0
    %4481 = vmatprep.mubr.bf16.mxu0 0
    %4482 = vmatmul.mubr.bf16.gmra.mrb[0].mxu0 %v4377
    %v4483 = vpop.f32.mrb[0].mxu0
    %v4484 = vadd.f32 0.0, %v4483
    %v4485 = vpop.f32.mrb[0].mxu0
    %v4486 = vpop.f32.mrb[0].mxu0
    %v4487 = vadd.f32 0.0, %v4486
    %v4488 = vpop.f32.mrb[0].mxu0
    %4489 = vmatprep.mubr.bf16.mxu0 0
    %4490 = vmatmul.mubr.bf16.gmra.mrb[0].mxu0 %v4378
    %v4491 = vpop.f32.mrb[0].mxu0
    %v4492 = vadd.f32 0.0, %v4491
    %v4493 = vpop.f32.mrb[0].mxu0
    %v4494 = vpop.f32.mrb[0].mxu0
    %v4495 = vadd.f32 0.0, %v4494
    %v4496 = vpop.f32.mrb[0].mxu0
    %4497 = vmatprep.mubr.bf16.mxu0 0
    %4498 = vmatmul.mubr.bf16.gmra.mrb[0].mxu0 %v4379
    %v4499 = vpop.f32.mrb[0].mxu0
    %v4500 = vadd.f32 0.0, %v4499
    %v4501 = vpop.f32.mrb[0].mxu0
    %v4502 = vpop.f32.mrb[0].mxu0
    %v4503 = vadd.f32 0.0, %v4502
    %v4504 = vpop.f32.mrb[0].mxu0
    %4505 = vmatprep.mubr.bf16.mxu0 0
    %4506 = vmatmul.mubr.bf16.gmra.mrb[0].mxu0 %v4380
    %v4507 = vpop.f32.mrb[0].mxu0
    %v4508 = vadd.f32 0.0, %v4507
    %v4509 = vpop.f32.mrb[0].mxu0
    %v4510 = vpop.f32.mrb[0].mxu0
    %v4511 = vadd.f32 0.0, %v4510
    %v4512 = vpop.f32.mrb[0].mxu0
    %4513 = vmatprep.mubr.bf16.mxu0 0
    %4514 = vmatmul.mubr.bf16.gmra.mrb[0].mxu0 %v4381
    %v4515 = vpop.f32.mrb[0].mxu0
    %v4516 = vadd.f32 0.0, %v4515
    %v4517 = vpop.f32.mrb[0].mxu0
    %v4518 = vpop.f32.mrb[0].mxu0
    %v4519 = vadd.f32 0.0, %v4518
    %v4520 = vpop.f32.mrb[0].mxu0
    %4521 = vmatprep.mubr.bf16.mxu0 0
    %4522 = vmatmul.mubr.bf16.gmra.mrb[0].mxu0 %v4382
    %v4523 = vpop.f32.mrb[0].mxu0
    %v4524 = vadd.f32 0.0, %v4523
    %v4525 = vpop.f32.mrb[0].mxu0
    %v4526 = vpop.f32.mrb[0].mxu0
    %v4527 = vadd.f32 0.0, %v4526
    %v4528 = vpop.f32.mrb[0].mxu0
    %4529 = vmatprep.mubr.bf16.mxu0 0
    %4530 = vmatmul.mubr.bf16.gmra.mrb[0].mxu0 %v4383
    %v4531 = vpop.f32.mrb[0].mxu0
    %v4532 = vadd.f32 0.0, %v4531
    %v4533 = vpop.f32.mrb[0].mxu0
    %v4534 = vpop.f32.mrb[0].mxu0
    %v4535 = vadd.f32 0.0, %v4534
    %v4536 = vpop.f32.mrb[0].mxu0
    %4537 = vmatprep.mubr.bf16.mxu0 0
    %4538 = vmatmul.mubr.bf16.gmra.mrb[0].mxu0 %v4384
    %v4539 = vpop.f32.mrb[0].mxu0
    %v4540 = vadd.f32 0.0, %v4539
    %v4541 = vpop.f32.mrb[0].mxu0
    %v4542 = vpop.f32.mrb[0].mxu0
    %v4543 = vadd.f32 0.0, %v4542
    %v4544 = vpop.f32.mrb[0].mxu0
    %4545 = vdwg.mxu0
    %v4562 = vunpack.c.l.b16 %v4361
    %v4563 = vunpack.c.l.b16 %v4362
    %v4564 = vunpack.c.l.b16 %v4363
    %v4565 = vunpack.c.l.b16 %v4364
    %v4566 = vunpack.c.l.b16 %v4365
    %v4567 = vunpack.c.l.b16 %v4366
    %v4568 = vunpack.c.l.b16 %v4367
    %v4569 = vunpack.c.l.b16 %v4368
    %v4570 = vunpack.c.l.b16 %v4369
    %v4571 = vunpack.c.l.b16 %v4370
    %v4572 = vunpack.c.l.b16 %v4371
    %v4573 = vunpack.c.l.b16 %v4372
    %v4574 = vunpack.c.l.b16 %v4373
    %v4575 = vunpack.c.l.b16 %v4374
    %v4576 = vunpack.c.l.b16 %v4375
    %v4577 = vunpack.c.l.b16 %v4376
    %v4578 = vpack.c.b16 %v4563, %v4562
    %v4579 = vpack.c.b16 %v4565, %v4564
    %v4580 = vpack.c.b16 %v4567, %v4566
    %v4581 = vpack.c.b16 %v4569, %v4568
    %v4582 = vpack.c.b16 %v4571, %v4570
    %v4583 = vpack.c.b16 %v4573, %v4572
    %v4584 = vpack.c.b16 %v4575, %v4574
    %v4585 = vpack.c.b16 %v4577, %v4576
    %4594 = vmatprep.subr.bf16.mxu0 0
    %4595 = vmatpush1.bf16.msra.mxu0 %v4578
    %4596 = vmatprep.subr.bf16.mxu0 0
    %4597 = vmatpush1.bf16.msra.mxu0 %v4579
    %4598 = vmatprep.subr.bf16.mxu0 0
    %4599 = vmatpush1.bf16.msra.mxu0 %v4580
    %4600 = vmatprep.subr.bf16.mxu0 0
    %4601 = vmatpush1.bf16.msra.mxu0 %v4581
    %4602 = vmatprep.subr.bf16.mxu0 0
    %4603 = vmatpush1.bf16.msra.mxu0 %v4582
    %4604 = vmatprep.subr.bf16.mxu0 0
    %4605 = vmatpush1.bf16.msra.mxu0 %v4583
    %4606 = vmatprep.subr.bf16.mxu0 0
    %4607 = vmatpush1.bf16.msra.mxu0 %v4584
    %4608 = vmatprep.subr.bf16.mxu0 0
    %4609 = vmatpush1.bf16.msra.mxu0 %v4585
    %4610 = vmatprep.subr.bf16.mxu0 0
    %4611 = vmatpush1.bf16.msra.mxu0 0
    %4612 = vmatprep.subr.bf16.mxu0 0
    %4613 = vmatpush1.bf16.msra.mxu0 0
    %4614 = vmatprep.subr.bf16.mxu0 0
    %4615 = vmatpush1.bf16.msra.mxu0 0
    %4616 = vmatprep.subr.bf16.mxu0 0
    %4617 = vmatpush1.bf16.msra.mxu0 0
    %4618 = vmatprep.subr.bf16.mxu0 0
    %4619 = vmatpush1.bf16.msra.mxu0 0
    %4620 = vmatprep.subr.bf16.mxu0 0
    %4621 = vmatpush1.bf16.msra.mxu0 0
    %4622 = vmatprep.subr.bf16.mxu0 0
    %4623 = vmatpush1.bf16.msra.mxu0 0
    %4624 = vmatprep.subr.bf16.mxu0 0
    %4625 = vmatpush1.bf16.msra.mxu0 0
    %4626 = vmatprep.mubr.bf16.mxu0 0
    %4627 = vmatmul.mubr.bf16.gmra.mrb[0].mxu0 %v4353
    %v4628 = vpop.f32.mrb[0].mxu0
    %v4629 = vadd.f32 %v4484, %v4628
    %v4630 = vpop.f32.mrb[0].mxu0
    %v4631 = vpop.f32.mrb[0].mxu0
    %v4632 = vadd.f32 %v4487, %v4631
    %v4633 = vpop.f32.mrb[0].mxu0
    %4634 = vmatprep.mubr.bf16.mxu0 0
    %4635 = vmatmul.mubr.bf16.gmra.mrb[0].mxu0 %v4354
    %v4636 = vpop.f32.mrb[0].mxu0
    %v4637 = vadd.f32 %v4492, %v4636
    %v4638 = vpop.f32.mrb[0].mxu0
    %v4639 = vpop.f32.mrb[0].mxu0
    %v4640 = vadd.f32 %v4495, %v4639
    %v4641 = vpop.f32.mrb[0].mxu0
    %4642 = vmatprep.mubr.bf16.mxu0 0
    %4643 = vmatmul.mubr.bf16.gmra.mrb[0].mxu0 %v4355
    %v4644 = vpop.f32.mrb[0].mxu0
    %v4645 = vadd.f32 %v4500, %v4644
    %v4646 = vpop.f32.mrb[0].mxu0
    %v4647 = vpop.f32.mrb[0].mxu0
    %v4648 = vadd.f32 %v4503, %v4647
    %v4649 = vpop.f32.mrb[0].mxu0
    %4650 = vmatprep.mubr.bf16.mxu0 0
    %4651 = vmatmul.mubr.bf16.gmra.mrb[0].mxu0 %v4356
    %v4652 = vpop.f32.mrb[0].mxu0
    %v4653 = vadd.f32 %v4508, %v4652
    %v4654 = vpop.f32.mrb[0].mxu0
    %v4655 = vpop.f32.mrb[0].mxu0
    %v4656 = vadd.f32 %v4511, %v4655
    %v4657 = vpop.f32.mrb[0].mxu0
    %4658 = vmatprep.mubr.bf16.mxu0 0
    %4659 = vmatmul.mubr.bf16.gmra.mrb[0].mxu0 %v4357
    %v4660 = vpop.f32.mrb[0].mxu0
    %v4661 = vadd.f32 %v4516, %v4660
    %v4662 = vpop.f32.mrb[0].mxu0
    %v4663 = vpop.f32.mrb[0].mxu0
    %v4664 = vadd.f32 %v4519, %v4663
    %v4665 = vpop.f32.mrb[0].mxu0
    %4666 = vmatprep.mubr.bf16.mxu0 0
    %4667 = vmatmul.mubr.bf16.gmra.mrb[0].mxu0 %v4358
    %v4668 = vpop.f32.mrb[0].mxu0
    %v4669 = vadd.f32 %v4524, %v4668
    %v4670 = vpop.f32.mrb[0].mxu0
    %v4671 = vpop.f32.mrb[0].mxu0
    %v4672 = vadd.f32 %v4527, %v4671
    %v4673 = vpop.f32.mrb[0].mxu0
    %4674 = vmatprep.mubr.bf16.mxu0 0
    %4675 = vmatmul.mubr.bf16.gmra.mrb[0].mxu0 %v4359
    %v4676 = vpop.f32.mrb[0].mxu0
    %v4677 = vadd.f32 %v4532, %v4676
    %v4678 = vpop.f32.mrb[0].mxu0
    %v4679 = vpop.f32.mrb[0].mxu0
    %v4680 = vadd.f32 %v4535, %v4679
    %v4681 = vpop.f32.mrb[0].mxu0
    %4682 = vmatprep.mubr.bf16.mxu0 0
    %4683 = vmatmul.mubr.bf16.gmra.mrb[0].mxu0 %v4360
    %v4684 = vpop.f32.mrb[0].mxu0
    %v4685 = vadd.f32 %v4540, %v4684
    %v4686 = vpop.f32.mrb[0].mxu0
    %v4687 = vpop.f32.mrb[0].mxu0
    %v4688 = vadd.f32 %v4543, %v4687
    %v4689 = vpop.f32.mrb[0].mxu0
    %4690 = vdwg.mxu0
    %v4691 = vld [vmem:[#allocation2 + $0xe0] sm:$0xff]
    %v4692 = vld [vmem:[#allocation2 + $0xe8] sm:$0xff]
    %v4693 = vld [vmem:[#allocation2 + $0xf0] sm:$0xff]
    %v4694 = vld [vmem:[#allocation2 + $0xf8] sm:$0xff]
    %v4695 = vld [vmem:[#allocation2 + $0x100] sm:$0xff]
    %v4696 = vld [vmem:[#allocation2 + $0x108] sm:$0xff]
    %v4697 = vld [vmem:[#allocation2 + $0x110] sm:$0xff]
    %v4698 = vld [vmem:[#allocation2 + $0x118] sm:$0xff]
    %v4699 = vld [vmem:[%s3671] sm:$0xf]
    %v4700 = vld [vmem:[%s3671 + $0x4] sm:$0xf]
    %v4701 = vld [vmem:[%s3671 + $0x8] sm:$0xf]
    %v4702 = vld [vmem:[%s3671 + $0xc] sm:$0xf]
    %v4703 = vld [vmem:[%s3671 + $0x10] sm:$0xf]
    %v4704 = vld [vmem:[%s3671 + $0x14] sm:$0xf]
    %v4705 = vld [vmem:[%s3671 + $0x18] sm:$0xf]
    %v4706 = vld [vmem:[%s3671 + $0x1c] sm:$0xf]
    %v4707 = vld [vmem:[%s3671 + $0x20] sm:$0xf]
    %v4708 = vld [vmem:[%s3671 + $0x24] sm:$0xf]
    %v4709 = vld [vmem:[%s3671 + $0x28] sm:$0xf]
    %v4710 = vld [vmem:[%s3671 + $0x2c] sm:$0xf]
    %v4711 = vld [vmem:[%s3671 + $0x30] sm:$0xf]
    %v4712 = vld [vmem:[%s3671 + $0x34] sm:$0xf]
    %v4713 = vld [vmem:[%s3671 + $0x38] sm:$0xf]
    %v4714 = vld [vmem:[%s3671 + $0x3c] sm:$0xf]
    %v4731 = vunpack.c.l.b16 %v4699
    %v4732 = vunpack.c.l.b16 %v4700
    %v4733 = vunpack.c.l.b16 %v4701
    %v4734 = vunpack.c.l.b16 %v4702
    %v4735 = vunpack.c.l.b16 %v4703
    %v4736 = vunpack.c.l.b16 %v4704
    %v4737 = vunpack.c.l.b16 %v4705
    %v4738 = vunpack.c.l.b16 %v4706
    %v4739 = vunpack.c.l.b16 %v4707
    %v4740 = vunpack.c.l.b16 %v4708
    %v4741 = vunpack.c.l.b16 %v4709
    %v4742 = vunpack.c.l.b16 %v4710
    %v4743 = vunpack.c.l.b16 %v4711
    %v4744 = vunpack.c.l.b16 %v4712
    %v4745 = vunpack.c.l.b16 %v4713
    %v4746 = vunpack.c.l.b16 %v4714
    %v4747 = vpack.c.b16 %v4732, %v4731
    %v4748 = vpack.c.b16 %v4734, %v4733
    %v4749 = vpack.c.b16 %v4736, %v4735
    %v4750 = vpack.c.b16 %v4738, %v4737
    %v4751 = vpack.c.b16 %v4740, %v4739
    %v4752 = vpack.c.b16 %v4742, %v4741
    %v4753 = vpack.c.b16 %v4744, %v4743
    %v4754 = vpack.c.b16 %v4746, %v4745
    %4763 = vmatprep.subr.bf16.mxu0 0
    %4764 = vmatpush1.bf16.msra.mxu0 %v4747
    %4765 = vmatprep.subr.bf16.mxu0 0
    %4766 = vmatpush1.bf16.msra.mxu0 %v4748
    %4767 = vmatprep.subr.bf16.mxu0 0
    %4768 = vmatpush1.bf16.msra.mxu0 %v4749
    %4769 = vmatprep.subr.bf16.mxu0 0
    %4770 = vmatpush1.bf16.msra.mxu0 %v4750
    %4771 = vmatprep.subr.bf16.mxu0 0
    %4772 = vmatpush1.bf16.msra.mxu0 %v4751
    %4773 = vmatprep.subr.bf16.mxu0 0
    %4774 = vmatpush1.bf16.msra.mxu0 %v4752
    %4775 = vmatprep.subr.bf16.mxu0 0
    %4776 = vmatpush1.bf16.msra.mxu0 %v4753
    %4777 = vmatprep.subr.bf16.mxu0 0
    %4778 = vmatpush1.bf16.msra.mxu0 %v4754
    %4779 = vmatprep.subr.bf16.mxu0 0
    %4780 = vmatpush1.bf16.msra.mxu0 0
    %4781 = vmatprep.subr.bf16.mxu0 0
    %4782 = vmatpush1.bf16.msra.mxu0 0
    %4783 = vmatprep.subr.bf16.mxu0 0
    %4784 = vmatpush1.bf16.msra.mxu0 0
    %4785 = vmatprep.subr.bf16.mxu0 0
    %4786 = vmatpush1.bf16.msra.mxu0 0
    %4787 = vmatprep.subr.bf16.mxu0 0
    %4788 = vmatpush1.bf16.msra.mxu0 0
    %4789 = vmatprep.subr.bf16.mxu0 0
    %4790 = vmatpush1.bf16.msra.mxu0 0
    %4791 = vmatprep.subr.bf16.mxu0 0
    %4792 = vmatpush1.bf16.msra.mxu0 0
    %4793 = vmatprep.subr.bf16.mxu0 0
    %4794 = vmatpush1.bf16.msra.mxu0 0
    %4795 = vmatprep.mubr.bf16.mxu0 0
    %4796 = vmatmul.mubr.bf16.gmra.mrb[0].mxu0 %v4691
    %v4797 = vpop.f32.mrb[0].mxu0
    %v4798 = vadd.f32 0.0, %v4797
    %v4799 = vpop.f32.mrb[0].mxu0
    %v4800 = vpop.f32.mrb[0].mxu0
    %v4801 = vadd.f32 0.0, %v4800
    %v4802 = vpop.f32.mrb[0].mxu0
    %4803 = vmatprep.mubr.bf16.mxu0 0
    %4804 = vmatmul.mubr.bf16.gmra.mrb[0].mxu0 %v4692
    %v4805 = vpop.f32.mrb[0].mxu0
    %v4806 = vadd.f32 0.0, %v4805
    %v4807 = vpop.f32.mrb[0].mxu0
    %v4808 = vpop.f32.mrb[0].mxu0
    %v4809 = vadd.f32 0.0, %v4808
    %v4810 = vpop.f32.mrb[0].mxu0
    %4811 = vmatprep.mubr.bf16.mxu0 0
    %4812 = vmatmul.mubr.bf16.gmra.mrb[0].mxu0 %v4693
    %v4813 = vpop.f32.mrb[0].mxu0
    %v4814 = vadd.f32 0.0, %v4813
    %v4815 = vpop.f32.mrb[0].mxu0
    %v4816 = vpop.f32.mrb[0].mxu0
    %v4817 = vadd.f32 0.0, %v4816
    %v4818 = vpop.f32.mrb[0].mxu0
    %4819 = vmatprep.mubr.bf16.mxu0 0
    %4820 = vmatmul.mubr.bf16.gmra.mrb[0].mxu0 %v4694
    %v4821 = vpop.f32.mrb[0].mxu0
    %v4822 = vadd.f32 0.0, %v4821
    %v4823 = vpop.f32.mrb[0].mxu0
    %v4824 = vpop.f32.mrb[0].mxu0
    %v4825 = vadd.f32 0.0, %v4824
    %v4826 = vpop.f32.mrb[0].mxu0
    %4827 = vmatprep.mubr.bf16.mxu0 0
    %4828 = vmatmul.mubr.bf16.gmra.mrb[0].mxu0 %v4695
    %v4829 = vpop.f32.mrb[0].mxu0
    %v4830 = vadd.f32 0.0, %v4829
    %v4831 = vpop.f32.mrb[0].mxu0
    %v4832 = vpop.f32.mrb[0].mxu0
    %v4833 = vadd.f32 0.0, %v4832
    %v4834 = vpop.f32.mrb[0].mxu0
    %4835 = vmatprep.mubr.bf16.mxu0 0
    %4836 = vmatmul.mubr.bf16.gmra.mrb[0].mxu0 %v4696
    %v4837 = vpop.f32.mrb[0].mxu0
    %v4838 = vadd.f32 0.0, %v4837
    %v4839 = vpop.f32.mrb[0].mxu0
    %v4840 = vpop.f32.mrb[0].mxu0
    %v4841 = vadd.f32 0.0, %v4840
    %v4842 = vpop.f32.mrb[0].mxu0
    %4843 = vmatprep.mubr.bf16.mxu0 0
    %4844 = vmatmul.mubr.bf16.gmra.mrb[0].mxu0 %v4697
    %v4845 = vpop.f32.mrb[0].mxu0
    %v4846 = vadd.f32 0.0, %v4845
    %v4847 = vpop.f32.mrb[0].mxu0
    %v4848 = vpop.f32.mrb[0].mxu0
    %v4849 = vadd.f32 0.0, %v4848
    %v4850 = vpop.f32.mrb[0].mxu0
    %4851 = vmatprep.mubr.bf16.mxu0 0
    %4852 = vmatmul.mubr.bf16.gmra.mrb[0].mxu0 %v4698
    %v4853 = vpop.f32.mrb[0].mxu0
    %v4854 = vadd.f32 0.0, %v4853
    %v4855 = vpop.f32.mrb[0].mxu0
    %v4856 = vpop.f32.mrb[0].mxu0
    %v4857 = vadd.f32 0.0, %v4856
    %v4858 = vpop.f32.mrb[0].mxu0
    %4859 = vdwg.mxu0
    %v4860 = vadd.f32 %v4629, %v4798
    %v4861 = vadd.f32 %v4632, %v4801
    %v4862 = vadd.f32 %v4637, %v4806
    %v4863 = vadd.f32 %v4640, %v4809
    %v4864 = vadd.f32 %v4645, %v4814
    %v4865 = vadd.f32 %v4648, %v4817
    %v4866 = vadd.f32 %v4653, %v4822
    %v4867 = vadd.f32 %v4656, %v4825
    %v4868 = vadd.f32 %v4661, %v4830
    %v4869 = vadd.f32 %v4664, %v4833
    %v4870 = vadd.f32 %v4669, %v4838
    %v4871 = vadd.f32 %v4672, %v4841
    %v4872 = vadd.f32 %v4677, %v4846
    %v4873 = vadd.f32 %v4680, %v4849
    %v4874 = vadd.f32 %v4685, %v4854
    %v4875 = vadd.f32 %v4688, %v4857
    %v4876 = vadd.f32 %v4860, %v3853
    %v4877 = vadd.f32 %v4861, %v3853
    %v4878 = vadd.f32 %v4862, %v3853
    %v4879 = vadd.f32 %v4863, %v3853
    %v4880 = vadd.f32 %v4864, %v3853
    %v4881 = vadd.f32 %v4865, %v3853
    %v4882 = vadd.f32 %v4866, %v3853
    %v4883 = vadd.f32 %v4867, %v3853
    %v4884 = vadd.f32 %v4868, %v3853
    %v4885 = vadd.f32 %v4869, %v3853
    %v4886 = vadd.f32 %v4870, %v3853
    %v4887 = vadd.f32 %v4871, %v3853
    %v4888 = vadd.f32 %v4872, %v3853
    %v4889 = vadd.f32 %v4873, %v3853
    %v4890 = vadd.f32 %v4874, %v3853
    %v4891 = vadd.f32 %v4875, %v3853
    %v4892 = vmin.f32 %v4876, 30.0
    %v4893 = vmin.f32 %v4877, 30.0
    %v4894 = vmin.f32 %v4878, 30.0
    %v4895 = vmin.f32 %v4879, 30.0
    %v4896 = vmin.f32 %v4880, 30.0
    %v4897 = vmin.f32 %v4881, 30.0
    %v4898 = vmin.f32 %v4882, 30.0
    %v4899 = vmin.f32 %v4883, 30.0
    %v4900 = vmin.f32 %v4884, 30.0
    %v4901 = vmin.f32 %v4885, 30.0
    %v4902 = vmin.f32 %v4886, 30.0
    %v4903 = vmin.f32 %v4887, 30.0
    %v4904 = vmin.f32 %v4888, 30.0
    %v4905 = vmin.f32 %v4889, 30.0
    %v4906 = vmin.f32 %v4890, 30.0
    %v4907 = vmin.f32 %v4891, 30.0
    %v4908 = vmul.f32 %v4892, 1.442695
    %v4909 = vpow.pop %v4908
    %v4910 = vmul.f32 %v4893, 1.442695
    %v4911 = vpow.pop %v4910
    %v4912 = vmul.f32 %v4894, 1.442695
    %v4913 = vpow.pop %v4912
    %v4914 = vmul.f32 %v4895, 1.442695
    %v4915 = vpow.pop %v4914
    %v4916 = vmul.f32 %v4896, 1.442695
    %v4917 = vpow.pop %v4916
    %v4918 = vmul.f32 %v4897, 1.442695
    %v4919 = vpow.pop %v4918
    %v4920 = vmul.f32 %v4898, 1.442695
    %v4921 = vpow.pop %v4920
    %v4922 = vmul.f32 %v4899, 1.442695
    %v4923 = vpow.pop %v4922
    %v4924 = vmul.f32 %v4900, 1.442695
    %v4925 = vpow.pop %v4924
    %v4926 = vmul.f32 %v4901, 1.442695
    %v4927 = vpow.pop %v4926
    %v4928 = vmul.f32 %v4902, 1.442695
    %v4929 = vpow.pop %v4928
    %v4930 = vmul.f32 %v4903, 1.442695
    %v4931 = vpow.pop %v4930
    %v4932 = vmul.f32 %v4904, 1.442695
    %v4933 = vpow.pop %v4932
    %v4934 = vmul.f32 %v4905, 1.442695
    %v4935 = vpow.pop %v4934
    %v4936 = vmul.f32 %v4906, 1.442695
    %v4937 = vpow.pop %v4936
    %v4938 = vmul.f32 %v4907, 1.442695
    %v4939 = vpow.pop %v4938
    %v4940 = vadd.f32 %v4909, 2.0
    %v4941 = vadd.f32 %v4911, 2.0
    %v4942 = vadd.f32 %v4913, 2.0
    %v4943 = vadd.f32 %v4915, 2.0
    %v4944 = vadd.f32 %v4917, 2.0
    %v4945 = vadd.f32 %v4919, 2.0
    %v4946 = vadd.f32 %v4921, 2.0
    %v4947 = vadd.f32 %v4923, 2.0
    %v4948 = vadd.f32 %v4925, 2.0
    %v4949 = vadd.f32 %v4927, 2.0
    %v4950 = vadd.f32 %v4929, 2.0
    %v4951 = vadd.f32 %v4931, 2.0
    %v4952 = vadd.f32 %v4933, 2.0
    %v4953 = vadd.f32 %v4935, 2.0
    %v4954 = vadd.f32 %v4937, 2.0
    %v4955 = vadd.f32 %v4939, 2.0
    %v4956 = vmul.f32 %v4909, %v4940
    %v4957 = vmul.f32 %v4911, %v4941
    %v4958 = vmul.f32 %v4913, %v4942
    %v4959 = vmul.f32 %v4915, %v4943
    %v4960 = vmul.f32 %v4917, %v4944
    %v4961 = vmul.f32 %v4919, %v4945
    %v4962 = vmul.f32 %v4921, %v4946
    %v4963 = vmul.f32 %v4923, %v4947
    %v4964 = vmul.f32 %v4925, %v4948
    %v4965 = vmul.f32 %v4927, %v4949
    %v4966 = vmul.f32 %v4929, %v4950
    %v4967 = vmul.f32 %v4931, %v4951
    %v4968 = vmul.f32 %v4933, %v4952
    %v4969 = vmul.f32 %v4935, %v4953
    %v4970 = vmul.f32 %v4937, %v4954
    %v4971 = vmul.f32 %v4939, %v4955
    %v4972 = vadd.f32 %v4956, 2.0
    %v4973 = vadd.f32 %v4957, 2.0
    %v4974 = vadd.f32 %v4958, 2.0
    %v4975 = vadd.f32 %v4959, 2.0
    %v4976 = vadd.f32 %v4960, 2.0
    %v4977 = vadd.f32 %v4961, 2.0
    %v4978 = vadd.f32 %v4962, 2.0
    %v4979 = vadd.f32 %v4963, 2.0
    %v4980 = vadd.f32 %v4964, 2.0
    %v4981 = vadd.f32 %v4965, 2.0
    %v4982 = vadd.f32 %v4966, 2.0
    %v4983 = vadd.f32 %v4967, 2.0
    %v4984 = vadd.f32 %v4968, 2.0
    %v4985 = vadd.f32 %v4969, 2.0
    %v4986 = vadd.f32 %v4970, 2.0
    %v4987 = vadd.f32 %v4971, 2.0
    %v4988 = vrcp.pop %v4972
    %v4989 = vrcp.pop %v4973
    %v4990 = vrcp.pop %v4974
    %v4991 = vrcp.pop %v4975
    %v4992 = vrcp.pop %v4976
    %v4993 = vrcp.pop %v4977
    %v4994 = vrcp.pop %v4978
    %v4995 = vrcp.pop %v4979
    %v4996 = vrcp.pop %v4980
    %v4997 = vrcp.pop %v4981
    %v4998 = vrcp.pop %v4982
    %v4999 = vrcp.pop %v4983
    %v5000 = vrcp.pop %v4984
    %v5001 = vrcp.pop %v4985
    %v5002 = vrcp.pop %v4986
    %v5003 = vrcp.pop %v4987
    %v5004 = vmul.f32 %v4956, %v4988
    %v5005 = vmul.f32 %v4957, %v4989
    %v5006 = vmul.f32 %v4958, %v4990
    %v5007 = vmul.f32 %v4959, %v4991
    %v5008 = vmul.f32 %v4960, %v4992
    %v5009 = vmul.f32 %v4961, %v4993
    %v5010 = vmul.f32 %v4962, %v4994
    %v5011 = vmul.f32 %v4963, %v4995
    %v5012 = vmul.f32 %v4964, %v4996
    %v5013 = vmul.f32 %v4965, %v4997
    %v5014 = vmul.f32 %v4966, %v4998
    %v5015 = vmul.f32 %v4967, %v4999
    %v5016 = vmul.f32 %v4968, %v5000
    %v5017 = vmul.f32 %v4969, %v5001
    %v5018 = vmul.f32 %v4970, %v5002
    %v5019 = vmul.f32 %v4971, %v5003
    %v5020 = vmul.f32 %v4876, %v5004
    %v5021 = vmul.f32 %v4877, %v5005
    %v5022 = vmul.f32 %v4878, %v5006
    %v5023 = vmul.f32 %v4879, %v5007
    %v5024 = vmul.f32 %v4880, %v5008
    %v5025 = vmul.f32 %v4881, %v5009
    %v5026 = vmul.f32 %v4882, %v5010
    %v5027 = vmul.f32 %v4883, %v5011
    %v5028 = vmul.f32 %v4884, %v5012
    %v5029 = vmul.f32 %v4885, %v5013
    %v5030 = vmul.f32 %v4886, %v5014
    %v5031 = vmul.f32 %v4887, %v5015
    %v5032 = vmul.f32 %v4888, %v5016
    %v5033 = vmul.f32 %v4889, %v5017
    %v5034 = vmul.f32 %v4890, %v5018
    %v5035 = vmul.f32 %v4891, %v5019
    %v5036 = vpack.c.bf16 %v5021, %v5020
    %v5037 = vpack.c.bf16 %v5023, %v5022
    %v5038 = vpack.c.bf16 %v5025, %v5024
    %v5039 = vpack.c.bf16 %v5027, %v5026
    %v5040 = vpack.c.bf16 %v5029, %v5028
    %v5041 = vpack.c.bf16 %v5031, %v5030
    %v5042 = vpack.c.bf16 %v5033, %v5032
    %v5043 = vpack.c.bf16 %v5035, %v5034
    %v5044 = vld [vmem:[%s4023] sm:$0xf]
    %v5045 = vld [vmem:[%s4023 + $0x4] sm:$0xf]
    %v5046 = vld [vmem:[%s4023 + $0x8] sm:$0xf]
    %v5047 = vld [vmem:[%s4023 + $0xc] sm:$0xf]
    %v5048 = vld [vmem:[%s4023 + $0x10] sm:$0xf]
    %v5049 = vld [vmem:[%s4023 + $0x14] sm:$0xf]
    %v5050 = vld [vmem:[%s4023 + $0x18] sm:$0xf]
    %v5051 = vld [vmem:[%s4023 + $0x1c] sm:$0xf]
    %v5052 = vld [vmem:[%s4023 + $0x20] sm:$0xf]
    %v5053 = vld [vmem:[%s4023 + $0x24] sm:$0xf]
    %v5054 = vld [vmem:[%s4023 + $0x28] sm:$0xf]
    %v5055 = vld [vmem:[%s4023 + $0x2c] sm:$0xf]
    %v5056 = vld [vmem:[%s4023 + $0x30] sm:$0xf]
    %v5057 = vld [vmem:[%s4023 + $0x34] sm:$0xf]
    %v5058 = vld [vmem:[%s4023 + $0x38] sm:$0xf]
    %v5059 = vld [vmem:[%s4023 + $0x3c] sm:$0xf]
    %v5060 = vld [vmem:[%s4040] sm:$0x1]
    %v5062 = vlaneseq
    %v5063 = vshrl.u32 %v5062, 7
    %v5064 = vsub.s32 0, %v5063
    %v5065 = vrot.slane %v5060, %v5064
    %v5083 = vunpack.c.l.b16 %v5044
    %v5084 = vunpack.c.l.b16 %v5045
    %v5085 = vunpack.c.l.b16 %v5046
    %v5086 = vunpack.c.l.b16 %v5047
    %v5087 = vunpack.c.l.b16 %v5048
    %v5088 = vunpack.c.l.b16 %v5049
    %v5089 = vunpack.c.l.b16 %v5050
    %v5090 = vunpack.c.l.b16 %v5051
    %v5091 = vunpack.c.l.b16 %v5052
    %v5092 = vunpack.c.l.b16 %v5053
    %v5093 = vunpack.c.l.b16 %v5054
    %v5094 = vunpack.c.l.b16 %v5055
    %v5095 = vunpack.c.l.b16 %v5056
    %v5096 = vunpack.c.l.b16 %v5057
    %v5097 = vunpack.c.l.b16 %v5058
    %v5098 = vunpack.c.l.b16 %v5059
    %v5099 = vpack.c.b16 %v5084, %v5083
    %v5100 = vpack.c.b16 %v5086, %v5085
    %v5101 = vpack.c.b16 %v5088, %v5087
    %v5102 = vpack.c.b16 %v5090, %v5089
    %v5103 = vpack.c.b16 %v5092, %v5091
    %v5104 = vpack.c.b16 %v5094, %v5093
    %v5105 = vpack.c.b16 %v5096, %v5095
    %v5106 = vpack.c.b16 %v5098, %v5097
    %5115 = vmatprep.subr.bf16.mxu0 0
    %5116 = vmatpush1.bf16.msra.mxu0 %v5099
    %5117 = vmatprep.subr.bf16.mxu0 0
    %5118 = vmatpush1.bf16.msra.mxu0 %v5100
    %5119 = vmatprep.subr.bf16.mxu0 0
    %5120 = vmatpush1.bf16.msra.mxu0 %v5101
    %5121 = vmatprep.subr.bf16.mxu0 0
    %5122 = vmatpush1.bf16.msra.mxu0 %v5102
    %5123 = vmatprep.subr.bf16.mxu0 0
    %5124 = vmatpush1.bf16.msra.mxu0 %v5103
    %5125 = vmatprep.subr.bf16.mxu0 0
    %5126 = vmatpush1.bf16.msra.mxu0 %v5104
    %5127 = vmatprep.subr.bf16.mxu0 0
    %5128 = vmatpush1.bf16.msra.mxu0 %v5105
    %5129 = vmatprep.subr.bf16.mxu0 0
    %5130 = vmatpush1.bf16.msra.mxu0 %v5106
    %5131 = vmatprep.subr.bf16.mxu0 0
    %5132 = vmatpush1.bf16.msra.mxu0 0
    %5133 = vmatprep.subr.bf16.mxu0 0
    %5134 = vmatpush1.bf16.msra.mxu0 0
    %5135 = vmatprep.subr.bf16.mxu0 0
    %5136 = vmatpush1.bf16.msra.mxu0 0
    %5137 = vmatprep.subr.bf16.mxu0 0
    %5138 = vmatpush1.bf16.msra.mxu0 0
    %5139 = vmatprep.subr.bf16.mxu0 0
    %5140 = vmatpush1.bf16.msra.mxu0 0
    %5141 = vmatprep.subr.bf16.mxu0 0
    %5142 = vmatpush1.bf16.msra.mxu0 0
    %5143 = vmatprep.subr.bf16.mxu0 0
    %5144 = vmatpush1.bf16.msra.mxu0 0
    %5145 = vmatprep.subr.bf16.mxu0 0
    %5146 = vmatpush1.bf16.msra.mxu0 0
    %5147 = vmatprep.mubr.bf16.mxu0 0
    %5148 = vmatmul.mubr.bf16.gmra.mrb[0].mxu0 %v5036
    %v5149 = vpop.f32.mrb[0].mxu0
    %v5150 = vadd.f32 %v5065, %v5149
    %v5151 = vpop.f32.mrb[0].mxu0
    %v5152 = vpop.f32.mrb[0].mxu0
    %v5153 = vadd.f32 %v5065, %v5152
    %v5154 = vpop.f32.mrb[0].mxu0
    %5155 = vmatprep.mubr.bf16.mxu0 0
    %5156 = vmatmul.mubr.bf16.gmra.mrb[0].mxu0 %v5037
    %v5157 = vpop.f32.mrb[0].mxu0
    %v5158 = vadd.f32 %v5065, %v5157
    %v5159 = vpop.f32.mrb[0].mxu0
    %v5160 = vpop.f32.mrb[0].mxu0
    %v5161 = vadd.f32 %v5065, %v5160
    %v5162 = vpop.f32.mrb[0].mxu0
    %5163 = vmatprep.mubr.bf16.mxu0 0
    %5164 = vmatmul.mubr.bf16.gmra.mrb[0].mxu0 %v5038
    %v5165 = vpop.f32.mrb[0].mxu0
    %v5166 = vadd.f32 %v5065, %v5165
    %v5167 = vpop.f32.mrb[0].mxu0
    %v5168 = vpop.f32.mrb[0].mxu0
    %v5169 = vadd.f32 %v5065, %v5168
    %v5170 = vpop.f32.mrb[0].mxu0
    %5171 = vmatprep.mubr.bf16.mxu0 0
    %5172 = vmatmul.mubr.bf16.gmra.mrb[0].mxu0 %v5039
    %v5173 = vpop.f32.mrb[0].mxu0
    %v5174 = vadd.f32 %v5065, %v5173
    %v5175 = vpop.f32.mrb[0].mxu0
    %v5176 = vpop.f32.mrb[0].mxu0
    %v5177 = vadd.f32 %v5065, %v5176
    %v5178 = vpop.f32.mrb[0].mxu0
    %5179 = vmatprep.mubr.bf16.mxu0 0
    %5180 = vmatmul.mubr.bf16.gmra.mrb[0].mxu0 %v5040
    %v5181 = vpop.f32.mrb[0].mxu0
    %v5182 = vadd.f32 %v5065, %v5181
    %v5183 = vpop.f32.mrb[0].mxu0
    %v5184 = vpop.f32.mrb[0].mxu0
    %v5185 = vadd.f32 %v5065, %v5184
    %v5186 = vpop.f32.mrb[0].mxu0
    %5187 = vmatprep.mubr.bf16.mxu0 0
    %5188 = vmatmul.mubr.bf16.gmra.mrb[0].mxu0 %v5041
    %v5189 = vpop.f32.mrb[0].mxu0
    %v5190 = vadd.f32 %v5065, %v5189
    %v5191 = vpop.f32.mrb[0].mxu0
    %v5192 = vpop.f32.mrb[0].mxu0
    %v5193 = vadd.f32 %v5065, %v5192
    %v5194 = vpop.f32.mrb[0].mxu0
    %5195 = vmatprep.mubr.bf16.mxu0 0
    %5196 = vmatmul.mubr.bf16.gmra.mrb[0].mxu0 %v5042
    %v5197 = vpop.f32.mrb[0].mxu0
    %v5198 = vadd.f32 %v5065, %v5197
    %v5199 = vpop.f32.mrb[0].mxu0
    %v5200 = vpop.f32.mrb[0].mxu0
    %v5201 = vadd.f32 %v5065, %v5200
    %v5202 = vpop.f32.mrb[0].mxu0
    %5203 = vmatprep.mubr.bf16.mxu0 0
    %5204 = vmatmul.mubr.bf16.gmra.mrb[0].mxu0 %v5043
    %v5205 = vpop.f32.mrb[0].mxu0
    %v5206 = vadd.f32 %v5065, %v5205
    %v5207 = vpop.f32.mrb[0].mxu0
    %v5208 = vpop.f32.mrb[0].mxu0
    %v5209 = vadd.f32 %v5065, %v5208
    %v5210 = vpop.f32.mrb[0].mxu0
    %5211 = vdwg.mxu0
    %v5212 = vmin.f32 %v5150, 30.0
    %v5213 = vmin.f32 %v5153, 30.0
    %v5214 = vmin.f32 %v5158, 30.0
    %v5215 = vmin.f32 %v5161, 30.0
    %v5216 = vmin.f32 %v5166, 30.0
    %v5217 = vmin.f32 %v5169, 30.0
    %v5218 = vmin.f32 %v5174, 30.0
    %v5219 = vmin.f32 %v5177, 30.0
    %v5220 = vmin.f32 %v5182, 30.0
    %v5221 = vmin.f32 %v5185, 30.0
    %v5222 = vmin.f32 %v5190, 30.0
    %v5223 = vmin.f32 %v5193, 30.0
    %v5224 = vmin.f32 %v5198, 30.0
    %v5225 = vmin.f32 %v5201, 30.0
    %v5226 = vmin.f32 %v5206, 30.0
    %v5227 = vmin.f32 %v5209, 30.0
    %v5228 = vmul.f32 %v5212, 1.442695
    %v5229 = vpow.pop %v5228
    %v5230 = vmul.f32 %v5213, 1.442695
    %v5231 = vpow.pop %v5230
    %v5232 = vmul.f32 %v5214, 1.442695
    %v5233 = vpow.pop %v5232
    %v5234 = vmul.f32 %v5215, 1.442695
    %v5235 = vpow.pop %v5234
    %v5236 = vmul.f32 %v5216, 1.442695
    %v5237 = vpow.pop %v5236
    %v5238 = vmul.f32 %v5217, 1.442695
    %v5239 = vpow.pop %v5238
    %v5240 = vmul.f32 %v5218, 1.442695
    %v5241 = vpow.pop %v5240
    %v5242 = vmul.f32 %v5219, 1.442695
    %v5243 = vpow.pop %v5242
    %v5244 = vmul.f32 %v5220, 1.442695
    %v5245 = vpow.pop %v5244
    %v5246 = vmul.f32 %v5221, 1.442695
    %v5247 = vpow.pop %v5246
    %v5248 = vmul.f32 %v5222, 1.442695
    %v5249 = vpow.pop %v5248
    %v5250 = vmul.f32 %v5223, 1.442695
    %v5251 = vpow.pop %v5250
    %v5252 = vmul.f32 %v5224, 1.442695
    %v5253 = vpow.pop %v5252
    %v5254 = vmul.f32 %v5225, 1.442695
    %v5255 = vpow.pop %v5254
    %v5256 = vmul.f32 %v5226, 1.442695
    %v5257 = vpow.pop %v5256
    %v5258 = vmul.f32 %v5227, 1.442695
    %v5259 = vpow.pop %v5258
    %v5260 = vadd.f32 %v5229, 2.0
    %v5261 = vadd.f32 %v5231, 2.0
    %v5262 = vadd.f32 %v5233, 2.0
    %v5263 = vadd.f32 %v5235, 2.0
    %v5264 = vadd.f32 %v5237, 2.0
    %v5265 = vadd.f32 %v5239, 2.0
    %v5266 = vadd.f32 %v5241, 2.0
    %v5267 = vadd.f32 %v5243, 2.0
    %v5268 = vadd.f32 %v5245, 2.0
    %v5269 = vadd.f32 %v5247, 2.0
    %v5270 = vadd.f32 %v5249, 2.0
    %v5271 = vadd.f32 %v5251, 2.0
    %v5272 = vadd.f32 %v5253, 2.0
    %v5273 = vadd.f32 %v5255, 2.0
    %v5274 = vadd.f32 %v5257, 2.0
    %v5275 = vadd.f32 %v5259, 2.0
    %v5276 = vmul.f32 %v5229, %v5260
    %v5277 = vmul.f32 %v5231, %v5261
    %v5278 = vmul.f32 %v5233, %v5262
    %v5279 = vmul.f32 %v5235, %v5263
    %v5280 = vmul.f32 %v5237, %v5264
    %v5281 = vmul.f32 %v5239, %v5265
    %v5282 = vmul.f32 %v5241, %v5266
    %v5283 = vmul.f32 %v5243, %v5267
    %v5284 = vmul.f32 %v5245, %v5268
    %v5285 = vmul.f32 %v5247, %v5269
    %v5286 = vmul.f32 %v5249, %v5270
    %v5287 = vmul.f32 %v5251, %v5271
    %v5288 = vmul.f32 %v5253, %v5272
    %v5289 = vmul.f32 %v5255, %v5273
    %v5290 = vmul.f32 %v5257, %v5274
    %v5291 = vmul.f32 %v5259, %v5275
    %v5292 = vadd.f32 %v5276, 2.0
    %v5293 = vadd.f32 %v5277, 2.0
    %v5294 = vadd.f32 %v5278, 2.0
    %v5295 = vadd.f32 %v5279, 2.0
    %v5296 = vadd.f32 %v5280, 2.0
    %v5297 = vadd.f32 %v5281, 2.0
    %v5298 = vadd.f32 %v5282, 2.0
    %v5299 = vadd.f32 %v5283, 2.0
    %v5300 = vadd.f32 %v5284, 2.0
    %v5301 = vadd.f32 %v5285, 2.0
    %v5302 = vadd.f32 %v5286, 2.0
    %v5303 = vadd.f32 %v5287, 2.0
    %v5304 = vadd.f32 %v5288, 2.0
    %v5305 = vadd.f32 %v5289, 2.0
    %v5306 = vadd.f32 %v5290, 2.0
    %v5307 = vadd.f32 %v5291, 2.0
    %v5308 = vrcp.pop %v5292
    %v5309 = vrcp.pop %v5293
    %v5310 = vrcp.pop %v5294
    %v5311 = vrcp.pop %v5295
    %v5312 = vrcp.pop %v5296
    %v5313 = vrcp.pop %v5297
    %v5314 = vrcp.pop %v5298
    %v5315 = vrcp.pop %v5299
    %v5316 = vrcp.pop %v5300
    %v5317 = vrcp.pop %v5301
    %v5318 = vrcp.pop %v5302
    %v5319 = vrcp.pop %v5303
    %v5320 = vrcp.pop %v5304
    %v5321 = vrcp.pop %v5305
    %v5322 = vrcp.pop %v5306
    %v5323 = vrcp.pop %v5307
    %v5324 = vmul.f32 %v5276, %v5308
    %v5325 = vmul.f32 %v5277, %v5309
    %v5326 = vmul.f32 %v5278, %v5310
    %v5327 = vmul.f32 %v5279, %v5311
    %v5328 = vmul.f32 %v5280, %v5312
    %v5329 = vmul.f32 %v5281, %v5313
    %v5330 = vmul.f32 %v5282, %v5314
    %v5331 = vmul.f32 %v5283, %v5315
    %v5332 = vmul.f32 %v5284, %v5316
    %v5333 = vmul.f32 %v5285, %v5317
    %v5334 = vmul.f32 %v5286, %v5318
    %v5335 = vmul.f32 %v5287, %v5319
    %v5336 = vmul.f32 %v5288, %v5320
    %v5337 = vmul.f32 %v5289, %v5321
    %v5338 = vmul.f32 %v5290, %v5322
    %v5339 = vmul.f32 %v5291, %v5323
    %v5340 = vmul.f32 %v5150, %v5324
    %v5341 = vmul.f32 %v5153, %v5325
    %v5342 = vmul.f32 %v5158, %v5326
    %v5343 = vmul.f32 %v5161, %v5327
    %v5344 = vmul.f32 %v5166, %v5328
    %v5345 = vmul.f32 %v5169, %v5329
    %v5346 = vmul.f32 %v5174, %v5330
    %v5347 = vmul.f32 %v5177, %v5331
    %v5348 = vmul.f32 %v5182, %v5332
    %v5349 = vmul.f32 %v5185, %v5333
    %v5350 = vmul.f32 %v5190, %v5334
    %v5351 = vmul.f32 %v5193, %v5335
    %v5352 = vmul.f32 %v5198, %v5336
    %v5353 = vmul.f32 %v5201, %v5337
    %v5354 = vmul.f32 %v5206, %v5338
    %v5355 = vmul.f32 %v5209, %v5339
    %v5356 = vpack.c.bf16 %v5341, %v5340
    %v5357 = vpack.c.bf16 %v5343, %v5342
    %v5358 = vpack.c.bf16 %v5345, %v5344
    %v5359 = vpack.c.bf16 %v5347, %v5346
    %v5360 = vpack.c.bf16 %v5349, %v5348
    %v5361 = vpack.c.bf16 %v5351, %v5350
    %v5362 = vpack.c.bf16 %v5353, %v5352
    %v5363 = vpack.c.bf16 %v5355, %v5354
    %5364 = vst [vmem:[#allocation3 + $0x40] sm:$0xff] %v5356
    %5365 = vst [vmem:[#allocation3 + $0x48] sm:$0xff] %v5357
    %5366 = vst [vmem:[#allocation3 + $0x50] sm:$0xff] %v5358
    %5367 = vst [vmem:[#allocation3 + $0x58] sm:$0xff] %v5359
    %5368 = vst [vmem:[#allocation3 + $0x60] sm:$0xff] %v5360
    %5369 = vst [vmem:[#allocation3 + $0x68] sm:$0xff] %v5361
    %5370 = vst [vmem:[#allocation3 + $0x70] sm:$0xff] %v5362
    %5371 = vst [vmem:[#allocation3 + $0x78] sm:$0xff] %v5363
    %s5372 = scalar_lea.vmem %s2, 2
    %v5373 = vld [vmem:[%s5372] sm:$0x1]
    %v5374 = vld [vmem:[#allocation3] sm:$0xff]
    %v5375 = vld [vmem:[#allocation3 + $0x8] sm:$0xff]
    %v5376 = vld [vmem:[#allocation3 + $0x10] sm:$0xff]
    %v5377 = vld [vmem:[#allocation3 + $0x18] sm:$0xff]
    %s5378 = scalar_lea.vmem [#allocation7], 192
    %v5379 = vld [vmem:[%s5378] sm:$0xf]
    %v5380 = vld [vmem:[%s5378 + $0x4] sm:$0xf]
    %v5381 = vld [vmem:[%s5378 + $0x8] sm:$0xf]
    %v5382 = vld [vmem:[%s5378 + $0xc] sm:$0xf]
    %v5383 = vld [vmem:[%s5378 + $0x10] sm:$0xf]
    %v5384 = vld [vmem:[%s5378 + $0x14] sm:$0xf]
    %v5385 = vld [vmem:[%s5378 + $0x18] sm:$0xf]
    %v5386 = vld [vmem:[%s5378 + $0x1c] sm:$0xf]
    %v5387 = vld [vmem:[%s5378 + $0x20] sm:$0xf]
    %v5388 = vld [vmem:[%s5378 + $0x24] sm:$0xf]
    %v5389 = vld [vmem:[%s5378 + $0x28] sm:$0xf]
    %v5390 = vld [vmem:[%s5378 + $0x2c] sm:$0xf]
    %v5391 = vld [vmem:[%s5378 + $0x30] sm:$0xf]
    %v5392 = vld [vmem:[%s5378 + $0x34] sm:$0xf]
    %v5393 = vld [vmem:[%s5378 + $0x38] sm:$0xf]
    %v5394 = vld [vmem:[%s5378 + $0x3c] sm:$0xf]
    %v5395 = vld [vmem:[#allocation3 + $0x40] sm:$0xff]
    %v5396 = vld [vmem:[#allocation3 + $0x48] sm:$0xff]
    %v5397 = vld [vmem:[#allocation3 + $0x50] sm:$0xff]
    %v5398 = vld [vmem:[#allocation3 + $0x58] sm:$0xff]
    %s5399 = scalar_lea.vmem [#allocation7], 256
    %v5400 = vld [vmem:[%s5399] sm:$0xf]
    %v5401 = vld [vmem:[%s5399 + $0x4] sm:$0xf]
    %v5402 = vld [vmem:[%s5399 + $0x8] sm:$0xf]
    %v5403 = vld [vmem:[%s5399 + $0xc] sm:$0xf]
    %v5404 = vld [vmem:[%s5399 + $0x10] sm:$0xf]
    %v5405 = vld [vmem:[%s5399 + $0x14] sm:$0xf]
    %v5406 = vld [vmem:[%s5399 + $0x18] sm:$0xf]
    %v5407 = vld [vmem:[%s5399 + $0x1c] sm:$0xf]
    %v5408 = vld [vmem:[%s5399 + $0x20] sm:$0xf]
    %v5409 = vld [vmem:[%s5399 + $0x24] sm:$0xf]
    %v5410 = vld [vmem:[%s5399 + $0x28] sm:$0xf]
    %v5411 = vld [vmem:[%s5399 + $0x2c] sm:$0xf]
    %v5412 = vld [vmem:[%s5399 + $0x30] sm:$0xf]
    %v5413 = vld [vmem:[%s5399 + $0x34] sm:$0xf]
    %v5414 = vld [vmem:[%s5399 + $0x38] sm:$0xf]
    %v5415 = vld [vmem:[%s5399 + $0x3c] sm:$0xf]
    %v5432 = vunpack.c.l.b16 %v5400
    %v5433 = vunpack.c.l.b16 %v5401
    %v5434 = vunpack.c.l.b16 %v5402
    %v5435 = vunpack.c.l.b16 %v5403
    %v5436 = vunpack.c.l.b16 %v5404
    %v5437 = vunpack.c.l.b16 %v5405
    %v5438 = vunpack.c.l.b16 %v5406
    %v5439 = vunpack.c.l.b16 %v5407
    %v5440 = vunpack.c.l.b16 %v5408
    %v5441 = vunpack.c.l.b16 %v5409
    %v5442 = vunpack.c.l.b16 %v5410
    %v5443 = vunpack.c.l.b16 %v5411
    %v5444 = vunpack.c.l.b16 %v5412
    %v5445 = vunpack.c.l.b16 %v5413
    %v5446 = vunpack.c.l.b16 %v5414
    %v5447 = vunpack.c.l.b16 %v5415
    %v5448 = vpack.c.b16 %v5433, %v5432
    %v5449 = vpack.c.b16 %v5435, %v5434
    %v5450 = vpack.c.b16 %v5437, %v5436
    %v5451 = vpack.c.b16 %v5439, %v5438
    %v5452 = vpack.c.b16 %v5441, %v5440
    %v5453 = vpack.c.b16 %v5443, %v5442
    %v5454 = vpack.c.b16 %v5445, %v5444
    %v5455 = vpack.c.b16 %v5447, %v5446
    %5464 = vmatprep.subr.bf16.mxu0 0
    %5465 = vmatpush1.bf16.msra.mxu0 %v5448
    %5466 = vmatprep.subr.bf16.mxu0 0
    %5467 = vmatpush1.bf16.msra.mxu0 %v5449
    %5468 = vmatprep.subr.bf16.mxu0 0
    %5469 = vmatpush1.bf16.msra.mxu0 %v5450
    %5470 = vmatprep.subr.bf16.mxu0 0
    %5471 = vmatpush1.bf16.msra.mxu0 %v5451
    %5472 = vmatprep.subr.bf16.mxu0 0
    %5473 = vmatpush1.bf16.msra.mxu0 %v5452
    %5474 = vmatprep.subr.bf16.mxu0 0
    %5475 = vmatpush1.bf16.msra.mxu0 %v5453
    %5476 = vmatprep.subr.bf16.mxu0 0
    %5477 = vmatpush1.bf16.msra.mxu0 %v5454
    %5478 = vmatprep.subr.bf16.mxu0 0
    %5479 = vmatpush1.bf16.msra.mxu0 %v5455
    %5480 = vmatprep.subr.bf16.mxu0 0
    %5481 = vmatpush1.bf16.msra.mxu0 0
    %5482 = vmatprep.subr.bf16.mxu0 0
    %5483 = vmatpush1.bf16.msra.mxu0 0
    %5484 = vmatprep.subr.bf16.mxu0 0
    %5485 = vmatpush1.bf16.msra.mxu0 0
    %5486 = vmatprep.subr.bf16.mxu0 0
    %5487 = vmatpush1.bf16.msra.mxu0 0
    %5488 = vmatprep.subr.bf16.mxu0 0
    %5489 = vmatpush1.bf16.msra.mxu0 0
    %5490 = vmatprep.subr.bf16.mxu0 0
    %5491 = vmatpush1.bf16.msra.mxu0 0
    %5492 = vmatprep.subr.bf16.mxu0 0
    %5493 = vmatpush1.bf16.msra.mxu0 0
    %5494 = vmatprep.subr.bf16.mxu0 0
    %5495 = vmatpush1.bf16.msra.mxu0 0
    %5496 = vmatprep.mubr.bf16.mxu0 0
    %5497 = vmatmul.mubr.bf16.gmra.mrb[0].mxu0 %v5395
    %v5498 = vpop.f32.mrb[0].mxu0
    %v5499 = vadd.f32 0.0, %v5498
    %v5500 = vpop.f32.mrb[0].mxu0
    %v5501 = vpop.f32.mrb[0].mxu0
    %v5502 = vadd.f32 0.0, %v5501
    %v5503 = vpop.f32.mrb[0].mxu0
    %5504 = vmatprep.mubr.bf16.mxu0 0
    %5505 = vmatmul.mubr.bf16.gmra.mrb[0].mxu0 %v5396
    %v5506 = vpop.f32.mrb[0].mxu0
    %v5507 = vadd.f32 0.0, %v5506
    %v5508 = vpop.f32.mrb[0].mxu0
    %v5509 = vpop.f32.mrb[0].mxu0
    %v5510 = vadd.f32 0.0, %v5509
    %v5511 = vpop.f32.mrb[0].mxu0
    %5512 = vmatprep.mubr.bf16.mxu0 0
    %5513 = vmatmul.mubr.bf16.gmra.mrb[0].mxu0 %v5397
    %v5514 = vpop.f32.mrb[0].mxu0
    %v5515 = vadd.f32 0.0, %v5514
    %v5516 = vpop.f32.mrb[0].mxu0
    %v5517 = vpop.f32.mrb[0].mxu0
    %v5518 = vadd.f32 0.0, %v5517
    %v5519 = vpop.f32.mrb[0].mxu0
    %5520 = vmatprep.mubr.bf16.mxu0 0
    %5521 = vmatmul.mubr.bf16.gmra.mrb[0].mxu0 %v5398
    %v5522 = vpop.f32.mrb[0].mxu0
    %v5523 = vadd.f32 0.0, %v5522
    %v5524 = vpop.f32.mrb[0].mxu0
    %v5525 = vpop.f32.mrb[0].mxu0
    %v5526 = vadd.f32 0.0, %v5525
    %v5527 = vpop.f32.mrb[0].mxu0
    %5528 = vdwg.mxu0
    %v5545 = vunpack.c.l.b16 %v5379
    %v5546 = vunpack.c.l.b16 %v5380
    %v5547 = vunpack.c.l.b16 %v5381
    %v5548 = vunpack.c.l.b16 %v5382
    %v5549 = vunpack.c.l.b16 %v5383
    %v5550 = vunpack.c.l.b16 %v5384
    %v5551 = vunpack.c.l.b16 %v5385
    %v5552 = vunpack.c.l.b16 %v5386
    %v5553 = vunpack.c.l.b16 %v5387
    %v5554 = vunpack.c.l.b16 %v5388
    %v5555 = vunpack.c.l.b16 %v5389
    %v5556 = vunpack.c.l.b16 %v5390
    %v5557 = vunpack.c.l.b16 %v5391
    %v5558 = vunpack.c.l.b16 %v5392
    %v5559 = vunpack.c.l.b16 %v5393
    %v5560 = vunpack.c.l.b16 %v5394
    %v5561 = vpack.c.b16 %v5546, %v5545
    %v5562 = vpack.c.b16 %v5548, %v5547
    %v5563 = vpack.c.b16 %v5550, %v5549
    %v5564 = vpack.c.b16 %v5552, %v5551
    %v5565 = vpack.c.b16 %v5554, %v5553
    %v5566 = vpack.c.b16 %v5556, %v5555
    %v5567 = vpack.c.b16 %v5558, %v5557
    %v5568 = vpack.c.b16 %v5560, %v5559
    %5577 = vmatprep.subr.bf16.mxu0 0
    %5578 = vmatpush1.bf16.msra.mxu0 %v5561
    %5579 = vmatprep.subr.bf16.mxu0 0
    %5580 = vmatpush1.bf16.msra.mxu0 %v5562
    %5581 = vmatprep.subr.bf16.mxu0 0
    %5582 = vmatpush1.bf16.msra.mxu0 %v5563
    %5583 = vmatprep.subr.bf16.mxu0 0
    %5584 = vmatpush1.bf16.msra.mxu0 %v5564
    %5585 = vmatprep.subr.bf16.mxu0 0
    %5586 = vmatpush1.bf16.msra.mxu0 %v5565
    %5587 = vmatprep.subr.bf16.mxu0 0
    %5588 = vmatpush1.bf16.msra.mxu0 %v5566
    %5589 = vmatprep.subr.bf16.mxu0 0
    %5590 = vmatpush1.bf16.msra.mxu0 %v5567
    %5591 = vmatprep.subr.bf16.mxu0 0
    %5592 = vmatpush1.bf16.msra.mxu0 %v5568
    %5593 = vmatprep.subr.bf16.mxu0 0
    %5594 = vmatpush1.bf16.msra.mxu0 0
    %5595 = vmatprep.subr.bf16.mxu0 0
    %5596 = vmatpush1.bf16.msra.mxu0 0
    %5597 = vmatprep.subr.bf16.mxu0 0
    %5598 = vmatpush1.bf16.msra.mxu0 0
    %5599 = vmatprep.subr.bf16.mxu0 0
    %5600 = vmatpush1.bf16.msra.mxu0 0
    %5601 = vmatprep.subr.bf16.mxu0 0
    %5602 = vmatpush1.bf16.msra.mxu0 0
    %5603 = vmatprep.subr.bf16.mxu0 0
    %5604 = vmatpush1.bf16.msra.mxu0 0
    %5605 = vmatprep.subr.bf16.mxu0 0
    %5606 = vmatpush1.bf16.msra.mxu0 0
    %5607 = vmatprep.subr.bf16.mxu0 0
    %5608 = vmatpush1.bf16.msra.mxu0 0
    %5609 = vmatprep.mubr.bf16.mxu0 0
    %5610 = vmatmul.mubr.bf16.gmra.mrb[0].mxu0 %v5374
    %v5611 = vpop.f32.mrb[0].mxu0
    %v5612 = vadd.f32 %v5499, %v5611
    %v5613 = vpop.f32.mrb[0].mxu0
    %v5614 = vpop.f32.mrb[0].mxu0
    %v5615 = vadd.f32 %v5502, %v5614
    %v5616 = vpop.f32.mrb[0].mxu0
    %5617 = vmatprep.mubr.bf16.mxu0 0
    %5618 = vmatmul.mubr.bf16.gmra.mrb[0].mxu0 %v5375
    %v5619 = vpop.f32.mrb[0].mxu0
    %v5620 = vadd.f32 %v5507, %v5619
    %v5621 = vpop.f32.mrb[0].mxu0
    %v5622 = vpop.f32.mrb[0].mxu0
    %v5623 = vadd.f32 %v5510, %v5622
    %v5624 = vpop.f32.mrb[0].mxu0
    %5625 = vmatprep.mubr.bf16.mxu0 0
    %5626 = vmatmul.mubr.bf16.gmra.mrb[0].mxu0 %v5376
    %v5627 = vpop.f32.mrb[0].mxu0
    %v5628 = vadd.f32 %v5515, %v5627
    %v5629 = vpop.f32.mrb[0].mxu0
    %v5630 = vpop.f32.mrb[0].mxu0
    %v5631 = vadd.f32 %v5518, %v5630
    %v5632 = vpop.f32.mrb[0].mxu0
    %5633 = vmatprep.mubr.bf16.mxu0 0
    %5634 = vmatmul.mubr.bf16.gmra.mrb[0].mxu0 %v5377
    %v5635 = vpop.f32.mrb[0].mxu0
    %v5636 = vadd.f32 %v5523, %v5635
    %v5637 = vpop.f32.mrb[0].mxu0
    %v5638 = vpop.f32.mrb[0].mxu0
    %v5639 = vadd.f32 %v5526, %v5638
    %v5640 = vpop.f32.mrb[0].mxu0
    %5641 = vdwg.mxu0
    %v5642 = vld [vmem:[#allocation3 + $0x60] sm:$0xff]
    %v5643 = vld [vmem:[#allocation3 + $0x68] sm:$0xff]
    %v5644 = vld [vmem:[#allocation3 + $0x70] sm:$0xff]
    %v5645 = vld [vmem:[#allocation3 + $0x78] sm:$0xff]
    %s5646 = scalar_lea.vmem [#allocation7], 320
    %v5647 = vld [vmem:[%s5646] sm:$0xf]
    %v5648 = vld [vmem:[%s5646 + $0x4] sm:$0xf]
    %v5649 = vld [vmem:[%s5646 + $0x8] sm:$0xf]
    %v5650 = vld [vmem:[%s5646 + $0xc] sm:$0xf]
    %v5651 = vld [vmem:[%s5646 + $0x10] sm:$0xf]
    %v5652 = vld [vmem:[%s5646 + $0x14] sm:$0xf]
    %v5653 = vld [vmem:[%s5646 + $0x18] sm:$0xf]
    %v5654 = vld [vmem:[%s5646 + $0x1c] sm:$0xf]
    %v5655 = vld [vmem:[%s5646 + $0x20] sm:$0xf]
    %v5656 = vld [vmem:[%s5646 + $0x24] sm:$0xf]
    %v5657 = vld [vmem:[%s5646 + $0x28] sm:$0xf]
    %v5658 = vld [vmem:[%s5646 + $0x2c] sm:$0xf]
    %v5659 = vld [vmem:[%s5646 + $0x30] sm:$0xf]
    %v5660 = vld [vmem:[%s5646 + $0x34] sm:$0xf]
    %v5661 = vld [vmem:[%s5646 + $0x38] sm:$0xf]
    %v5662 = vld [vmem:[%s5646 + $0x3c] sm:$0xf]
    %v5679 = vunpack.c.l.b16 %v5647
    %v5680 = vunpack.c.l.b16 %v5648
    %v5681 = vunpack.c.l.b16 %v5649
    %v5682 = vunpack.c.l.b16 %v5650
    %v5683 = vunpack.c.l.b16 %v5651
    %v5684 = vunpack.c.l.b16 %v5652
    %v5685 = vunpack.c.l.b16 %v5653
    %v5686 = vunpack.c.l.b16 %v5654
    %v5687 = vunpack.c.l.b16 %v5655
    %v5688 = vunpack.c.l.b16 %v5656
    %v5689 = vunpack.c.l.b16 %v5657
    %v5690 = vunpack.c.l.b16 %v5658
    %v5691 = vunpack.c.l.b16 %v5659
    %v5692 = vunpack.c.l.b16 %v5660
    %v5693 = vunpack.c.l.b16 %v5661
    %v5694 = vunpack.c.l.b16 %v5662
    %v5695 = vpack.c.b16 %v5680, %v5679
    %v5696 = vpack.c.b16 %v5682, %v5681
    %v5697 = vpack.c.b16 %v5684, %v5683
    %v5698 = vpack.c.b16 %v5686, %v5685
    %v5699 = vpack.c.b16 %v5688, %v5687
    %v5700 = vpack.c.b16 %v5690, %v5689
    %v5701 = vpack.c.b16 %v5692, %v5691
    %v5702 = vpack.c.b16 %v5694, %v5693
    %5711 = vmatprep.subr.bf16.mxu0 0
    %5712 = vmatpush1.bf16.msra.mxu0 %v5695
    %5713 = vmatprep.subr.bf16.mxu0 0
    %5714 = vmatpush1.bf16.msra.mxu0 %v5696
    %5715 = vmatprep.subr.bf16.mxu0 0
    %5716 = vmatpush1.bf16.msra.mxu0 %v5697
    %5717 = vmatprep.subr.bf16.mxu0 0
    %5718 = vmatpush1.bf16.msra.mxu0 %v5698
    %5719 = vmatprep.subr.bf16.mxu0 0
    %5720 = vmatpush1.bf16.msra.mxu0 %v5699
    %5721 = vmatprep.subr.bf16.mxu0 0
    %5722 = vmatpush1.bf16.msra.mxu0 %v5700
    %5723 = vmatprep.subr.bf16.mxu0 0
    %5724 = vmatpush1.bf16.msra.mxu0 %v5701
    %5725 = vmatprep.subr.bf16.mxu0 0
    %5726 = vmatpush1.bf16.msra.mxu0 %v5702
    %5727 = vmatprep.subr.bf16.mxu0 0
    %5728 = vmatpush1.bf16.msra.mxu0 0
    %5729 = vmatprep.subr.bf16.mxu0 0
    %5730 = vmatpush1.bf16.msra.mxu0 0
    %5731 = vmatprep.subr.bf16.mxu0 0
    %5732 = vmatpush1.bf16.msra.mxu0 0
    %5733 = vmatprep.subr.bf16.mxu0 0
    %5734 = vmatpush1.bf16.msra.mxu0 0
    %5735 = vmatprep.subr.bf16.mxu0 0
    %5736 = vmatpush1.bf16.msra.mxu0 0
    %5737 = vmatprep.subr.bf16.mxu0 0
    %5738 = vmatpush1.bf16.msra.mxu0 0
    %5739 = vmatprep.subr.bf16.mxu0 0
    %5740 = vmatpush1.bf16.msra.mxu0 0
    %5741 = vmatprep.subr.bf16.mxu0 0
    %5742 = vmatpush1.bf16.msra.mxu0 0
    %5743 = vmatprep.mubr.bf16.mxu0 0
    %5744 = vmatmul.mubr.bf16.gmra.mrb[0].mxu0 %v5642
    %v5745 = vpop.f32.mrb[0].mxu0
    %v5746 = vadd.f32 0.0, %v5745
    %v5747 = vpop.f32.mrb[0].mxu0
    %v5748 = vpop.f32.mrb[0].mxu0
    %v5749 = vadd.f32 0.0, %v5748
    %v5750 = vpop.f32.mrb[0].mxu0
    %5751 = vmatprep.mubr.bf16.mxu0 0
    %5752 = vmatmul.mubr.bf16.gmra.mrb[0].mxu0 %v5643
    %v5753 = vpop.f32.mrb[0].mxu0
    %v5754 = vadd.f32 0.0, %v5753
    %v5755 = vpop.f32.mrb[0].mxu0
    %v5756 = vpop.f32.mrb[0].mxu0
    %v5757 = vadd.f32 0.0, %v5756
    %v5758 = vpop.f32.mrb[0].mxu0
    %5759 = vmatprep.mubr.bf16.mxu0 0
    %5760 = vmatmul.mubr.bf16.gmra.mrb[0].mxu0 %v5644
    %v5761 = vpop.f32.mrb[0].mxu0
    %v5762 = vadd.f32 0.0, %v5761
    %v5763 = vpop.f32.mrb[0].mxu0
    %v5764 = vpop.f32.mrb[0].mxu0
    %v5765 = vadd.f32 0.0, %v5764
    %v5766 = vpop.f32.mrb[0].mxu0
    %5767 = vmatprep.mubr.bf16.mxu0 0
    %5768 = vmatmul.mubr.bf16.gmra.mrb[0].mxu0 %v5645
    %v5769 = vpop.f32.mrb[0].mxu0
    %v5770 = vadd.f32 0.0, %v5769
    %v5771 = vpop.f32.mrb[0].mxu0
    %v5772 = vpop.f32.mrb[0].mxu0
    %v5773 = vadd.f32 0.0, %v5772
    %v5774 = vpop.f32.mrb[0].mxu0
    %5775 = vdwg.mxu0
    %v5776 = vadd.f32 %v5612, %v5746
    %v5777 = vadd.f32 %v5615, %v5749
    %v5778 = vadd.f32 %v5620, %v5754
    %v5779 = vadd.f32 %v5623, %v5757
    %v5780 = vadd.f32 %v5628, %v5762
    %v5781 = vadd.f32 %v5631, %v5765
    %v5782 = vadd.f32 %v5636, %v5770
    %v5783 = vadd.f32 %v5639, %v5773
    %v5785 = vlaneseq
    %v5786 = vshrl.u32 %v5785, 7
    %v5787 = vsub.s32 0, %v5786
    %v5788 = vrot.slane %v5373, %v5787
    %v5790 = vadd.f32 %v5776, %v5788
    %v5791 = vadd.f32 %v5777, %v5788
    %v5792 = vadd.f32 %v5778, %v5788
    %v5793 = vadd.f32 %v5779, %v5788
    %v5794 = vadd.f32 %v5780, %v5788
    %v5795 = vadd.f32 %v5781, %v5788
    %v5796 = vadd.f32 %v5782, %v5788
    %v5797 = vadd.f32 %v5783, %v5788
    %v5798 = vmin.f32 %v5790, 30.0
    %v5799 = vmin.f32 %v5791, 30.0
    %v5800 = vmin.f32 %v5792, 30.0
    %v5801 = vmin.f32 %v5793, 30.0
    %v5802 = vmin.f32 %v5794, 30.0
    %v5803 = vmin.f32 %v5795, 30.0
    %v5804 = vmin.f32 %v5796, 30.0
    %v5805 = vmin.f32 %v5797, 30.0
    %v5806 = vmul.f32 %v5798, 1.442695
    %v5807 = vpow.pop %v5806
    %v5808 = vmul.f32 %v5799, 1.442695
    %v5809 = vpow.pop %v5808
    %v5810 = vmul.f32 %v5800, 1.442695
    %v5811 = vpow.pop %v5810
    %v5812 = vmul.f32 %v5801, 1.442695
    %v5813 = vpow.pop %v5812
    %v5814 = vmul.f32 %v5802, 1.442695
    %v5815 = vpow.pop %v5814
    %v5816 = vmul.f32 %v5803, 1.442695
    %v5817 = vpow.pop %v5816
    %v5818 = vmul.f32 %v5804, 1.442695
    %v5819 = vpow.pop %v5818
    %v5820 = vmul.f32 %v5805, 1.442695
    %v5821 = vpow.pop %v5820
    %v5822 = vadd.f32 %v5807, 2.0
    %v5823 = vadd.f32 %v5809, 2.0
    %v5824 = vadd.f32 %v5811, 2.0
    %v5825 = vadd.f32 %v5813, 2.0
    %v5826 = vadd.f32 %v5815, 2.0
    %v5827 = vadd.f32 %v5817, 2.0
    %v5828 = vadd.f32 %v5819, 2.0
    %v5829 = vadd.f32 %v5821, 2.0
    %v5830 = vmul.f32 %v5807, %v5822
    %v5831 = vmul.f32 %v5809, %v5823
    %v5832 = vmul.f32 %v5811, %v5824
    %v5833 = vmul.f32 %v5813, %v5825
    %v5834 = vmul.f32 %v5815, %v5826
    %v5835 = vmul.f32 %v5817, %v5827
    %v5836 = vmul.f32 %v5819, %v5828
    %v5837 = vmul.f32 %v5821, %v5829
    %v5838 = vadd.f32 %v5830, 2.0
    %v5839 = vadd.f32 %v5831, 2.0
    %v5840 = vadd.f32 %v5832, 2.0
    %v5841 = vadd.f32 %v5833, 2.0
    %v5842 = vadd.f32 %v5834, 2.0
    %v5843 = vadd.f32 %v5835, 2.0
    %v5844 = vadd.f32 %v5836, 2.0
    %v5845 = vadd.f32 %v5837, 2.0
    %v5846 = vrcp.pop %v5838
    %v5847 = vrcp.pop %v5839
    %v5848 = vrcp.pop %v5840
    %v5849 = vrcp.pop %v5841
    %v5850 = vrcp.pop %v5842
    %v5851 = vrcp.pop %v5843
    %v5852 = vrcp.pop %v5844
    %v5853 = vrcp.pop %v5845
    %v5854 = vmul.f32 %v5830, %v5846
    %v5855 = vmul.f32 %v5831, %v5847
    %v5856 = vmul.f32 %v5832, %v5848
    %v5857 = vmul.f32 %v5833, %v5849
    %v5858 = vmul.f32 %v5834, %v5850
    %v5859 = vmul.f32 %v5835, %v5851
    %v5860 = vmul.f32 %v5836, %v5852
    %v5861 = vmul.f32 %v5837, %v5853
    %v5862 = vmul.f32 %v5790, %v5854
    %v5863 = vmul.f32 %v5791, %v5855
    %v5864 = vmul.f32 %v5792, %v5856
    %v5865 = vmul.f32 %v5793, %v5857
    %v5866 = vmul.f32 %v5794, %v5858
    %v5867 = vmul.f32 %v5795, %v5859
    %v5868 = vmul.f32 %v5796, %v5860
    %v5869 = vmul.f32 %v5797, %v5861
    %v5870 = vpack.c.bf16 %v5863, %v5862
    %v5871 = vpack.c.bf16 %v5865, %v5864
    %v5872 = vpack.c.bf16 %v5867, %v5866
    %v5873 = vpack.c.bf16 %v5869, %v5868
    %s5874 = scalar_lea.vmem [#allocation9], 128
    %v5875 = vld [vmem:[%s5874] sm:$0xf]
    %v5876 = vld [vmem:[%s5874 + $0x4] sm:$0xf]
    %v5877 = vld [vmem:[%s5874 + $0x8] sm:$0xf]
    %v5878 = vld [vmem:[%s5874 + $0xc] sm:$0xf]
    %v5879 = vld [vmem:[%s5874 + $0x10] sm:$0xf]
    %v5880 = vld [vmem:[%s5874 + $0x14] sm:$0xf]
    %v5881 = vld [vmem:[%s5874 + $0x18] sm:$0xf]
    %v5882 = vld [vmem:[%s5874 + $0x1c] sm:$0xf]
    %v5883 = vld [vmem:[%s5874 + $0x20] sm:$0xf]
    %v5884 = vld [vmem:[%s5874 + $0x24] sm:$0xf]
    %v5885 = vld [vmem:[%s5874 + $0x28] sm:$0xf]
    %v5886 = vld [vmem:[%s5874 + $0x2c] sm:$0xf]
    %v5887 = vld [vmem:[%s5874 + $0x30] sm:$0xf]
    %v5888 = vld [vmem:[%s5874 + $0x34] sm:$0xf]
    %v5889 = vld [vmem:[%s5874 + $0x38] sm:$0xf]
    %v5890 = vld [vmem:[%s5874 + $0x3c] sm:$0xf]
    %s5891 = scalar_lea.vmem %s5, 2
    %v5892 = vld [vmem:[%s5891] sm:$0x1]
    %v5894 = vlaneseq
    %v5895 = vshrl.u32 %v5894, 7
    %v5896 = vsub.s32 0, %v5895
    %v5897 = vrot.slane %v5892, %v5896
    %v5915 = vunpack.c.l.b16 %v5875
    %v5916 = vunpack.c.l.b16 %v5876
    %v5917 = vunpack.c.l.b16 %v5877
    %v5918 = vunpack.c.l.b16 %v5878
    %v5919 = vunpack.c.l.b16 %v5879
    %v5920 = vunpack.c.l.b16 %v5880
    %v5921 = vunpack.c.l.b16 %v5881
    %v5922 = vunpack.c.l.b16 %v5882
    %v5923 = vunpack.c.l.b16 %v5883
    %v5924 = vunpack.c.l.b16 %v5884
    %v5925 = vunpack.c.l.b16 %v5885
    %v5926 = vunpack.c.l.b16 %v5886
    %v5927 = vunpack.c.l.b16 %v5887
    %v5928 = vunpack.c.l.b16 %v5888
    %v5929 = vunpack.c.l.b16 %v5889
    %v5930 = vunpack.c.l.b16 %v5890
    %v5931 = vpack.c.b16 %v5916, %v5915
    %v5932 = vpack.c.b16 %v5918, %v5917
    %v5933 = vpack.c.b16 %v5920, %v5919
    %v5934 = vpack.c.b16 %v5922, %v5921
    %v5935 = vpack.c.b16 %v5924, %v5923
    %v5936 = vpack.c.b16 %v5926, %v5925
    %v5937 = vpack.c.b16 %v5928, %v5927
    %v5938 = vpack.c.b16 %v5930, %v5929
    %5947 = vmatprep.subr.bf16.mxu0 0
    %5948 = vmatpush1.bf16.msra.mxu0 %v5931
    %5949 = vmatprep.subr.bf16.mxu0 0
    %5950 = vmatpush1.bf16.msra.mxu0 %v5932
    %5951 = vmatprep.subr.bf16.mxu0 0
    %5952 = vmatpush1.bf16.msra.mxu0 %v5933
    %5953 = vmatprep.subr.bf16.mxu0 0
    %5954 = vmatpush1.bf16.msra.mxu0 %v5934
    %5955 = vmatprep.subr.bf16.mxu0 0
    %5956 = vmatpush1.bf16.msra.mxu0 %v5935
    %5957 = vmatprep.subr.bf16.mxu0 0
    %5958 = vmatpush1.bf16.msra.mxu0 %v5936
    %5959 = vmatprep.subr.bf16.mxu0 0
    %5960 = vmatpush1.bf16.msra.mxu0 %v5937
    %5961 = vmatprep.subr.bf16.mxu0 0
    %5962 = vmatpush1.bf16.msra.mxu0 %v5938
    %5963 = vmatprep.subr.bf16.mxu0 0
    %5964 = vmatpush1.bf16.msra.mxu0 0
    %5965 = vmatprep.subr.bf16.mxu0 0
    %5966 = vmatpush1.bf16.msra.mxu0 0
    %5967 = vmatprep.subr.bf16.mxu0 0
    %5968 = vmatpush1.bf16.msra.mxu0 0
    %5969 = vmatprep.subr.bf16.mxu0 0
    %5970 = vmatpush1.bf16.msra.mxu0 0
    %5971 = vmatprep.subr.bf16.mxu0 0
    %5972 = vmatpush1.bf16.msra.mxu0 0
    %5973 = vmatprep.subr.bf16.mxu0 0
    %5974 = vmatpush1.bf16.msra.mxu0 0
    %5975 = vmatprep.subr.bf16.mxu0 0
    %5976 = vmatpush1.bf16.msra.mxu0 0
    %5977 = vmatprep.subr.bf16.mxu0 0
    %5978 = vmatpush1.bf16.msra.mxu0 0
    %5979 = vmatprep.mubr.bf16.mxu0 0
    %5980 = vmatmul.mubr.bf16.gmra.mrb[0].mxu0 %v5870
    %v5981 = vpop.f32.mrb[0].mxu0
    %v5982 = vadd.f32 %v5897, %v5981
    %v5983 = vpop.f32.mrb[0].mxu0
    %v5984 = vpop.f32.mrb[0].mxu0
    %v5985 = vadd.f32 %v5897, %v5984
    %v5986 = vpop.f32.mrb[0].mxu0
    %5987 = vmatprep.mubr.bf16.mxu0 0
    %5988 = vmatmul.mubr.bf16.gmra.mrb[0].mxu0 %v5871
    %v5989 = vpop.f32.mrb[0].mxu0
    %v5990 = vadd.f32 %v5897, %v5989
    %v5991 = vpop.f32.mrb[0].mxu0
    %v5992 = vpop.f32.mrb[0].mxu0
    %v5993 = vadd.f32 %v5897, %v5992
    %v5994 = vpop.f32.mrb[0].mxu0
    %5995 = vmatprep.mubr.bf16.mxu0 0
    %5996 = vmatmul.mubr.bf16.gmra.mrb[0].mxu0 %v5872
    %v5997 = vpop.f32.mrb[0].mxu0
    %v5998 = vadd.f32 %v5897, %v5997
    %v5999 = vpop.f32.mrb[0].mxu0
    %v6000 = vpop.f32.mrb[0].mxu0
    %v6001 = vadd.f32 %v5897, %v6000
    %v6002 = vpop.f32.mrb[0].mxu0
    %6003 = vmatprep.mubr.bf16.mxu0 0
    %6004 = vmatmul.mubr.bf16.gmra.mrb[0].mxu0 %v5873
    %v6005 = vpop.f32.mrb[0].mxu0
    %v6006 = vadd.f32 %v5897, %v6005
    %v6007 = vpop.f32.mrb[0].mxu0
    %v6008 = vpop.f32.mrb[0].mxu0
    %v6009 = vadd.f32 %v5897, %v6008
    %v6010 = vpop.f32.mrb[0].mxu0
    %6011 = vdwg.mxu0
    %v6012 = vmin.f32 %v5982, 30.0
    %v6013 = vmin.f32 %v5985, 30.0
    %v6014 = vmin.f32 %v5990, 30.0
    %v6015 = vmin.f32 %v5993, 30.0
    %v6016 = vmin.f32 %v5998, 30.0
    %v6017 = vmin.f32 %v6001, 30.0
    %v6018 = vmin.f32 %v6006, 30.0
    %v6019 = vmin.f32 %v6009, 30.0
    %v6020 = vmul.f32 %v6012, 1.442695
    %v6021 = vpow.pop %v6020
    %v6022 = vmul.f32 %v6013, 1.442695
    %v6023 = vpow.pop %v6022
    %v6024 = vmul.f32 %v6014, 1.442695
    %v6025 = vpow.pop %v6024
    %v6026 = vmul.f32 %v6015, 1.442695
    %v6027 = vpow.pop %v6026
    %v6028 = vmul.f32 %v6016, 1.442695
    %v6029 = vpow.pop %v6028
    %v6030 = vmul.f32 %v6017, 1.442695
    %v6031 = vpow.pop %v6030
    %v6032 = vmul.f32 %v6018, 1.442695
    %v6033 = vpow.pop %v6032
    %v6034 = vmul.f32 %v6019, 1.442695
    %v6035 = vpow.pop %v6034
    %v6036 = vadd.f32 %v6021, 2.0
    %v6037 = vadd.f32 %v6023, 2.0
    %v6038 = vadd.f32 %v6025, 2.0
    %v6039 = vadd.f32 %v6027, 2.0
    %v6040 = vadd.f32 %v6029, 2.0
    %v6041 = vadd.f32 %v6031, 2.0
    %v6042 = vadd.f32 %v6033, 2.0
    %v6043 = vadd.f32 %v6035, 2.0
    %v6044 = vmul.f32 %v6021, %v6036
    %v6045 = vmul.f32 %v6023, %v6037
    %v6046 = vmul.f32 %v6025, %v6038
    %v6047 = vmul.f32 %v6027, %v6039
    %v6048 = vmul.f32 %v6029, %v6040
    %v6049 = vmul.f32 %v6031, %v6041
    %v6050 = vmul.f32 %v6033, %v6042
    %v6051 = vmul.f32 %v6035, %v6043
    %v6052 = vadd.f32 %v6044, 2.0
    %v6053 = vadd.f32 %v6045, 2.0
    %v6054 = vadd.f32 %v6046, 2.0
    %v6055 = vadd.f32 %v6047, 2.0
    %v6056 = vadd.f32 %v6048, 2.0
    %v6057 = vadd.f32 %v6049, 2.0
    %v6058 = vadd.f32 %v6050, 2.0
    %v6059 = vadd.f32 %v6051, 2.0
    %v6060 = vrcp.pop %v6052
    %v6061 = vrcp.pop %v6053
    %v6062 = vrcp.pop %v6054
    %v6063 = vrcp.pop %v6055
    %v6064 = vrcp.pop %v6056
    %v6065 = vrcp.pop %v6057
    %v6066 = vrcp.pop %v6058
    %v6067 = vrcp.pop %v6059
    %v6068 = vmul.f32 %v6044, %v6060
    %v6069 = vmul.f32 %v6045, %v6061
    %v6070 = vmul.f32 %v6046, %v6062
    %v6071 = vmul.f32 %v6047, %v6063
    %v6072 = vmul.f32 %v6048, %v6064
    %v6073 = vmul.f32 %v6049, %v6065
    %v6074 = vmul.f32 %v6050, %v6066
    %v6075 = vmul.f32 %v6051, %v6067
    %v6076 = vmul.f32 %v5982, %v6068
    %v6077 = vmul.f32 %v5985, %v6069
    %v6078 = vmul.f32 %v5990, %v6070
    %v6079 = vmul.f32 %v5993, %v6071
    %v6080 = vmul.f32 %v5998, %v6072
    %v6081 = vmul.f32 %v6001, %v6073
    %v6082 = vmul.f32 %v6006, %v6074
    %v6083 = vmul.f32 %v6009, %v6075
    %v6084 = vpack.c.bf16 %v6077, %v6076
    %v6085 = vpack.c.bf16 %v6079, %v6078
    %v6086 = vpack.c.bf16 %v6081, %v6080
    %v6087 = vpack.c.bf16 %v6083, %v6082
    %s6088 = scalar_lea.vmem [#allocation9], 192
    %v6089 = vld [vmem:[%s6088] sm:$0xf]
    %v6090 = vld [vmem:[%s6088 + $0x4] sm:$0xf]
    %v6091 = vld [vmem:[%s6088 + $0x8] sm:$0xf]
    %v6092 = vld [vmem:[%s6088 + $0xc] sm:$0xf]
    %v6093 = vld [vmem:[%s6088 + $0x10] sm:$0xf]
    %v6094 = vld [vmem:[%s6088 + $0x14] sm:$0xf]
    %v6095 = vld [vmem:[%s6088 + $0x18] sm:$0xf]
    %v6096 = vld [vmem:[%s6088 + $0x1c] sm:$0xf]
    %v6097 = vld [vmem:[%s6088 + $0x20] sm:$0xf]
    %v6098 = vld [vmem:[%s6088 + $0x24] sm:$0xf]
    %v6099 = vld [vmem:[%s6088 + $0x28] sm:$0xf]
    %v6100 = vld [vmem:[%s6088 + $0x2c] sm:$0xf]
    %v6101 = vld [vmem:[%s6088 + $0x30] sm:$0xf]
    %v6102 = vld [vmem:[%s6088 + $0x34] sm:$0xf]
    %v6103 = vld [vmem:[%s6088 + $0x38] sm:$0xf]
    %v6104 = vld [vmem:[%s6088 + $0x3c] sm:$0xf]
    %s6105 = scalar_lea.vmem %s5, 3
    %v6106 = vld [vmem:[%s6105] sm:$0x1]
    %v6108 = vlaneseq
    %v6109 = vshrl.u32 %v6108, 7
    %v6110 = vsub.s32 0, %v6109
    %v6111 = vrot.slane %v6106, %v6110
    %v6129 = vunpack.c.l.b16 %v6089
    %v6130 = vunpack.c.l.b16 %v6090
    %v6131 = vunpack.c.l.b16 %v6091
    %v6132 = vunpack.c.l.b16 %v6092
    %v6133 = vunpack.c.l.b16 %v6093
    %v6134 = vunpack.c.l.b16 %v6094
    %v6135 = vunpack.c.l.b16 %v6095
    %v6136 = vunpack.c.l.b16 %v6096
    %v6137 = vunpack.c.l.b16 %v6097
    %v6138 = vunpack.c.l.b16 %v6098
    %v6139 = vunpack.c.l.b16 %v6099
    %v6140 = vunpack.c.l.b16 %v6100
    %v6141 = vunpack.c.l.b16 %v6101
    %v6142 = vunpack.c.l.b16 %v6102
    %v6143 = vunpack.c.l.b16 %v6103
    %v6144 = vunpack.c.l.b16 %v6104
    %v6145 = vpack.c.b16 %v6130, %v6129
    %v6146 = vpack.c.b16 %v6132, %v6131
    %v6147 = vpack.c.b16 %v6134, %v6133
    %v6148 = vpack.c.b16 %v6136, %v6135
    %v6149 = vpack.c.b16 %v6138, %v6137
    %v6150 = vpack.c.b16 %v6140, %v6139
    %v6151 = vpack.c.b16 %v6142, %v6141
    %v6152 = vpack.c.b16 %v6144, %v6143
    %6161 = vmatprep.subr.bf16.mxu0 0
    %6162 = vmatpush1.bf16.msra.mxu0 %v6145
    %6163 = vmatprep.subr.bf16.mxu0 0
    %6164 = vmatpush1.bf16.msra.mxu0 %v6146
    %6165 = vmatprep.subr.bf16.mxu0 0
    %6166 = vmatpush1.bf16.msra.mxu0 %v6147
    %6167 = vmatprep.subr.bf16.mxu0 0
    %6168 = vmatpush1.bf16.msra.mxu0 %v6148
    %6169 = vmatprep.subr.bf16.mxu0 0
    %6170 = vmatpush1.bf16.msra.mxu0 %v6149
    %6171 = vmatprep.subr.bf16.mxu0 0
    %6172 = vmatpush1.bf16.msra.mxu0 %v6150
    %6173 = vmatprep.subr.bf16.mxu0 0
    %6174 = vmatpush1.bf16.msra.mxu0 %v6151
    %6175 = vmatprep.subr.bf16.mxu0 0
    %6176 = vmatpush1.bf16.msra.mxu0 %v6152
    %6177 = vmatprep.subr.bf16.mxu0 0
    %6178 = vmatpush1.bf16.msra.mxu0 0
    %6179 = vmatprep.subr.bf16.mxu0 0
    %6180 = vmatpush1.bf16.msra.mxu0 0
    %6181 = vmatprep.subr.bf16.mxu0 0
    %6182 = vmatpush1.bf16.msra.mxu0 0
    %6183 = vmatprep.subr.bf16.mxu0 0
    %6184 = vmatpush1.bf16.msra.mxu0 0
    %6185 = vmatprep.subr.bf16.mxu0 0
    %6186 = vmatpush1.bf16.msra.mxu0 0
    %6187 = vmatprep.subr.bf16.mxu0 0
    %6188 = vmatpush1.bf16.msra.mxu0 0
    %6189 = vmatprep.subr.bf16.mxu0 0
    %6190 = vmatpush1.bf16.msra.mxu0 0
    %6191 = vmatprep.subr.bf16.mxu0 0
    %6192 = vmatpush1.bf16.msra.mxu0 0
    %6193 = vmatprep.mubr.bf16.mxu0 0
    %6194 = vmatmul.mubr.bf16.gmra.mrb[0].mxu0 %v6084
    %v6195 = vpop.f32.mrb[0].mxu0
    %v6196 = vadd.f32 %v6111, %v6195
    %v6197 = vpop.f32.mrb[0].mxu0
    %v6198 = vpop.f32.mrb[0].mxu0
    %v6199 = vadd.f32 %v6111, %v6198
    %v6200 = vpop.f32.mrb[0].mxu0
    %6201 = vmatprep.mubr.bf16.mxu0 0
    %6202 = vmatmul.mubr.bf16.gmra.mrb[0].mxu0 %v6085
    %v6203 = vpop.f32.mrb[0].mxu0
    %v6204 = vadd.f32 %v6111, %v6203
    %v6205 = vpop.f32.mrb[0].mxu0
    %v6206 = vpop.f32.mrb[0].mxu0
    %v6207 = vadd.f32 %v6111, %v6206
    %v6208 = vpop.f32.mrb[0].mxu0
    %6209 = vmatprep.mubr.bf16.mxu0 0
    %6210 = vmatmul.mubr.bf16.gmra.mrb[0].mxu0 %v6086
    %v6211 = vpop.f32.mrb[0].mxu0
    %v6212 = vadd.f32 %v6111, %v6211
    %v6213 = vpop.f32.mrb[0].mxu0
    %v6214 = vpop.f32.mrb[0].mxu0
    %v6215 = vadd.f32 %v6111, %v6214
    %v6216 = vpop.f32.mrb[0].mxu0
    %6217 = vmatprep.mubr.bf16.mxu0 0
    %6218 = vmatmul.mubr.bf16.gmra.mrb[0].mxu0 %v6087
    %v6219 = vpop.f32.mrb[0].mxu0
    %v6220 = vadd.f32 %v6111, %v6219
    %v6221 = vpop.f32.mrb[0].mxu0
    %v6222 = vpop.f32.mrb[0].mxu0
    %v6223 = vadd.f32 %v6111, %v6222
    %v6224 = vpop.f32.mrb[0].mxu0
    %6225 = vdwg.mxu0
    %v6226 = vmax.f32 %v6196, -1.0
    %v6227 = vmax.f32 %v6199, -1.0
    %v6228 = vmax.f32 %v6204, -1.0
    %v6229 = vmax.f32 %v6207, -1.0
    %v6230 = vmax.f32 %v6212, -1.0
    %v6231 = vmax.f32 %v6215, -1.0
    %v6232 = vmax.f32 %v6220, -1.0
    %v6233 = vmax.f32 %v6223, -1.0
    %v6234 = vmin.f32 %v6226, 0.9921875
    %v6235 = vmin.f32 %v6227, 0.9921875
    %v6236 = vmin.f32 %v6228, 0.9921875
    %v6237 = vmin.f32 %v6229, 0.9921875
    %v6238 = vmin.f32 %v6230, 0.9921875
    %v6239 = vmin.f32 %v6231, 0.9921875
    %v6240 = vmin.f32 %v6232, 0.9921875
    %v6241 = vmin.f32 %v6233, 0.9921875
    %v6242 = vmul.f32 %v6234, 128.0
    %v6243 = vmul.f32 %v6235, 128.0
    %v6244 = vmul.f32 %v6236, 128.0
    %v6245 = vmul.f32 %v6237, 128.0
    %v6246 = vmul.f32 %v6238, 128.0
    %v6247 = vmul.f32 %v6239, 128.0
    %v6248 = vmul.f32 %v6240, 128.0
    %v6249 = vmul.f32 %v6241, 128.0
    %v6250 = vround.ne.pseudo %v6242
    %v6251 = vround.ne.pseudo %v6243
    %v6252 = vround.ne.pseudo %v6244
    %v6253 = vround.ne.pseudo %v6245
    %v6254 = vround.ne.pseudo %v6246
    %v6255 = vround.ne.pseudo %v6247
    %v6256 = vround.ne.pseudo %v6248
    %v6257 = vround.ne.pseudo %v6249
    %v6258 = vmul.f32 %v6250, 0.0078125
    %v6259 = vmul.f32 %v6251, 0.0078125
    %v6260 = vmul.f32 %v6252, 0.0078125
    %v6261 = vmul.f32 %v6253, 0.0078125
    %v6262 = vmul.f32 %v6254, 0.0078125
    %v6263 = vmul.f32 %v6255, 0.0078125
    %v6264 = vmul.f32 %v6256, 0.0078125
    %v6265 = vmul.f32 %v6257, 0.0078125
    %v6266 = vadd.f32 %v6258, %v6259
    %v6267 = vadd.f32 %v6266, %v6260
    %v6268 = vadd.f32 %v6267, %v6261
    %v6269 = vadd.f32 %v6268, %v6262
    %v6270 = vadd.f32 %v6269, %v6263
    %v6271 = vadd.f32 %v6270, %v6264
    %v6272 = vadd.f32 %v6271, %v6265
    %v6273 = vld [vmem:[#allocation10] sm:$0xff]
    %v6274 = vld [vmem:[#allocation10 + $0x8] sm:$0xff]
    %v6275 = vld [vmem:[#allocation10 + $0x10] sm:$0xff]
    %v6276 = vld [vmem:[#allocation10 + $0x18] sm:$0xff]
    %v6277 = vld [vmem:[#allocation10 + $0x20] sm:$0xff]
    %v6278 = vld [vmem:[#allocation10 + $0x28] sm:$0xff]
    %v6279 = vld [vmem:[#allocation10 + $0x30] sm:$0xff]
    %v6280 = vld [vmem:[#allocation10 + $0x38] sm:$0xff]
    %v6281 = vld [vmem:[#allocation10 + $0x40] sm:$0xff]
    %v6282 = vld [vmem:[#allocation10 + $0x48] sm:$0xff]
    %v6283 = vld [vmem:[#allocation10 + $0x50] sm:$0xff]
    %v6284 = vld [vmem:[#allocation10 + $0x58] sm:$0xff]
    %v6285 = vld [vmem:[#allocation10 + $0x60] sm:$0xff]
    %v6286 = vld [vmem:[#allocation10 + $0x68] sm:$0xff]
    %v6287 = vld [vmem:[#allocation10 + $0x70] sm:$0xff]
    %v6288 = vld [vmem:[#allocation10 + $0x78] sm:$0xff]
    %v6289 = vld [vmem:[%s7] sm:$0x1]
    %v6291 = vlaneseq
    %v6292 = vshrl.u32 %v6291, 7
    %v6293 = vsub.s32 0, %v6292
    %v6294 = vrot.slane %v6289, %v6293
    %6296 = vmatprep.subr.mxu0 0.0
    %6297 = vmatpush1.msra.mxu0 %v6273
    %6298 = vmatprep.subr.mxu0 0.0
    %6299 = vmatpush1.msra.mxu0 %v6274
    %6300 = vmatprep.subr.mxu0 0.0
    %6301 = vmatpush1.msra.mxu0 %v6275
    %6302 = vmatprep.subr.mxu0 0.0
    %6303 = vmatpush1.msra.mxu0 %v6276
    %6304 = vmatprep.subr.mxu0 0.0
    %6305 = vmatpush1.msra.mxu0 %v6277
    %6306 = vmatprep.subr.mxu0 0.0
    %6307 = vmatpush1.msra.mxu0 %v6278
    %6308 = vmatprep.subr.mxu0 0.0
    %6309 = vmatpush1.msra.mxu0 %v6279
    %6310 = vmatprep.subr.mxu0 0.0
    %6311 = vmatpush1.msra.mxu0 %v6280
    %6312 = vmatprep.subr.mxu0 0.0
    %6313 = vmatpush1.msra.mxu0 %v6281
    %6314 = vmatprep.subr.mxu0 0.0
    %6315 = vmatpush1.msra.mxu0 %v6282
    %6316 = vmatprep.subr.mxu0 0.0
    %6317 = vmatpush1.msra.mxu0 %v6283
    %6318 = vmatprep.subr.mxu0 0.0
    %6319 = vmatpush1.msra.mxu0 %v6284
    %6320 = vmatprep.subr.mxu0 0.0
    %6321 = vmatpush1.msra.mxu0 %v6285
    %6322 = vmatprep.subr.mxu0 0.0
    %6323 = vmatpush1.msra.mxu0 %v6286
    %6324 = vmatprep.subr.mxu0 0.0
    %6325 = vmatpush1.msra.mxu0 %v6287
    %6326 = vmatprep.subr.mxu0 0.0
    %6327 = vmatpush1.msra.mxu0 %v6288
    %6328 = vmatprep.subr.mxu0 0.0
    %6329 = vmatpush1.msra.mxu0 0.0
    %6330 = vmatprep.subr.mxu0 0.0
    %6331 = vmatpush1.msra.mxu0 0.0
    %6332 = vmatprep.subr.mxu0 0.0
    %6333 = vmatpush1.msra.mxu0 0.0
    %6334 = vmatprep.subr.mxu0 0.0
    %6335 = vmatpush1.msra.mxu0 0.0
    %6336 = vmatprep.subr.mxu0 0.0
    %6337 = vmatpush1.msra.mxu0 0.0
    %6338 = vmatprep.subr.mxu0 0.0
    %6339 = vmatpush1.msra.mxu0 0.0
    %6340 = vmatprep.subr.mxu0 0.0
    %6341 = vmatpush1.msra.mxu0 0.0
    %6342 = vmatprep.subr.mxu0 0.0
    %6343 = vmatpush1.msra.mxu0 0.0
    %6344 = vmatprep.subr.mxu0 0.0
    %6345 = vmatpush1.msra.mxu0 0.0
    %6346 = vmatprep.subr.mxu0 0.0
    %6347 = vmatpush1.msra.mxu0 0.0
    %6348 = vmatprep.subr.mxu0 0.0
    %6349 = vmatpush1.msra.mxu0 0.0
    %6350 = vmatprep.subr.mxu0 0.0
    %6351 = vmatpush1.msra.mxu0 0.0
    %6352 = vmatprep.subr.mxu0 0.0
    %6353 = vmatpush1.msra.mxu0 0.0
    %6354 = vmatprep.subr.mxu0 0.0
    %6355 = vmatpush1.msra.mxu0 0.0
    %6356 = vmatprep.subr.mxu0 0.0
    %6357 = vmatpush1.msra.mxu0 0.0
    %6358 = vmatprep.subr.mxu0 0.0
    %6359 = vmatpush1.msra.mxu0 0.0
    %6360 = vmatprep.mubr.f32.mxu0 0.0
    %6361 = vmatmul.mubr.f32.gmra.mrb[0].mxu0 %v6272
    %v6362 = vpop.f32.mrb[0].mxu0
    %v6363 = vadd.f32 %v6294, %v6362
    %v6364 = vpop.f32.mrb[0].mxu0
    %6365 = vdwg.mxu0
    %v6366 = vmax.f32 %v6363, 0.0
    %s6367 = scalar_lea.vmem [#allocation10], 128
    %v6368 = vld [vmem:[%s6367] sm:$0xff]
    %v6369 = vld [vmem:[%s6367 + $0x8] sm:$0xff]
    %v6370 = vld [vmem:[%s6367 + $0x10] sm:$0xff]
    %v6371 = vld [vmem:[%s6367 + $0x18] sm:$0xff]
    %v6372 = vld [vmem:[%s6367 + $0x20] sm:$0xff]
    %v6373 = vld [vmem:[%s6367 + $0x28] sm:$0xff]
    %v6374 = vld [vmem:[%s6367 + $0x30] sm:$0xff]
    %v6375 = vld [vmem:[%s6367 + $0x38] sm:$0xff]
    %v6376 = vld [vmem:[%s6367 + $0x40] sm:$0xff]
    %v6377 = vld [vmem:[%s6367 + $0x48] sm:$0xff]
    %v6378 = vld [vmem:[%s6367 + $0x50] sm:$0xff]
    %v6379 = vld [vmem:[%s6367 + $0x58] sm:$0xff]
    %v6380 = vld [vmem:[%s6367 + $0x60] sm:$0xff]
    %v6381 = vld [vmem:[%s6367 + $0x68] sm:$0xff]
    %v6382 = vld [vmem:[%s6367 + $0x70] sm:$0xff]
    %v6383 = vld [vmem:[%s6367 + $0x78] sm:$0xff]
    %s6384 = scalar_lea.vmem %s7, 1
    %v6385 = vld [vmem:[%s6384] sm:$0x1]
    %v6387 = vlaneseq
    %v6388 = vshrl.u32 %v6387, 7
    %v6389 = vsub.s32 0, %v6388
    %v6390 = vrot.slane %v6385, %v6389
    %6392 = vmatprep.subr.mxu0 0.0
    %6393 = vmatpush1.msra.mxu0 %v6368
    %6394 = vmatprep.subr.mxu0 0.0
    %6395 = vmatpush1.msra.mxu0 %v6369
    %6396 = vmatprep.subr.mxu0 0.0
    %6397 = vmatpush1.msra.mxu0 %v6370
    %6398 = vmatprep.subr.mxu0 0.0
    %6399 = vmatpush1.msra.mxu0 %v6371
    %6400 = vmatprep.subr.mxu0 0.0
    %6401 = vmatpush1.msra.mxu0 %v6372
    %6402 = vmatprep.subr.mxu0 0.0
    %6403 = vmatpush1.msra.mxu0 %v6373
    %6404 = vmatprep.subr.mxu0 0.0
    %6405 = vmatpush1.msra.mxu0 %v6374
    %6406 = vmatprep.subr.mxu0 0.0
    %6407 = vmatpush1.msra.mxu0 %v6375
    %6408 = vmatprep.subr.mxu0 0.0
    %6409 = vmatpush1.msra.mxu0 %v6376
    %6410 = vmatprep.subr.mxu0 0.0
    %6411 = vmatpush1.msra.mxu0 %v6377
    %6412 = vmatprep.subr.mxu0 0.0
    %6413 = vmatpush1.msra.mxu0 %v6378
    %6414 = vmatprep.subr.mxu0 0.0
    %6415 = vmatpush1.msra.mxu0 %v6379
    %6416 = vmatprep.subr.mxu0 0.0
    %6417 = vmatpush1.msra.mxu0 %v6380
    %6418 = vmatprep.subr.mxu0 0.0
    %6419 = vmatpush1.msra.mxu0 %v6381
    %6420 = vmatprep.subr.mxu0 0.0
    %6421 = vmatpush1.msra.mxu0 %v6382
    %6422 = vmatprep.subr.mxu0 0.0
    %6423 = vmatpush1.msra.mxu0 %v6383
    %6424 = vmatprep.subr.mxu0 0.0
    %6425 = vmatpush1.msra.mxu0 0.0
    %6426 = vmatprep.subr.mxu0 0.0
    %6427 = vmatpush1.msra.mxu0 0.0
    %6428 = vmatprep.subr.mxu0 0.0
    %6429 = vmatpush1.msra.mxu0 0.0
    %6430 = vmatprep.subr.mxu0 0.0
    %6431 = vmatpush1.msra.mxu0 0.0
    %6432 = vmatprep.subr.mxu0 0.0
    %6433 = vmatpush1.msra.mxu0 0.0
    %6434 = vmatprep.subr.mxu0 0.0
    %6435 = vmatpush1.msra.mxu0 0.0
    %6436 = vmatprep.subr.mxu0 0.0
    %6437 = vmatpush1.msra.mxu0 0.0
    %6438 = vmatprep.subr.mxu0 0.0
    %6439 = vmatpush1.msra.mxu0 0.0
    %6440 = vmatprep.subr.mxu0 0.0
    %6441 = vmatpush1.msra.mxu0 0.0
    %6442 = vmatprep.subr.mxu0 0.0
    %6443 = vmatpush1.msra.mxu0 0.0
    %6444 = vmatprep.subr.mxu0 0.0
    %6445 = vmatpush1.msra.mxu0 0.0
    %6446 = vmatprep.subr.mxu0 0.0
    %6447 = vmatpush1.msra.mxu0 0.0
    %6448 = vmatprep.subr.mxu0 0.0
    %6449 = vmatpush1.msra.mxu0 0.0
    %6450 = vmatprep.subr.mxu0 0.0
    %6451 = vmatpush1.msra.mxu0 0.0
    %6452 = vmatprep.subr.mxu0 0.0
    %6453 = vmatpush1.msra.mxu0 0.0
    %6454 = vmatprep.subr.mxu0 0.0
    %6455 = vmatpush1.msra.mxu0 0.0
    %6456 = vmatprep.mubr.f32.mxu0 0.0
    %6457 = vmatmul.mubr.f32.gmra.mrb[0].mxu0 %v6366
    %v6458 = vpop.f32.mrb[0].mxu0
    %v6459 = vadd.f32 %v6390, %v6458
    %v6460 = vpop.f32.mrb[0].mxu0
    %6461 = vdwg.mxu0
    %s6462 = scalar_lea.vmem [#allocation10], 256
    %v6463 = vld [vmem:[%s6462] sm:$0xff]
    %v6464 = vld [vmem:[%s6462 + $0x8] sm:$0xff]
    %v6465 = vld [vmem:[%s6462 + $0x10] sm:$0xff]
    %v6466 = vld [vmem:[%s6462 + $0x18] sm:$0xff]
    %v6467 = vld [vmem:[%s6462 + $0x20] sm:$0xff]
    %v6468 = vld [vmem:[%s6462 + $0x28] sm:$0xff]
    %v6469 = vld [vmem:[%s6462 + $0x30] sm:$0xff]
    %v6470 = vld [vmem:[%s6462 + $0x38] sm:$0xff]
    %v6471 = vld [vmem:[%s6462 + $0x40] sm:$0xff]
    %v6472 = vld [vmem:[%s6462 + $0x48] sm:$0xff]
    %v6473 = vld [vmem:[%s6462 + $0x50] sm:$0xff]
    %v6474 = vld [vmem:[%s6462 + $0x58] sm:$0xff]
    %v6475 = vld [vmem:[%s6462 + $0x60] sm:$0xff]
    %v6476 = vld [vmem:[%s6462 + $0x68] sm:$0xff]
    %v6477 = vld [vmem:[%s6462 + $0x70] sm:$0xff]
    %v6478 = vld [vmem:[%s6462 + $0x78] sm:$0xff]
    %v6479 = vmax.f32 %v6272, 0.0
    %v6480 = vmin.f32 %v6479, 0.9921875
    %v6481 = vld [vmem:[#allocation12] sm:$0xff]
    %v6482 = vld [vmem:[#allocation12 + $0x8] sm:$0xff]
    %v6483 = vld [vmem:[#allocation12 + $0x10] sm:$0xff]
    %v6484 = vld [vmem:[#allocation12 + $0x18] sm:$0xff]
    %v6485 = vld [vmem:[#allocation12 + $0x20] sm:$0xff]
    %v6486 = vld [vmem:[#allocation12 + $0x28] sm:$0xff]
    %v6487 = vld [vmem:[#allocation12 + $0x30] sm:$0xff]
    %v6488 = vld [vmem:[#allocation12 + $0x38] sm:$0xff]
    %v6489 = vld [vmem:[#allocation12 + $0x40] sm:$0xff]
    %v6490 = vld [vmem:[#allocation12 + $0x48] sm:$0xff]
    %v6491 = vld [vmem:[#allocation12 + $0x50] sm:$0xff]
    %v6492 = vld [vmem:[#allocation12 + $0x58] sm:$0xff]
    %v6493 = vld [vmem:[#allocation12 + $0x60] sm:$0xff]
    %v6494 = vld [vmem:[#allocation12 + $0x68] sm:$0xff]
    %v6495 = vld [vmem:[#allocation12 + $0x70] sm:$0xff]
    %v6496 = vld [vmem:[#allocation12 + $0x78] sm:$0xff]
    %v6497 = vld [vmem:[%s9] sm:$0x1]
    %v6499 = vlaneseq
    %v6500 = vshrl.u32 %v6499, 7
    %v6501 = vsub.s32 0, %v6500
    %v6502 = vrot.slane %v6497, %v6501
    %6504 = vmatprep.subr.mxu0 0.0
    %6505 = vmatpush1.msra.mxu0 %v6481
    %6506 = vmatprep.subr.mxu0 0.0
    %6507 = vmatpush1.msra.mxu0 %v6482
    %6508 = vmatprep.subr.mxu0 0.0
    %6509 = vmatpush1.msra.mxu0 %v6483
    %6510 = vmatprep.subr.mxu0 0.0
    %6511 = vmatpush1.msra.mxu0 %v6484
    %6512 = vmatprep.subr.mxu0 0.0
    %6513 = vmatpush1.msra.mxu0 %v6485
    %6514 = vmatprep.subr.mxu0 0.0
    %6515 = vmatpush1.msra.mxu0 %v6486
    %6516 = vmatprep.subr.mxu0 0.0
    %6517 = vmatpush1.msra.mxu0 %v6487
    %6518 = vmatprep.subr.mxu0 0.0
    %6519 = vmatpush1.msra.mxu0 %v6488
    %6520 = vmatprep.subr.mxu0 0.0
    %6521 = vmatpush1.msra.mxu0 %v6489
    %6522 = vmatprep.subr.mxu0 0.0
    %6523 = vmatpush1.msra.mxu0 %v6490
    %6524 = vmatprep.subr.mxu0 0.0
    %6525 = vmatpush1.msra.mxu0 %v6491
    %6526 = vmatprep.subr.mxu0 0.0
    %6527 = vmatpush1.msra.mxu0 %v6492
    %6528 = vmatprep.subr.mxu0 0.0
    %6529 = vmatpush1.msra.mxu0 %v6493
    %6530 = vmatprep.subr.mxu0 0.0
    %6531 = vmatpush1.msra.mxu0 %v6494
    %6532 = vmatprep.subr.mxu0 0.0
    %6533 = vmatpush1.msra.mxu0 %v6495
    %6534 = vmatprep.subr.mxu0 0.0
    %6535 = vmatpush1.msra.mxu0 %v6496
    %6536 = vmatprep.subr.mxu0 0.0
    %6537 = vmatpush1.msra.mxu0 0.0
    %6538 = vmatprep.subr.mxu0 0.0
    %6539 = vmatpush1.msra.mxu0 0.0
    %6540 = vmatprep.subr.mxu0 0.0
    %6541 = vmatpush1.msra.mxu0 0.0
    %6542 = vmatprep.subr.mxu0 0.0
    %6543 = vmatpush1.msra.mxu0 0.0
    %6544 = vmatprep.subr.mxu0 0.0
    %6545 = vmatpush1.msra.mxu0 0.0
    %6546 = vmatprep.subr.mxu0 0.0
    %6547 = vmatpush1.msra.mxu0 0.0
    %6548 = vmatprep.subr.mxu0 0.0
    %6549 = vmatpush1.msra.mxu0 0.0
    %6550 = vmatprep.subr.mxu0 0.0
    %6551 = vmatpush1.msra.mxu0 0.0
    %6552 = vmatprep.subr.mxu0 0.0
    %6553 = vmatpush1.msra.mxu0 0.0
    %6554 = vmatprep.subr.mxu0 0.0
    %6555 = vmatpush1.msra.mxu0 0.0
    %6556 = vmatprep.subr.mxu0 0.0
    %6557 = vmatpush1.msra.mxu0 0.0
    %6558 = vmatprep.subr.mxu0 0.0
    %6559 = vmatpush1.msra.mxu0 0.0
    %6560 = vmatprep.subr.mxu0 0.0
    %6561 = vmatpush1.msra.mxu0 0.0
    %6562 = vmatprep.subr.mxu0 0.0
    %6563 = vmatpush1.msra.mxu0 0.0
    %6564 = vmatprep.subr.mxu0 0.0
    %6565 = vmatpush1.msra.mxu0 0.0
    %6566 = vmatprep.subr.mxu0 0.0
    %6567 = vmatpush1.msra.mxu0 0.0
    %6568 = vmatprep.mubr.f32.mxu0 0.0
    %6569 = vmatmul.mubr.f32.gmra.mrb[0].mxu0 %v6480
    %v6570 = vpop.f32.mrb[0].mxu0
    %v6571 = vadd.f32 %v6502, %v6570
    %v6572 = vpop.f32.mrb[0].mxu0
    %6573 = vdwg.mxu0
    %v6574 = vmax.f32 %v6571, 0.0
    %v6575 = vmin.f32 %v6574, 0.9921875
    %s6576 = scalar_lea.vmem [#allocation12], 128
    %v6577 = vld [vmem:[%s6576] sm:$0xff]
    %v6578 = vld [vmem:[%s6576 + $0x8] sm:$0xff]
    %v6579 = vld [vmem:[%s6576 + $0x10] sm:$0xff]
    %v6580 = vld [vmem:[%s6576 + $0x18] sm:$0xff]
    %v6581 = vld [vmem:[%s6576 + $0x20] sm:$0xff]
    %v6582 = vld [vmem:[%s6576 + $0x28] sm:$0xff]
    %v6583 = vld [vmem:[%s6576 + $0x30] sm:$0xff]
    %v6584 = vld [vmem:[%s6576 + $0x38] sm:$0xff]
    %v6585 = vld [vmem:[%s6576 + $0x40] sm:$0xff]
    %v6586 = vld [vmem:[%s6576 + $0x48] sm:$0xff]
    %v6587 = vld [vmem:[%s6576 + $0x50] sm:$0xff]
    %v6588 = vld [vmem:[%s6576 + $0x58] sm:$0xff]
    %v6589 = vld [vmem:[%s6576 + $0x60] sm:$0xff]
    %v6590 = vld [vmem:[%s6576 + $0x68] sm:$0xff]
    %v6591 = vld [vmem:[%s6576 + $0x70] sm:$0xff]
    %v6592 = vld [vmem:[%s6576 + $0x78] sm:$0xff]
    %s6593 = scalar_lea.vmem %s9, 1
    %v6594 = vld [vmem:[%s6593] sm:$0x1]
    %v6596 = vlaneseq
    %v6597 = vshrl.u32 %v6596, 7
    %v6598 = vsub.s32 0, %v6597
    %v6599 = vrot.slane %v6594, %v6598
    %6601 = vmatprep.subr.mxu0 0.0
    %6602 = vmatpush1.msra.mxu0 %v6577
    %6603 = vmatprep.subr.mxu0 0.0
    %6604 = vmatpush1.msra.mxu0 %v6578
    %6605 = vmatprep.subr.mxu0 0.0
    %6606 = vmatpush1.msra.mxu0 %v6579
    %6607 = vmatprep.subr.mxu0 0.0
    %6608 = vmatpush1.msra.mxu0 %v6580
    %6609 = vmatprep.subr.mxu0 0.0
    %6610 = vmatpush1.msra.mxu0 %v6581
    %6611 = vmatprep.subr.mxu0 0.0
    %6612 = vmatpush1.msra.mxu0 %v6582
    %6613 = vmatprep.subr.mxu0 0.0
    %6614 = vmatpush1.msra.mxu0 %v6583
    %6615 = vmatprep.subr.mxu0 0.0
    %6616 = vmatpush1.msra.mxu0 %v6584
    %6617 = vmatprep.subr.mxu0 0.0
    %6618 = vmatpush1.msra.mxu0 %v6585
    %6619 = vmatprep.subr.mxu0 0.0
    %6620 = vmatpush1.msra.mxu0 %v6586
    %6621 = vmatprep.subr.mxu0 0.0
    %6622 = vmatpush1.msra.mxu0 %v6587
    %6623 = vmatprep.subr.mxu0 0.0
    %6624 = vmatpush1.msra.mxu0 %v6588
    %6625 = vmatprep.subr.mxu0 0.0
    %6626 = vmatpush1.msra.mxu0 %v6589
    %6627 = vmatprep.subr.mxu0 0.0
    %6628 = vmatpush1.msra.mxu0 %v6590
    %6629 = vmatprep.subr.mxu0 0.0
    %6630 = vmatpush1.msra.mxu0 %v6591
    %6631 = vmatprep.subr.mxu0 0.0
    %6632 = vmatpush1.msra.mxu0 %v6592
    %6633 = vmatprep.subr.mxu0 0.0
    %6634 = vmatpush1.msra.mxu0 0.0
    %6635 = vmatprep.subr.mxu0 0.0
    %6636 = vmatpush1.msra.mxu0 0.0
    %6637 = vmatprep.subr.mxu0 0.0
    %6638 = vmatpush1.msra.mxu0 0.0
    %6639 = vmatprep.subr.mxu0 0.0
    %6640 = vmatpush1.msra.mxu0 0.0
    %6641 = vmatprep.subr.mxu0 0.0
    %6642 = vmatpush1.msra.mxu0 0.0
    %6643 = vmatprep.subr.mxu0 0.0
    %6644 = vmatpush1.msra.mxu0 0.0
    %6645 = vmatprep.subr.mxu0 0.0
    %6646 = vmatpush1.msra.mxu0 0.0
    %6647 = vmatprep.subr.mxu0 0.0
    %6648 = vmatpush1.msra.mxu0 0.0
    %6649 = vmatprep.subr.mxu0 0.0
    %6650 = vmatpush1.msra.mxu0 0.0
    %6651 = vmatprep.subr.mxu0 0.0
    %6652 = vmatpush1.msra.mxu0 0.0
    %6653 = vmatprep.subr.mxu0 0.0
    %6654 = vmatpush1.msra.mxu0 0.0
    %6655 = vmatprep.subr.mxu0 0.0
    %6656 = vmatpush1.msra.mxu0 0.0
    %6657 = vmatprep.subr.mxu0 0.0
    %6658 = vmatpush1.msra.mxu0 0.0
    %6659 = vmatprep.subr.mxu0 0.0
    %6660 = vmatpush1.msra.mxu0 0.0
    %6661 = vmatprep.subr.mxu0 0.0
    %6662 = vmatpush1.msra.mxu0 0.0
    %6663 = vmatprep.subr.mxu0 0.0
    %6664 = vmatpush1.msra.mxu0 0.0
    %6665 = vmatprep.mubr.f32.mxu0 0.0
    %6666 = vmatmul.mubr.f32.gmra.mrb[0].mxu0 %v6575
    %v6667 = vpop.f32.mrb[0].mxu0
    %v6668 = vadd.f32 %v6599, %v6667
    %v6669 = vpop.f32.mrb[0].mxu0
    %6670 = vdwg.mxu0
    %v6671 = vmax.f32 %v6668, 0.0
    %v6672 = vmin.f32 %v6671, 0.9921875
    %s6673 = scalar_lea.vmem [#allocation12], 256
    %v6674 = vld [vmem:[%s6673] sm:$0xff]
    %v6675 = vld [vmem:[%s6673 + $0x8] sm:$0xff]
    %v6676 = vld [vmem:[%s6673 + $0x10] sm:$0xff]
    %v6677 = vld [vmem:[%s6673 + $0x18] sm:$0xff]
    %v6678 = vld [vmem:[%s6673 + $0x20] sm:$0xff]
    %v6679 = vld [vmem:[%s6673 + $0x28] sm:$0xff]
    %v6680 = vld [vmem:[%s6673 + $0x30] sm:$0xff]
    %v6681 = vld [vmem:[%s6673 + $0x38] sm:$0xff]
    %v6682 = vld [vmem:[%s6673 + $0x40] sm:$0xff]
    %v6683 = vld [vmem:[%s6673 + $0x48] sm:$0xff]
    %v6684 = vld [vmem:[%s6673 + $0x50] sm:$0xff]
    %v6685 = vld [vmem:[%s6673 + $0x58] sm:$0xff]
    %v6686 = vld [vmem:[%s6673 + $0x60] sm:$0xff]
    %v6687 = vld [vmem:[%s6673 + $0x68] sm:$0xff]
    %v6688 = vld [vmem:[%s6673 + $0x70] sm:$0xff]
    %v6689 = vld [vmem:[%s6673 + $0x78] sm:$0xff]
    %s6690 = scalar_lea.vmem %s9, 2
    %v6691 = vld [vmem:[%s6690] sm:$0x1]
    %v6693 = vlaneseq
    %v6694 = vshrl.u32 %v6693, 7
    %v6695 = vsub.s32 0, %v6694
    %v6696 = vrot.slane %v6691, %v6695
    %6698 = vmatprep.subr.mxu0 0.0
    %6699 = vmatpush1.msra.mxu0 %v6674
    %6700 = vmatprep.subr.mxu0 0.0
    %6701 = vmatpush1.msra.mxu0 %v6675
    %6702 = vmatprep.subr.mxu0 0.0
    %6703 = vmatpush1.msra.mxu0 %v6676
    %6704 = vmatprep.subr.mxu0 0.0
    %6705 = vmatpush1.msra.mxu0 %v6677
    %6706 = vmatprep.subr.mxu0 0.0
    %6707 = vmatpush1.msra.mxu0 %v6678
    %6708 = vmatprep.subr.mxu0 0.0
    %6709 = vmatpush1.msra.mxu0 %v6679
    %6710 = vmatprep.subr.mxu0 0.0
    %6711 = vmatpush1.msra.mxu0 %v6680
    %6712 = vmatprep.subr.mxu0 0.0
    %6713 = vmatpush1.msra.mxu0 %v6681
    %6714 = vmatprep.subr.mxu0 0.0
    %6715 = vmatpush1.msra.mxu0 %v6682
    %6716 = vmatprep.subr.mxu0 0.0
    %6717 = vmatpush1.msra.mxu0 %v6683
    %6718 = vmatprep.subr.mxu0 0.0
    %6719 = vmatpush1.msra.mxu0 %v6684
    %6720 = vmatprep.subr.mxu0 0.0
    %6721 = vmatpush1.msra.mxu0 %v6685
    %6722 = vmatprep.subr.mxu0 0.0
    %6723 = vmatpush1.msra.mxu0 %v6686
    %6724 = vmatprep.subr.mxu0 0.0
    %6725 = vmatpush1.msra.mxu0 %v6687
    %6726 = vmatprep.subr.mxu0 0.0
    %6727 = vmatpush1.msra.mxu0 %v6688
    %6728 = vmatprep.subr.mxu0 0.0
    %6729 = vmatpush1.msra.mxu0 %v6689
    %6730 = vmatprep.subr.mxu0 0.0
    %6731 = vmatpush1.msra.mxu0 0.0
    %6732 = vmatprep.subr.mxu0 0.0
    %6733 = vmatpush1.msra.mxu0 0.0
    %6734 = vmatprep.subr.mxu0 0.0
    %6735 = vmatpush1.msra.mxu0 0.0
    %6736 = vmatprep.subr.mxu0 0.0
    %6737 = vmatpush1.msra.mxu0 0.0
    %6738 = vmatprep.subr.mxu0 0.0
    %6739 = vmatpush1.msra.mxu0 0.0
    %6740 = vmatprep.subr.mxu0 0.0
    %6741 = vmatpush1.msra.mxu0 0.0
    %6742 = vmatprep.subr.mxu0 0.0
    %6743 = vmatpush1.msra.mxu0 0.0
    %6744 = vmatprep.subr.mxu0 0.0
    %6745 = vmatpush1.msra.mxu0 0.0
    %6746 = vmatprep.subr.mxu0 0.0
    %6747 = vmatpush1.msra.mxu0 0.0
    %6748 = vmatprep.subr.mxu0 0.0
    %6749 = vmatpush1.msra.mxu0 0.0
    %6750 = vmatprep.subr.mxu0 0.0
    %6751 = vmatpush1.msra.mxu0 0.0
    %6752 = vmatprep.subr.mxu0 0.0
    %6753 = vmatpush1.msra.mxu0 0.0
    %6754 = vmatprep.subr.mxu0 0.0
    %6755 = vmatpush1.msra.mxu0 0.0
    %6756 = vmatprep.subr.mxu0 0.0
    %6757 = vmatpush1.msra.mxu0 0.0
    %6758 = vmatprep.subr.mxu0 0.0
    %6759 = vmatpush1.msra.mxu0 0.0
    %6760 = vmatprep.subr.mxu0 0.0
    %6761 = vmatpush1.msra.mxu0 0.0
    %6762 = vmatprep.mubr.f32.mxu0 0.0
    %6763 = vmatmul.mubr.f32.gmra.mrb[0].mxu0 %v6672
    %v6764 = vpop.f32.mrb[0].mxu0
    %v6765 = vadd.f32 %v6696, %v6764
    %v6766 = vpop.f32.mrb[0].mxu0
    %6767 = vdwg.mxu0
    %v6768 = vmax.f32 %v6765, 0.0
    %v6769 = vmin.f32 %v6768, 0.9921875
    %s6770 = scalar_lea.vmem [#allocation12], 384
    %v6771 = vld [vmem:[%s6770] sm:$0xff]
    %v6772 = vld [vmem:[%s6770 + $0x8] sm:$0xff]
    %v6773 = vld [vmem:[%s6770 + $0x10] sm:$0xff]
    %v6774 = vld [vmem:[%s6770 + $0x18] sm:$0xff]
    %v6775 = vld [vmem:[%s6770 + $0x20] sm:$0xff]
    %v6776 = vld [vmem:[%s6770 + $0x28] sm:$0xff]
    %v6777 = vld [vmem:[%s6770 + $0x30] sm:$0xff]
    %v6778 = vld [vmem:[%s6770 + $0x38] sm:$0xff]
    %v6779 = vld [vmem:[%s6770 + $0x40] sm:$0xff]
    %v6780 = vld [vmem:[%s6770 + $0x48] sm:$0xff]
    %v6781 = vld [vmem:[%s6770 + $0x50] sm:$0xff]
    %v6782 = vld [vmem:[%s6770 + $0x58] sm:$0xff]
    %v6783 = vld [vmem:[%s6770 + $0x60] sm:$0xff]
    %v6784 = vld [vmem:[%s6770 + $0x68] sm:$0xff]
    %v6785 = vld [vmem:[%s6770 + $0x70] sm:$0xff]
    %v6786 = vld [vmem:[%s6770 + $0x78] sm:$0xff]
    %s6787 = scalar_lea.vmem %s9, 3
    %v6788 = vld [vmem:[%s6787] sm:$0x1]
    %v6790 = vlaneseq
    %v6791 = vshrl.u32 %v6790, 7
    %v6792 = vsub.s32 0, %v6791
    %v6793 = vrot.slane %v6788, %v6792
    %6795 = vmatprep.subr.mxu0 0.0
    %6796 = vmatpush1.msra.mxu0 %v6771
    %6797 = vmatprep.subr.mxu0 0.0
    %6798 = vmatpush1.msra.mxu0 %v6772
    %6799 = vmatprep.subr.mxu0 0.0
    %6800 = vmatpush1.msra.mxu0 %v6773
    %6801 = vmatprep.subr.mxu0 0.0
    %6802 = vmatpush1.msra.mxu0 %v6774
    %6803 = vmatprep.subr.mxu0 0.0
    %6804 = vmatpush1.msra.mxu0 %v6775
    %6805 = vmatprep.subr.mxu0 0.0
    %6806 = vmatpush1.msra.mxu0 %v6776
    %6807 = vmatprep.subr.mxu0 0.0
    %6808 = vmatpush1.msra.mxu0 %v6777
    %6809 = vmatprep.subr.mxu0 0.0
    %6810 = vmatpush1.msra.mxu0 %v6778
    %6811 = vmatprep.subr.mxu0 0.0
    %6812 = vmatpush1.msra.mxu0 %v6779
    %6813 = vmatprep.subr.mxu0 0.0
    %6814 = vmatpush1.msra.mxu0 %v6780
    %6815 = vmatprep.subr.mxu0 0.0
    %6816 = vmatpush1.msra.mxu0 %v6781
    %6817 = vmatprep.subr.mxu0 0.0
    %6818 = vmatpush1.msra.mxu0 %v6782
    %6819 = vmatprep.subr.mxu0 0.0
    %6820 = vmatpush1.msra.mxu0 %v6783
    %6821 = vmatprep.subr.mxu0 0.0
    %6822 = vmatpush1.msra.mxu0 %v6784
    %6823 = vmatprep.subr.mxu0 0.0
    %6824 = vmatpush1.msra.mxu0 %v6785
    %6825 = vmatprep.subr.mxu0 0.0
    %6826 = vmatpush1.msra.mxu0 %v6786
    %6827 = vmatprep.subr.mxu0 0.0
    %6828 = vmatpush1.msra.mxu0 0.0
    %6829 = vmatprep.subr.mxu0 0.0
    %6830 = vmatpush1.msra.mxu0 0.0
    %6831 = vmatprep.subr.mxu0 0.0
    %6832 = vmatpush1.msra.mxu0 0.0
    %6833 = vmatprep.subr.mxu0 0.0
    %6834 = vmatpush1.msra.mxu0 0.0
    %6835 = vmatprep.subr.mxu0 0.0
    %6836 = vmatpush1.msra.mxu0 0.0
    %6837 = vmatprep.subr.mxu0 0.0
    %6838 = vmatpush1.msra.mxu0 0.0
    %6839 = vmatprep.subr.mxu0 0.0
    %6840 = vmatpush1.msra.mxu0 0.0
    %6841 = vmatprep.subr.mxu0 0.0
    %6842 = vmatpush1.msra.mxu0 0.0
    %6843 = vmatprep.subr.mxu0 0.0
    %6844 = vmatpush1.msra.mxu0 0.0
    %6845 = vmatprep.subr.mxu0 0.0
    %6846 = vmatpush1.msra.mxu0 0.0
    %6847 = vmatprep.subr.mxu0 0.0
    %6848 = vmatpush1.msra.mxu0 0.0
    %6849 = vmatprep.subr.mxu0 0.0
    %6850 = vmatpush1.msra.mxu0 0.0
    %6851 = vmatprep.subr.mxu0 0.0
    %6852 = vmatpush1.msra.mxu0 0.0
    %6853 = vmatprep.subr.mxu0 0.0
    %6854 = vmatpush1.msra.mxu0 0.0
    %6855 = vmatprep.subr.mxu0 0.0
    %6856 = vmatpush1.msra.mxu0 0.0
    %6857 = vmatprep.subr.mxu0 0.0
    %6858 = vmatpush1.msra.mxu0 0.0
    %6859 = vmatprep.mubr.f32.mxu0 0.0
    %6860 = vmatmul.mubr.f32.gmra.mrb[0].mxu0 %v6769
    %v6861 = vpop.f32.mrb[0].mxu0
    %v6862 = vadd.f32 %v6793, %v6861
    %v6863 = vpop.f32.mrb[0].mxu0
    %6864 = vdwg.mxu0
    %6865 = vmatprep.subr.mxu0 0.0
    %6866 = vmatpush1.msra.mxu0 %v6463
    %6867 = vmatprep.subr.mxu0 0.0
    %6868 = vmatpush1.msra.mxu0 %v6464
    %6869 = vmatprep.subr.mxu0 0.0
    %6870 = vmatpush1.msra.mxu0 %v6465
    %6871 = vmatprep.subr.mxu0 0.0
    %6872 = vmatpush1.msra.mxu0 %v6466
    %6873 = vmatprep.subr.mxu0 0.0
    %6874 = vmatpush1.msra.mxu0 %v6467
    %6875 = vmatprep.subr.mxu0 0.0
    %6876 = vmatpush1.msra.mxu0 %v6468
    %6877 = vmatprep.subr.mxu0 0.0
    %6878 = vmatpush1.msra.mxu0 %v6469
    %6879 = vmatprep.subr.mxu0 0.0
    %6880 = vmatpush1.msra.mxu0 %v6470
    %6881 = vmatprep.subr.mxu0 0.0
    %6882 = vmatpush1.msra.mxu0 %v6471
    %6883 = vmatprep.subr.mxu0 0.0
    %6884 = vmatpush1.msra.mxu0 %v6472
    %6885 = vmatprep.subr.mxu0 0.0
    %6886 = vmatpush1.msra.mxu0 %v6473
    %6887 = vmatprep.subr.mxu0 0.0
    %6888 = vmatpush1.msra.mxu0 %v6474
    %6889 = vmatprep.subr.mxu0 0.0
    %6890 = vmatpush1.msra.mxu0 %v6475
    %6891 = vmatprep.subr.mxu0 0.0
    %6892 = vmatpush1.msra.mxu0 %v6476
    %6893 = vmatprep.subr.mxu0 0.0
    %6894 = vmatpush1.msra.mxu0 %v6477
    %6895 = vmatprep.subr.mxu0 0.0
    %6896 = vmatpush1.msra.mxu0 %v6478
    %6897 = vmatprep.subr.mxu0 0.0
    %6898 = vmatpush1.msra.mxu0 0.0
    %6899 = vmatprep.subr.mxu0 0.0
    %6900 = vmatpush1.msra.mxu0 0.0
    %6901 = vmatprep.subr.mxu0 0.0
    %6902 = vmatpush1.msra.mxu0 0.0
    %6903 = vmatprep.subr.mxu0 0.0
    %6904 = vmatpush1.msra.mxu0 0.0
    %6905 = vmatprep.subr.mxu0 0.0
    %6906 = vmatpush1.msra.mxu0 0.0
    %6907 = vmatprep.subr.mxu0 0.0
    %6908 = vmatpush1.msra.mxu0 0.0
    %6909 = vmatprep.subr.mxu0 0.0
    %6910 = vmatpush1.msra.mxu0 0.0
    %6911 = vmatprep.subr.mxu0 0.0
    %6912 = vmatpush1.msra.mxu0 0.0
    %6913 = vmatprep.subr.mxu0 0.0
    %6914 = vmatpush1.msra.mxu0 0.0
    %6915 = vmatprep.subr.mxu0 0.0
    %6916 = vmatpush1.msra.mxu0 0.0
    %6917 = vmatprep.subr.mxu0 0.0
    %6918 = vmatpush1.msra.mxu0 0.0
    %6919 = vmatprep.subr.mxu0 0.0
    %6920 = vmatpush1.msra.mxu0 0.0
    %6921 = vmatprep.subr.mxu0 0.0
    %6922 = vmatpush1.msra.mxu0 0.0
    %6923 = vmatprep.subr.mxu0 0.0
    %6924 = vmatpush1.msra.mxu0 0.0
    %6925 = vmatprep.subr.mxu0 0.0
    %6926 = vmatpush1.msra.mxu0 0.0
    %6927 = vmatprep.subr.mxu0 0.0
    %6928 = vmatpush1.msra.mxu0 0.0
    %6929 = vmatprep.mubr.f32.mxu0 0.0
    %6930 = vmatmul.mubr.f32.gmra.mrb[0].mxu0 %v6459
    %v6931 = vpop.f32.mrb[0].mxu0
    %v6932 = vadd.f32 %v6862, %v6931
    %v6933 = vpop.f32.mrb[0].mxu0
    %6934 = vdwg.mxu0
    %6935 = vst [vmem:[#allocation13] sm:$0xff] %v6932
    // Predicated region
    $region62: #{tpu_custom_call.1} parent=1 // pred_check
      _
    $region63: #{tpu_custom_call.1} parent=1 // pred_check_branch
      %6937 = sbr.rel (0) target = $region65
    $region64: #{tpu_custom_call.1} parent=1 // pred_region
      %s6939 = ssub.s32 128, 128
      %6940 = vsyncadd [#allocation6], %s6939
      %s6942 = sshll.u32 [#allocation13], 4
      %s6943 = int_to_ptr.vmem [resolvable:$true] %s6942
      %6945 = dma.vmem_to_hbm [thread:$0]  %s6943, 128, %s10, [#allocation6]
    $region65: #{tpu_custom_call.1} parent=1 // pred_fallthru
      _
    // Predicated region
    $region66: #{tpu_custom_call.1} parent=1 // pred_check
      _
    $region67: #{tpu_custom_call.1} parent=1 // pred_check_branch
      %6947 = sbr.rel (0) target = $region69
    $region68: #{tpu_custom_call.1} parent=1 // pred_region
      %6948 = dma.done [#allocation6], 128
    $region69: #{tpu_custom_call.1} parent=1 // pred_fallthru
      _
    %6949 = vsyncpa [#allocation5], 1
    %6950 = vsyncpa [#allocation8], 1
    %6951 = vsyncpa [#allocation11], 1
    %6952 = vsyncpa [#allocation6], 1

</llo_original>
